<compile_context>
chip_gen: v6e
topology: v6e:2x2x1
jax: 0.10.0
libtpu: 0.0.40
codegen_flags: <defaults>
</compile_context>

<pallas_src>
import jax
import jax.numpy as jnp
from jax.experimental import pallas as pl
from jax.experimental.pallas import tpu as pltpu

F32 = jnp.float32
BF16 = jnp.bfloat16
_SQRT_HALF = 0.7071067811865476


# ----------------------------------------------------------------------------
# In-kernel math helpers
# ----------------------------------------------------------------------------
def _erf(x):
    # Eigen / XLA float32 erf approximation (rational polynomial, |err| ~1e-7).
    x = jnp.clip(x, -4.0, 4.0)
    x2 = x * x
    alpha = (-2.72614225801306e-10, 2.77068142495902e-08, -2.10102402082508e-06,
             -5.69250639462346e-05, -7.34990630326855e-04, -2.95459980854025e-03,
             -1.60960333262415e-02)
    beta = (-1.45660718464996e-05, -2.13374055278905e-04, -1.68282697438203e-03,
            -7.37332916720468e-03, -1.42647390514189e-02)
    p = alpha[0]
    for c in alpha[1:]:
        p = p * x2 + c
    p = p * x
    q = beta[0]
    for c in beta[1:]:
        q = q * x2 + c
    return p / q


def _gelu(x):
    return 0.5 * x * (1.0 + _erf(x * _SQRT_HALF))


def _layernorm(x, g, b, eps=1e-5):
    mu = jnp.mean(x, axis=-1, keepdims=True)
    var = jnp.mean(jnp.square(x - mu), axis=-1, keepdims=True)
    return (x - mu) * jax.lax.rsqrt(var + eps) * g + b


# ----------------------------------------------------------------------------
# Fused Linear:  out[g] = [LN+GELU](A) @ W[g] + b[g]  ->  [LN] -> [GELU]
# ----------------------------------------------------------------------------
def _make_linear_kernel(has_pro, has_epi, out_gelu):
    def kernel(*refs):
        i = 0
        a_ref = refs[i]; i += 1
        if has_pro:
            pg_ref, pb_ref = refs[i], refs[i + 1]; i += 2
        w_ref, b_ref = refs[i], refs[i + 1]; i += 2
        if has_epi:
            eg_ref, eb_ref = refs[i], refs[i + 1]; i += 2
        o_ref = refs[i]

        a = a_ref[...]                                   # (tm, K) f32
        if has_pro:
            a = _gelu(_layernorm(a, pg_ref[...], pb_ref[...]))
        out = jnp.dot(a.astype(BF16), w_ref[0],
                      preferred_element_type=F32) + b_ref[0]
        if has_epi:
            out = _layernorm(out, eg_ref[...], eb_ref[...])
        if out_gelu:
            out = _gelu(out)
        o_ref[0] = out
    return kernel


def fused_linear(a, w, bias, *, ln=None, out_ln=None, out_gelu=False, tm=256):
    """a: (M, K) f32.  w: (G, K, N) bf16.  bias: (G, 1, N) f32.  Returns (G, M, N)."""
    M, K = a.shape
    G, _, N = w.shape
    tm = M if M <= tm else tm                           # tm=256 is 8-aligned
    nM = pl.cdiv(M, tm)

    args = [a.astype(F32)]
    in_specs = [pl.BlockSpec((tm, K), lambda m, g: (m, 0))]
    if ln is not None:
        pg, pb = ln
        args += [pg.reshape(1, K).astype(F32), pb.reshape(1, K).astype(F32)]
        in_specs += [pl.BlockSpec((1, K), lambda m, g: (0, 0))] * 2
    args += [w, bias]
    in_specs += [pl.BlockSpec((1, K, N), lambda m, g: (g, 0, 0)),
                 pl.BlockSpec((1, 1, N), lambda m, g: (g, 0, 0))]
    if out_ln is not None:
        eg, eb = out_ln
        args += [eg.reshape(1, N).astype(F32), eb.reshape(1, N).astype(F32)]
        in_specs += [pl.BlockSpec((1, N), lambda m, g: (0, 0))] * 2

    return pl.pallas_call(
        _make_linear_kernel(ln is not None, out_ln is not None, out_gelu),
        out_shape=jax.ShapeDtypeStruct((G, M, N), F32),
        grid=(nM, G),
        in_specs=in_specs,
        out_specs=pl.BlockSpec((1, tm, N), lambda m, g: (g, m, 0)),
        compiler_params=pltpu.CompilerParams(
            dimension_semantics=("parallel", "arbitrary")),
    )(*args)


# ----------------------------------------------------------------------------
# Residual-CNN conv:  LN(n_feats) -> GELU -> Conv3x3(s=1,p=1) [+ bias] [+ residual]
# NHWC layout (B, Fd, T, C); one grid step per batch element.
# ----------------------------------------------------------------------------
def _make_conv_kernel(Fd, T, has_res):
    def kernel(*refs):
        if has_res:
            x_ref, g_ref, bln_ref, w_ref, b_ref, r_ref, o_ref, pad = refs
        else:
            x_ref, g_ref, bln_ref, w_ref, b_ref, o_ref, pad = refs

        x = x_ref[0]                                     # (Fd, T, Cin) f32
        Cin = x.shape[-1]
        Cout = o_ref.shape[-1]

        # CNNLayerNorm over the n_feats (Fd) axis, then GELU.
        mu = jnp.mean(x, axis=0, keepdims=True)
        var = jnp.mean(jnp.square(x - mu), axis=0, keepdims=True)
        y = (x - mu) * jax.lax.rsqrt(var + 1e-5) * g_ref[...] + bln_ref[...]
        y = _gelu(y)

        # Zero-padded copy in VMEM (padding=1), then 9 shifted MXU matmuls.
        pad[...] = jnp.zeros_like(pad)
        pad[1:Fd + 1, 1:T + 1, :] = y

        acc = jnp.zeros((Fd * T, Cout), F32)
        for di in range(3):
            for dj in range(3):
                patch = pad[di:di + Fd, dj:dj + T, :]
                patch = patch.reshape(Fd * T, Cin).astype(BF16)
                acc = acc + jnp.dot(patch, w_ref[di * 3 + dj],
                                    preferred_element_type=F32)
        out = (acc + b_ref[...]).reshape(Fd, T, Cout)
        if has_res:
            out = out + r_ref[0]
        o_ref[0] = out
    return kernel


def conv3x3_ln(x, ln_g, ln_b, w9, bias, residual=None):
    """x: (B, Fd, T, C) f32.  w9: (9, Cin, Cout) bf16.  bias: (1, Cout) f32."""
    B_, Fd, T_, Cin = x.shape
    Cout = w9.shape[-1]
    has_res = residual is not None

    in_specs = [pl.BlockSpec((1, Fd, T_, Cin), lambda b: (b, 0, 0, 0)),
                pl.BlockSpec((Fd, 1, 1), lambda b: (0, 0, 0)),
                pl.BlockSpec((Fd, 1, 1), lambda b: (0, 0, 0)),
                pl.BlockSpec((9, Cin, Cout), lambda b: (0, 0, 0)),
                pl.BlockSpec((1, Cout), lambda b: (0, 0))]
    args = [x, ln_g, ln_b, w9, bias]
    if has_res:
        in_specs.append(pl.BlockSpec((1, Fd, T_, Cout), lambda b: (b, 0, 0, 0)))
        args.append(residual)

    # TODO(synk): for long sequences the time axis should also be tiled (with
    # halo handling); at these shapes a per-batch block fits VMEM easily.
    return pl.pallas_call(
        _make_conv_kernel(Fd, T_, has_res),
        out_shape=jax.ShapeDtypeStruct((B_, Fd, T_, Cout), F32),
        grid=(B_,),
        in_specs=in_specs,
        out_specs=pl.BlockSpec((1, Fd, T_, Cout), lambda b: (b, 0, 0, 0)),
        scratch_shapes=[pltpu.VMEM((Fd + 2, T_ + 2, Cin), F32)],
        compiler_params=pltpu.CompilerParams(dimension_semantics=("parallel",)),
    )(*args)


# ----------------------------------------------------------------------------
# Bidirectional GRU recurrence: fwd+bwd in one call, time-chunked grid,
# backward direction handled purely via reversed index_maps.
# ----------------------------------------------------------------------------
def _make_gru_kernel(TC, H):
    def kernel(gxf_ref, gxb_ref, whh_ref, bhh_ref, of_ref, ob_ref, h_sc):
        @pl.when(pl.program_id(0) == 0)
        def _():
            h_sc[...] = jnp.zeros_like(h_sc)

        whh_f = whh_ref[0]                               # (H, 3H) bf16
        whh_b = whh_ref[1]
        bhh_f = bhh_ref[0]                               # (1, 3H) f32
        bhh_b = bhh_ref[1]
        hf = h_sc[0]                                     # (B, H) f32
        hb = h_sc[1]

        def gates(gx, gh, hprev):
            r = jax.nn.sigmoid(gx[:, :H] + gh[:, :H])
            z = jax.nn.sigmoid(gx[:, H:2 * H] + gh[:, H:2 * H])
            n = jnp.tanh(gx[:, 2 * H:] + r * gh[:, 2 * H:])
            return (1.0 - z) * n + z * hprev

        # Fully unrolled time chunk: amortizes per-grid-step overhead and lets
        # the scheduler overlap the gx DMA with the recurrent matmul chain.
        for k in range(TC):
            ghf = jnp.dot(hf.astype(BF16), whh_f, preferred_element_type=F32) + bhh_f
            ghb = jnp.dot(hb.astype(BF16), whh_b, preferred_element_type=F32) + bhh_b
            hf = gates(gxf_ref[0, k], ghf, hf)
            hb = gates(gxb_ref[0, TC - 1 - k], ghb, hb)
            of_ref[k] = hf
            ob_ref[TC - 1 - k] = hb

        h_sc[0] = hf
        h_sc[1] = hb
    return kernel


def gru_scan(gx, whh, bhh):
    """gx: (2, T, B, 3H) f32 (dir 0 = fwd, dir 1 = bwd gates, both forward-time).
    whh: (2, H, 3H) bf16.  bhh: (2, 1, 3H) f32.  Returns (out_f, out_b): (T, B, H)."""
    _, T_, B_, H3 = gx.shape
    H = H3 // 3
    TC = 1
    for c in (16, 8, 4, 2, 1):
        if T_ % c == 0:
            TC = c
            break
    nT = T_ // TC

    return pl.pallas_call(
        _make_gru_kernel(TC, H),
        out_shape=(jax.ShapeDtypeStruct((T_, B_, H), F32),
                   jax.ShapeDtypeStruct((T_, B_, H), F32)),
        grid=(nT,),
        in_specs=[pl.BlockSpec((1, TC, B_, H3), lambda i: (0, i, 0, 0)),
                  pl.BlockSpec((1, TC, B_, H3), lambda i: (1, nT - 1 - i, 0, 0)),
                  pl.BlockSpec((2, H, H3), lambda i: (0, 0, 0)),
                  pl.BlockSpec((2, 1, H3), lambda i: (0, 0, 0))],
        out_specs=(pl.BlockSpec((TC, B_, H), lambda i: (i, 0, 0)),
                   pl.BlockSpec((TC, B_, H), lambda i: (nT - 1 - i, 0, 0))),
        scratch_shapes=[pltpu.VMEM((2, B_, H), F32)],
        compiler_params=pltpu.CompilerParams(dimension_semantics=("arbitrary",)),
    )(gx, gx, whh, bhh)   # same gates array passed twice with different specs


# ----------------------------------------------------------------------------
# ASR forward
# ----------------------------------------------------------------------------
def asr_forward(x, params):
    # x: (B, n_mels, T) -- the implicit channel dim of the stem conv is 1.
    B_, n_mels, T0 = x.shape
    Fo = (n_mels - 1) // 2 + 1
    To = (T0 - 1) // 2 + 1

    # Stem Conv2d(1, 32, 3, stride=2, padding=1): Cin=1 so the 3x3 patch
    # extraction is a tiny XLA gather; the GEMM (+bias) runs in Pallas.
    xp = jnp.pad(x, ((0, 0), (1, 1), (1, 1)))
    cols = jnp.stack([xp[:, di:di + 2 * (Fo - 1) + 1:2, dj:dj + 2 * (To - 1) + 1:2]
                      for di in range(3) for dj in range(3)], axis=-1)    # (B,Fo,To,9)
    h = fused_linear(cols.reshape(B_ * Fo * To, 9).astype(F32),
                     params['conv0_w'], params['conv0_b'])[0]
    h = h.reshape(B_, Fo, To, 32)                                          # NHWC

    # Residual CNN blocks: two fused LN+GELU+Conv kernels per block.
    for blk in params['rescnn']:
        res = h
        y = conv3x3_ln(h, blk['ln1_g'], blk['ln1_b'], blk['conv1_w'], blk['conv1_b'])
        h = conv3x3_ln(y, blk['ln2_g'], blk['ln2_b'], blk['conv2_w'], blk['conv2_b'],
                       residual=res)

    # (B, Fd, T, C) -> time-major (T, B, C*Fd); feature index = c*Fd + f
    # (matches PyTorch's reshape(B, C*F, T).transpose(1, 2)).
    Bc, Fd, Tt, C = h.shape
    h = h.transpose(2, 0, 3, 1).reshape(Tt, Bc, C * Fd)

    # fc1: LN -> GELU -> Linear -> LN -> GELU, one pallas_call.
    D = C * Fd
    h = fused_linear(h.reshape(Tt * Bc, D), params['fc1_w'], params['fc1_b'],
                     ln=(params['fc1_ln1_g'], params['fc1_ln1_b']),
                     out_ln=(params['fc1_ln2_g'], params['fc1_ln2_b']),
                     out_gelu=True)[0]
    h = h.reshape(Tt, Bc, -1)

    # Stacked BiGRU layers (time-major throughout).
    for p in params['gru']:
        Din = h.shape[-1]
        H = p['whh'].shape[1]
        # LN -> GELU -> input-gate GEMM for both directions in one call.
        gx = fused_linear(h.reshape(Tt * Bc, Din), p['wih'], p['bih'],
                          ln=(p['ln_g'], p['ln_b']))                       # (2, T*B, 3H)
        gx = gx.reshape(2, Tt, Bc, 3 * H)
        out_f, out_b = gru_scan(gx, p['whh'], p['bhh'])
        h = jnp.concatenate([out_f, out_b], axis=-1)                       # (T, B, 2H)

    # fc2: Linear -> LN -> GELU, one pallas_call; back to batch-first at the end.
    H2 = h.shape[-1]
    o = fused_linear(h.reshape(Tt * Bc, H2), params['fc2_w'], params['fc2_b'],
                     out_ln=(params['fc2_ln_g'], params['fc2_ln_b']),
                     out_gelu=True)[0]
    o = o.reshape(Tt, Bc, -1).transpose(1, 0, 2)                           # (B, T', 29)
    return o, None


# ----------------------------------------------------------------------------
# Deterministic parameter init (PyTorch-style uniform(-1/sqrt(fan), .)), with
# weights pre-laid-out for the kernels (GEMM weights in bf16, biases f32).
# ----------------------------------------------------------------------------
def init_params(key, n_mels, hidden_size, rnn_layers, rescnn_layers):
    nm = n_mels // 2
    keys = iter(jax.random.split(key, 512))

    def uni(shape, fan_in):
        bound = 1.0 / (fan_in ** 0.5)
        return jax.random.uniform(next(keys), shape, F32, -bound, bound)

    def conv_w9(cout, cin):
        w = uni((cout, cin, 3, 3), cin * 9)                    # PyTorch layout
        return w.transpose(2, 3, 1, 0).reshape(9, cin, cout).astype(BF16)

    params = {}
    w0 = uni((32, 1, 3, 3), 9)
    params['conv0_w'] = w0.reshape(32, 9).T.reshape(1, 9, 32).astype(BF16)
    params['conv0_b'] = uni((32,), 9).reshape(1, 1, 32)

    params['rescnn'] = []
    for _ in range(rescnn_layers):
        params['rescnn'].append({
            'ln1_g': jnp.ones((nm, 1, 1), F32), 'ln1_b': jnp.zeros((nm, 1, 1), F32),
            'conv1_w': conv_w9(32, 32), 'conv1_b': uni((32,), 32 * 9).reshape(1, 32),
            'ln2_g': jnp.ones((nm, 1, 1), F32), 'ln2_b': jnp.zeros((nm, 1, 1), F32),
            'conv2_w': conv_w9(32, 32), 'conv2_b': uni((32,), 32 * 9).reshape(1, 32),
        })

    D = nm * 32
    params['fc1_ln1_g'] = jnp.ones((D,), F32)
    params['fc1_ln1_b'] = jnp.zeros((D,), F32)
    params['fc1_w'] = uni((hidden_size, D), D).T.reshape(1, D, hidden_size).astype(BF16)
    params['fc1_b'] = uni((hidden_size,), D).reshape(1, 1, hidden_size)
    params['fc1_ln2_g'] = jnp.ones((hidden_size,), F32)
    params['fc1_ln2_b'] = jnp.zeros((hidden_size,), F32)

    params['gru'] = []
    for i in range(rnn_layers):
        rnn_dim = hidden_size if i == 0 else hidden_size * 2
        H = hidden_size
        wih = jnp.stack([uni((3 * H, rnn_dim), H).T,
                         uni((3 * H, rnn_dim), H).T], axis=0)              # (2, Din, 3H)
        whh = jnp.stack([uni((3 * H, H), H).T,
                         uni((3 * H, H), H).T], axis=0)                    # (2, H, 3H)
        bih = jnp.stack([uni((3 * H,), H), uni((3 * H,), H)], 0).reshape(2, 1, 3 * H)
        bhh = jnp.stack([uni((3 * H,), H), uni((3 * H,), H)], 0).reshape(2, 1, 3 * H)
        params['gru'].append({
            'ln_g': jnp.ones((rnn_dim,), F32), 'ln_b': jnp.zeros((rnn_dim,), F32),
            'wih': wih.astype(BF16), 'bih': bih,
            'whh': whh.astype(BF16), 'bhh': bhh,
        })

    params['fc2_w'] = uni((29, 2 * hidden_size),
                          2 * hidden_size).T.reshape(1, 2 * hidden_size, 29).astype(BF16)
    params['fc2_b'] = uni((29,), 2 * hidden_size).reshape(1, 1, 29)
    params['fc2_ln_g'] = jnp.ones((29,), F32)
    params['fc2_ln_b'] = jnp.zeros((29,), F32)
    return params


if __name__ == "__main__":
    key = jax.random.PRNGKey(0)
    kp, kx = jax.random.split(key)
    B, n_mels, T = 2, 16, 16
    hidden_size, rnn_layers, rescnn_layers = 32, 2, 2

    params = init_params(kp, n_mels, hidden_size, rnn_layers, rescnn_layers)
    x = jax.random.normal(kx, (B, n_mels, T), F32)

    fwd = jax.jit(asr_forward)
    out, _ = fwd(x, params)
    out = jax.block_until_ready(out)

    assert out.shape == (B, T // 2, 29), out.shape
    assert bool(jnp.all(jnp.isfinite(out)))
    print("KERNEL_OK")
</pallas_src>

<mosaic_0001>
module attributes {stable_mosaic.version = 11 : i64} {
  func.func @kernel(%arg0: i32, %arg1: i32, %arg2: memref<128x9xf32, #tpu.memory_space<vmem>>, %arg3: memref<1x9x32xbf16, #tpu.memory_space<vmem>>, %arg4: memref<1x1x32xf32, #tpu.memory_space<vmem>>, %arg5: memref<1x128x32xf32, #tpu.memory_space<vmem>>) attributes {dimension_semantics = [#tpu.dimension_semantics<parallel>, #tpu.dimension_semantics<arbitrary>], iteration_bounds = array<i64: 1, 1>, scalar_prefetch = 0 : i64, scratch_operands = 0 : i64, tpu.core_type = #tpu.core_type<tc>, window_params = [{transform_indices = @transform_0, window_bounds = array<i64: 128, 9>}, {transform_indices = @transform_1, window_bounds = array<i64: 1, 9, 32>}, {transform_indices = @transform_2, window_bounds = array<i64: 1, 1, 32>}, {transform_indices = @transform_3, window_bounds = array<i64: 1, 128, 32>}]} {
    %c0 = arith.constant 0 : index
    %c0_0 = arith.constant 0 : index
    %0 = vector.load %arg2[%c0, %c0_0] : memref<128x9xf32, #tpu.memory_space<vmem>>, vector<128x9xf32>
    %1 = arith.truncf %0 : vector<128x9xf32> to vector<128x9xbf16>
    %c0_1 = arith.constant 0 : index
    %c0_2 = arith.constant 0 : index
    %c0_3 = arith.constant 0 : index
    %2 = vector.load %arg3[%c0_1, %c0_2, %c0_3] : memref<1x9x32xbf16, #tpu.memory_space<vmem>>, vector<1x9x32xbf16>
    %3 = vector.shape_cast %2 : vector<1x9x32xbf16> to vector<9x32xbf16>
    %cst = arith.constant dense<0.000000e+00> : vector<128x32xf32>
    %4 = tpu.matmul %1, %3, %cst {dimension_numbers = #tpu.dot_dimension_numbers<[1], [0], [0], [1], [0, 0, 1, 1], [], []>} : vector<128x9xbf16>, vector<9x32xbf16>, vector<128x32xf32> -> vector<128x32xf32>
    %c0_4 = arith.constant 0 : index
    %c0_5 = arith.constant 0 : index
    %c0_6 = arith.constant 0 : index
    %5 = vector.load %arg4[%c0_4, %c0_5, %c0_6] : memref<1x1x32xf32, #tpu.memory_space<vmem>>, vector<1x1x32xf32>
    %6 = vector.shape_cast %5 : vector<1x1x32xf32> to vector<1x32xf32>
    %7 = vector.broadcast %6 : vector<1x32xf32> to vector<128x32xf32>
    %8 = arith.addf %4, %7 : vector<128x32xf32>
    %c0_7 = arith.constant 0 : index
    %c0_8 = arith.constant 0 : index
    %c0_9 = arith.constant 0 : index
    %9 = vector.load %arg5[%c0_7, %c0_8, %c0_9] : memref<1x128x32xf32, #tpu.memory_space<vmem>>, vector<1x128x32xf32>
    %10 = vector.shape_cast %9 : vector<1x128x32xf32> to vector<128x32xf32>
    %11 = vector.shape_cast %8 : vector<128x32xf32> to vector<1x128x32xf32>
    tpu.vector_store %arg5[%c0_7, %c0_8, %c0_9], %11 {strides = array<i32>} : memref<1x128x32xf32, #tpu.memory_space<vmem>>, vector<1x128x32xf32>,
    return
  }
  func.func @transform_0(%arg0: i32, %arg1: i32) -> (i32, i32) {
    %c0_i32 = arith.constant 0 : i32
    %c0_i32_0 = arith.constant 0 : i32
    return %arg0, %c0_i32 : i32, i32
  }
  func.func @transform_1(%arg0: i32, %arg1: i32) -> (i32, i32, i32) {
    %c0_i32 = arith.constant 0 : i32
    %c0_i32_0 = arith.constant 0 : i32
    %c0_i32_1 = arith.constant 0 : i32
    return %arg1, %c0_i32, %c0_i32_0 : i32, i32, i32
  }
  func.func @transform_2(%arg0: i32, %arg1: i32) -> (i32, i32, i32) {
    %c0_i32 = arith.constant 0 : i32
    %c0_i32_0 = arith.constant 0 : i32
    %c0_i32_1 = arith.constant 0 : i32
    return %arg1, %c0_i32, %c0_i32_0 : i32, i32, i32
  }
  func.func @transform_3(%arg0: i32, %arg1: i32) -> (i32, i32, i32) {
    %c0_i32 = arith.constant 0 : i32
    %c0_i32_0 = arith.constant 0 : i32
    return %arg1, %arg0, %c0_i32 : i32, i32, i32
  }
}

module attributes {stable_mosaic.version = 11 : i64} {
  func.func @kernel(%arg0: i32, %arg1: memref<1x8x8x32xf32, #tpu.memory_space<vmem>>, %arg2: memref<8x1x1xf32, #tpu.memory_space<vmem>>, %arg3: memref<8x1x1xf32, #tpu.memory_space<vmem>>, %arg4: memref<9x32x32xbf16, #tpu.memory_space<vmem>>, %arg5: memref<1x32xf32, #tpu.memory_space<vmem>>, %arg6: memref<1x8x8x32xf32, #tpu.memory_space<vmem>>, %arg7: memref<10x10x32xf32, #tpu.memory_space<vmem>>) attributes {dimension_semantics = [#tpu.dimension_semantics<parallel>], iteration_bounds = array<i64: 2>, scalar_prefetch = 0 : i64, scratch_operands = 1 : i64, tpu.core_type = #tpu.core_type<tc>, window_params = [{transform_indices = @transform_0, window_bounds = array<i64: 1, 8, 8, 32>}, {pipeline_mode = #tpu.pipeline_mode<synchronous>, transform_indices = @transform_1, window_bounds = array<i64: 8, 1, 1>}, {pipeline_mode = #tpu.pipeline_mode<synchronous>, transform_indices = @transform_2, window_bounds = array<i64: 8, 1, 1>}, {pipeline_mode = #tpu.pipeline_mode<synchronous>, transform_indices = @transform_3, window_bounds = array<i64: 9, 32, 32>}, {pipeline_mode = #tpu.pipeline_mode<synchronous>, transform_indices = @transform_4, window_bounds = array<i64: 1, 32>}, {transform_indices = @transform_5, window_bounds = array<i64: 1, 8, 8, 32>}]} {
    %c0 = arith.constant 0 : index
    %c0_0 = arith.constant 0 : index
    %c0_1 = arith.constant 0 : index
    %c0_2 = arith.constant 0 : index
    %0 = vector.load %arg1[%c0, %c0_0, %c0_1, %c0_2] : memref<1x8x8x32xf32, #tpu.memory_space<vmem>>, vector<1x8x8x32xf32>
    %1 = vector.shape_cast %0 : vector<1x8x8x32xf32> to vector<8x8x32xf32>
    %cst = arith.constant dense<0.000000e+00> : vector<8x32xf32>
    %2 = vector.multi_reduction <add>, %1, %cst [0] : vector<8x8x32xf32> to vector<8x32xf32>
    %3 = vector.shape_cast %2 : vector<8x32xf32> to vector<1x8x32xf32>
    %cst_3 = arith.constant 8.000000e+00 : f32
    %4 = vector.broadcast %cst_3 : f32 to vector<1x8x32xf32>
    %5 = arith.divf %3, %4 : vector<1x8x32xf32>
    %6 = vector.broadcast %5 : vector<1x8x32xf32> to vector<8x8x32xf32>
    %7 = arith.subf %1, %6 : vector<8x8x32xf32>
    %8 = arith.mulf %7, %7 : vector<8x8x32xf32>
    %cst_4 = arith.constant dense<0.000000e+00> : vector<8x32xf32>
    %9 = vector.multi_reduction <add>, %8, %cst_4 [0] : vector<8x8x32xf32> to vector<8x32xf32>
    %10 = vector.shape_cast %9 : vector<8x32xf32> to vector<1x8x32xf32>
    %cst_5 = arith.constant 8.000000e+00 : f32
    %11 = vector.broadcast %cst_5 : f32 to vector<1x8x32xf32>
    %12 = arith.divf %10, %11 : vector<1x8x32xf32>
    %13 = vector.broadcast %5 : vector<1x8x32xf32> to vector<8x8x32xf32>
    %14 = arith.subf %1, %13 : vector<8x8x32xf32>
    %cst_6 = arith.constant 9.99999974E-6 : f32
    %15 = vector.broadcast %cst_6 : f32 to vector<1x8x32xf32>
    %16 = arith.addf %12, %15 : vector<1x8x32xf32>
    %17 = math.rsqrt %16 : vector<1x8x32xf32>
    %18 = vector.broadcast %17 : vector<1x8x32xf32> to vector<8x8x32xf32>
    %19 = arith.mulf %14, %18 : vector<8x8x32xf32>
    %c0_7 = arith.constant 0 : index
    %c0_8 = arith.constant 0 : index
    %c0_9 = arith.constant 0 : index
    %20 = vector.load %arg2[%c0_7, %c0_8, %c0_9] : memref<8x1x1xf32, #tpu.memory_space<vmem>>, vector<8x1x1xf32>
    %21 = vector.broadcast %20 : vector<8x1x1xf32> to vector<8x8x32xf32>
    %22 = arith.mulf %19, %21 : vector<8x8x32xf32>
    %c0_10 = arith.constant 0 : index
    %c0_11 = arith.constant 0 : index
    %c0_12 = arith.constant 0 : index
    %23 = vector.load %arg3[%c0_10, %c0_11, %c0_12] : memref<8x1x1xf32, #tpu.memory_space<vmem>>, vector<8x1x1xf32>
    %24 = vector.broadcast %23 : vector<8x1x1xf32> to vector<8x8x32xf32>
    %25 = arith.addf %22, %24 : vector<8x8x32xf32>
    %cst_13 = arith.constant 5.000000e-01 : f32
    %26 = vector.broadcast %cst_13 : f32 to vector<8x8x32xf32>
    %27 = arith.mulf %26, %25 : vector<8x8x32xf32>
    %cst_14 = arith.constant 0.707106769 : f32
    %28 = vector.broadcast %cst_14 : f32 to vector<8x8x32xf32>
    %29 = arith.mulf %25, %28 : vector<8x8x32xf32>
    %cst_15 = arith.constant -4.000000e+00 : f32
    %cst_16 = arith.constant 4.000000e+00 : f32
    %30 = vector.broadcast %cst_15 : f32 to vector<8x8x32xf32>
    %31 = arith.maximumf %30, %29 : vector<8x8x32xf32>
    %32 = vector.broadcast %cst_16 : f32 to vector<8x8x32xf32>
    %33 = arith.minimumf %32, %31 : vector<8x8x32xf32>
    %34 = arith.mulf %33, %33 : vector<8x8x32xf32>
    %cst_17 = arith.constant -2.72614237E-10 : f32
    %35 = vector.broadcast %cst_17 : f32 to vector<8x8x32xf32>
    %36 = arith.mulf %35, %34 : vector<8x8x32xf32>
    %cst_18 = arith.constant 2.77068146E-8 : f32
    %37 = vector.broadcast %cst_18 : f32 to vector<8x8x32xf32>
    %38 = arith.addf %36, %37 : vector<8x8x32xf32>
    %39 = arith.mulf %38, %34 : vector<8x8x32xf32>
    %cst_19 = arith.constant -2.10102394E-6 : f32
    %40 = vector.broadcast %cst_19 : f32 to vector<8x8x32xf32>
    %41 = arith.addf %39, %40 : vector<8x8x32xf32>
    %42 = arith.mulf %41, %34 : vector<8x8x32xf32>
    %cst_20 = arith.constant -5.69250624E-5 : f32
    %43 = vector.broadcast %cst_20 : f32 to vector<8x8x32xf32>
    %44 = arith.addf %42, %43 : vector<8x8x32xf32>
    %45 = arith.mulf %44, %34 : vector<8x8x32xf32>
    %cst_21 = arith.constant -7.34990637E-4 : f32
    %46 = vector.broadcast %cst_21 : f32 to vector<8x8x32xf32>
    %47 = arith.addf %45, %46 : vector<8x8x32xf32>
    %48 = arith.mulf %47, %34 : vector<8x8x32xf32>
    %cst_22 = arith.constant -2.954600e-03 : f32
    %49 = vector.broadcast %cst_22 : f32 to vector<8x8x32xf32>
    %50 = arith.addf %48, %49 : vector<8x8x32xf32>
    %51 = arith.mulf %50, %34 : vector<8x8x32xf32>
    %cst_23 = arith.constant -0.0160960332 : f32
    %52 = vector.broadcast %cst_23 : f32 to vector<8x8x32xf32>
    %53 = arith.addf %51, %52 : vector<8x8x32xf32>
    %54 = arith.mulf %53, %33 : vector<8x8x32xf32>
    %cst_24 = arith.constant -1.45660715E-5 : f32
    %55 = vector.broadcast %cst_24 : f32 to vector<8x8x32xf32>
    %56 = arith.mulf %55, %34 : vector<8x8x32xf32>
    %cst_25 = arith.constant -2.13374049E-4 : f32
    %57 = vector.broadcast %cst_25 : f32 to vector<8x8x32xf32>
    %58 = arith.addf %56, %57 : vector<8x8x32xf32>
    %59 = arith.mulf %58, %34 : vector<8x8x32xf32>
    %cst_26 = arith.constant -0.00168282702 : f32
    %60 = vector.broadcast %cst_26 : f32 to vector<8x8x32xf32>
    %61 = arith.addf %59, %60 : vector<8x8x32xf32>
    %62 = arith.mulf %61, %34 : vector<8x8x32xf32>
    %cst_27 = arith.constant -0.00737332925 : f32
    %63 = vector.broadcast %cst_27 : f32 to vector<8x8x32xf32>
    %64 = arith.addf %62, %63 : vector<8x8x32xf32>
    %65 = arith.mulf %64, %34 : vector<8x8x32xf32>
    %cst_28 = arith.constant -0.0142647391 : f32
    %66 = vector.broadcast %cst_28 : f32 to vector<8x8x32xf32>
    %67 = arith.addf %65, %66 : vector<8x8x32xf32>
    %68 = arith.divf %54, %67 : vector<8x8x32xf32>
    %cst_29 = arith.constant 1.000000e+00 : f32
    %69 = vector.broadcast %cst_29 : f32 to vector<8x8x32xf32>
    %70 = arith.addf %69, %68 : vector<8x8x32xf32>
    %71 = arith.mulf %27, %70 : vector<8x8x32xf32>
    %cst_30 = arith.constant 0.000000e+00 : f32
    %72 = vector.broadcast %cst_30 : f32 to vector<10x10x32xf32>
    %c0_31 = arith.constant 0 : index
    %c0_32 = arith.constant 0 : index
    %c0_33 = arith.constant 0 : index
    %73 = vector.load %arg7[%c0_31, %c0_32, %c0_33] : memref<10x10x32xf32, #tpu.memory_space<vmem>>, vector<10x10x32xf32>
    tpu.vector_store %arg7[%c0_31, %c0_32, %c0_33], %72 {strides = array<i32>} : memref<10x10x32xf32, #tpu.memory_space<vmem>>, vector<10x10x32xf32>,
    %c1 = arith.constant 1 : index
    %c1_34 = arith.constant 1 : index
    %c0_35 = arith.constant 0 : index
    %74 = vector.load %arg7[%c1, %c1_34, %c0_35] : memref<10x10x32xf32, #tpu.memory_space<vmem>>, vector<8x8x32xf32>
    tpu.vector_store %arg7[%c1, %c1_34, %c0_35], %71 {strides = array<i32>} : memref<10x10x32xf32, #tpu.memory_space<vmem>>, vector<8x8x32xf32>,
    %cst_36 = arith.constant 0.000000e+00 : f32
    %75 = vector.broadcast %cst_36 : f32 to vector<64x32xf32>
    %c0_37 = arith.constant 0 : index
    %c0_38 = arith.constant 0 : index
    %c0_39 = arith.constant 0 : index
    %76 = vector.load %arg7[%c0_37, %c0_38, %c0_39] : memref<10x10x32xf32, #tpu.memory_space<vmem>>, vector<8x8x32xf32>
    %77 = vector.shape_cast %76 : vector<8x8x32xf32> to vector<64x32xf32>
    %78 = arith.truncf %77 : vector<64x32xf32> to vector<64x32xbf16>
    %c0_40 = arith.constant 0 : index
    %c0_41 = arith.constant 0 : index
    %c0_42 = arith.constant 0 : index
    %79 = vector.load %arg4[%c0_40, %c0_41, %c0_42] : memref<9x32x32xbf16, #tpu.memory_space<vmem>>, vector<1x32x32xbf16>
    %80 = vector.shape_cast %79 : vector<1x32x32xbf16> to vector<32x32xbf16>
    %cst_43 = arith.constant dense<0.000000e+00> : vector<64x32xf32>
    %81 = tpu.matmul %78, %80, %cst_43 {dimension_numbers = #tpu.dot_dimension_numbers<[1], [0], [0], [1], [0, 0, 1, 1], [], []>} : vector<64x32xbf16>, vector<32x32xbf16>, vector<64x32xf32> -> vector<64x32xf32>
    %82 = arith.addf %75, %81 : vector<64x32xf32>
    %c0_44 = arith.constant 0 : index
    %c1_45 = arith.constant 1 : index
    %c0_46 = arith.constant 0 : index
    %83 = vector.load %arg7[%c0_44, %c1_45, %c0_46] : memref<10x10x32xf32, #tpu.memory_space<vmem>>, vector<8x8x32xf32>
    %84 = vector.shape_cast %83 : vector<8x8x32xf32> to vector<64x32xf32>
    %85 = arith.truncf %84 : vector<64x32xf32> to vector<64x32xbf16>
    %c1_47 = arith.constant 1 : index
    %c0_48 = arith.constant 0 : index
    %c0_49 = arith.constant 0 : index
    %86 = vector.load %arg4[%c1_47, %c0_48, %c0_49] : memref<9x32x32xbf16, #tpu.memory_space<vmem>>, vector<1x32x32xbf16>
    %87 = vector.shape_cast %86 : vector<1x32x32xbf16> to vector<32x32xbf16>
    %cst_50 = arith.constant dense<0.000000e+00> : vector<64x32xf32>
    %88 = tpu.matmul %85, %87, %cst_50 {dimension_numbers = #tpu.dot_dimension_numbers<[1], [0], [0], [1], [0, 0, 1, 1], [], []>} : vector<64x32xbf16>, vector<32x32xbf16>, vector<64x32xf32> -> vector<64x32xf32>
    %89 = arith.addf %82, %88 : vector<64x32xf32>
    %c0_51 = arith.constant 0 : index
    %c2 = arith.constant 2 : index
    %c0_52 = arith.constant 0 : index
    %90 = vector.load %arg7[%c0_51, %c2, %c0_52] : memref<10x10x32xf32, #tpu.memory_space<vmem>>, vector<8x8x32xf32>
    %91 = vector.shape_cast %90 : vector<8x8x32xf32> to vector<64x32xf32>
    %92 = arith.truncf %91 : vector<64x32xf32> to vector<64x32xbf16>
    %c2_53 = arith.constant 2 : index
    %c0_54 = arith.constant 0 : index
    %c0_55 = arith.constant 0 : index
    %93 = vector.load %arg4[%c2_53, %c0_54, %c0_55] : memref<9x32x32xbf16, #tpu.memory_space<vmem>>, vector<1x32x32xbf16>
    %94 = vector.shape_cast %93 : vector<1x32x32xbf16> to vector<32x32xbf16>
    %cst_56 = arith.constant dense<0.000000e+00> : vector<64x32xf32>
    %95 = tpu.matmul %92, %94, %cst_56 {dimension_numbers = #tpu.dot_dimension_numbers<[1], [0], [0], [1], [0, 0, 1, 1], [], []>} : vector<64x32xbf16>, vector<32x32xbf16>, vector<64x32xf32> -> vector<64x32xf32>
    %96 = arith.addf %89, %95 : vector<64x32xf32>
    %c1_57 = arith.constant 1 : index
    %c0_58 = arith.constant 0 : index
    %c0_59 = arith.constant 0 : index
    %97 = vector.load %arg7[%c1_57, %c0_58, %c0_59] : memref<10x10x32xf32, #tpu.memory_space<vmem>>, vector<8x8x32xf32>
    %98 = vector.shape_cast %97 : vector<8x8x32xf32> to vector<64x32xf32>
    %99 = arith.truncf %98 : vector<64x32xf32> to vector<64x32xbf16>
    %c3 = arith.constant 3 : index
    %c0_60 = arith.constant 0 : index
    %c0_61 = arith.constant 0 : index
    %100 = vector.load %arg4[%c3, %c0_60, %c0_61] : memref<9x32x32xbf16, #tpu.memory_space<vmem>>, vector<1x32x32xbf16>
    %101 = vector.shape_cast %100 : vector<1x32x32xbf16> to vector<32x32xbf16>
    %cst_62 = arith.constant dense<0.000000e+00> : vector<64x32xf32>
    %102 = tpu.matmul %99, %101, %cst_62 {dimension_numbers = #tpu.dot_dimension_numbers<[1], [0], [0], [1], [0, 0, 1, 1], [], []>} : vector<64x32xbf16>, vector<32x32xbf16>, vector<64x32xf32> -> vector<64x32xf32>
    %103 = arith.addf %96, %102 : vector<64x32xf32>
    %c1_63 = arith.constant 1 : index
    %c1_64 = arith.constant 1 : index
    %c0_65 = arith.constant 0 : index
    %104 = vector.load %arg7[%c1_63, %c1_64, %c0_65] : memref<10x10x32xf32, #tpu.memory_space<vmem>>, vector<8x8x32xf32>
    %105 = vector.shape_cast %104 : vector<8x8x32xf32> to vector<64x32xf32>
    %106 = arith.truncf %105 : vector<64x32xf32> to vector<64x32xbf16>
    %c4 = arith.constant 4 : index
    %c0_66 = arith.constant 0 : index
    %c0_67 = arith.constant 0 : index
    %107 = vector.load %arg4[%c4, %c0_66, %c0_67] : memref<9x32x32xbf16, #tpu.memory_space<vmem>>, vector<1x32x32xbf16>
    %108 = vector.shape_cast %107 : vector<1x32x32xbf16> to vector<32x32xbf16>
    %cst_68 = arith.constant dense<0.000000e+00> : vector<64x32xf32>
    %109 = tpu.matmul %106, %108, %cst_68 {dimension_numbers = #tpu.dot_dimension_numbers<[1], [0], [0], [1], [0, 0, 1, 1], [], []>} : vector<64x32xbf16>, vector<32x32xbf16>, vector<64x32xf32> -> vector<64x32xf32>
    %110 = arith.addf %103, %109 : vector<64x32xf32>
    %c1_69 = arith.constant 1 : index
    %c2_70 = arith.constant 2 : index
    %c0_71 = arith.constant 0 : index
    %111 = vector.load %arg7[%c1_69, %c2_70, %c0_71] : memref<10x10x32xf32, #tpu.memory_space<vmem>>, vector<8x8x32xf32>
    %112 = vector.shape_cast %111 : vector<8x8x32xf32> to vector<64x32xf32>
    %113 = arith.truncf %112 : vector<64x32xf32> to vector<64x32xbf16>
    %c5 = arith.constant 5 : index
    %c0_72 = arith.constant 0 : index
    %c0_73 = arith.constant 0 : index
    %114 = vector.load %arg4[%c5, %c0_72, %c0_73] : memref<9x32x32xbf16, #tpu.memory_space<vmem>>, vector<1x32x32xbf16>
    %115 = vector.shape_cast %114 : vector<1x32x32xbf16> to vector<32x32xbf16>
    %cst_74 = arith.constant dense<0.000000e+00> : vector<64x32xf32>
    %116 = tpu.matmul %113, %115, %cst_74 {dimension_numbers = #tpu.dot_dimension_numbers<[1], [0], [0], [1], [0, 0, 1, 1], [], []>} : vector<64x32xbf16>, vector<32x32xbf16>, vector<64x32xf32> -> vector<64x32xf32>
    %117 = arith.addf %110, %116 : vector<64x32xf32>
    %c2_75 = arith.constant 2 : index
    %c0_76 = arith.constant 0 : index
    %c0_77 = arith.constant 0 : index
    %118 = vector.load %arg7[%c2_75, %c0_76, %c0_77] : memref<10x10x32xf32, #tpu.memory_space<vmem>>, vector<8x8x32xf32>
    %119 = vector.shape_cast %118 : vector<8x8x32xf32> to vector<64x32xf32>
    %120 = arith.truncf %119 : vector<64x32xf32> to vector<64x32xbf16>
    %c6 = arith.constant 6 : index
    %c0_78 = arith.constant 0 : index
    %c0_79 = arith.constant 0 : index
    %121 = vector.load %arg4[%c6, %c0_78, %c0_79] : memref<9x32x32xbf16, #tpu.memory_space<vmem>>, vector<1x32x32xbf16>
    %122 = vector.shape_cast %121 : vector<1x32x32xbf16> to vector<32x32xbf16>
    %cst_80 = arith.constant dense<0.000000e+00> : vector<64x32xf32>
    %123 = tpu.matmul %120, %122, %cst_80 {dimension_numbers = #tpu.dot_dimension_numbers<[1], [0], [0], [1], [0, 0, 1, 1], [], []>} : vector<64x32xbf16>, vector<32x32xbf16>, vector<64x32xf32> -> vector<64x32xf32>
    %124 = arith.addf %117, %123 : vector<64x32xf32>
    %c2_81 = arith.constant 2 : index
    %c1_82 = arith.constant 1 : index
    %c0_83 = arith.constant 0 : index
    %125 = vector.load %arg7[%c2_81, %c1_82, %c0_83] : memref<10x10x32xf32, #tpu.memory_space<vmem>>, vector<8x8x32xf32>
    %126 = vector.shape_cast %125 : vector<8x8x32xf32> to vector<64x32xf32>
    %127 = arith.truncf %126 : vector<64x32xf32> to vector<64x32xbf16>
    %c7 = arith.constant 7 : index
    %c0_84 = arith.constant 0 : index
    %c0_85 = arith.constant 0 : index
    %128 = vector.load %arg4[%c7, %c0_84, %c0_85] : memref<9x32x32xbf16, #tpu.memory_space<vmem>>, vector<1x32x32xbf16>
    %129 = vector.shape_cast %128 : vector<1x32x32xbf16> to vector<32x32xbf16>
    %cst_86 = arith.constant dense<0.000000e+00> : vector<64x32xf32>
    %130 = tpu.matmul %127, %129, %cst_86 {dimension_numbers = #tpu.dot_dimension_numbers<[1], [0], [0], [1], [0, 0, 1, 1], [], []>} : vector<64x32xbf16>, vector<32x32xbf16>, vector<64x32xf32> -> vector<64x32xf32>
    %131 = arith.addf %124, %130 : vector<64x32xf32>
    %c2_87 = arith.constant 2 : index
    %c2_88 = arith.constant 2 : index
    %c0_89 = arith.constant 0 : index
    %132 = vector.load %arg7[%c2_87, %c2_88, %c0_89] : memref<10x10x32xf32, #tpu.memory_space<vmem>>, vector<8x8x32xf32>
    %133 = vector.shape_cast %132 : vector<8x8x32xf32> to vector<64x32xf32>
    %134 = arith.truncf %133 : vector<64x32xf32> to vector<64x32xbf16>
    %c8 = arith.constant 8 : index
    %c0_90 = arith.constant 0 : index
    %c0_91 = arith.constant 0 : index
    %135 = vector.load %arg4[%c8, %c0_90, %c0_91] : memref<9x32x32xbf16, #tpu.memory_space<vmem>>, vector<1x32x32xbf16>
    %136 = vector.shape_cast %135 : vector<1x32x32xbf16> to vector<32x32xbf16>
    %cst_92 = arith.constant dense<0.000000e+00> : vector<64x32xf32>
    %137 = tpu.matmul %134, %136, %cst_92 {dimension_numbers = #tpu.dot_dimension_numbers<[1], [0], [0], [1], [0, 0, 1, 1], [], []>} : vector<64x32xbf16>, vector<32x32xbf16>, vector<64x32xf32> -> vector<64x32xf32>
    %138 = arith.addf %131, %137 : vector<64x32xf32>
    %c0_93 = arith.constant 0 : index
    %c0_94 = arith.constant 0 : index
    %139 = vector.load %arg5[%c0_93, %c0_94] : memref<1x32xf32, #tpu.memory_space<vmem>>, vector<1x32xf32>
    %140 = vector.broadcast %139 : vector<1x32xf32> to vector<64x32xf32>
    %141 = arith.addf %138, %140 : vector<64x32xf32>
    %142 = vector.shape_cast %141 : vector<64x32xf32> to vector<8x8x32xf32>
    %c0_95 = arith.constant 0 : index
    %c0_96 = arith.constant 0 : index
    %c0_97 = arith.constant 0 : index
    %c0_98 = arith.constant 0 : index
    %143 = vector.load %arg6[%c0_95, %c0_96, %c0_97, %c0_98] : memref<1x8x8x32xf32, #tpu.memory_space<vmem>>, vector<1x8x8x32xf32>
    %144 = vector.shape_cast %143 : vector<1x8x8x32xf32> to vector<8x8x32xf32>
    %145 = vector.shape_cast %142 : vector<8x8x32xf32> to vector<1x8x8x32xf32>
    tpu.vector_store %arg6[%c0_95, %c0_96, %c0_97, %c0_98], %145 {strides = array<i32>} : memref<1x8x8x32xf32, #tpu.memory_space<vmem>>, vector<1x8x8x32xf32>,
    return
  }
  func.func @transform_0(%arg0: i32) -> (i32, i32, i32, i32) {
    %c0_i32 = arith.constant 0 : i32
    %c0_i32_0 = arith.constant 0 : i32
    %c0_i32_1 = arith.constant 0 : i32
    %c0_i32_2 = arith.constant 0 : i32
    return %arg0, %c0_i32, %c0_i32_0, %c0_i32_1 : i32, i32, i32, i32
  }
  func.func @transform_1(%arg0: i32) -> (i32, i32, i32) {
    %c0_i32 = arith.constant 0 : i32
    %c0_i32_0 = arith.constant 0 : i32
    %c0_i32_1 = arith.constant 0 : i32
    %c0_i32_2 = arith.constant 0 : i32
    return %c0_i32, %c0_i32_0, %c0_i32_1 : i32, i32, i32
  }
  func.func @transform_2(%arg0: i32) -> (i32, i32, i32) {
    %c0_i32 = arith.constant 0 : i32
    %c0_i32_0 = arith.constant 0 : i32
    %c0_i32_1 = arith.constant 0 : i32
    %c0_i32_2 = arith.constant 0 : i32
    return %c0_i32, %c0_i32_0, %c0_i32_1 : i32, i32, i32
  }
  func.func @transform_3(%arg0: i32) -> (i32, i32, i32) {
    %c0_i32 = arith.constant 0 : i32
    %c0_i32_0 = arith.constant 0 : i32
    %c0_i32_1 = arith.constant 0 : i32
    %c0_i32_2 = arith.constant 0 : i32
    return %c0_i32, %c0_i32_0, %c0_i32_1 : i32, i32, i32
  }
  func.func @transform_4(%arg0: i32) -> (i32, i32) {
    %c0_i32 = arith.constant 0 : i32
    %c0_i32_0 = arith.constant 0 : i32
    %c0_i32_1 = arith.constant 0 : i32
    return %c0_i32, %c0_i32_0 : i32, i32
  }
  func.func @transform_5(%arg0: i32) -> (i32, i32, i32, i32) {
    %c0_i32 = arith.constant 0 : i32
    %c0_i32_0 = arith.constant 0 : i32
    %c0_i32_1 = arith.constant 0 : i32
    %c0_i32_2 = arith.constant 0 : i32
    return %arg0, %c0_i32, %c0_i32_0, %c0_i32_1 : i32, i32, i32, i32
  }
}

module attributes {stable_mosaic.version = 11 : i64} {
  func.func @kernel(%arg0: i32, %arg1: memref<1x8x8x32xf32, #tpu.memory_space<vmem>>, %arg2: memref<8x1x1xf32, #tpu.memory_space<vmem>>, %arg3: memref<8x1x1xf32, #tpu.memory_space<vmem>>, %arg4: memref<9x32x32xbf16, #tpu.memory_space<vmem>>, %arg5: memref<1x32xf32, #tpu.memory_space<vmem>>, %arg6: memref<1x8x8x32xf32, #tpu.memory_space<vmem>>, %arg7: memref<1x8x8x32xf32, #tpu.memory_space<vmem>>, %arg8: memref<10x10x32xf32, #tpu.memory_space<vmem>>) attributes {dimension_semantics = [#tpu.dimension_semantics<parallel>], iteration_bounds = array<i64: 2>, scalar_prefetch = 0 : i64, scratch_operands = 1 : i64, tpu.core_type = #tpu.core_type<tc>, window_params = [{transform_indices = @transform_0, window_bounds = array<i64: 1, 8, 8, 32>}, {pipeline_mode = #tpu.pipeline_mode<synchronous>, transform_indices = @transform_1, window_bounds = array<i64: 8, 1, 1>}, {pipeline_mode = #tpu.pipeline_mode<synchronous>, transform_indices = @transform_2, window_bounds = array<i64: 8, 1, 1>}, {pipeline_mode = #tpu.pipeline_mode<synchronous>, transform_indices = @transform_3, window_bounds = array<i64: 9, 32, 32>}, {pipeline_mode = #tpu.pipeline_mode<synchronous>, transform_indices = @transform_4, window_bounds = array<i64: 1, 32>}, {transform_indices = @transform_5, window_bounds = array<i64: 1, 8, 8, 32>}, {transform_indices = @transform_6, window_bounds = array<i64: 1, 8, 8, 32>}]} {
    %c0 = arith.constant 0 : index
    %c0_0 = arith.constant 0 : index
    %c0_1 = arith.constant 0 : index
    %c0_2 = arith.constant 0 : index
    %0 = vector.load %arg1[%c0, %c0_0, %c0_1, %c0_2] : memref<1x8x8x32xf32, #tpu.memory_space<vmem>>, vector<1x8x8x32xf32>
    %1 = vector.shape_cast %0 : vector<1x8x8x32xf32> to vector<8x8x32xf32>
    %cst = arith.constant dense<0.000000e+00> : vector<8x32xf32>
    %2 = vector.multi_reduction <add>, %1, %cst [0] : vector<8x8x32xf32> to vector<8x32xf32>
    %3 = vector.shape_cast %2 : vector<8x32xf32> to vector<1x8x32xf32>
    %cst_3 = arith.constant 8.000000e+00 : f32
    %4 = vector.broadcast %cst_3 : f32 to vector<1x8x32xf32>
    %5 = arith.divf %3, %4 : vector<1x8x32xf32>
    %6 = vector.broadcast %5 : vector<1x8x32xf32> to vector<8x8x32xf32>
    %7 = arith.subf %1, %6 : vector<8x8x32xf32>
    %8 = arith.mulf %7, %7 : vector<8x8x32xf32>
    %cst_4 = arith.constant dense<0.000000e+00> : vector<8x32xf32>
    %9 = vector.multi_reduction <add>, %8, %cst_4 [0] : vector<8x8x32xf32> to vector<8x32xf32>
    %10 = vector.shape_cast %9 : vector<8x32xf32> to vector<1x8x32xf32>
    %cst_5 = arith.constant 8.000000e+00 : f32
    %11 = vector.broadcast %cst_5 : f32 to vector<1x8x32xf32>
    %12 = arith.divf %10, %11 : vector<1x8x32xf32>
    %13 = vector.broadcast %5 : vector<1x8x32xf32> to vector<8x8x32xf32>
    %14 = arith.subf %1, %13 : vector<8x8x32xf32>
    %cst_6 = arith.constant 9.99999974E-6 : f32
    %15 = vector.broadcast %cst_6 : f32 to vector<1x8x32xf32>
    %16 = arith.addf %12, %15 : vector<1x8x32xf32>
    %17 = math.rsqrt %16 : vector<1x8x32xf32>
    %18 = vector.broadcast %17 : vector<1x8x32xf32> to vector<8x8x32xf32>
    %19 = arith.mulf %14, %18 : vector<8x8x32xf32>
    %c0_7 = arith.constant 0 : index
    %c0_8 = arith.constant 0 : index
    %c0_9 = arith.constant 0 : index
    %20 = vector.load %arg2[%c0_7, %c0_8, %c0_9] : memref<8x1x1xf32, #tpu.memory_space<vmem>>, vector<8x1x1xf32>
    %21 = vector.broadcast %20 : vector<8x1x1xf32> to vector<8x8x32xf32>
    %22 = arith.mulf %19, %21 : vector<8x8x32xf32>
    %c0_10 = arith.constant 0 : index
    %c0_11 = arith.constant 0 : index
    %c0_12 = arith.constant 0 : index
    %23 = vector.load %arg3[%c0_10, %c0_11, %c0_12] : memref<8x1x1xf32, #tpu.memory_space<vmem>>, vector<8x1x1xf32>
    %24 = vector.broadcast %23 : vector<8x1x1xf32> to vector<8x8x32xf32>
    %25 = arith.addf %22, %24 : vector<8x8x32xf32>
    %cst_13 = arith.constant 5.000000e-01 : f32
    %26 = vector.broadcast %cst_13 : f32 to vector<8x8x32xf32>
    %27 = arith.mulf %26, %25 : vector<8x8x32xf32>
    %cst_14 = arith.constant 0.707106769 : f32
    %28 = vector.broadcast %cst_14 : f32 to vector<8x8x32xf32>
    %29 = arith.mulf %25, %28 : vector<8x8x32xf32>
    %cst_15 = arith.constant -4.000000e+00 : f32
    %cst_16 = arith.constant 4.000000e+00 : f32
    %30 = vector.broadcast %cst_15 : f32 to vector<8x8x32xf32>
    %31 = arith.maximumf %30, %29 : vector<8x8x32xf32>
    %32 = vector.broadcast %cst_16 : f32 to vector<8x8x32xf32>
    %33 = arith.minimumf %32, %31 : vector<8x8x32xf32>
    %34 = arith.mulf %33, %33 : vector<8x8x32xf32>
    %cst_17 = arith.constant -2.72614237E-10 : f32
    %35 = vector.broadcast %cst_17 : f32 to vector<8x8x32xf32>
    %36 = arith.mulf %35, %34 : vector<8x8x32xf32>
    %cst_18 = arith.constant 2.77068146E-8 : f32
    %37 = vector.broadcast %cst_18 : f32 to vector<8x8x32xf32>
    %38 = arith.addf %36, %37 : vector<8x8x32xf32>
    %39 = arith.mulf %38, %34 : vector<8x8x32xf32>
    %cst_19 = arith.constant -2.10102394E-6 : f32
    %40 = vector.broadcast %cst_19 : f32 to vector<8x8x32xf32>
    %41 = arith.addf %39, %40 : vector<8x8x32xf32>
    %42 = arith.mulf %41, %34 : vector<8x8x32xf32>
    %cst_20 = arith.constant -5.69250624E-5 : f32
    %43 = vector.broadcast %cst_20 : f32 to vector<8x8x32xf32>
    %44 = arith.addf %42, %43 : vector<8x8x32xf32>
    %45 = arith.mulf %44, %34 : vector<8x8x32xf32>
    %cst_21 = arith.constant -7.34990637E-4 : f32
    %46 = vector.broadcast %cst_21 : f32 to vector<8x8x32xf32>
    %47 = arith.addf %45, %46 : vector<8x8x32xf32>
    %48 = arith.mulf %47, %34 : vector<8x8x32xf32>
    %cst_22 = arith.constant -2.954600e-03 : f32
    %49 = vector.broadcast %cst_22 : f32 to vector<8x8x32xf32>
    %50 = arith.addf %48, %49 : vector<8x8x32xf32>
    %51 = arith.mulf %50, %34 : vector<8x8x32xf32>
    %cst_23 = arith.constant -0.0160960332 : f32
    %52 = vector.broadcast %cst_23 : f32 to vector<8x8x32xf32>
    %53 = arith.addf %51, %52 : vector<8x8x32xf32>
    %54 = arith.mulf %53, %33 : vector<8x8x32xf32>
    %cst_24 = arith.constant -1.45660715E-5 : f32
    %55 = vector.broadcast %cst_24 : f32 to vector<8x8x32xf32>
    %56 = arith.mulf %55, %34 : vector<8x8x32xf32>
    %cst_25 = arith.constant -2.13374049E-4 : f32
    %57 = vector.broadcast %cst_25 : f32 to vector<8x8x32xf32>
    %58 = arith.addf %56, %57 : vector<8x8x32xf32>
    %59 = arith.mulf %58, %34 : vector<8x8x32xf32>
    %cst_26 = arith.constant -0.00168282702 : f32
    %60 = vector.broadcast %cst_26 : f32 to vector<8x8x32xf32>
    %61 = arith.addf %59, %60 : vector<8x8x32xf32>
    %62 = arith.mulf %61, %34 : vector<8x8x32xf32>
    %cst_27 = arith.constant -0.00737332925 : f32
    %63 = vector.broadcast %cst_27 : f32 to vector<8x8x32xf32>
    %64 = arith.addf %62, %63 : vector<8x8x32xf32>
    %65 = arith.mulf %64, %34 : vector<8x8x32xf32>
    %cst_28 = arith.constant -0.0142647391 : f32
    %66 = vector.broadcast %cst_28 : f32 to vector<8x8x32xf32>
    %67 = arith.addf %65, %66 : vector<8x8x32xf32>
    %68 = arith.divf %54, %67 : vector<8x8x32xf32>
    %cst_29 = arith.constant 1.000000e+00 : f32
    %69 = vector.broadcast %cst_29 : f32 to vector<8x8x32xf32>
    %70 = arith.addf %69, %68 : vector<8x8x32xf32>
    %71 = arith.mulf %27, %70 : vector<8x8x32xf32>
    %cst_30 = arith.constant 0.000000e+00 : f32
    %72 = vector.broadcast %cst_30 : f32 to vector<10x10x32xf32>
    %c0_31 = arith.constant 0 : index
    %c0_32 = arith.constant 0 : index
    %c0_33 = arith.constant 0 : index
    %73 = vector.load %arg8[%c0_31, %c0_32, %c0_33] : memref<10x10x32xf32, #tpu.memory_space<vmem>>, vector<10x10x32xf32>
    tpu.vector_store %arg8[%c0_31, %c0_32, %c0_33], %72 {strides = array<i32>} : memref<10x10x32xf32, #tpu.memory_space<vmem>>, vector<10x10x32xf32>,
    %c1 = arith.constant 1 : index
    %c1_34 = arith.constant 1 : index
    %c0_35 = arith.constant 0 : index
    %74 = vector.load %arg8[%c1, %c1_34, %c0_35] : memref<10x10x32xf32, #tpu.memory_space<vmem>>, vector<8x8x32xf32>
    tpu.vector_store %arg8[%c1, %c1_34, %c0_35], %71 {strides = array<i32>} : memref<10x10x32xf32, #tpu.memory_space<vmem>>, vector<8x8x32xf32>,
    %cst_36 = arith.constant 0.000000e+00 : f32
    %75 = vector.broadcast %cst_36 : f32 to vector<64x32xf32>
    %c0_37 = arith.constant 0 : index
    %c0_38 = arith.constant 0 : index
    %c0_39 = arith.constant 0 : index
    %76 = vector.load %arg8[%c0_37, %c0_38, %c0_39] : memref<10x10x32xf32, #tpu.memory_space<vmem>>, vector<8x8x32xf32>
    %77 = vector.shape_cast %76 : vector<8x8x32xf32> to vector<64x32xf32>
    %78 = arith.truncf %77 : vector<64x32xf32> to vector<64x32xbf16>
    %c0_40 = arith.constant 0 : index
    %c0_41 = arith.constant 0 : index
    %c0_42 = arith.constant 0 : index
    %79 = vector.load %arg4[%c0_40, %c0_41, %c0_42] : memref<9x32x32xbf16, #tpu.memory_space<vmem>>, vector<1x32x32xbf16>
    %80 = vector.shape_cast %79 : vector<1x32x32xbf16> to vector<32x32xbf16>
    %cst_43 = arith.constant dense<0.000000e+00> : vector<64x32xf32>
    %81 = tpu.matmul %78, %80, %cst_43 {dimension_numbers = #tpu.dot_dimension_numbers<[1], [0], [0], [1], [0, 0, 1, 1], [], []>} : vector<64x32xbf16>, vector<32x32xbf16>, vector<64x32xf32> -> vector<64x32xf32>
    %82 = arith.addf %75, %81 : vector<64x32xf32>
    %c0_44 = arith.constant 0 : index
    %c1_45 = arith.constant 1 : index
    %c0_46 = arith.constant 0 : index
    %83 = vector.load %arg8[%c0_44, %c1_45, %c0_46] : memref<10x10x32xf32, #tpu.memory_space<vmem>>, vector<8x8x32xf32>
    %84 = vector.shape_cast %83 : vector<8x8x32xf32> to vector<64x32xf32>
    %85 = arith.truncf %84 : vector<64x32xf32> to vector<64x32xbf16>
    %c1_47 = arith.constant 1 : index
    %c0_48 = arith.constant 0 : index
    %c0_49 = arith.constant 0 : index
    %86 = vector.load %arg4[%c1_47, %c0_48, %c0_49] : memref<9x32x32xbf16, #tpu.memory_space<vmem>>, vector<1x32x32xbf16>
    %87 = vector.shape_cast %86 : vector<1x32x32xbf16> to vector<32x32xbf16>
    %cst_50 = arith.constant dense<0.000000e+00> : vector<64x32xf32>
    %88 = tpu.matmul %85, %87, %cst_50 {dimension_numbers = #tpu.dot_dimension_numbers<[1], [0], [0], [1], [0, 0, 1, 1], [], []>} : vector<64x32xbf16>, vector<32x32xbf16>, vector<64x32xf32> -> vector<64x32xf32>
    %89 = arith.addf %82, %88 : vector<64x32xf32>
    %c0_51 = arith.constant 0 : index
    %c2 = arith.constant 2 : index
    %c0_52 = arith.constant 0 : index
    %90 = vector.load %arg8[%c0_51, %c2, %c0_52] : memref<10x10x32xf32, #tpu.memory_space<vmem>>, vector<8x8x32xf32>
    %91 = vector.shape_cast %90 : vector<8x8x32xf32> to vector<64x32xf32>
    %92 = arith.truncf %91 : vector<64x32xf32> to vector<64x32xbf16>
    %c2_53 = arith.constant 2 : index
    %c0_54 = arith.constant 0 : index
    %c0_55 = arith.constant 0 : index
    %93 = vector.load %arg4[%c2_53, %c0_54, %c0_55] : memref<9x32x32xbf16, #tpu.memory_space<vmem>>, vector<1x32x32xbf16>
    %94 = vector.shape_cast %93 : vector<1x32x32xbf16> to vector<32x32xbf16>
    %cst_56 = arith.constant dense<0.000000e+00> : vector<64x32xf32>
    %95 = tpu.matmul %92, %94, %cst_56 {dimension_numbers = #tpu.dot_dimension_numbers<[1], [0], [0], [1], [0, 0, 1, 1], [], []>} : vector<64x32xbf16>, vector<32x32xbf16>, vector<64x32xf32> -> vector<64x32xf32>
    %96 = arith.addf %89, %95 : vector<64x32xf32>
    %c1_57 = arith.constant 1 : index
    %c0_58 = arith.constant 0 : index
    %c0_59 = arith.constant 0 : index
    %97 = vector.load %arg8[%c1_57, %c0_58, %c0_59] : memref<10x10x32xf32, #tpu.memory_space<vmem>>, vector<8x8x32xf32>
    %98 = vector.shape_cast %97 : vector<8x8x32xf32> to vector<64x32xf32>
    %99 = arith.truncf %98 : vector<64x32xf32> to vector<64x32xbf16>
    %c3 = arith.constant 3 : index
    %c0_60 = arith.constant 0 : index
    %c0_61 = arith.constant 0 : index
    %100 = vector.load %arg4[%c3, %c0_60, %c0_61] : memref<9x32x32xbf16, #tpu.memory_space<vmem>>, vector<1x32x32xbf16>
    %101 = vector.shape_cast %100 : vector<1x32x32xbf16> to vector<32x32xbf16>
    %cst_62 = arith.constant dense<0.000000e+00> : vector<64x32xf32>
    %102 = tpu.matmul %99, %101, %cst_62 {dimension_numbers = #tpu.dot_dimension_numbers<[1], [0], [0], [1], [0, 0, 1, 1], [], []>} : vector<64x32xbf16>, vector<32x32xbf16>, vector<64x32xf32> -> vector<64x32xf32>
    %103 = arith.addf %96, %102 : vector<64x32xf32>
    %c1_63 = arith.constant 1 : index
    %c1_64 = arith.constant 1 : index
    %c0_65 = arith.constant 0 : index
    %104 = vector.load %arg8[%c1_63, %c1_64, %c0_65] : memref<10x10x32xf32, #tpu.memory_space<vmem>>, vector<8x8x32xf32>
    %105 = vector.shape_cast %104 : vector<8x8x32xf32> to vector<64x32xf32>
    %106 = arith.truncf %105 : vector<64x32xf32> to vector<64x32xbf16>
    %c4 = arith.constant 4 : index
    %c0_66 = arith.constant 0 : index
    %c0_67 = arith.constant 0 : index
    %107 = vector.load %arg4[%c4, %c0_66, %c0_67] : memref<9x32x32xbf16, #tpu.memory_space<vmem>>, vector<1x32x32xbf16>
    %108 = vector.shape_cast %107 : vector<1x32x32xbf16> to vector<32x32xbf16>
    %cst_68 = arith.constant dense<0.000000e+00> : vector<64x32xf32>
    %109 = tpu.matmul %106, %108, %cst_68 {dimension_numbers = #tpu.dot_dimension_numbers<[1], [0], [0], [1], [0, 0, 1, 1], [], []>} : vector<64x32xbf16>, vector<32x32xbf16>, vector<64x32xf32> -> vector<64x32xf32>
    %110 = arith.addf %103, %109 : vector<64x32xf32>
    %c1_69 = arith.constant 1 : index
    %c2_70 = arith.constant 2 : index
    %c0_71 = arith.constant 0 : index
    %111 = vector.load %arg8[%c1_69, %c2_70, %c0_71] : memref<10x10x32xf32, #tpu.memory_space<vmem>>, vector<8x8x32xf32>
    %112 = vector.shape_cast %111 : vector<8x8x32xf32> to vector<64x32xf32>
    %113 = arith.truncf %112 : vector<64x32xf32> to vector<64x32xbf16>
    %c5 = arith.constant 5 : index
    %c0_72 = arith.constant 0 : index
    %c0_73 = arith.constant 0 : index
    %114 = vector.load %arg4[%c5, %c0_72, %c0_73] : memref<9x32x32xbf16, #tpu.memory_space<vmem>>, vector<1x32x32xbf16>
    %115 = vector.shape_cast %114 : vector<1x32x32xbf16> to vector<32x32xbf16>
    %cst_74 = arith.constant dense<0.000000e+00> : vector<64x32xf32>
    %116 = tpu.matmul %113, %115, %cst_74 {dimension_numbers = #tpu.dot_dimension_numbers<[1], [0], [0], [1], [0, 0, 1, 1], [], []>} : vector<64x32xbf16>, vector<32x32xbf16>, vector<64x32xf32> -> vector<64x32xf32>
    %117 = arith.addf %110, %116 : vector<64x32xf32>
    %c2_75 = arith.constant 2 : index
    %c0_76 = arith.constant 0 : index
    %c0_77 = arith.constant 0 : index
    %118 = vector.load %arg8[%c2_75, %c0_76, %c0_77] : memref<10x10x32xf32, #tpu.memory_space<vmem>>, vector<8x8x32xf32>
    %119 = vector.shape_cast %118 : vector<8x8x32xf32> to vector<64x32xf32>
    %120 = arith.truncf %119 : vector<64x32xf32> to vector<64x32xbf16>
    %c6 = arith.constant 6 : index
    %c0_78 = arith.constant 0 : index
    %c0_79 = arith.constant 0 : index
    %121 = vector.load %arg4[%c6, %c0_78, %c0_79] : memref<9x32x32xbf16, #tpu.memory_space<vmem>>, vector<1x32x32xbf16>
    %122 = vector.shape_cast %121 : vector<1x32x32xbf16> to vector<32x32xbf16>
    %cst_80 = arith.constant dense<0.000000e+00> : vector<64x32xf32>
    %123 = tpu.matmul %120, %122, %cst_80 {dimension_numbers = #tpu.dot_dimension_numbers<[1], [0], [0], [1], [0, 0, 1, 1], [], []>} : vector<64x32xbf16>, vector<32x32xbf16>, vector<64x32xf32> -> vector<64x32xf32>
    %124 = arith.addf %117, %123 : vector<64x32xf32>
    %c2_81 = arith.constant 2 : index
    %c1_82 = arith.constant 1 : index
    %c0_83 = arith.constant 0 : index
    %125 = vector.load %arg8[%c2_81, %c1_82, %c0_83] : memref<10x10x32xf32, #tpu.memory_space<vmem>>, vector<8x8x32xf32>
    %126 = vector.shape_cast %125 : vector<8x8x32xf32> to vector<64x32xf32>
    %127 = arith.truncf %126 : vector<64x32xf32> to vector<64x32xbf16>
    %c7 = arith.constant 7 : index
    %c0_84 = arith.constant 0 : index
    %c0_85 = arith.constant 0 : index
    %128 = vector.load %arg4[%c7, %c0_84, %c0_85] : memref<9x32x32xbf16, #tpu.memory_space<vmem>>, vector<1x32x32xbf16>
    %129 = vector.shape_cast %128 : vector<1x32x32xbf16> to vector<32x32xbf16>
    %cst_86 = arith.constant dense<0.000000e+00> : vector<64x32xf32>
    %130 = tpu.matmul %127, %129, %cst_86 {dimension_numbers = #tpu.dot_dimension_numbers<[1], [0], [0], [1], [0, 0, 1, 1], [], []>} : vector<64x32xbf16>, vector<32x32xbf16>, vector<64x32xf32> -> vector<64x32xf32>
    %131 = arith.addf %124, %130 : vector<64x32xf32>
    %c2_87 = arith.constant 2 : index
    %c2_88 = arith.constant 2 : index
    %c0_89 = arith.constant 0 : index
    %132 = vector.load %arg8[%c2_87, %c2_88, %c0_89] : memref<10x10x32xf32, #tpu.memory_space<vmem>>, vector<8x8x32xf32>
    %133 = vector.shape_cast %132 : vector<8x8x32xf32> to vector<64x32xf32>
    %134 = arith.truncf %133 : vector<64x32xf32> to vector<64x32xbf16>
    %c8 = arith.constant 8 : index
    %c0_90 = arith.constant 0 : index
    %c0_91 = arith.constant 0 : index
    %135 = vector.load %arg4[%c8, %c0_90, %c0_91] : memref<9x32x32xbf16, #tpu.memory_space<vmem>>, vector<1x32x32xbf16>
    %136 = vector.shape_cast %135 : vector<1x32x32xbf16> to vector<32x32xbf16>
    %cst_92 = arith.constant dense<0.000000e+00> : vector<64x32xf32>
    %137 = tpu.matmul %134, %136, %cst_92 {dimension_numbers = #tpu.dot_dimension_numbers<[1], [0], [0], [1], [0, 0, 1, 1], [], []>} : vector<64x32xbf16>, vector<32x32xbf16>, vector<64x32xf32> -> vector<64x32xf32>
    %138 = arith.addf %131, %137 : vector<64x32xf32>
    %c0_93 = arith.constant 0 : index
    %c0_94 = arith.constant 0 : index
    %139 = vector.load %arg5[%c0_93, %c0_94] : memref<1x32xf32, #tpu.memory_space<vmem>>, vector<1x32xf32>
    %140 = vector.broadcast %139 : vector<1x32xf32> to vector<64x32xf32>
    %141 = arith.addf %138, %140 : vector<64x32xf32>
    %142 = vector.shape_cast %141 : vector<64x32xf32> to vector<8x8x32xf32>
    %c0_95 = arith.constant 0 : index
    %c0_96 = arith.constant 0 : index
    %c0_97 = arith.constant 0 : index
    %c0_98 = arith.constant 0 : index
    %143 = vector.load %arg6[%c0_95, %c0_96, %c0_97, %c0_98] : memref<1x8x8x32xf32, #tpu.memory_space<vmem>>, vector<1x8x8x32xf32>
    %144 = vector.shape_cast %143 : vector<1x8x8x32xf32> to vector<8x8x32xf32>
    %145 = arith.addf %142, %144 : vector<8x8x32xf32>
    %c0_99 = arith.constant 0 : index
    %c0_100 = arith.constant 0 : index
    %c0_101 = arith.constant 0 : index
    %c0_102 = arith.constant 0 : index
    %146 = vector.load %arg7[%c0_99, %c0_100, %c0_101, %c0_102] : memref<1x8x8x32xf32, #tpu.memory_space<vmem>>, vector<1x8x8x32xf32>
    %147 = vector.shape_cast %146 : vector<1x8x8x32xf32> to vector<8x8x32xf32>
    %148 = vector.shape_cast %145 : vector<8x8x32xf32> to vector<1x8x8x32xf32>
    tpu.vector_store %arg7[%c0_99, %c0_100, %c0_101, %c0_102], %148 {strides = array<i32>} : memref<1x8x8x32xf32, #tpu.memory_space<vmem>>, vector<1x8x8x32xf32>,
    return
  }
  func.func @transform_0(%arg0: i32) -> (i32, i32, i32, i32) {
    %c0_i32 = arith.constant 0 : i32
    %c0_i32_0 = arith.constant 0 : i32
    %c0_i32_1 = arith.constant 0 : i32
    %c0_i32_2 = arith.constant 0 : i32
    return %arg0, %c0_i32, %c0_i32_0, %c0_i32_1 : i32, i32, i32, i32
  }
  func.func @transform_1(%arg0: i32) -> (i32, i32, i32) {
    %c0_i32 = arith.constant 0 : i32
    %c0_i32_0 = arith.constant 0 : i32
    %c0_i32_1 = arith.constant 0 : i32
    %c0_i32_2 = arith.constant 0 : i32
    return %c0_i32, %c0_i32_0, %c0_i32_1 : i32, i32, i32
  }
  func.func @transform_2(%arg0: i32) -> (i32, i32, i32) {
    %c0_i32 = arith.constant 0 : i32
    %c0_i32_0 = arith.constant 0 : i32
    %c0_i32_1 = arith.constant 0 : i32
    %c0_i32_2 = arith.constant 0 : i32
    return %c0_i32, %c0_i32_0, %c0_i32_1 : i32, i32, i32
  }
  func.func @transform_3(%arg0: i32) -> (i32, i32, i32) {
    %c0_i32 = arith.constant 0 : i32
    %c0_i32_0 = arith.constant 0 : i32
    %c0_i32_1 = arith.constant 0 : i32
    %c0_i32_2 = arith.constant 0 : i32
    return %c0_i32, %c0_i32_0, %c0_i32_1 : i32, i32, i32
  }
  func.func @transform_4(%arg0: i32) -> (i32, i32) {
    %c0_i32 = arith.constant 0 : i32
    %c0_i32_0 = arith.constant 0 : i32
    %c0_i32_1 = arith.constant 0 : i32
    return %c0_i32, %c0_i32_0 : i32, i32
  }
  func.func @transform_5(%arg0: i32) -> (i32, i32, i32, i32) {
    %c0_i32 = arith.constant 0 : i32
    %c0_i32_0 = arith.constant 0 : i32
    %c0_i32_1 = arith.constant 0 : i32
    %c0_i32_2 = arith.constant 0 : i32
    return %arg0, %c0_i32, %c0_i32_0, %c0_i32_1 : i32, i32, i32, i32
  }
  func.func @transform_6(%arg0: i32) -> (i32, i32, i32, i32) {
    %c0_i32 = arith.constant 0 : i32
    %c0_i32_0 = arith.constant 0 : i32
    %c0_i32_1 = arith.constant 0 : i32
    %c0_i32_2 = arith.constant 0 : i32
    return %arg0, %c0_i32, %c0_i32_0, %c0_i32_1 : i32, i32, i32, i32
  }
}

module attributes {stable_mosaic.version = 11 : i64} {
  func.func @kernel(%arg0: i32, %arg1: i32, %arg2: memref<16x256xf32, #tpu.memory_space<vmem>>, %arg3: memref<1x256xf32, #tpu.memory_space<vmem>>, %arg4: memref<1x256xf32, #tpu.memory_space<vmem>>, %arg5: memref<1x256x32xbf16, #tpu.memory_space<vmem>>, %arg6: memref<1x1x32xf32, #tpu.memory_space<vmem>>, %arg7: memref<1x32xf32, #tpu.memory_space<vmem>>, %arg8: memref<1x32xf32, #tpu.memory_space<vmem>>, %arg9: memref<1x16x32xf32, #tpu.memory_space<vmem>>) attributes {dimension_semantics = [#tpu.dimension_semantics<parallel>, #tpu.dimension_semantics<arbitrary>], iteration_bounds = array<i64: 1, 1>, scalar_prefetch = 0 : i64, scratch_operands = 0 : i64, tpu.core_type = #tpu.core_type<tc>, window_params = [{transform_indices = @transform_0, window_bounds = array<i64: 16, 256>}, {pipeline_mode = #tpu.pipeline_mode<synchronous>, transform_indices = @transform_1, window_bounds = array<i64: 1, 256>}, {pipeline_mode = #tpu.pipeline_mode<synchronous>, transform_indices = @transform_2, window_bounds = array<i64: 1, 256>}, {transform_indices = @transform_3, window_bounds = array<i64: 1, 256, 32>}, {transform_indices = @transform_4, window_bounds = array<i64: 1, 1, 32>}, {pipeline_mode = #tpu.pipeline_mode<synchronous>, transform_indices = @transform_5, window_bounds = array<i64: 1, 32>}, {pipeline_mode = #tpu.pipeline_mode<synchronous>, transform_indices = @transform_6, window_bounds = array<i64: 1, 32>}, {transform_indices = @transform_7, window_bounds = array<i64: 1, 16, 32>}]} {
    %c0 = arith.constant 0 : index
    %c0_0 = arith.constant 0 : index
    %0 = vector.load %arg2[%c0, %c0_0] : memref<16x256xf32, #tpu.memory_space<vmem>>, vector<16x256xf32>
    %c0_1 = arith.constant 0 : index
    %c0_2 = arith.constant 0 : index
    %1 = vector.load %arg3[%c0_1, %c0_2] : memref<1x256xf32, #tpu.memory_space<vmem>>, vector<1x256xf32>
    %c0_3 = arith.constant 0 : index
    %c0_4 = arith.constant 0 : index
    %2 = vector.load %arg4[%c0_3, %c0_4] : memref<1x256xf32, #tpu.memory_space<vmem>>, vector<1x256xf32>
    %cst = arith.constant dense<0.000000e+00> : vector<16xf32>
    %3 = vector.multi_reduction <add>, %0, %cst [1] : vector<16x256xf32> to vector<16xf32>
    %4 = vector.shape_cast %3 : vector<16xf32> to vector<16x1xf32>
    %cst_5 = arith.constant 2.560000e+02 : f32
    %5 = vector.broadcast %cst_5 : f32 to vector<16x1xf32>
    %6 = arith.divf %4, %5 : vector<16x1xf32>
    %7 = vector.broadcast %6 : vector<16x1xf32> to vector<16x256xf32>
    %8 = arith.subf %0, %7 : vector<16x256xf32>
    %9 = arith.mulf %8, %8 : vector<16x256xf32>
    %cst_6 = arith.constant dense<0.000000e+00> : vector<16xf32>
    %10 = vector.multi_reduction <add>, %9, %cst_6 [1] : vector<16x256xf32> to vector<16xf32>
    %11 = vector.shape_cast %10 : vector<16xf32> to vector<16x1xf32>
    %cst_7 = arith.constant 2.560000e+02 : f32
    %12 = vector.broadcast %cst_7 : f32 to vector<16x1xf32>
    %13 = arith.divf %11, %12 : vector<16x1xf32>
    %14 = vector.broadcast %6 : vector<16x1xf32> to vector<16x256xf32>
    %15 = arith.subf %0, %14 : vector<16x256xf32>
    %cst_8 = arith.constant 9.99999974E-6 : f32
    %16 = vector.broadcast %cst_8 : f32 to vector<16x1xf32>
    %17 = arith.addf %13, %16 : vector<16x1xf32>
    %18 = math.rsqrt %17 : vector<16x1xf32>
    %19 = vector.broadcast %18 : vector<16x1xf32> to vector<16x256xf32>
    %20 = arith.mulf %15, %19 : vector<16x256xf32>
    %21 = vector.broadcast %1 : vector<1x256xf32> to vector<16x256xf32>
    %22 = arith.mulf %20, %21 : vector<16x256xf32>
    %23 = vector.broadcast %2 : vector<1x256xf32> to vector<16x256xf32>
    %24 = arith.addf %22, %23 : vector<16x256xf32>
    %cst_9 = arith.constant 5.000000e-01 : f32
    %25 = vector.broadcast %cst_9 : f32 to vector<16x256xf32>
    %26 = arith.mulf %25, %24 : vector<16x256xf32>
    %cst_10 = arith.constant 0.707106769 : f32
    %27 = vector.broadcast %cst_10 : f32 to vector<16x256xf32>
    %28 = arith.mulf %24, %27 : vector<16x256xf32>
    %cst_11 = arith.constant -4.000000e+00 : f32
    %cst_12 = arith.constant 4.000000e+00 : f32
    %29 = vector.broadcast %cst_11 : f32 to vector<16x256xf32>
    %30 = arith.maximumf %29, %28 : vector<16x256xf32>
    %31 = vector.broadcast %cst_12 : f32 to vector<16x256xf32>
    %32 = arith.minimumf %31, %30 : vector<16x256xf32>
    %33 = arith.mulf %32, %32 : vector<16x256xf32>
    %cst_13 = arith.constant -2.72614237E-10 : f32
    %34 = vector.broadcast %cst_13 : f32 to vector<16x256xf32>
    %35 = arith.mulf %34, %33 : vector<16x256xf32>
    %cst_14 = arith.constant 2.77068146E-8 : f32
    %36 = vector.broadcast %cst_14 : f32 to vector<16x256xf32>
    %37 = arith.addf %35, %36 : vector<16x256xf32>
    %38 = arith.mulf %37, %33 : vector<16x256xf32>
    %cst_15 = arith.constant -2.10102394E-6 : f32
    %39 = vector.broadcast %cst_15 : f32 to vector<16x256xf32>
    %40 = arith.addf %38, %39 : vector<16x256xf32>
    %41 = arith.mulf %40, %33 : vector<16x256xf32>
    %cst_16 = arith.constant -5.69250624E-5 : f32
    %42 = vector.broadcast %cst_16 : f32 to vector<16x256xf32>
    %43 = arith.addf %41, %42 : vector<16x256xf32>
    %44 = arith.mulf %43, %33 : vector<16x256xf32>
    %cst_17 = arith.constant -7.34990637E-4 : f32
    %45 = vector.broadcast %cst_17 : f32 to vector<16x256xf32>
    %46 = arith.addf %44, %45 : vector<16x256xf32>
    %47 = arith.mulf %46, %33 : vector<16x256xf32>
    %cst_18 = arith.constant -2.954600e-03 : f32
    %48 = vector.broadcast %cst_18 : f32 to vector<16x256xf32>
    %49 = arith.addf %47, %48 : vector<16x256xf32>
    %50 = arith.mulf %49, %33 : vector<16x256xf32>
    %cst_19 = arith.constant -0.0160960332 : f32
    %51 = vector.broadcast %cst_19 : f32 to vector<16x256xf32>
    %52 = arith.addf %50, %51 : vector<16x256xf32>
    %53 = arith.mulf %52, %32 : vector<16x256xf32>
    %cst_20 = arith.constant -1.45660715E-5 : f32
    %54 = vector.broadcast %cst_20 : f32 to vector<16x256xf32>
    %55 = arith.mulf %54, %33 : vector<16x256xf32>
    %cst_21 = arith.constant -2.13374049E-4 : f32
    %56 = vector.broadcast %cst_21 : f32 to vector<16x256xf32>
    %57 = arith.addf %55, %56 : vector<16x256xf32>
    %58 = arith.mulf %57, %33 : vector<16x256xf32>
    %cst_22 = arith.constant -0.00168282702 : f32
    %59 = vector.broadcast %cst_22 : f32 to vector<16x256xf32>
    %60 = arith.addf %58, %59 : vector<16x256xf32>
    %61 = arith.mulf %60, %33 : vector<16x256xf32>
    %cst_23 = arith.constant -0.00737332925 : f32
    %62 = vector.broadcast %cst_23 : f32 to vector<16x256xf32>
    %63 = arith.addf %61, %62 : vector<16x256xf32>
    %64 = arith.mulf %63, %33 : vector<16x256xf32>
    %cst_24 = arith.constant -0.0142647391 : f32
    %65 = vector.broadcast %cst_24 : f32 to vector<16x256xf32>
    %66 = arith.addf %64, %65 : vector<16x256xf32>
    %67 = arith.divf %53, %66 : vector<16x256xf32>
    %cst_25 = arith.constant 1.000000e+00 : f32
    %68 = vector.broadcast %cst_25 : f32 to vector<16x256xf32>
    %69 = arith.addf %68, %67 : vector<16x256xf32>
    %70 = arith.mulf %26, %69 : vector<16x256xf32>
    %71 = arith.truncf %70 : vector<16x256xf32> to vector<16x256xbf16>
    %c0_26 = arith.constant 0 : index
    %c0_27 = arith.constant 0 : index
    %c0_28 = arith.constant 0 : index
    %72 = vector.load %arg5[%c0_26, %c0_27, %c0_28] : memref<1x256x32xbf16, #tpu.memory_space<vmem>>, vector<1x256x32xbf16>
    %73 = vector.shape_cast %72 : vector<1x256x32xbf16> to vector<256x32xbf16>
    %cst_29 = arith.constant dense<0.000000e+00> : vector<16x32xf32>
    %74 = tpu.matmul %71, %73, %cst_29 {dimension_numbers = #tpu.dot_dimension_numbers<[1], [0], [0], [1], [0, 0, 1, 1], [], []>} : vector<16x256xbf16>, vector<256x32xbf16>, vector<16x32xf32> -> vector<16x32xf32>
    %c0_30 = arith.constant 0 : index
    %c0_31 = arith.constant 0 : index
    %c0_32 = arith.constant 0 : index
    %75 = vector.load %arg6[%c0_30, %c0_31, %c0_32] : memref<1x1x32xf32, #tpu.memory_space<vmem>>, vector<1x1x32xf32>
    %76 = vector.shape_cast %75 : vector<1x1x32xf32> to vector<1x32xf32>
    %77 = vector.broadcast %76 : vector<1x32xf32> to vector<16x32xf32>
    %78 = arith.addf %74, %77 : vector<16x32xf32>
    %c0_33 = arith.constant 0 : index
    %c0_34 = arith.constant 0 : index
    %79 = vector.load %arg7[%c0_33, %c0_34] : memref<1x32xf32, #tpu.memory_space<vmem>>, vector<1x32xf32>
    %c0_35 = arith.constant 0 : index
    %c0_36 = arith.constant 0 : index
    %80 = vector.load %arg8[%c0_35, %c0_36] : memref<1x32xf32, #tpu.memory_space<vmem>>, vector<1x32xf32>
    %cst_37 = arith.constant dense<0.000000e+00> : vector<16xf32>
    %81 = vector.multi_reduction <add>, %78, %cst_37 [1] : vector<16x32xf32> to vector<16xf32>
    %82 = vector.shape_cast %81 : vector<16xf32> to vector<16x1xf32>
    %cst_38 = arith.constant 3.200000e+01 : f32
    %83 = vector.broadcast %cst_38 : f32 to vector<16x1xf32>
    %84 = arith.divf %82, %83 : vector<16x1xf32>
    %85 = vector.broadcast %84 : vector<16x1xf32> to vector<16x32xf32>
    %86 = arith.subf %78, %85 : vector<16x32xf32>
    %87 = arith.mulf %86, %86 : vector<16x32xf32>
    %cst_39 = arith.constant dense<0.000000e+00> : vector<16xf32>
    %88 = vector.multi_reduction <add>, %87, %cst_39 [1] : vector<16x32xf32> to vector<16xf32>
    %89 = vector.shape_cast %88 : vector<16xf32> to vector<16x1xf32>
    %cst_40 = arith.constant 3.200000e+01 : f32
    %90 = vector.broadcast %cst_40 : f32 to vector<16x1xf32>
    %91 = arith.divf %89, %90 : vector<16x1xf32>
    %92 = vector.broadcast %84 : vector<16x1xf32> to vector<16x32xf32>
    %93 = arith.subf %78, %92 : vector<16x32xf32>
    %cst_41 = arith.constant 9.99999974E-6 : f32
    %94 = vector.broadcast %cst_41 : f32 to vector<16x1xf32>
    %95 = arith.addf %91, %94 : vector<16x1xf32>
    %96 = math.rsqrt %95 : vector<16x1xf32>
    %97 = vector.broadcast %96 : vector<16x1xf32> to vector<16x32xf32>
    %98 = arith.mulf %93, %97 : vector<16x32xf32>
    %99 = vector.broadcast %79 : vector<1x32xf32> to vector<16x32xf32>
    %100 = arith.mulf %98, %99 : vector<16x32xf32>
    %101 = vector.broadcast %80 : vector<1x32xf32> to vector<16x32xf32>
    %102 = arith.addf %100, %101 : vector<16x32xf32>
    %cst_42 = arith.constant 5.000000e-01 : f32
    %103 = vector.broadcast %cst_42 : f32 to vector<16x32xf32>
    %104 = arith.mulf %103, %102 : vector<16x32xf32>
    %cst_43 = arith.constant 0.707106769 : f32
    %105 = vector.broadcast %cst_43 : f32 to vector<16x32xf32>
    %106 = arith.mulf %102, %105 : vector<16x32xf32>
    %cst_44 = arith.constant -4.000000e+00 : f32
    %cst_45 = arith.constant 4.000000e+00 : f32
    %107 = vector.broadcast %cst_44 : f32 to vector<16x32xf32>
    %108 = arith.maximumf %107, %106 : vector<16x32xf32>
    %109 = vector.broadcast %cst_45 : f32 to vector<16x32xf32>
    %110 = arith.minimumf %109, %108 : vector<16x32xf32>
    %111 = arith.mulf %110, %110 : vector<16x32xf32>
    %cst_46 = arith.constant -2.72614237E-10 : f32
    %112 = vector.broadcast %cst_46 : f32 to vector<16x32xf32>
    %113 = arith.mulf %112, %111 : vector<16x32xf32>
    %cst_47 = arith.constant 2.77068146E-8 : f32
    %114 = vector.broadcast %cst_47 : f32 to vector<16x32xf32>
    %115 = arith.addf %113, %114 : vector<16x32xf32>
    %116 = arith.mulf %115, %111 : vector<16x32xf32>
    %cst_48 = arith.constant -2.10102394E-6 : f32
    %117 = vector.broadcast %cst_48 : f32 to vector<16x32xf32>
    %118 = arith.addf %116, %117 : vector<16x32xf32>
    %119 = arith.mulf %118, %111 : vector<16x32xf32>
    %cst_49 = arith.constant -5.69250624E-5 : f32
    %120 = vector.broadcast %cst_49 : f32 to vector<16x32xf32>
    %121 = arith.addf %119, %120 : vector<16x32xf32>
    %122 = arith.mulf %121, %111 : vector<16x32xf32>
    %cst_50 = arith.constant -7.34990637E-4 : f32
    %123 = vector.broadcast %cst_50 : f32 to vector<16x32xf32>
    %124 = arith.addf %122, %123 : vector<16x32xf32>
    %125 = arith.mulf %124, %111 : vector<16x32xf32>
    %cst_51 = arith.constant -2.954600e-03 : f32
    %126 = vector.broadcast %cst_51 : f32 to vector<16x32xf32>
    %127 = arith.addf %125, %126 : vector<16x32xf32>
    %128 = arith.mulf %127, %111 : vector<16x32xf32>
    %cst_52 = arith.constant -0.0160960332 : f32
    %129 = vector.broadcast %cst_52 : f32 to vector<16x32xf32>
    %130 = arith.addf %128, %129 : vector<16x32xf32>
    %131 = arith.mulf %130, %110 : vector<16x32xf32>
    %cst_53 = arith.constant -1.45660715E-5 : f32
    %132 = vector.broadcast %cst_53 : f32 to vector<16x32xf32>
    %133 = arith.mulf %132, %111 : vector<16x32xf32>
    %cst_54 = arith.constant -2.13374049E-4 : f32
    %134 = vector.broadcast %cst_54 : f32 to vector<16x32xf32>
    %135 = arith.addf %133, %134 : vector<16x32xf32>
    %136 = arith.mulf %135, %111 : vector<16x32xf32>
    %cst_55 = arith.constant -0.00168282702 : f32
    %137 = vector.broadcast %cst_55 : f32 to vector<16x32xf32>
    %138 = arith.addf %136, %137 : vector<16x32xf32>
    %139 = arith.mulf %138, %111 : vector<16x32xf32>
    %cst_56 = arith.constant -0.00737332925 : f32
    %140 = vector.broadcast %cst_56 : f32 to vector<16x32xf32>
    %141 = arith.addf %139, %140 : vector<16x32xf32>
    %142 = arith.mulf %141, %111 : vector<16x32xf32>
    %cst_57 = arith.constant -0.0142647391 : f32
    %143 = vector.broadcast %cst_57 : f32 to vector<16x32xf32>
    %144 = arith.addf %142, %143 : vector<16x32xf32>
    %145 = arith.divf %131, %144 : vector<16x32xf32>
    %cst_58 = arith.constant 1.000000e+00 : f32
    %146 = vector.broadcast %cst_58 : f32 to vector<16x32xf32>
    %147 = arith.addf %146, %145 : vector<16x32xf32>
    %148 = arith.mulf %104, %147 : vector<16x32xf32>
    %c0_59 = arith.constant 0 : index
    %c0_60 = arith.constant 0 : index
    %c0_61 = arith.constant 0 : index
    %149 = vector.load %arg9[%c0_59, %c0_60, %c0_61] : memref<1x16x32xf32, #tpu.memory_space<vmem>>, vector<1x16x32xf32>
    %150 = vector.shape_cast %149 : vector<1x16x32xf32> to vector<16x32xf32>
    %151 = vector.shape_cast %148 : vector<16x32xf32> to vector<1x16x32xf32>
    tpu.vector_store %arg9[%c0_59, %c0_60, %c0_61], %151 {strides = array<i32>} : memref<1x16x32xf32, #tpu.memory_space<vmem>>, vector<1x16x32xf32>,
    return
  }
  func.func @transform_0(%arg0: i32, %arg1: i32) -> (i32, i32) {
    %c0_i32 = arith.constant 0 : i32
    %c0_i32_0 = arith.constant 0 : i32
    return %arg0, %c0_i32 : i32, i32
  }
  func.func @transform_1(%arg0: i32, %arg1: i32) -> (i32, i32) {
    %c0_i32 = arith.constant 0 : i32
    %c0_i32_0 = arith.constant 0 : i32
    %c0_i32_1 = arith.constant 0 : i32
    return %c0_i32, %c0_i32_0 : i32, i32
  }
  func.func @transform_2(%arg0: i32, %arg1: i32) -> (i32, i32) {
    %c0_i32 = arith.constant 0 : i32
    %c0_i32_0 = arith.constant 0 : i32
    %c0_i32_1 = arith.constant 0 : i32
    return %c0_i32, %c0_i32_0 : i32, i32
  }
  func.func @transform_3(%arg0: i32, %arg1: i32) -> (i32, i32, i32) {
    %c0_i32 = arith.constant 0 : i32
    %c0_i32_0 = arith.constant 0 : i32
    %c0_i32_1 = arith.constant 0 : i32
    return %arg1, %c0_i32, %c0_i32_0 : i32, i32, i32
  }
  func.func @transform_4(%arg0: i32, %arg1: i32) -> (i32, i32, i32) {
    %c0_i32 = arith.constant 0 : i32
    %c0_i32_0 = arith.constant 0 : i32
    %c0_i32_1 = arith.constant 0 : i32
    return %arg1, %c0_i32, %c0_i32_0 : i32, i32, i32
  }
  func.func @transform_5(%arg0: i32, %arg1: i32) -> (i32, i32) {
    %c0_i32 = arith.constant 0 : i32
    %c0_i32_0 = arith.constant 0 : i32
    %c0_i32_1 = arith.constant 0 : i32
    return %c0_i32, %c0_i32_0 : i32, i32
  }
  func.func @transform_6(%arg0: i32, %arg1: i32) -> (i32, i32) {
    %c0_i32 = arith.constant 0 : i32
    %c0_i32_0 = arith.constant 0 : i32
    %c0_i32_1 = arith.constant 0 : i32
    return %c0_i32, %c0_i32_0 : i32, i32
  }
  func.func @transform_7(%arg0: i32, %arg1: i32) -> (i32, i32, i32) {
    %c0_i32 = arith.constant 0 : i32
    %c0_i32_0 = arith.constant 0 : i32
    return %arg1, %arg0, %c0_i32 : i32, i32, i32
  }
}

module attributes {stable_mosaic.version = 11 : i64} {
  func.func @kernel(%arg0: i32, %arg1: i32, %arg2: memref<16x32xf32, #tpu.memory_space<vmem>>, %arg3: memref<1x32xf32, #tpu.memory_space<vmem>>, %arg4: memref<1x32xf32, #tpu.memory_space<vmem>>, %arg5: memref<1x32x96xbf16, #tpu.memory_space<vmem>>, %arg6: memref<1x1x96xf32, #tpu.memory_space<vmem>>, %arg7: memref<1x16x96xf32, #tpu.memory_space<vmem>>) attributes {dimension_semantics = [#tpu.dimension_semantics<parallel>, #tpu.dimension_semantics<arbitrary>], iteration_bounds = array<i64: 1, 2>, scalar_prefetch = 0 : i64, scratch_operands = 0 : i64, tpu.core_type = #tpu.core_type<tc>, window_params = [{transform_indices = @transform_0, window_bounds = array<i64: 16, 32>}, {pipeline_mode = #tpu.pipeline_mode<synchronous>, transform_indices = @transform_1, window_bounds = array<i64: 1, 32>}, {pipeline_mode = #tpu.pipeline_mode<synchronous>, transform_indices = @transform_2, window_bounds = array<i64: 1, 32>}, {transform_indices = @transform_3, window_bounds = array<i64: 1, 32, 96>}, {transform_indices = @transform_4, window_bounds = array<i64: 1, 1, 96>}, {transform_indices = @transform_5, window_bounds = array<i64: 1, 16, 96>}]} {
    %c0 = arith.constant 0 : index
    %c0_0 = arith.constant 0 : index
    %0 = vector.load %arg2[%c0, %c0_0] : memref<16x32xf32, #tpu.memory_space<vmem>>, vector<16x32xf32>
    %c0_1 = arith.constant 0 : index
    %c0_2 = arith.constant 0 : index
    %1 = vector.load %arg3[%c0_1, %c0_2] : memref<1x32xf32, #tpu.memory_space<vmem>>, vector<1x32xf32>
    %c0_3 = arith.constant 0 : index
    %c0_4 = arith.constant 0 : index
    %2 = vector.load %arg4[%c0_3, %c0_4] : memref<1x32xf32, #tpu.memory_space<vmem>>, vector<1x32xf32>
    %cst = arith.constant dense<0.000000e+00> : vector<16xf32>
    %3 = vector.multi_reduction <add>, %0, %cst [1] : vector<16x32xf32> to vector<16xf32>
    %4 = vector.shape_cast %3 : vector<16xf32> to vector<16x1xf32>
    %cst_5 = arith.constant 3.200000e+01 : f32
    %5 = vector.broadcast %cst_5 : f32 to vector<16x1xf32>
    %6 = arith.divf %4, %5 : vector<16x1xf32>
    %7 = vector.broadcast %6 : vector<16x1xf32> to vector<16x32xf32>
    %8 = arith.subf %0, %7 : vector<16x32xf32>
    %9 = arith.mulf %8, %8 : vector<16x32xf32>
    %cst_6 = arith.constant dense<0.000000e+00> : vector<16xf32>
    %10 = vector.multi_reduction <add>, %9, %cst_6 [1] : vector<16x32xf32> to vector<16xf32>
    %11 = vector.shape_cast %10 : vector<16xf32> to vector<16x1xf32>
    %cst_7 = arith.constant 3.200000e+01 : f32
    %12 = vector.broadcast %cst_7 : f32 to vector<16x1xf32>
    %13 = arith.divf %11, %12 : vector<16x1xf32>
    %14 = vector.broadcast %6 : vector<16x1xf32> to vector<16x32xf32>
    %15 = arith.subf %0, %14 : vector<16x32xf32>
    %cst_8 = arith.constant 9.99999974E-6 : f32
    %16 = vector.broadcast %cst_8 : f32 to vector<16x1xf32>
    %17 = arith.addf %13, %16 : vector<16x1xf32>
    %18 = math.rsqrt %17 : vector<16x1xf32>
    %19 = vector.broadcast %18 : vector<16x1xf32> to vector<16x32xf32>
    %20 = arith.mulf %15, %19 : vector<16x32xf32>
    %21 = vector.broadcast %1 : vector<1x32xf32> to vector<16x32xf32>
    %22 = arith.mulf %20, %21 : vector<16x32xf32>
    %23 = vector.broadcast %2 : vector<1x32xf32> to vector<16x32xf32>
    %24 = arith.addf %22, %23 : vector<16x32xf32>
    %cst_9 = arith.constant 5.000000e-01 : f32
    %25 = vector.broadcast %cst_9 : f32 to vector<16x32xf32>
    %26 = arith.mulf %25, %24 : vector<16x32xf32>
    %cst_10 = arith.constant 0.707106769 : f32
    %27 = vector.broadcast %cst_10 : f32 to vector<16x32xf32>
    %28 = arith.mulf %24, %27 : vector<16x32xf32>
    %cst_11 = arith.constant -4.000000e+00 : f32
    %cst_12 = arith.constant 4.000000e+00 : f32
    %29 = vector.broadcast %cst_11 : f32 to vector<16x32xf32>
    %30 = arith.maximumf %29, %28 : vector<16x32xf32>
    %31 = vector.broadcast %cst_12 : f32 to vector<16x32xf32>
    %32 = arith.minimumf %31, %30 : vector<16x32xf32>
    %33 = arith.mulf %32, %32 : vector<16x32xf32>
    %cst_13 = arith.constant -2.72614237E-10 : f32
    %34 = vector.broadcast %cst_13 : f32 to vector<16x32xf32>
    %35 = arith.mulf %34, %33 : vector<16x32xf32>
    %cst_14 = arith.constant 2.77068146E-8 : f32
    %36 = vector.broadcast %cst_14 : f32 to vector<16x32xf32>
    %37 = arith.addf %35, %36 : vector<16x32xf32>
    %38 = arith.mulf %37, %33 : vector<16x32xf32>
    %cst_15 = arith.constant -2.10102394E-6 : f32
    %39 = vector.broadcast %cst_15 : f32 to vector<16x32xf32>
    %40 = arith.addf %38, %39 : vector<16x32xf32>
    %41 = arith.mulf %40, %33 : vector<16x32xf32>
    %cst_16 = arith.constant -5.69250624E-5 : f32
    %42 = vector.broadcast %cst_16 : f32 to vector<16x32xf32>
    %43 = arith.addf %41, %42 : vector<16x32xf32>
    %44 = arith.mulf %43, %33 : vector<16x32xf32>
    %cst_17 = arith.constant -7.34990637E-4 : f32
    %45 = vector.broadcast %cst_17 : f32 to vector<16x32xf32>
    %46 = arith.addf %44, %45 : vector<16x32xf32>
    %47 = arith.mulf %46, %33 : vector<16x32xf32>
    %cst_18 = arith.constant -2.954600e-03 : f32
    %48 = vector.broadcast %cst_18 : f32 to vector<16x32xf32>
    %49 = arith.addf %47, %48 : vector<16x32xf32>
    %50 = arith.mulf %49, %33 : vector<16x32xf32>
    %cst_19 = arith.constant -0.0160960332 : f32
    %51 = vector.broadcast %cst_19 : f32 to vector<16x32xf32>
    %52 = arith.addf %50, %51 : vector<16x32xf32>
    %53 = arith.mulf %52, %32 : vector<16x32xf32>
    %cst_20 = arith.constant -1.45660715E-5 : f32
    %54 = vector.broadcast %cst_20 : f32 to vector<16x32xf32>
    %55 = arith.mulf %54, %33 : vector<16x32xf32>
    %cst_21 = arith.constant -2.13374049E-4 : f32
    %56 = vector.broadcast %cst_21 : f32 to vector<16x32xf32>
    %57 = arith.addf %55, %56 : vector<16x32xf32>
    %58 = arith.mulf %57, %33 : vector<16x32xf32>
    %cst_22 = arith.constant -0.00168282702 : f32
    %59 = vector.broadcast %cst_22 : f32 to vector<16x32xf32>
    %60 = arith.addf %58, %59 : vector<16x32xf32>
    %61 = arith.mulf %60, %33 : vector<16x32xf32>
    %cst_23 = arith.constant -0.00737332925 : f32
    %62 = vector.broadcast %cst_23 : f32 to vector<16x32xf32>
    %63 = arith.addf %61, %62 : vector<16x32xf32>
    %64 = arith.mulf %63, %33 : vector<16x32xf32>
    %cst_24 = arith.constant -0.0142647391 : f32
    %65 = vector.broadcast %cst_24 : f32 to vector<16x32xf32>
    %66 = arith.addf %64, %65 : vector<16x32xf32>
    %67 = arith.divf %53, %66 : vector<16x32xf32>
    %cst_25 = arith.constant 1.000000e+00 : f32
    %68 = vector.broadcast %cst_25 : f32 to vector<16x32xf32>
    %69 = arith.addf %68, %67 : vector<16x32xf32>
    %70 = arith.mulf %26, %69 : vector<16x32xf32>
    %71 = arith.truncf %70 : vector<16x32xf32> to vector<16x32xbf16>
    %c0_26 = arith.constant 0 : index
    %c0_27 = arith.constant 0 : index
    %c0_28 = arith.constant 0 : index
    %72 = vector.load %arg5[%c0_26, %c0_27, %c0_28] : memref<1x32x96xbf16, #tpu.memory_space<vmem>>, vector<1x32x96xbf16>
    %73 = vector.shape_cast %72 : vector<1x32x96xbf16> to vector<32x96xbf16>
    %cst_29 = arith.constant dense<0.000000e+00> : vector<16x96xf32>
    %74 = tpu.matmul %71, %73, %cst_29 {dimension_numbers = #tpu.dot_dimension_numbers<[1], [0], [0], [1], [0, 0, 1, 1], [], []>} : vector<16x32xbf16>, vector<32x96xbf16>, vector<16x96xf32> -> vector<16x96xf32>
    %c0_30 = arith.constant 0 : index
    %c0_31 = arith.constant 0 : index
    %c0_32 = arith.constant 0 : index
    %75 = vector.load %arg6[%c0_30, %c0_31, %c0_32] : memref<1x1x96xf32, #tpu.memory_space<vmem>>, vector<1x1x96xf32>
    %76 = vector.shape_cast %75 : vector<1x1x96xf32> to vector<1x96xf32>
    %77 = vector.broadcast %76 : vector<1x96xf32> to vector<16x96xf32>
    %78 = arith.addf %74, %77 : vector<16x96xf32>
    %c0_33 = arith.constant 0 : index
    %c0_34 = arith.constant 0 : index
    %c0_35 = arith.constant 0 : index
    %79 = vector.load %arg7[%c0_33, %c0_34, %c0_35] : memref<1x16x96xf32, #tpu.memory_space<vmem>>, vector<1x16x96xf32>
    %80 = vector.shape_cast %79 : vector<1x16x96xf32> to vector<16x96xf32>
    %81 = vector.shape_cast %78 : vector<16x96xf32> to vector<1x16x96xf32>
    tpu.vector_store %arg7[%c0_33, %c0_34, %c0_35], %81 {strides = array<i32>} : memref<1x16x96xf32, #tpu.memory_space<vmem>>, vector<1x16x96xf32>,
    return
  }
  func.func @transform_0(%arg0: i32, %arg1: i32) -> (i32, i32) {
    %c0_i32 = arith.constant 0 : i32
    %c0_i32_0 = arith.constant 0 : i32
    return %arg0, %c0_i32 : i32, i32
  }
  func.func @transform_1(%arg0: i32, %arg1: i32) -> (i32, i32) {
    %c0_i32 = arith.constant 0 : i32
    %c0_i32_0 = arith.constant 0 : i32
    %c0_i32_1 = arith.constant 0 : i32
    return %c0_i32, %c0_i32_0 : i32, i32
  }
  func.func @transform_2(%arg0: i32, %arg1: i32) -> (i32, i32) {
    %c0_i32 = arith.constant 0 : i32
    %c0_i32_0 = arith.constant 0 : i32
    %c0_i32_1 = arith.constant 0 : i32
    return %c0_i32, %c0_i32_0 : i32, i32
  }
  func.func @transform_3(%arg0: i32, %arg1: i32) -> (i32, i32, i32) {
    %c0_i32 = arith.constant 0 : i32
    %c0_i32_0 = arith.constant 0 : i32
    %c0_i32_1 = arith.constant 0 : i32
    return %arg1, %c0_i32, %c0_i32_0 : i32, i32, i32
  }
  func.func @transform_4(%arg0: i32, %arg1: i32) -> (i32, i32, i32) {
    %c0_i32 = arith.constant 0 : i32
    %c0_i32_0 = arith.constant 0 : i32
    %c0_i32_1 = arith.constant 0 : i32
    return %arg1, %c0_i32, %c0_i32_0 : i32, i32, i32
  }
  func.func @transform_5(%arg0: i32, %arg1: i32) -> (i32, i32, i32) {
    %c0_i32 = arith.constant 0 : i32
    %c0_i32_0 = arith.constant 0 : i32
    return %arg1, %arg0, %c0_i32 : i32, i32, i32
  }
}

module attributes {stable_mosaic.version = 11 : i64} {
  func.func @kernel(%arg0: i32, %arg1: memref<1x8x2x96xf32, #tpu.memory_space<vmem>>, %arg2: memref<1x8x2x96xf32, #tpu.memory_space<vmem>>, %arg3: memref<2x32x96xbf16, #tpu.memory_space<vmem>>, %arg4: memref<2x1x96xf32, #tpu.memory_space<vmem>>, %arg5: memref<8x2x32xf32, #tpu.memory_space<vmem>>, %arg6: memref<8x2x32xf32, #tpu.memory_space<vmem>>, %arg7: memref<2x2x32xf32, #tpu.memory_space<vmem>>) attributes {dimension_semantics = [#tpu.dimension_semantics<arbitrary>], iteration_bounds = array<i64: 1>, scalar_prefetch = 0 : i64, scratch_operands = 1 : i64, tpu.core_type = #tpu.core_type<tc>, window_params = [{transform_indices = @transform_0, window_bounds = array<i64: 1, 8, 2, 96>}, {transform_indices = @transform_1, window_bounds = array<i64: 1, 8, 2, 96>}, {pipeline_mode = #tpu.pipeline_mode<synchronous>, transform_indices = @transform_2, window_bounds = array<i64: 2, 32, 96>}, {pipeline_mode = #tpu.pipeline_mode<synchronous>, transform_indices = @transform_3, window_bounds = array<i64: 2, 1, 96>}, {transform_indices = @transform_4, window_bounds = array<i64: 8, 2, 32>}, {transform_indices = @transform_5, window_bounds = array<i64: 8, 2, 32>}]} {
    %c0_i32 = arith.constant 0 : i32
    %0 = arith.cmpi eq, %arg0, %c0_i32 : i32
    %1 = arith.extui %0 : i1 to i32
    %c0_i32_0 = arith.constant 0 : i32
    %2 = arith.cmpi ne, %1, %c0_i32_0 : i32
    scf.if %2 {
      %cst_192 = arith.constant 0.000000e+00 : f32
      %581 = vector.broadcast %cst_192 : f32 to vector<2x2x32xf32>
      %c0_193 = arith.constant 0 : index
      %c0_194 = arith.constant 0 : index
      %c0_195 = arith.constant 0 : index
      %582 = vector.load %arg7[%c0_193, %c0_194, %c0_195] : memref<2x2x32xf32, #tpu.memory_space<vmem>>, vector<2x2x32xf32>
      tpu.vector_store %arg7[%c0_193, %c0_194, %c0_195], %581 {strides = array<i32>} : memref<2x2x32xf32, #tpu.memory_space<vmem>>, vector<2x2x32xf32>,
    } else {
    }
    %c0 = arith.constant 0 : index
    %c0_1 = arith.constant 0 : index
    %c0_2 = arith.constant 0 : index
    %3 = vector.load %arg3[%c0, %c0_1, %c0_2] : memref<2x32x96xbf16, #tpu.memory_space<vmem>>, vector<1x32x96xbf16>
    %4 = vector.shape_cast %3 : vector<1x32x96xbf16> to vector<32x96xbf16>
    %c1 = arith.constant 1 : index
    %c0_3 = arith.constant 0 : index
    %c0_4 = arith.constant 0 : index
    %5 = vector.load %arg3[%c1, %c0_3, %c0_4] : memref<2x32x96xbf16, #tpu.memory_space<vmem>>, vector<1x32x96xbf16>
    %6 = vector.shape_cast %5 : vector<1x32x96xbf16> to vector<32x96xbf16>
    %c0_5 = arith.constant 0 : index
    %c0_6 = arith.constant 0 : index
    %c0_7 = arith.constant 0 : index
    %7 = vector.load %arg4[%c0_5, %c0_6, %c0_7] : memref<2x1x96xf32, #tpu.memory_space<vmem>>, vector<1x1x96xf32>
    %8 = vector.shape_cast %7 : vector<1x1x96xf32> to vector<1x96xf32>
    %c1_8 = arith.constant 1 : index
    %c0_9 = arith.constant 0 : index
    %c0_10 = arith.constant 0 : index
    %9 = vector.load %arg4[%c1_8, %c0_9, %c0_10] : memref<2x1x96xf32, #tpu.memory_space<vmem>>, vector<1x1x96xf32>
    %10 = vector.shape_cast %9 : vector<1x1x96xf32> to vector<1x96xf32>
    %c0_11 = arith.constant 0 : index
    %c0_12 = arith.constant 0 : index
    %c0_13 = arith.constant 0 : index
    %11 = vector.load %arg7[%c0_11, %c0_12, %c0_13] : memref<2x2x32xf32, #tpu.memory_space<vmem>>, vector<1x2x32xf32>
    %12 = vector.shape_cast %11 : vector<1x2x32xf32> to vector<2x32xf32>
    %c1_14 = arith.constant 1 : index
    %c0_15 = arith.constant 0 : index
    %c0_16 = arith.constant 0 : index
    %13 = vector.load %arg7[%c1_14, %c0_15, %c0_16] : memref<2x2x32xf32, #tpu.memory_space<vmem>>, vector<1x2x32xf32>
    %14 = vector.shape_cast %13 : vector<1x2x32xf32> to vector<2x32xf32>
    %15 = arith.truncf %12 : vector<2x32xf32> to vector<2x32xbf16>
    %cst = arith.constant dense<0.000000e+00> : vector<2x96xf32>
    %16 = tpu.matmul %15, %4, %cst {dimension_numbers = #tpu.dot_dimension_numbers<[1], [0], [0], [1], [0, 0, 1, 1], [], []>} : vector<2x32xbf16>, vector<32x96xbf16>, vector<2x96xf32> -> vector<2x96xf32>
    %17 = vector.broadcast %8 : vector<1x96xf32> to vector<2x96xf32>
    %18 = arith.addf %16, %17 : vector<2x96xf32>
    %19 = arith.truncf %14 : vector<2x32xf32> to vector<2x32xbf16>
    %cst_17 = arith.constant dense<0.000000e+00> : vector<2x96xf32>
    %20 = tpu.matmul %19, %6, %cst_17 {dimension_numbers = #tpu.dot_dimension_numbers<[1], [0], [0], [1], [0, 0, 1, 1], [], []>} : vector<2x32xbf16>, vector<32x96xbf16>, vector<2x96xf32> -> vector<2x96xf32>
    %21 = vector.broadcast %10 : vector<1x96xf32> to vector<2x96xf32>
    %22 = arith.addf %20, %21 : vector<2x96xf32>
    %c0_18 = arith.constant 0 : index
    %c0_19 = arith.constant 0 : index
    %c0_20 = arith.constant 0 : index
    %c0_21 = arith.constant 0 : index
    %23 = vector.load %arg1[%c0_18, %c0_19, %c0_20, %c0_21] : memref<1x8x2x96xf32, #tpu.memory_space<vmem>>, vector<1x1x2x96xf32>
    %24 = vector.shape_cast %23 : vector<1x1x2x96xf32> to vector<2x96xf32>
    %25 = vector.extract_strided_slice %24 {offsets = [0, 0], sizes = [2, 32], strides = [1, 1]} : vector<2x96xf32> to vector<2x32xf32>
    %26 = vector.extract_strided_slice %18 {offsets = [0, 0], sizes = [2, 32], strides = [1, 1]} : vector<2x96xf32> to vector<2x32xf32>
    %27 = arith.addf %25, %26 : vector<2x32xf32>
    %28 = arith.negf %27 : vector<2x32xf32>
    %29 = math.exp %28 : vector<2x32xf32>
    %cst_22 = arith.constant 1.000000e+00 : f32
    %30 = vector.broadcast %cst_22 : f32 to vector<2x32xf32>
    %31 = arith.addf %30, %29 : vector<2x32xf32>
    %32 = arith.divf %30, %31 : vector<2x32xf32>
    %33 = vector.extract_strided_slice %24 {offsets = [0, 32], sizes = [2, 32], strides = [1, 1]} : vector<2x96xf32> to vector<2x32xf32>
    %34 = vector.extract_strided_slice %18 {offsets = [0, 32], sizes = [2, 32], strides = [1, 1]} : vector<2x96xf32> to vector<2x32xf32>
    %35 = arith.addf %33, %34 : vector<2x32xf32>
    %36 = arith.negf %35 : vector<2x32xf32>
    %37 = math.exp %36 : vector<2x32xf32>
    %cst_23 = arith.constant 1.000000e+00 : f32
    %38 = vector.broadcast %cst_23 : f32 to vector<2x32xf32>
    %39 = arith.addf %38, %37 : vector<2x32xf32>
    %40 = arith.divf %38, %39 : vector<2x32xf32>
    %41 = vector.extract_strided_slice %24 {offsets = [0, 64], sizes = [2, 32], strides = [1, 1]} : vector<2x96xf32> to vector<2x32xf32>
    %42 = vector.extract_strided_slice %18 {offsets = [0, 64], sizes = [2, 32], strides = [1, 1]} : vector<2x96xf32> to vector<2x32xf32>
    %43 = arith.mulf %32, %42 : vector<2x32xf32>
    %44 = arith.addf %41, %43 : vector<2x32xf32>
    %45 = math.tanh %44 : vector<2x32xf32>
    %cst_24 = arith.constant 1.000000e+00 : f32
    %46 = vector.broadcast %cst_24 : f32 to vector<2x32xf32>
    %47 = arith.subf %46, %40 : vector<2x32xf32>
    %48 = arith.mulf %47, %45 : vector<2x32xf32>
    %49 = arith.mulf %40, %12 : vector<2x32xf32>
    %50 = arith.addf %48, %49 : vector<2x32xf32>
    %c0_25 = arith.constant 0 : index
    %c7 = arith.constant 7 : index
    %c0_26 = arith.constant 0 : index
    %c0_27 = arith.constant 0 : index
    %51 = vector.load %arg2[%c0_25, %c7, %c0_26, %c0_27] : memref<1x8x2x96xf32, #tpu.memory_space<vmem>>, vector<1x1x2x96xf32>
    %52 = vector.shape_cast %51 : vector<1x1x2x96xf32> to vector<2x96xf32>
    %53 = vector.extract_strided_slice %52 {offsets = [0, 0], sizes = [2, 32], strides = [1, 1]} : vector<2x96xf32> to vector<2x32xf32>
    %54 = vector.extract_strided_slice %22 {offsets = [0, 0], sizes = [2, 32], strides = [1, 1]} : vector<2x96xf32> to vector<2x32xf32>
    %55 = arith.addf %53, %54 : vector<2x32xf32>
    %56 = arith.negf %55 : vector<2x32xf32>
    %57 = math.exp %56 : vector<2x32xf32>
    %cst_28 = arith.constant 1.000000e+00 : f32
    %58 = vector.broadcast %cst_28 : f32 to vector<2x32xf32>
    %59 = arith.addf %58, %57 : vector<2x32xf32>
    %60 = arith.divf %58, %59 : vector<2x32xf32>
    %61 = vector.extract_strided_slice %52 {offsets = [0, 32], sizes = [2, 32], strides = [1, 1]} : vector<2x96xf32> to vector<2x32xf32>
    %62 = vector.extract_strided_slice %22 {offsets = [0, 32], sizes = [2, 32], strides = [1, 1]} : vector<2x96xf32> to vector<2x32xf32>
    %63 = arith.addf %61, %62 : vector<2x32xf32>
    %64 = arith.negf %63 : vector<2x32xf32>
    %65 = math.exp %64 : vector<2x32xf32>
    %cst_29 = arith.constant 1.000000e+00 : f32
    %66 = vector.broadcast %cst_29 : f32 to vector<2x32xf32>
    %67 = arith.addf %66, %65 : vector<2x32xf32>
    %68 = arith.divf %66, %67 : vector<2x32xf32>
    %69 = vector.extract_strided_slice %52 {offsets = [0, 64], sizes = [2, 32], strides = [1, 1]} : vector<2x96xf32> to vector<2x32xf32>
    %70 = vector.extract_strided_slice %22 {offsets = [0, 64], sizes = [2, 32], strides = [1, 1]} : vector<2x96xf32> to vector<2x32xf32>
    %71 = arith.mulf %60, %70 : vector<2x32xf32>
    %72 = arith.addf %69, %71 : vector<2x32xf32>
    %73 = math.tanh %72 : vector<2x32xf32>
    %cst_30 = arith.constant 1.000000e+00 : f32
    %74 = vector.broadcast %cst_30 : f32 to vector<2x32xf32>
    %75 = arith.subf %74, %68 : vector<2x32xf32>
    %76 = arith.mulf %75, %73 : vector<2x32xf32>
    %77 = arith.mulf %68, %14 : vector<2x32xf32>
    %78 = arith.addf %76, %77 : vector<2x32xf32>
    %c0_31 = arith.constant 0 : index
    %c0_32 = arith.constant 0 : index
    %c0_33 = arith.constant 0 : index
    %79 = vector.load %arg5[%c0_31, %c0_32, %c0_33] : memref<8x2x32xf32, #tpu.memory_space<vmem>>, vector<1x2x32xf32>
    %80 = vector.shape_cast %79 : vector<1x2x32xf32> to vector<2x32xf32>
    %81 = vector.shape_cast %50 : vector<2x32xf32> to vector<1x2x32xf32>
    tpu.vector_store %arg5[%c0_31, %c0_32, %c0_33], %81 {strides = array<i32>} : memref<8x2x32xf32, #tpu.memory_space<vmem>>, vector<1x2x32xf32>,
    %c7_34 = arith.constant 7 : index
    %c0_35 = arith.constant 0 : index
    %c0_36 = arith.constant 0 : index
    %82 = vector.load %arg6[%c7_34, %c0_35, %c0_36] : memref<8x2x32xf32, #tpu.memory_space<vmem>>, vector<1x2x32xf32>
    %83 = vector.shape_cast %82 : vector<1x2x32xf32> to vector<2x32xf32>
    %84 = vector.shape_cast %78 : vector<2x32xf32> to vector<1x2x32xf32>
    tpu.vector_store %arg6[%c7_34, %c0_35, %c0_36], %84 {strides = array<i32>} : memref<8x2x32xf32, #tpu.memory_space<vmem>>, vector<1x2x32xf32>,
    %85 = arith.truncf %50 : vector<2x32xf32> to vector<2x32xbf16>
    %cst_37 = arith.constant dense<0.000000e+00> : vector<2x96xf32>
    %86 = tpu.matmul %85, %4, %cst_37 {dimension_numbers = #tpu.dot_dimension_numbers<[1], [0], [0], [1], [0, 0, 1, 1], [], []>} : vector<2x32xbf16>, vector<32x96xbf16>, vector<2x96xf32> -> vector<2x96xf32>
    %87 = vector.broadcast %8 : vector<1x96xf32> to vector<2x96xf32>
    %88 = arith.addf %86, %87 : vector<2x96xf32>
    %89 = arith.truncf %78 : vector<2x32xf32> to vector<2x32xbf16>
    %cst_38 = arith.constant dense<0.000000e+00> : vector<2x96xf32>
    %90 = tpu.matmul %89, %6, %cst_38 {dimension_numbers = #tpu.dot_dimension_numbers<[1], [0], [0], [1], [0, 0, 1, 1], [], []>} : vector<2x32xbf16>, vector<32x96xbf16>, vector<2x96xf32> -> vector<2x96xf32>
    %91 = vector.broadcast %10 : vector<1x96xf32> to vector<2x96xf32>
    %92 = arith.addf %90, %91 : vector<2x96xf32>
    %c0_39 = arith.constant 0 : index
    %c1_40 = arith.constant 1 : index
    %c0_41 = arith.constant 0 : index
    %c0_42 = arith.constant 0 : index
    %93 = vector.load %arg1[%c0_39, %c1_40, %c0_41, %c0_42] : memref<1x8x2x96xf32, #tpu.memory_space<vmem>>, vector<1x1x2x96xf32>
    %94 = vector.shape_cast %93 : vector<1x1x2x96xf32> to vector<2x96xf32>
    %95 = vector.extract_strided_slice %94 {offsets = [0, 0], sizes = [2, 32], strides = [1, 1]} : vector<2x96xf32> to vector<2x32xf32>
    %96 = vector.extract_strided_slice %88 {offsets = [0, 0], sizes = [2, 32], strides = [1, 1]} : vector<2x96xf32> to vector<2x32xf32>
    %97 = arith.addf %95, %96 : vector<2x32xf32>
    %98 = arith.negf %97 : vector<2x32xf32>
    %99 = math.exp %98 : vector<2x32xf32>
    %cst_43 = arith.constant 1.000000e+00 : f32
    %100 = vector.broadcast %cst_43 : f32 to vector<2x32xf32>
    %101 = arith.addf %100, %99 : vector<2x32xf32>
    %102 = arith.divf %100, %101 : vector<2x32xf32>
    %103 = vector.extract_strided_slice %94 {offsets = [0, 32], sizes = [2, 32], strides = [1, 1]} : vector<2x96xf32> to vector<2x32xf32>
    %104 = vector.extract_strided_slice %88 {offsets = [0, 32], sizes = [2, 32], strides = [1, 1]} : vector<2x96xf32> to vector<2x32xf32>
    %105 = arith.addf %103, %104 : vector<2x32xf32>
    %106 = arith.negf %105 : vector<2x32xf32>
    %107 = math.exp %106 : vector<2x32xf32>
    %cst_44 = arith.constant 1.000000e+00 : f32
    %108 = vector.broadcast %cst_44 : f32 to vector<2x32xf32>
    %109 = arith.addf %108, %107 : vector<2x32xf32>
    %110 = arith.divf %108, %109 : vector<2x32xf32>
    %111 = vector.extract_strided_slice %94 {offsets = [0, 64], sizes = [2, 32], strides = [1, 1]} : vector<2x96xf32> to vector<2x32xf32>
    %112 = vector.extract_strided_slice %88 {offsets = [0, 64], sizes = [2, 32], strides = [1, 1]} : vector<2x96xf32> to vector<2x32xf32>
    %113 = arith.mulf %102, %112 : vector<2x32xf32>
    %114 = arith.addf %111, %113 : vector<2x32xf32>
    %115 = math.tanh %114 : vector<2x32xf32>
    %cst_45 = arith.constant 1.000000e+00 : f32
    %116 = vector.broadcast %cst_45 : f32 to vector<2x32xf32>
    %117 = arith.subf %116, %110 : vector<2x32xf32>
    %118 = arith.mulf %117, %115 : vector<2x32xf32>
    %119 = arith.mulf %110, %50 : vector<2x32xf32>
    %120 = arith.addf %118, %119 : vector<2x32xf32>
    %c0_46 = arith.constant 0 : index
    %c6 = arith.constant 6 : index
    %c0_47 = arith.constant 0 : index
    %c0_48 = arith.constant 0 : index
    %121 = vector.load %arg2[%c0_46, %c6, %c0_47, %c0_48] : memref<1x8x2x96xf32, #tpu.memory_space<vmem>>, vector<1x1x2x96xf32>
    %122 = vector.shape_cast %121 : vector<1x1x2x96xf32> to vector<2x96xf32>
    %123 = vector.extract_strided_slice %122 {offsets = [0, 0], sizes = [2, 32], strides = [1, 1]} : vector<2x96xf32> to vector<2x32xf32>
    %124 = vector.extract_strided_slice %92 {offsets = [0, 0], sizes = [2, 32], strides = [1, 1]} : vector<2x96xf32> to vector<2x32xf32>
    %125 = arith.addf %123, %124 : vector<2x32xf32>
    %126 = arith.negf %125 : vector<2x32xf32>
    %127 = math.exp %126 : vector<2x32xf32>
    %cst_49 = arith.constant 1.000000e+00 : f32
    %128 = vector.broadcast %cst_49 : f32 to vector<2x32xf32>
    %129 = arith.addf %128, %127 : vector<2x32xf32>
    %130 = arith.divf %128, %129 : vector<2x32xf32>
    %131 = vector.extract_strided_slice %122 {offsets = [0, 32], sizes = [2, 32], strides = [1, 1]} : vector<2x96xf32> to vector<2x32xf32>
    %132 = vector.extract_strided_slice %92 {offsets = [0, 32], sizes = [2, 32], strides = [1, 1]} : vector<2x96xf32> to vector<2x32xf32>
    %133 = arith.addf %131, %132 : vector<2x32xf32>
    %134 = arith.negf %133 : vector<2x32xf32>
    %135 = math.exp %134 : vector<2x32xf32>
    %cst_50 = arith.constant 1.000000e+00 : f32
    %136 = vector.broadcast %cst_50 : f32 to vector<2x32xf32>
    %137 = arith.addf %136, %135 : vector<2x32xf32>
    %138 = arith.divf %136, %137 : vector<2x32xf32>
    %139 = vector.extract_strided_slice %122 {offsets = [0, 64], sizes = [2, 32], strides = [1, 1]} : vector<2x96xf32> to vector<2x32xf32>
    %140 = vector.extract_strided_slice %92 {offsets = [0, 64], sizes = [2, 32], strides = [1, 1]} : vector<2x96xf32> to vector<2x32xf32>
    %141 = arith.mulf %130, %140 : vector<2x32xf32>
    %142 = arith.addf %139, %141 : vector<2x32xf32>
    %143 = math.tanh %142 : vector<2x32xf32>
    %cst_51 = arith.constant 1.000000e+00 : f32
    %144 = vector.broadcast %cst_51 : f32 to vector<2x32xf32>
    %145 = arith.subf %144, %138 : vector<2x32xf32>
    %146 = arith.mulf %145, %143 : vector<2x32xf32>
    %147 = arith.mulf %138, %78 : vector<2x32xf32>
    %148 = arith.addf %146, %147 : vector<2x32xf32>
    %c1_52 = arith.constant 1 : index
    %c0_53 = arith.constant 0 : index
    %c0_54 = arith.constant 0 : index
    %149 = vector.load %arg5[%c1_52, %c0_53, %c0_54] : memref<8x2x32xf32, #tpu.memory_space<vmem>>, vector<1x2x32xf32>
    %150 = vector.shape_cast %149 : vector<1x2x32xf32> to vector<2x32xf32>
    %151 = vector.shape_cast %120 : vector<2x32xf32> to vector<1x2x32xf32>
    tpu.vector_store %arg5[%c1_52, %c0_53, %c0_54], %151 {strides = array<i32>} : memref<8x2x32xf32, #tpu.memory_space<vmem>>, vector<1x2x32xf32>,
    %c6_55 = arith.constant 6 : index
    %c0_56 = arith.constant 0 : index
    %c0_57 = arith.constant 0 : index
    %152 = vector.load %arg6[%c6_55, %c0_56, %c0_57] : memref<8x2x32xf32, #tpu.memory_space<vmem>>, vector<1x2x32xf32>
    %153 = vector.shape_cast %152 : vector<1x2x32xf32> to vector<2x32xf32>
    %154 = vector.shape_cast %148 : vector<2x32xf32> to vector<1x2x32xf32>
    tpu.vector_store %arg6[%c6_55, %c0_56, %c0_57], %154 {strides = array<i32>} : memref<8x2x32xf32, #tpu.memory_space<vmem>>, vector<1x2x32xf32>,
    %155 = arith.truncf %120 : vector<2x32xf32> to vector<2x32xbf16>
    %cst_58 = arith.constant dense<0.000000e+00> : vector<2x96xf32>
    %156 = tpu.matmul %155, %4, %cst_58 {dimension_numbers = #tpu.dot_dimension_numbers<[1], [0], [0], [1], [0, 0, 1, 1], [], []>} : vector<2x32xbf16>, vector<32x96xbf16>, vector<2x96xf32> -> vector<2x96xf32>
    %157 = vector.broadcast %8 : vector<1x96xf32> to vector<2x96xf32>
    %158 = arith.addf %156, %157 : vector<2x96xf32>
    %159 = arith.truncf %148 : vector<2x32xf32> to vector<2x32xbf16>
    %cst_59 = arith.constant dense<0.000000e+00> : vector<2x96xf32>
    %160 = tpu.matmul %159, %6, %cst_59 {dimension_numbers = #tpu.dot_dimension_numbers<[1], [0], [0], [1], [0, 0, 1, 1], [], []>} : vector<2x32xbf16>, vector<32x96xbf16>, vector<2x96xf32> -> vector<2x96xf32>
    %161 = vector.broadcast %10 : vector<1x96xf32> to vector<2x96xf32>
    %162 = arith.addf %160, %161 : vector<2x96xf32>
    %c0_60 = arith.constant 0 : index
    %c2 = arith.constant 2 : index
    %c0_61 = arith.constant 0 : index
    %c0_62 = arith.constant 0 : index
    %163 = vector.load %arg1[%c0_60, %c2, %c0_61, %c0_62] : memref<1x8x2x96xf32, #tpu.memory_space<vmem>>, vector<1x1x2x96xf32>
    %164 = vector.shape_cast %163 : vector<1x1x2x96xf32> to vector<2x96xf32>
    %165 = vector.extract_strided_slice %164 {offsets = [0, 0], sizes = [2, 32], strides = [1, 1]} : vector<2x96xf32> to vector<2x32xf32>
    %166 = vector.extract_strided_slice %158 {offsets = [0, 0], sizes = [2, 32], strides = [1, 1]} : vector<2x96xf32> to vector<2x32xf32>
    %167 = arith.addf %165, %166 : vector<2x32xf32>
    %168 = arith.negf %167 : vector<2x32xf32>
    %169 = math.exp %168 : vector<2x32xf32>
    %cst_63 = arith.constant 1.000000e+00 : f32
    %170 = vector.broadcast %cst_63 : f32 to vector<2x32xf32>
    %171 = arith.addf %170, %169 : vector<2x32xf32>
    %172 = arith.divf %170, %171 : vector<2x32xf32>
    %173 = vector.extract_strided_slice %164 {offsets = [0, 32], sizes = [2, 32], strides = [1, 1]} : vector<2x96xf32> to vector<2x32xf32>
    %174 = vector.extract_strided_slice %158 {offsets = [0, 32], sizes = [2, 32], strides = [1, 1]} : vector<2x96xf32> to vector<2x32xf32>
    %175 = arith.addf %173, %174 : vector<2x32xf32>
    %176 = arith.negf %175 : vector<2x32xf32>
    %177 = math.exp %176 : vector<2x32xf32>
    %cst_64 = arith.constant 1.000000e+00 : f32
    %178 = vector.broadcast %cst_64 : f32 to vector<2x32xf32>
    %179 = arith.addf %178, %177 : vector<2x32xf32>
    %180 = arith.divf %178, %179 : vector<2x32xf32>
    %181 = vector.extract_strided_slice %164 {offsets = [0, 64], sizes = [2, 32], strides = [1, 1]} : vector<2x96xf32> to vector<2x32xf32>
    %182 = vector.extract_strided_slice %158 {offsets = [0, 64], sizes = [2, 32], strides = [1, 1]} : vector<2x96xf32> to vector<2x32xf32>
    %183 = arith.mulf %172, %182 : vector<2x32xf32>
    %184 = arith.addf %181, %183 : vector<2x32xf32>
    %185 = math.tanh %184 : vector<2x32xf32>
    %cst_65 = arith.constant 1.000000e+00 : f32
    %186 = vector.broadcast %cst_65 : f32 to vector<2x32xf32>
    %187 = arith.subf %186, %180 : vector<2x32xf32>
    %188 = arith.mulf %187, %185 : vector<2x32xf32>
    %189 = arith.mulf %180, %120 : vector<2x32xf32>
    %190 = arith.addf %188, %189 : vector<2x32xf32>
    %c0_66 = arith.constant 0 : index
    %c5 = arith.constant 5 : index
    %c0_67 = arith.constant 0 : index
    %c0_68 = arith.constant 0 : index
    %191 = vector.load %arg2[%c0_66, %c5, %c0_67, %c0_68] : memref<1x8x2x96xf32, #tpu.memory_space<vmem>>, vector<1x1x2x96xf32>
    %192 = vector.shape_cast %191 : vector<1x1x2x96xf32> to vector<2x96xf32>
    %193 = vector.extract_strided_slice %192 {offsets = [0, 0], sizes = [2, 32], strides = [1, 1]} : vector<2x96xf32> to vector<2x32xf32>
    %194 = vector.extract_strided_slice %162 {offsets = [0, 0], sizes = [2, 32], strides = [1, 1]} : vector<2x96xf32> to vector<2x32xf32>
    %195 = arith.addf %193, %194 : vector<2x32xf32>
    %196 = arith.negf %195 : vector<2x32xf32>
    %197 = math.exp %196 : vector<2x32xf32>
    %cst_69 = arith.constant 1.000000e+00 : f32
    %198 = vector.broadcast %cst_69 : f32 to vector<2x32xf32>
    %199 = arith.addf %198, %197 : vector<2x32xf32>
    %200 = arith.divf %198, %199 : vector<2x32xf32>
    %201 = vector.extract_strided_slice %192 {offsets = [0, 32], sizes = [2, 32], strides = [1, 1]} : vector<2x96xf32> to vector<2x32xf32>
    %202 = vector.extract_strided_slice %162 {offsets = [0, 32], sizes = [2, 32], strides = [1, 1]} : vector<2x96xf32> to vector<2x32xf32>
    %203 = arith.addf %201, %202 : vector<2x32xf32>
    %204 = arith.negf %203 : vector<2x32xf32>
    %205 = math.exp %204 : vector<2x32xf32>
    %cst_70 = arith.constant 1.000000e+00 : f32
    %206 = vector.broadcast %cst_70 : f32 to vector<2x32xf32>
    %207 = arith.addf %206, %205 : vector<2x32xf32>
    %208 = arith.divf %206, %207 : vector<2x32xf32>
    %209 = vector.extract_strided_slice %192 {offsets = [0, 64], sizes = [2, 32], strides = [1, 1]} : vector<2x96xf32> to vector<2x32xf32>
    %210 = vector.extract_strided_slice %162 {offsets = [0, 64], sizes = [2, 32], strides = [1, 1]} : vector<2x96xf32> to vector<2x32xf32>
    %211 = arith.mulf %200, %210 : vector<2x32xf32>
    %212 = arith.addf %209, %211 : vector<2x32xf32>
    %213 = math.tanh %212 : vector<2x32xf32>
    %cst_71 = arith.constant 1.000000e+00 : f32
    %214 = vector.broadcast %cst_71 : f32 to vector<2x32xf32>
    %215 = arith.subf %214, %208 : vector<2x32xf32>
    %216 = arith.mulf %215, %213 : vector<2x32xf32>
    %217 = arith.mulf %208, %148 : vector<2x32xf32>
    %218 = arith.addf %216, %217 : vector<2x32xf32>
    %c2_72 = arith.constant 2 : index
    %c0_73 = arith.constant 0 : index
    %c0_74 = arith.constant 0 : index
    %219 = vector.load %arg5[%c2_72, %c0_73, %c0_74] : memref<8x2x32xf32, #tpu.memory_space<vmem>>, vector<1x2x32xf32>
    %220 = vector.shape_cast %219 : vector<1x2x32xf32> to vector<2x32xf32>
    %221 = vector.shape_cast %190 : vector<2x32xf32> to vector<1x2x32xf32>
    tpu.vector_store %arg5[%c2_72, %c0_73, %c0_74], %221 {strides = array<i32>} : memref<8x2x32xf32, #tpu.memory_space<vmem>>, vector<1x2x32xf32>,
    %c5_75 = arith.constant 5 : index
    %c0_76 = arith.constant 0 : index
    %c0_77 = arith.constant 0 : index
    %222 = vector.load %arg6[%c5_75, %c0_76, %c0_77] : memref<8x2x32xf32, #tpu.memory_space<vmem>>, vector<1x2x32xf32>
    %223 = vector.shape_cast %222 : vector<1x2x32xf32> to vector<2x32xf32>
    %224 = vector.shape_cast %218 : vector<2x32xf32> to vector<1x2x32xf32>
    tpu.vector_store %arg6[%c5_75, %c0_76, %c0_77], %224 {strides = array<i32>} : memref<8x2x32xf32, #tpu.memory_space<vmem>>, vector<1x2x32xf32>,
    %225 = arith.truncf %190 : vector<2x32xf32> to vector<2x32xbf16>
    %cst_78 = arith.constant dense<0.000000e+00> : vector<2x96xf32>
    %226 = tpu.matmul %225, %4, %cst_78 {dimension_numbers = #tpu.dot_dimension_numbers<[1], [0], [0], [1], [0, 0, 1, 1], [], []>} : vector<2x32xbf16>, vector<32x96xbf16>, vector<2x96xf32> -> vector<2x96xf32>
    %227 = vector.broadcast %8 : vector<1x96xf32> to vector<2x96xf32>
    %228 = arith.addf %226, %227 : vector<2x96xf32>
    %229 = arith.truncf %218 : vector<2x32xf32> to vector<2x32xbf16>
    %cst_79 = arith.constant dense<0.000000e+00> : vector<2x96xf32>
    %230 = tpu.matmul %229, %6, %cst_79 {dimension_numbers = #tpu.dot_dimension_numbers<[1], [0], [0], [1], [0, 0, 1, 1], [], []>} : vector<2x32xbf16>, vector<32x96xbf16>, vector<2x96xf32> -> vector<2x96xf32>
    %231 = vector.broadcast %10 : vector<1x96xf32> to vector<2x96xf32>
    %232 = arith.addf %230, %231 : vector<2x96xf32>
    %c0_80 = arith.constant 0 : index
    %c3 = arith.constant 3 : index
    %c0_81 = arith.constant 0 : index
    %c0_82 = arith.constant 0 : index
    %233 = vector.load %arg1[%c0_80, %c3, %c0_81, %c0_82] : memref<1x8x2x96xf32, #tpu.memory_space<vmem>>, vector<1x1x2x96xf32>
    %234 = vector.shape_cast %233 : vector<1x1x2x96xf32> to vector<2x96xf32>
    %235 = vector.extract_strided_slice %234 {offsets = [0, 0], sizes = [2, 32], strides = [1, 1]} : vector<2x96xf32> to vector<2x32xf32>
    %236 = vector.extract_strided_slice %228 {offsets = [0, 0], sizes = [2, 32], strides = [1, 1]} : vector<2x96xf32> to vector<2x32xf32>
    %237 = arith.addf %235, %236 : vector<2x32xf32>
    %238 = arith.negf %237 : vector<2x32xf32>
    %239 = math.exp %238 : vector<2x32xf32>
    %cst_83 = arith.constant 1.000000e+00 : f32
    %240 = vector.broadcast %cst_83 : f32 to vector<2x32xf32>
    %241 = arith.addf %240, %239 : vector<2x32xf32>
    %242 = arith.divf %240, %241 : vector<2x32xf32>
    %243 = vector.extract_strided_slice %234 {offsets = [0, 32], sizes = [2, 32], strides = [1, 1]} : vector<2x96xf32> to vector<2x32xf32>
    %244 = vector.extract_strided_slice %228 {offsets = [0, 32], sizes = [2, 32], strides = [1, 1]} : vector<2x96xf32> to vector<2x32xf32>
    %245 = arith.addf %243, %244 : vector<2x32xf32>
    %246 = arith.negf %245 : vector<2x32xf32>
    %247 = math.exp %246 : vector<2x32xf32>
    %cst_84 = arith.constant 1.000000e+00 : f32
    %248 = vector.broadcast %cst_84 : f32 to vector<2x32xf32>
    %249 = arith.addf %248, %247 : vector<2x32xf32>
    %250 = arith.divf %248, %249 : vector<2x32xf32>
    %251 = vector.extract_strided_slice %234 {offsets = [0, 64], sizes = [2, 32], strides = [1, 1]} : vector<2x96xf32> to vector<2x32xf32>
    %252 = vector.extract_strided_slice %228 {offsets = [0, 64], sizes = [2, 32], strides = [1, 1]} : vector<2x96xf32> to vector<2x32xf32>
    %253 = arith.mulf %242, %252 : vector<2x32xf32>
    %254 = arith.addf %251, %253 : vector<2x32xf32>
    %255 = math.tanh %254 : vector<2x32xf32>
    %cst_85 = arith.constant 1.000000e+00 : f32
    %256 = vector.broadcast %cst_85 : f32 to vector<2x32xf32>
    %257 = arith.subf %256, %250 : vector<2x32xf32>
    %258 = arith.mulf %257, %255 : vector<2x32xf32>
    %259 = arith.mulf %250, %190 : vector<2x32xf32>
    %260 = arith.addf %258, %259 : vector<2x32xf32>
    %c0_86 = arith.constant 0 : index
    %c4 = arith.constant 4 : index
    %c0_87 = arith.constant 0 : index
    %c0_88 = arith.constant 0 : index
    %261 = vector.load %arg2[%c0_86, %c4, %c0_87, %c0_88] : memref<1x8x2x96xf32, #tpu.memory_space<vmem>>, vector<1x1x2x96xf32>
    %262 = vector.shape_cast %261 : vector<1x1x2x96xf32> to vector<2x96xf32>
    %263 = vector.extract_strided_slice %262 {offsets = [0, 0], sizes = [2, 32], strides = [1, 1]} : vector<2x96xf32> to vector<2x32xf32>
    %264 = vector.extract_strided_slice %232 {offsets = [0, 0], sizes = [2, 32], strides = [1, 1]} : vector<2x96xf32> to vector<2x32xf32>
    %265 = arith.addf %263, %264 : vector<2x32xf32>
    %266 = arith.negf %265 : vector<2x32xf32>
    %267 = math.exp %266 : vector<2x32xf32>
    %cst_89 = arith.constant 1.000000e+00 : f32
    %268 = vector.broadcast %cst_89 : f32 to vector<2x32xf32>
    %269 = arith.addf %268, %267 : vector<2x32xf32>
    %270 = arith.divf %268, %269 : vector<2x32xf32>
    %271 = vector.extract_strided_slice %262 {offsets = [0, 32], sizes = [2, 32], strides = [1, 1]} : vector<2x96xf32> to vector<2x32xf32>
    %272 = vector.extract_strided_slice %232 {offsets = [0, 32], sizes = [2, 32], strides = [1, 1]} : vector<2x96xf32> to vector<2x32xf32>
    %273 = arith.addf %271, %272 : vector<2x32xf32>
    %274 = arith.negf %273 : vector<2x32xf32>
    %275 = math.exp %274 : vector<2x32xf32>
    %cst_90 = arith.constant 1.000000e+00 : f32
    %276 = vector.broadcast %cst_90 : f32 to vector<2x32xf32>
    %277 = arith.addf %276, %275 : vector<2x32xf32>
    %278 = arith.divf %276, %277 : vector<2x32xf32>
    %279 = vector.extract_strided_slice %262 {offsets = [0, 64], sizes = [2, 32], strides = [1, 1]} : vector<2x96xf32> to vector<2x32xf32>
    %280 = vector.extract_strided_slice %232 {offsets = [0, 64], sizes = [2, 32], strides = [1, 1]} : vector<2x96xf32> to vector<2x32xf32>
    %281 = arith.mulf %270, %280 : vector<2x32xf32>
    %282 = arith.addf %279, %281 : vector<2x32xf32>
    %283 = math.tanh %282 : vector<2x32xf32>
    %cst_91 = arith.constant 1.000000e+00 : f32
    %284 = vector.broadcast %cst_91 : f32 to vector<2x32xf32>
    %285 = arith.subf %284, %278 : vector<2x32xf32>
    %286 = arith.mulf %285, %283 : vector<2x32xf32>
    %287 = arith.mulf %278, %218 : vector<2x32xf32>
    %288 = arith.addf %286, %287 : vector<2x32xf32>
    %c3_92 = arith.constant 3 : index
    %c0_93 = arith.constant 0 : index
    %c0_94 = arith.constant 0 : index
    %289 = vector.load %arg5[%c3_92, %c0_93, %c0_94] : memref<8x2x32xf32, #tpu.memory_space<vmem>>, vector<1x2x32xf32>
    %290 = vector.shape_cast %289 : vector<1x2x32xf32> to vector<2x32xf32>
    %291 = vector.shape_cast %260 : vector<2x32xf32> to vector<1x2x32xf32>
    tpu.vector_store %arg5[%c3_92, %c0_93, %c0_94], %291 {strides = array<i32>} : memref<8x2x32xf32, #tpu.memory_space<vmem>>, vector<1x2x32xf32>,
    %c4_95 = arith.constant 4 : index
    %c0_96 = arith.constant 0 : index
    %c0_97 = arith.constant 0 : index
    %292 = vector.load %arg6[%c4_95, %c0_96, %c0_97] : memref<8x2x32xf32, #tpu.memory_space<vmem>>, vector<1x2x32xf32>
    %293 = vector.shape_cast %292 : vector<1x2x32xf32> to vector<2x32xf32>
    %294 = vector.shape_cast %288 : vector<2x32xf32> to vector<1x2x32xf32>
    tpu.vector_store %arg6[%c4_95, %c0_96, %c0_97], %294 {strides = array<i32>} : memref<8x2x32xf32, #tpu.memory_space<vmem>>, vector<1x2x32xf32>,
    %295 = arith.truncf %260 : vector<2x32xf32> to vector<2x32xbf16>
    %cst_98 = arith.constant dense<0.000000e+00> : vector<2x96xf32>
    %296 = tpu.matmul %295, %4, %cst_98 {dimension_numbers = #tpu.dot_dimension_numbers<[1], [0], [0], [1], [0, 0, 1, 1], [], []>} : vector<2x32xbf16>, vector<32x96xbf16>, vector<2x96xf32> -> vector<2x96xf32>
    %297 = vector.broadcast %8 : vector<1x96xf32> to vector<2x96xf32>
    %298 = arith.addf %296, %297 : vector<2x96xf32>
    %299 = arith.truncf %288 : vector<2x32xf32> to vector<2x32xbf16>
    %cst_99 = arith.constant dense<0.000000e+00> : vector<2x96xf32>
    %300 = tpu.matmul %299, %6, %cst_99 {dimension_numbers = #tpu.dot_dimension_numbers<[1], [0], [0], [1], [0, 0, 1, 1], [], []>} : vector<2x32xbf16>, vector<32x96xbf16>, vector<2x96xf32> -> vector<2x96xf32>
    %301 = vector.broadcast %10 : vector<1x96xf32> to vector<2x96xf32>
    %302 = arith.addf %300, %301 : vector<2x96xf32>
    %c0_100 = arith.constant 0 : index
    %c4_101 = arith.constant 4 : index
    %c0_102 = arith.constant 0 : index
    %c0_103 = arith.constant 0 : index
    %303 = vector.load %arg1[%c0_100, %c4_101, %c0_102, %c0_103] : memref<1x8x2x96xf32, #tpu.memory_space<vmem>>, vector<1x1x2x96xf32>
    %304 = vector.shape_cast %303 : vector<1x1x2x96xf32> to vector<2x96xf32>
    %305 = vector.extract_strided_slice %304 {offsets = [0, 0], sizes = [2, 32], strides = [1, 1]} : vector<2x96xf32> to vector<2x32xf32>
    %306 = vector.extract_strided_slice %298 {offsets = [0, 0], sizes = [2, 32], strides = [1, 1]} : vector<2x96xf32> to vector<2x32xf32>
    %307 = arith.addf %305, %306 : vector<2x32xf32>
    %308 = arith.negf %307 : vector<2x32xf32>
    %309 = math.exp %308 : vector<2x32xf32>
    %cst_104 = arith.constant 1.000000e+00 : f32
    %310 = vector.broadcast %cst_104 : f32 to vector<2x32xf32>
    %311 = arith.addf %310, %309 : vector<2x32xf32>
    %312 = arith.divf %310, %311 : vector<2x32xf32>
    %313 = vector.extract_strided_slice %304 {offsets = [0, 32], sizes = [2, 32], strides = [1, 1]} : vector<2x96xf32> to vector<2x32xf32>
    %314 = vector.extract_strided_slice %298 {offsets = [0, 32], sizes = [2, 32], strides = [1, 1]} : vector<2x96xf32> to vector<2x32xf32>
    %315 = arith.addf %313, %314 : vector<2x32xf32>
    %316 = arith.negf %315 : vector<2x32xf32>
    %317 = math.exp %316 : vector<2x32xf32>
    %cst_105 = arith.constant 1.000000e+00 : f32
    %318 = vector.broadcast %cst_105 : f32 to vector<2x32xf32>
    %319 = arith.addf %318, %317 : vector<2x32xf32>
    %320 = arith.divf %318, %319 : vector<2x32xf32>
    %321 = vector.extract_strided_slice %304 {offsets = [0, 64], sizes = [2, 32], strides = [1, 1]} : vector<2x96xf32> to vector<2x32xf32>
    %322 = vector.extract_strided_slice %298 {offsets = [0, 64], sizes = [2, 32], strides = [1, 1]} : vector<2x96xf32> to vector<2x32xf32>
    %323 = arith.mulf %312, %322 : vector<2x32xf32>
    %324 = arith.addf %321, %323 : vector<2x32xf32>
    %325 = math.tanh %324 : vector<2x32xf32>
    %cst_106 = arith.constant 1.000000e+00 : f32
    %326 = vector.broadcast %cst_106 : f32 to vector<2x32xf32>
    %327 = arith.subf %326, %320 : vector<2x32xf32>
    %328 = arith.mulf %327, %325 : vector<2x32xf32>
    %329 = arith.mulf %320, %260 : vector<2x32xf32>
    %330 = arith.addf %328, %329 : vector<2x32xf32>
    %c0_107 = arith.constant 0 : index
    %c3_108 = arith.constant 3 : index
    %c0_109 = arith.constant 0 : index
    %c0_110 = arith.constant 0 : index
    %331 = vector.load %arg2[%c0_107, %c3_108, %c0_109, %c0_110] : memref<1x8x2x96xf32, #tpu.memory_space<vmem>>, vector<1x1x2x96xf32>
    %332 = vector.shape_cast %331 : vector<1x1x2x96xf32> to vector<2x96xf32>
    %333 = vector.extract_strided_slice %332 {offsets = [0, 0], sizes = [2, 32], strides = [1, 1]} : vector<2x96xf32> to vector<2x32xf32>
    %334 = vector.extract_strided_slice %302 {offsets = [0, 0], sizes = [2, 32], strides = [1, 1]} : vector<2x96xf32> to vector<2x32xf32>
    %335 = arith.addf %333, %334 : vector<2x32xf32>
    %336 = arith.negf %335 : vector<2x32xf32>
    %337 = math.exp %336 : vector<2x32xf32>
    %cst_111 = arith.constant 1.000000e+00 : f32
    %338 = vector.broadcast %cst_111 : f32 to vector<2x32xf32>
    %339 = arith.addf %338, %337 : vector<2x32xf32>
    %340 = arith.divf %338, %339 : vector<2x32xf32>
    %341 = vector.extract_strided_slice %332 {offsets = [0, 32], sizes = [2, 32], strides = [1, 1]} : vector<2x96xf32> to vector<2x32xf32>
    %342 = vector.extract_strided_slice %302 {offsets = [0, 32], sizes = [2, 32], strides = [1, 1]} : vector<2x96xf32> to vector<2x32xf32>
    %343 = arith.addf %341, %342 : vector<2x32xf32>
    %344 = arith.negf %343 : vector<2x32xf32>
    %345 = math.exp %344 : vector<2x32xf32>
    %cst_112 = arith.constant 1.000000e+00 : f32
    %346 = vector.broadcast %cst_112 : f32 to vector<2x32xf32>
    %347 = arith.addf %346, %345 : vector<2x32xf32>
    %348 = arith.divf %346, %347 : vector<2x32xf32>
    %349 = vector.extract_strided_slice %332 {offsets = [0, 64], sizes = [2, 32], strides = [1, 1]} : vector<2x96xf32> to vector<2x32xf32>
    %350 = vector.extract_strided_slice %302 {offsets = [0, 64], sizes = [2, 32], strides = [1, 1]} : vector<2x96xf32> to vector<2x32xf32>
    %351 = arith.mulf %340, %350 : vector<2x32xf32>
    %352 = arith.addf %349, %351 : vector<2x32xf32>
    %353 = math.tanh %352 : vector<2x32xf32>
    %cst_113 = arith.constant 1.000000e+00 : f32
    %354 = vector.broadcast %cst_113 : f32 to vector<2x32xf32>
    %355 = arith.subf %354, %348 : vector<2x32xf32>
    %356 = arith.mulf %355, %353 : vector<2x32xf32>
    %357 = arith.mulf %348, %288 : vector<2x32xf32>
    %358 = arith.addf %356, %357 : vector<2x32xf32>
    %c4_114 = arith.constant 4 : index
    %c0_115 = arith.constant 0 : index
    %c0_116 = arith.constant 0 : index
    %359 = vector.load %arg5[%c4_114, %c0_115, %c0_116] : memref<8x2x32xf32, #tpu.memory_space<vmem>>, vector<1x2x32xf32>
    %360 = vector.shape_cast %359 : vector<1x2x32xf32> to vector<2x32xf32>
    %361 = vector.shape_cast %330 : vector<2x32xf32> to vector<1x2x32xf32>
    tpu.vector_store %arg5[%c4_114, %c0_115, %c0_116], %361 {strides = array<i32>} : memref<8x2x32xf32, #tpu.memory_space<vmem>>, vector<1x2x32xf32>,
    %c3_117 = arith.constant 3 : index
    %c0_118 = arith.constant 0 : index
    %c0_119 = arith.constant 0 : index
    %362 = vector.load %arg6[%c3_117, %c0_118, %c0_119] : memref<8x2x32xf32, #tpu.memory_space<vmem>>, vector<1x2x32xf32>
    %363 = vector.shape_cast %362 : vector<1x2x32xf32> to vector<2x32xf32>
    %364 = vector.shape_cast %358 : vector<2x32xf32> to vector<1x2x32xf32>
    tpu.vector_store %arg6[%c3_117, %c0_118, %c0_119], %364 {strides = array<i32>} : memref<8x2x32xf32, #tpu.memory_space<vmem>>, vector<1x2x32xf32>,
    %365 = arith.truncf %330 : vector<2x32xf32> to vector<2x32xbf16>
    %cst_120 = arith.constant dense<0.000000e+00> : vector<2x96xf32>
    %366 = tpu.matmul %365, %4, %cst_120 {dimension_numbers = #tpu.dot_dimension_numbers<[1], [0], [0], [1], [0, 0, 1, 1], [], []>} : vector<2x32xbf16>, vector<32x96xbf16>, vector<2x96xf32> -> vector<2x96xf32>
    %367 = vector.broadcast %8 : vector<1x96xf32> to vector<2x96xf32>
    %368 = arith.addf %366, %367 : vector<2x96xf32>
    %369 = arith.truncf %358 : vector<2x32xf32> to vector<2x32xbf16>
    %cst_121 = arith.constant dense<0.000000e+00> : vector<2x96xf32>
    %370 = tpu.matmul %369, %6, %cst_121 {dimension_numbers = #tpu.dot_dimension_numbers<[1], [0], [0], [1], [0, 0, 1, 1], [], []>} : vector<2x32xbf16>, vector<32x96xbf16>, vector<2x96xf32> -> vector<2x96xf32>
    %371 = vector.broadcast %10 : vector<1x96xf32> to vector<2x96xf32>
    %372 = arith.addf %370, %371 : vector<2x96xf32>
    %c0_122 = arith.constant 0 : index
    %c5_123 = arith.constant 5 : index
    %c0_124 = arith.constant 0 : index
    %c0_125 = arith.constant 0 : index
    %373 = vector.load %arg1[%c0_122, %c5_123, %c0_124, %c0_125] : memref<1x8x2x96xf32, #tpu.memory_space<vmem>>, vector<1x1x2x96xf32>
    %374 = vector.shape_cast %373 : vector<1x1x2x96xf32> to vector<2x96xf32>
    %375 = vector.extract_strided_slice %374 {offsets = [0, 0], sizes = [2, 32], strides = [1, 1]} : vector<2x96xf32> to vector<2x32xf32>
    %376 = vector.extract_strided_slice %368 {offsets = [0, 0], sizes = [2, 32], strides = [1, 1]} : vector<2x96xf32> to vector<2x32xf32>
    %377 = arith.addf %375, %376 : vector<2x32xf32>
    %378 = arith.negf %377 : vector<2x32xf32>
    %379 = math.exp %378 : vector<2x32xf32>
    %cst_126 = arith.constant 1.000000e+00 : f32
    %380 = vector.broadcast %cst_126 : f32 to vector<2x32xf32>
    %381 = arith.addf %380, %379 : vector<2x32xf32>
    %382 = arith.divf %380, %381 : vector<2x32xf32>
    %383 = vector.extract_strided_slice %374 {offsets = [0, 32], sizes = [2, 32], strides = [1, 1]} : vector<2x96xf32> to vector<2x32xf32>
    %384 = vector.extract_strided_slice %368 {offsets = [0, 32], sizes = [2, 32], strides = [1, 1]} : vector<2x96xf32> to vector<2x32xf32>
    %385 = arith.addf %383, %384 : vector<2x32xf32>
    %386 = arith.negf %385 : vector<2x32xf32>
    %387 = math.exp %386 : vector<2x32xf32>
    %cst_127 = arith.constant 1.000000e+00 : f32
    %388 = vector.broadcast %cst_127 : f32 to vector<2x32xf32>
    %389 = arith.addf %388, %387 : vector<2x32xf32>
    %390 = arith.divf %388, %389 : vector<2x32xf32>
    %391 = vector.extract_strided_slice %374 {offsets = [0, 64], sizes = [2, 32], strides = [1, 1]} : vector<2x96xf32> to vector<2x32xf32>
    %392 = vector.extract_strided_slice %368 {offsets = [0, 64], sizes = [2, 32], strides = [1, 1]} : vector<2x96xf32> to vector<2x32xf32>
    %393 = arith.mulf %382, %392 : vector<2x32xf32>
    %394 = arith.addf %391, %393 : vector<2x32xf32>
    %395 = math.tanh %394 : vector<2x32xf32>
    %cst_128 = arith.constant 1.000000e+00 : f32
    %396 = vector.broadcast %cst_128 : f32 to vector<2x32xf32>
    %397 = arith.subf %396, %390 : vector<2x32xf32>
    %398 = arith.mulf %397, %395 : vector<2x32xf32>
    %399 = arith.mulf %390, %330 : vector<2x32xf32>
    %400 = arith.addf %398, %399 : vector<2x32xf32>
    %c0_129 = arith.constant 0 : index
    %c2_130 = arith.constant 2 : index
    %c0_131 = arith.constant 0 : index
    %c0_132 = arith.constant 0 : index
    %401 = vector.load %arg2[%c0_129, %c2_130, %c0_131, %c0_132] : memref<1x8x2x96xf32, #tpu.memory_space<vmem>>, vector<1x1x2x96xf32>
    %402 = vector.shape_cast %401 : vector<1x1x2x96xf32> to vector<2x96xf32>
    %403 = vector.extract_strided_slice %402 {offsets = [0, 0], sizes = [2, 32], strides = [1, 1]} : vector<2x96xf32> to vector<2x32xf32>
    %404 = vector.extract_strided_slice %372 {offsets = [0, 0], sizes = [2, 32], strides = [1, 1]} : vector<2x96xf32> to vector<2x32xf32>
    %405 = arith.addf %403, %404 : vector<2x32xf32>
    %406 = arith.negf %405 : vector<2x32xf32>
    %407 = math.exp %406 : vector<2x32xf32>
    %cst_133 = arith.constant 1.000000e+00 : f32
    %408 = vector.broadcast %cst_133 : f32 to vector<2x32xf32>
    %409 = arith.addf %408, %407 : vector<2x32xf32>
    %410 = arith.divf %408, %409 : vector<2x32xf32>
    %411 = vector.extract_strided_slice %402 {offsets = [0, 32], sizes = [2, 32], strides = [1, 1]} : vector<2x96xf32> to vector<2x32xf32>
    %412 = vector.extract_strided_slice %372 {offsets = [0, 32], sizes = [2, 32], strides = [1, 1]} : vector<2x96xf32> to vector<2x32xf32>
    %413 = arith.addf %411, %412 : vector<2x32xf32>
    %414 = arith.negf %413 : vector<2x32xf32>
    %415 = math.exp %414 : vector<2x32xf32>
    %cst_134 = arith.constant 1.000000e+00 : f32
    %416 = vector.broadcast %cst_134 : f32 to vector<2x32xf32>
    %417 = arith.addf %416, %415 : vector<2x32xf32>
    %418 = arith.divf %416, %417 : vector<2x32xf32>
    %419 = vector.extract_strided_slice %402 {offsets = [0, 64], sizes = [2, 32], strides = [1, 1]} : vector<2x96xf32> to vector<2x32xf32>
    %420 = vector.extract_strided_slice %372 {offsets = [0, 64], sizes = [2, 32], strides = [1, 1]} : vector<2x96xf32> to vector<2x32xf32>
    %421 = arith.mulf %410, %420 : vector<2x32xf32>
    %422 = arith.addf %419, %421 : vector<2x32xf32>
    %423 = math.tanh %422 : vector<2x32xf32>
    %cst_135 = arith.constant 1.000000e+00 : f32
    %424 = vector.broadcast %cst_135 : f32 to vector<2x32xf32>
    %425 = arith.subf %424, %418 : vector<2x32xf32>
    %426 = arith.mulf %425, %423 : vector<2x32xf32>
    %427 = arith.mulf %418, %358 : vector<2x32xf32>
    %428 = arith.addf %426, %427 : vector<2x32xf32>
    %c5_136 = arith.constant 5 : index
    %c0_137 = arith.constant 0 : index
    %c0_138 = arith.constant 0 : index
    %429 = vector.load %arg5[%c5_136, %c0_137, %c0_138] : memref<8x2x32xf32, #tpu.memory_space<vmem>>, vector<1x2x32xf32>
    %430 = vector.shape_cast %429 : vector<1x2x32xf32> to vector<2x32xf32>
    %431 = vector.shape_cast %400 : vector<2x32xf32> to vector<1x2x32xf32>
    tpu.vector_store %arg5[%c5_136, %c0_137, %c0_138], %431 {strides = array<i32>} : memref<8x2x32xf32, #tpu.memory_space<vmem>>, vector<1x2x32xf32>,
    %c2_139 = arith.constant 2 : index
    %c0_140 = arith.constant 0 : index
    %c0_141 = arith.constant 0 : index
    %432 = vector.load %arg6[%c2_139, %c0_140, %c0_141] : memref<8x2x32xf32, #tpu.memory_space<vmem>>, vector<1x2x32xf32>
    %433 = vector.shape_cast %432 : vector<1x2x32xf32> to vector<2x32xf32>
    %434 = vector.shape_cast %428 : vector<2x32xf32> to vector<1x2x32xf32>
    tpu.vector_store %arg6[%c2_139, %c0_140, %c0_141], %434 {strides = array<i32>} : memref<8x2x32xf32, #tpu.memory_space<vmem>>, vector<1x2x32xf32>,
    %435 = arith.truncf %400 : vector<2x32xf32> to vector<2x32xbf16>
    %cst_142 = arith.constant dense<0.000000e+00> : vector<2x96xf32>
    %436 = tpu.matmul %435, %4, %cst_142 {dimension_numbers = #tpu.dot_dimension_numbers<[1], [0], [0], [1], [0, 0, 1, 1], [], []>} : vector<2x32xbf16>, vector<32x96xbf16>, vector<2x96xf32> -> vector<2x96xf32>
    %437 = vector.broadcast %8 : vector<1x96xf32> to vector<2x96xf32>
    %438 = arith.addf %436, %437 : vector<2x96xf32>
    %439 = arith.truncf %428 : vector<2x32xf32> to vector<2x32xbf16>
    %cst_143 = arith.constant dense<0.000000e+00> : vector<2x96xf32>
    %440 = tpu.matmul %439, %6, %cst_143 {dimension_numbers = #tpu.dot_dimension_numbers<[1], [0], [0], [1], [0, 0, 1, 1], [], []>} : vector<2x32xbf16>, vector<32x96xbf16>, vector<2x96xf32> -> vector<2x96xf32>
    %441 = vector.broadcast %10 : vector<1x96xf32> to vector<2x96xf32>
    %442 = arith.addf %440, %441 : vector<2x96xf32>
    %c0_144 = arith.constant 0 : index
    %c6_145 = arith.constant 6 : index
    %c0_146 = arith.constant 0 : index
    %c0_147 = arith.constant 0 : index
    %443 = vector.load %arg1[%c0_144, %c6_145, %c0_146, %c0_147] : memref<1x8x2x96xf32, #tpu.memory_space<vmem>>, vector<1x1x2x96xf32>
    %444 = vector.shape_cast %443 : vector<1x1x2x96xf32> to vector<2x96xf32>
    %445 = vector.extract_strided_slice %444 {offsets = [0, 0], sizes = [2, 32], strides = [1, 1]} : vector<2x96xf32> to vector<2x32xf32>
    %446 = vector.extract_strided_slice %438 {offsets = [0, 0], sizes = [2, 32], strides = [1, 1]} : vector<2x96xf32> to vector<2x32xf32>
    %447 = arith.addf %445, %446 : vector<2x32xf32>
    %448 = arith.negf %447 : vector<2x32xf32>
    %449 = math.exp %448 : vector<2x32xf32>
    %cst_148 = arith.constant 1.000000e+00 : f32
    %450 = vector.broadcast %cst_148 : f32 to vector<2x32xf32>
    %451 = arith.addf %450, %449 : vector<2x32xf32>
    %452 = arith.divf %450, %451 : vector<2x32xf32>
    %453 = vector.extract_strided_slice %444 {offsets = [0, 32], sizes = [2, 32], strides = [1, 1]} : vector<2x96xf32> to vector<2x32xf32>
    %454 = vector.extract_strided_slice %438 {offsets = [0, 32], sizes = [2, 32], strides = [1, 1]} : vector<2x96xf32> to vector<2x32xf32>
    %455 = arith.addf %453, %454 : vector<2x32xf32>
    %456 = arith.negf %455 : vector<2x32xf32>
    %457 = math.exp %456 : vector<2x32xf32>
    %cst_149 = arith.constant 1.000000e+00 : f32
    %458 = vector.broadcast %cst_149 : f32 to vector<2x32xf32>
    %459 = arith.addf %458, %457 : vector<2x32xf32>
    %460 = arith.divf %458, %459 : vector<2x32xf32>
    %461 = vector.extract_strided_slice %444 {offsets = [0, 64], sizes = [2, 32], strides = [1, 1]} : vector<2x96xf32> to vector<2x32xf32>
    %462 = vector.extract_strided_slice %438 {offsets = [0, 64], sizes = [2, 32], strides = [1, 1]} : vector<2x96xf32> to vector<2x32xf32>
    %463 = arith.mulf %452, %462 : vector<2x32xf32>
    %464 = arith.addf %461, %463 : vector<2x32xf32>
    %465 = math.tanh %464 : vector<2x32xf32>
    %cst_150 = arith.constant 1.000000e+00 : f32
    %466 = vector.broadcast %cst_150 : f32 to vector<2x32xf32>
    %467 = arith.subf %466, %460 : vector<2x32xf32>
    %468 = arith.mulf %467, %465 : vector<2x32xf32>
    %469 = arith.mulf %460, %400 : vector<2x32xf32>
    %470 = arith.addf %468, %469 : vector<2x32xf32>
    %c0_151 = arith.constant 0 : index
    %c1_152 = arith.constant 1 : index
    %c0_153 = arith.constant 0 : index
    %c0_154 = arith.constant 0 : index
    %471 = vector.load %arg2[%c0_151, %c1_152, %c0_153, %c0_154] : memref<1x8x2x96xf32, #tpu.memory_space<vmem>>, vector<1x1x2x96xf32>
    %472 = vector.shape_cast %471 : vector<1x1x2x96xf32> to vector<2x96xf32>
    %473 = vector.extract_strided_slice %472 {offsets = [0, 0], sizes = [2, 32], strides = [1, 1]} : vector<2x96xf32> to vector<2x32xf32>
    %474 = vector.extract_strided_slice %442 {offsets = [0, 0], sizes = [2, 32], strides = [1, 1]} : vector<2x96xf32> to vector<2x32xf32>
    %475 = arith.addf %473, %474 : vector<2x32xf32>
    %476 = arith.negf %475 : vector<2x32xf32>
    %477 = math.exp %476 : vector<2x32xf32>
    %cst_155 = arith.constant 1.000000e+00 : f32
    %478 = vector.broadcast %cst_155 : f32 to vector<2x32xf32>
    %479 = arith.addf %478, %477 : vector<2x32xf32>
    %480 = arith.divf %478, %479 : vector<2x32xf32>
    %481 = vector.extract_strided_slice %472 {offsets = [0, 32], sizes = [2, 32], strides = [1, 1]} : vector<2x96xf32> to vector<2x32xf32>
    %482 = vector.extract_strided_slice %442 {offsets = [0, 32], sizes = [2, 32], strides = [1, 1]} : vector<2x96xf32> to vector<2x32xf32>
    %483 = arith.addf %481, %482 : vector<2x32xf32>
    %484 = arith.negf %483 : vector<2x32xf32>
    %485 = math.exp %484 : vector<2x32xf32>
    %cst_156 = arith.constant 1.000000e+00 : f32
    %486 = vector.broadcast %cst_156 : f32 to vector<2x32xf32>
    %487 = arith.addf %486, %485 : vector<2x32xf32>
    %488 = arith.divf %486, %487 : vector<2x32xf32>
    %489 = vector.extract_strided_slice %472 {offsets = [0, 64], sizes = [2, 32], strides = [1, 1]} : vector<2x96xf32> to vector<2x32xf32>
    %490 = vector.extract_strided_slice %442 {offsets = [0, 64], sizes = [2, 32], strides = [1, 1]} : vector<2x96xf32> to vector<2x32xf32>
    %491 = arith.mulf %480, %490 : vector<2x32xf32>
    %492 = arith.addf %489, %491 : vector<2x32xf32>
    %493 = math.tanh %492 : vector<2x32xf32>
    %cst_157 = arith.constant 1.000000e+00 : f32
    %494 = vector.broadcast %cst_157 : f32 to vector<2x32xf32>
    %495 = arith.subf %494, %488 : vector<2x32xf32>
    %496 = arith.mulf %495, %493 : vector<2x32xf32>
    %497 = arith.mulf %488, %428 : vector<2x32xf32>
    %498 = arith.addf %496, %497 : vector<2x32xf32>
    %c6_158 = arith.constant 6 : index
    %c0_159 = arith.constant 0 : index
    %c0_160 = arith.constant 0 : index
    %499 = vector.load %arg5[%c6_158, %c0_159, %c0_160] : memref<8x2x32xf32, #tpu.memory_space<vmem>>, vector<1x2x32xf32>
    %500 = vector.shape_cast %499 : vector<1x2x32xf32> to vector<2x32xf32>
    %501 = vector.shape_cast %470 : vector<2x32xf32> to vector<1x2x32xf32>
    tpu.vector_store %arg5[%c6_158, %c0_159, %c0_160], %501 {strides = array<i32>} : memref<8x2x32xf32, #tpu.memory_space<vmem>>, vector<1x2x32xf32>,
    %c1_161 = arith.constant 1 : index
    %c0_162 = arith.constant 0 : index
    %c0_163 = arith.constant 0 : index
    %502 = vector.load %arg6[%c1_161, %c0_162, %c0_163] : memref<8x2x32xf32, #tpu.memory_space<vmem>>, vector<1x2x32xf32>
    %503 = vector.shape_cast %502 : vector<1x2x32xf32> to vector<2x32xf32>
    %504 = vector.shape_cast %498 : vector<2x32xf32> to vector<1x2x32xf32>
    tpu.vector_store %arg6[%c1_161, %c0_162, %c0_163], %504 {strides = array<i32>} : memref<8x2x32xf32, #tpu.memory_space<vmem>>, vector<1x2x32xf32>,
    %505 = arith.truncf %470 : vector<2x32xf32> to vector<2x32xbf16>
    %cst_164 = arith.constant dense<0.000000e+00> : vector<2x96xf32>
    %506 = tpu.matmul %505, %4, %cst_164 {dimension_numbers = #tpu.dot_dimension_numbers<[1], [0], [0], [1], [0, 0, 1, 1], [], []>} : vector<2x32xbf16>, vector<32x96xbf16>, vector<2x96xf32> -> vector<2x96xf32>
    %507 = vector.broadcast %8 : vector<1x96xf32> to vector<2x96xf32>
    %508 = arith.addf %506, %507 : vector<2x96xf32>
    %509 = arith.truncf %498 : vector<2x32xf32> to vector<2x32xbf16>
    %cst_165 = arith.constant dense<0.000000e+00> : vector<2x96xf32>
    %510 = tpu.matmul %509, %6, %cst_165 {dimension_numbers = #tpu.dot_dimension_numbers<[1], [0], [0], [1], [0, 0, 1, 1], [], []>} : vector<2x32xbf16>, vector<32x96xbf16>, vector<2x96xf32> -> vector<2x96xf32>
    %511 = vector.broadcast %10 : vector<1x96xf32> to vector<2x96xf32>
    %512 = arith.addf %510, %511 : vector<2x96xf32>
    %c0_166 = arith.constant 0 : index
    %c7_167 = arith.constant 7 : index
    %c0_168 = arith.constant 0 : index
    %c0_169 = arith.constant 0 : index
    %513 = vector.load %arg1[%c0_166, %c7_167, %c0_168, %c0_169] : memref<1x8x2x96xf32, #tpu.memory_space<vmem>>, vector<1x1x2x96xf32>
    %514 = vector.shape_cast %513 : vector<1x1x2x96xf32> to vector<2x96xf32>
    %515 = vector.extract_strided_slice %514 {offsets = [0, 0], sizes = [2, 32], strides = [1, 1]} : vector<2x96xf32> to vector<2x32xf32>
    %516 = vector.extract_strided_slice %508 {offsets = [0, 0], sizes = [2, 32], strides = [1, 1]} : vector<2x96xf32> to vector<2x32xf32>
    %517 = arith.addf %515, %516 : vector<2x32xf32>
    %518 = arith.negf %517 : vector<2x32xf32>
    %519 = math.exp %518 : vector<2x32xf32>
    %cst_170 = arith.constant 1.000000e+00 : f32
    %520 = vector.broadcast %cst_170 : f32 to vector<2x32xf32>
    %521 = arith.addf %520, %519 : vector<2x32xf32>
    %522 = arith.divf %520, %521 : vector<2x32xf32>
    %523 = vector.extract_strided_slice %514 {offsets = [0, 32], sizes = [2, 32], strides = [1, 1]} : vector<2x96xf32> to vector<2x32xf32>
    %524 = vector.extract_strided_slice %508 {offsets = [0, 32], sizes = [2, 32], strides = [1, 1]} : vector<2x96xf32> to vector<2x32xf32>
    %525 = arith.addf %523, %524 : vector<2x32xf32>
    %526 = arith.negf %525 : vector<2x32xf32>
    %527 = math.exp %526 : vector<2x32xf32>
    %cst_171 = arith.constant 1.000000e+00 : f32
    %528 = vector.broadcast %cst_171 : f32 to vector<2x32xf32>
    %529 = arith.addf %528, %527 : vector<2x32xf32>
    %530 = arith.divf %528, %529 : vector<2x32xf32>
    %531 = vector.extract_strided_slice %514 {offsets = [0, 64], sizes = [2, 32], strides = [1, 1]} : vector<2x96xf32> to vector<2x32xf32>
    %532 = vector.extract_strided_slice %508 {offsets = [0, 64], sizes = [2, 32], strides = [1, 1]} : vector<2x96xf32> to vector<2x32xf32>
    %533 = arith.mulf %522, %532 : vector<2x32xf32>
    %534 = arith.addf %531, %533 : vector<2x32xf32>
    %535 = math.tanh %534 : vector<2x32xf32>
    %cst_172 = arith.constant 1.000000e+00 : f32
    %536 = vector.broadcast %cst_172 : f32 to vector<2x32xf32>
    %537 = arith.subf %536, %530 : vector<2x32xf32>
    %538 = arith.mulf %537, %535 : vector<2x32xf32>
    %539 = arith.mulf %530, %470 : vector<2x32xf32>
    %540 = arith.addf %538, %539 : vector<2x32xf32>
    %c0_173 = arith.constant 0 : index
    %c0_174 = arith.constant 0 : index
    %c0_175 = arith.constant 0 : index
    %c0_176 = arith.constant 0 : index
    %541 = vector.load %arg2[%c0_173, %c0_174, %c0_175, %c0_176] : memref<1x8x2x96xf32, #tpu.memory_space<vmem>>, vector<1x1x2x96xf32>
    %542 = vector.shape_cast %541 : vector<1x1x2x96xf32> to vector<2x96xf32>
    %543 = vector.extract_strided_slice %542 {offsets = [0, 0], sizes = [2, 32], strides = [1, 1]} : vector<2x96xf32> to vector<2x32xf32>
    %544 = vector.extract_strided_slice %512 {offsets = [0, 0], sizes = [2, 32], strides = [1, 1]} : vector<2x96xf32> to vector<2x32xf32>
    %545 = arith.addf %543, %544 : vector<2x32xf32>
    %546 = arith.negf %545 : vector<2x32xf32>
    %547 = math.exp %546 : vector<2x32xf32>
    %cst_177 = arith.constant 1.000000e+00 : f32
    %548 = vector.broadcast %cst_177 : f32 to vector<2x32xf32>
    %549 = arith.addf %548, %547 : vector<2x32xf32>
    %550 = arith.divf %548, %549 : vector<2x32xf32>
    %551 = vector.extract_strided_slice %542 {offsets = [0, 32], sizes = [2, 32], strides = [1, 1]} : vector<2x96xf32> to vector<2x32xf32>
    %552 = vector.extract_strided_slice %512 {offsets = [0, 32], sizes = [2, 32], strides = [1, 1]} : vector<2x96xf32> to vector<2x32xf32>
    %553 = arith.addf %551, %552 : vector<2x32xf32>
    %554 = arith.negf %553 : vector<2x32xf32>
    %555 = math.exp %554 : vector<2x32xf32>
    %cst_178 = arith.constant 1.000000e+00 : f32
    %556 = vector.broadcast %cst_178 : f32 to vector<2x32xf32>
    %557 = arith.addf %556, %555 : vector<2x32xf32>
    %558 = arith.divf %556, %557 : vector<2x32xf32>
    %559 = vector.extract_strided_slice %542 {offsets = [0, 64], sizes = [2, 32], strides = [1, 1]} : vector<2x96xf32> to vector<2x32xf32>
    %560 = vector.extract_strided_slice %512 {offsets = [0, 64], sizes = [2, 32], strides = [1, 1]} : vector<2x96xf32> to vector<2x32xf32>
    %561 = arith.mulf %550, %560 : vector<2x32xf32>
    %562 = arith.addf %559, %561 : vector<2x32xf32>
    %563 = math.tanh %562 : vector<2x32xf32>
    %cst_179 = arith.constant 1.000000e+00 : f32
    %564 = vector.broadcast %cst_179 : f32 to vector<2x32xf32>
    %565 = arith.subf %564, %558 : vector<2x32xf32>
    %566 = arith.mulf %565, %563 : vector<2x32xf32>
    %567 = arith.mulf %558, %498 : vector<2x32xf32>
    %568 = arith.addf %566, %567 : vector<2x32xf32>
    %c7_180 = arith.constant 7 : index
    %c0_181 = arith.constant 0 : index
    %c0_182 = arith.constant 0 : index
    %569 = vector.load %arg5[%c7_180, %c0_181, %c0_182] : memref<8x2x32xf32, #tpu.memory_space<vmem>>, vector<1x2x32xf32>
    %570 = vector.shape_cast %569 : vector<1x2x32xf32> to vector<2x32xf32>
    %571 = vector.shape_cast %540 : vector<2x32xf32> to vector<1x2x32xf32>
    tpu.vector_store %arg5[%c7_180, %c0_181, %c0_182], %571 {strides = array<i32>} : memref<8x2x32xf32, #tpu.memory_space<vmem>>, vector<1x2x32xf32>,
    %c0_183 = arith.constant 0 : index
    %c0_184 = arith.constant 0 : index
    %c0_185 = arith.constant 0 : index
    %572 = vector.load %arg6[%c0_183, %c0_184, %c0_185] : memref<8x2x32xf32, #tpu.memory_space<vmem>>, vector<1x2x32xf32>
    %573 = vector.shape_cast %572 : vector<1x2x32xf32> to vector<2x32xf32>
    %574 = vector.shape_cast %568 : vector<2x32xf32> to vector<1x2x32xf32>
    tpu.vector_store %arg6[%c0_183, %c0_184, %c0_185], %574 {strides = array<i32>} : memref<8x2x32xf32, #tpu.memory_space<vmem>>, vector<1x2x32xf32>,
    %c0_186 = arith.constant 0 : index
    %c0_187 = arith.constant 0 : index
    %c0_188 = arith.constant 0 : index
    %575 = vector.load %arg7[%c0_186, %c0_187, %c0_188] : memref<2x2x32xf32, #tpu.memory_space<vmem>>, vector<1x2x32xf32>
    %576 = vector.shape_cast %575 : vector<1x2x32xf32> to vector<2x32xf32>
    %577 = vector.shape_cast %540 : vector<2x32xf32> to vector<1x2x32xf32>
    tpu.vector_store %arg7[%c0_186, %c0_187, %c0_188], %577 {strides = array<i32>} : memref<2x2x32xf32, #tpu.memory_space<vmem>>, vector<1x2x32xf32>,
    %c1_189 = arith.constant 1 : index
    %c0_190 = arith.constant 0 : index
    %c0_191 = arith.constant 0 : index
    %578 = vector.load %arg7[%c1_189, %c0_190, %c0_191] : memref<2x2x32xf32, #tpu.memory_space<vmem>>, vector<1x2x32xf32>
    %579 = vector.shape_cast %578 : vector<1x2x32xf32> to vector<2x32xf32>
    %580 = vector.shape_cast %568 : vector<2x32xf32> to vector<1x2x32xf32>
    tpu.vector_store %arg7[%c1_189, %c0_190, %c0_191], %580 {strides = array<i32>} : memref<2x2x32xf32, #tpu.memory_space<vmem>>, vector<1x2x32xf32>,
    return
  }
  func.func @transform_0(%arg0: i32) -> (i32, i32, i32, i32) {
    %c0_i32 = arith.constant 0 : i32
    %c0_i32_0 = arith.constant 0 : i32
    %c0_i32_1 = arith.constant 0 : i32
    %c0_i32_2 = arith.constant 0 : i32
    return %c0_i32, %arg0, %c0_i32_0, %c0_i32_1 : i32, i32, i32, i32
  }
  func.func @transform_1(%arg0: i32) -> (i32, i32, i32, i32) {
    %c0_i32 = arith.constant 0 : i32
    %0 = arith.subi %c0_i32, %arg0 : i32
    %c1_i32 = arith.constant 1 : i32
    %c0_i32_0 = arith.constant 0 : i32
    %c0_i32_1 = arith.constant 0 : i32
    %c0_i32_2 = arith.constant 0 : i32
    return %c1_i32, %0, %c0_i32_0, %c0_i32_1 : i32, i32, i32, i32
  }
  func.func @transform_2(%arg0: i32) -> (i32, i32, i32) {
    %c0_i32 = arith.constant 0 : i32
    %c0_i32_0 = arith.constant 0 : i32
    %c0_i32_1 = arith.constant 0 : i32
    %c0_i32_2 = arith.constant 0 : i32
    return %c0_i32, %c0_i32_0, %c0_i32_1 : i32, i32, i32
  }
  func.func @transform_3(%arg0: i32) -> (i32, i32, i32) {
    %c0_i32 = arith.constant 0 : i32
    %c0_i32_0 = arith.constant 0 : i32
    %c0_i32_1 = arith.constant 0 : i32
    %c0_i32_2 = arith.constant 0 : i32
    return %c0_i32, %c0_i32_0, %c0_i32_1 : i32, i32, i32
  }
  func.func @transform_4(%arg0: i32) -> (i32, i32, i32) {
    %c0_i32 = arith.constant 0 : i32
    %c0_i32_0 = arith.constant 0 : i32
    %c0_i32_1 = arith.constant 0 : i32
    return %arg0, %c0_i32, %c0_i32_0 : i32, i32, i32
  }
  func.func @transform_5(%arg0: i32) -> (i32, i32, i32) {
    %c0_i32 = arith.constant 0 : i32
    %0 = arith.subi %c0_i32, %arg0 : i32
    %c0_i32_0 = arith.constant 0 : i32
    %c0_i32_1 = arith.constant 0 : i32
    %c0_i32_2 = arith.constant 0 : i32
    return %0, %c0_i32_0, %c0_i32_1 : i32, i32, i32
  }
}

module attributes {stable_mosaic.version = 11 : i64} {
  func.func @kernel(%arg0: i32, %arg1: i32, %arg2: memref<16x64xf32, #tpu.memory_space<vmem>>, %arg3: memref<1x64xf32, #tpu.memory_space<vmem>>, %arg4: memref<1x64xf32, #tpu.memory_space<vmem>>, %arg5: memref<1x64x96xbf16, #tpu.memory_space<vmem>>, %arg6: memref<1x1x96xf32, #tpu.memory_space<vmem>>, %arg7: memref<1x16x96xf32, #tpu.memory_space<vmem>>) attributes {dimension_semantics = [#tpu.dimension_semantics<parallel>, #tpu.dimension_semantics<arbitrary>], iteration_bounds = array<i64: 1, 2>, scalar_prefetch = 0 : i64, scratch_operands = 0 : i64, tpu.core_type = #tpu.core_type<tc>, window_params = [{transform_indices = @transform_0, window_bounds = array<i64: 16, 64>}, {pipeline_mode = #tpu.pipeline_mode<synchronous>, transform_indices = @transform_1, window_bounds = array<i64: 1, 64>}, {pipeline_mode = #tpu.pipeline_mode<synchronous>, transform_indices = @transform_2, window_bounds = array<i64: 1, 64>}, {transform_indices = @transform_3, window_bounds = array<i64: 1, 64, 96>}, {transform_indices = @transform_4, window_bounds = array<i64: 1, 1, 96>}, {transform_indices = @transform_5, window_bounds = array<i64: 1, 16, 96>}]} {
    %c0 = arith.constant 0 : index
    %c0_0 = arith.constant 0 : index
    %0 = vector.load %arg2[%c0, %c0_0] : memref<16x64xf32, #tpu.memory_space<vmem>>, vector<16x64xf32>
    %c0_1 = arith.constant 0 : index
    %c0_2 = arith.constant 0 : index
    %1 = vector.load %arg3[%c0_1, %c0_2] : memref<1x64xf32, #tpu.memory_space<vmem>>, vector<1x64xf32>
    %c0_3 = arith.constant 0 : index
    %c0_4 = arith.constant 0 : index
    %2 = vector.load %arg4[%c0_3, %c0_4] : memref<1x64xf32, #tpu.memory_space<vmem>>, vector<1x64xf32>
    %cst = arith.constant dense<0.000000e+00> : vector<16xf32>
    %3 = vector.multi_reduction <add>, %0, %cst [1] : vector<16x64xf32> to vector<16xf32>
    %4 = vector.shape_cast %3 : vector<16xf32> to vector<16x1xf32>
    %cst_5 = arith.constant 6.400000e+01 : f32
    %5 = vector.broadcast %cst_5 : f32 to vector<16x1xf32>
    %6 = arith.divf %4, %5 : vector<16x1xf32>
    %7 = vector.broadcast %6 : vector<16x1xf32> to vector<16x64xf32>
    %8 = arith.subf %0, %7 : vector<16x64xf32>
    %9 = arith.mulf %8, %8 : vector<16x64xf32>
    %cst_6 = arith.constant dense<0.000000e+00> : vector<16xf32>
    %10 = vector.multi_reduction <add>, %9, %cst_6 [1] : vector<16x64xf32> to vector<16xf32>
    %11 = vector.shape_cast %10 : vector<16xf32> to vector<16x1xf32>
    %cst_7 = arith.constant 6.400000e+01 : f32
    %12 = vector.broadcast %cst_7 : f32 to vector<16x1xf32>
    %13 = arith.divf %11, %12 : vector<16x1xf32>
    %14 = vector.broadcast %6 : vector<16x1xf32> to vector<16x64xf32>
    %15 = arith.subf %0, %14 : vector<16x64xf32>
    %cst_8 = arith.constant 9.99999974E-6 : f32
    %16 = vector.broadcast %cst_8 : f32 to vector<16x1xf32>
    %17 = arith.addf %13, %16 : vector<16x1xf32>
    %18 = math.rsqrt %17 : vector<16x1xf32>
    %19 = vector.broadcast %18 : vector<16x1xf32> to vector<16x64xf32>
    %20 = arith.mulf %15, %19 : vector<16x64xf32>
    %21 = vector.broadcast %1 : vector<1x64xf32> to vector<16x64xf32>
    %22 = arith.mulf %20, %21 : vector<16x64xf32>
    %23 = vector.broadcast %2 : vector<1x64xf32> to vector<16x64xf32>
    %24 = arith.addf %22, %23 : vector<16x64xf32>
    %cst_9 = arith.constant 5.000000e-01 : f32
    %25 = vector.broadcast %cst_9 : f32 to vector<16x64xf32>
    %26 = arith.mulf %25, %24 : vector<16x64xf32>
    %cst_10 = arith.constant 0.707106769 : f32
    %27 = vector.broadcast %cst_10 : f32 to vector<16x64xf32>
    %28 = arith.mulf %24, %27 : vector<16x64xf32>
    %cst_11 = arith.constant -4.000000e+00 : f32
    %cst_12 = arith.constant 4.000000e+00 : f32
    %29 = vector.broadcast %cst_11 : f32 to vector<16x64xf32>
    %30 = arith.maximumf %29, %28 : vector<16x64xf32>
    %31 = vector.broadcast %cst_12 : f32 to vector<16x64xf32>
    %32 = arith.minimumf %31, %30 : vector<16x64xf32>
    %33 = arith.mulf %32, %32 : vector<16x64xf32>
    %cst_13 = arith.constant -2.72614237E-10 : f32
    %34 = vector.broadcast %cst_13 : f32 to vector<16x64xf32>
    %35 = arith.mulf %34, %33 : vector<16x64xf32>
    %cst_14 = arith.constant 2.77068146E-8 : f32
    %36 = vector.broadcast %cst_14 : f32 to vector<16x64xf32>
    %37 = arith.addf %35, %36 : vector<16x64xf32>
    %38 = arith.mulf %37, %33 : vector<16x64xf32>
    %cst_15 = arith.constant -2.10102394E-6 : f32
    %39 = vector.broadcast %cst_15 : f32 to vector<16x64xf32>
    %40 = arith.addf %38, %39 : vector<16x64xf32>
    %41 = arith.mulf %40, %33 : vector<16x64xf32>
    %cst_16 = arith.constant -5.69250624E-5 : f32
    %42 = vector.broadcast %cst_16 : f32 to vector<16x64xf32>
    %43 = arith.addf %41, %42 : vector<16x64xf32>
    %44 = arith.mulf %43, %33 : vector<16x64xf32>
    %cst_17 = arith.constant -7.34990637E-4 : f32
    %45 = vector.broadcast %cst_17 : f32 to vector<16x64xf32>
    %46 = arith.addf %44, %45 : vector<16x64xf32>
    %47 = arith.mulf %46, %33 : vector<16x64xf32>
    %cst_18 = arith.constant -2.954600e-03 : f32
    %48 = vector.broadcast %cst_18 : f32 to vector<16x64xf32>
    %49 = arith.addf %47, %48 : vector<16x64xf32>
    %50 = arith.mulf %49, %33 : vector<16x64xf32>
    %cst_19 = arith.constant -0.0160960332 : f32
    %51 = vector.broadcast %cst_19 : f32 to vector<16x64xf32>
    %52 = arith.addf %50, %51 : vector<16x64xf32>
    %53 = arith.mulf %52, %32 : vector<16x64xf32>
    %cst_20 = arith.constant -1.45660715E-5 : f32
    %54 = vector.broadcast %cst_20 : f32 to vector<16x64xf32>
    %55 = arith.mulf %54, %33 : vector<16x64xf32>
    %cst_21 = arith.constant -2.13374049E-4 : f32
    %56 = vector.broadcast %cst_21 : f32 to vector<16x64xf32>
    %57 = arith.addf %55, %56 : vector<16x64xf32>
    %58 = arith.mulf %57, %33 : vector<16x64xf32>
    %cst_22 = arith.constant -0.00168282702 : f32
    %59 = vector.broadcast %cst_22 : f32 to vector<16x64xf32>
    %60 = arith.addf %58, %59 : vector<16x64xf32>
    %61 = arith.mulf %60, %33 : vector<16x64xf32>
    %cst_23 = arith.constant -0.00737332925 : f32
    %62 = vector.broadcast %cst_23 : f32 to vector<16x64xf32>
    %63 = arith.addf %61, %62 : vector<16x64xf32>
    %64 = arith.mulf %63, %33 : vector<16x64xf32>
    %cst_24 = arith.constant -0.0142647391 : f32
    %65 = vector.broadcast %cst_24 : f32 to vector<16x64xf32>
    %66 = arith.addf %64, %65 : vector<16x64xf32>
    %67 = arith.divf %53, %66 : vector<16x64xf32>
    %cst_25 = arith.constant 1.000000e+00 : f32
    %68 = vector.broadcast %cst_25 : f32 to vector<16x64xf32>
    %69 = arith.addf %68, %67 : vector<16x64xf32>
    %70 = arith.mulf %26, %69 : vector<16x64xf32>
    %71 = arith.truncf %70 : vector<16x64xf32> to vector<16x64xbf16>
    %c0_26 = arith.constant 0 : index
    %c0_27 = arith.constant 0 : index
    %c0_28 = arith.constant 0 : index
    %72 = vector.load %arg5[%c0_26, %c0_27, %c0_28] : memref<1x64x96xbf16, #tpu.memory_space<vmem>>, vector<1x64x96xbf16>
    %73 = vector.shape_cast %72 : vector<1x64x96xbf16> to vector<64x96xbf16>
    %cst_29 = arith.constant dense<0.000000e+00> : vector<16x96xf32>
    %74 = tpu.matmul %71, %73, %cst_29 {dimension_numbers = #tpu.dot_dimension_numbers<[1], [0], [0], [1], [0, 0, 1, 1], [], []>} : vector<16x64xbf16>, vector<64x96xbf16>, vector<16x96xf32> -> vector<16x96xf32>
    %c0_30 = arith.constant 0 : index
    %c0_31 = arith.constant 0 : index
    %c0_32 = arith.constant 0 : index
    %75 = vector.load %arg6[%c0_30, %c0_31, %c0_32] : memref<1x1x96xf32, #tpu.memory_space<vmem>>, vector<1x1x96xf32>
    %76 = vector.shape_cast %75 : vector<1x1x96xf32> to vector<1x96xf32>
    %77 = vector.broadcast %76 : vector<1x96xf32> to vector<16x96xf32>
    %78 = arith.addf %74, %77 : vector<16x96xf32>
    %c0_33 = arith.constant 0 : index
    %c0_34 = arith.constant 0 : index
    %c0_35 = arith.constant 0 : index
    %79 = vector.load %arg7[%c0_33, %c0_34, %c0_35] : memref<1x16x96xf32, #tpu.memory_space<vmem>>, vector<1x16x96xf32>
    %80 = vector.shape_cast %79 : vector<1x16x96xf32> to vector<16x96xf32>
    %81 = vector.shape_cast %78 : vector<16x96xf32> to vector<1x16x96xf32>
    tpu.vector_store %arg7[%c0_33, %c0_34, %c0_35], %81 {strides = array<i32>} : memref<1x16x96xf32, #tpu.memory_space<vmem>>, vector<1x16x96xf32>,
    return
  }
  func.func @transform_0(%arg0: i32, %arg1: i32) -> (i32, i32) {
    %c0_i32 = arith.constant 0 : i32
    %c0_i32_0 = arith.constant 0 : i32
    return %arg0, %c0_i32 : i32, i32
  }
  func.func @transform_1(%arg0: i32, %arg1: i32) -> (i32, i32) {
    %c0_i32 = arith.constant 0 : i32
    %c0_i32_0 = arith.constant 0 : i32
    %c0_i32_1 = arith.constant 0 : i32
    return %c0_i32, %c0_i32_0 : i32, i32
  }
  func.func @transform_2(%arg0: i32, %arg1: i32) -> (i32, i32) {
    %c0_i32 = arith.constant 0 : i32
    %c0_i32_0 = arith.constant 0 : i32
    %c0_i32_1 = arith.constant 0 : i32
    return %c0_i32, %c0_i32_0 : i32, i32
  }
  func.func @transform_3(%arg0: i32, %arg1: i32) -> (i32, i32, i32) {
    %c0_i32 = arith.constant 0 : i32
    %c0_i32_0 = arith.constant 0 : i32
    %c0_i32_1 = arith.constant 0 : i32
    return %arg1, %c0_i32, %c0_i32_0 : i32, i32, i32
  }
  func.func @transform_4(%arg0: i32, %arg1: i32) -> (i32, i32, i32) {
    %c0_i32 = arith.constant 0 : i32
    %c0_i32_0 = arith.constant 0 : i32
    %c0_i32_1 = arith.constant 0 : i32
    return %arg1, %c0_i32, %c0_i32_0 : i32, i32, i32
  }
  func.func @transform_5(%arg0: i32, %arg1: i32) -> (i32, i32, i32) {
    %c0_i32 = arith.constant 0 : i32
    %c0_i32_0 = arith.constant 0 : i32
    return %arg1, %arg0, %c0_i32 : i32, i32, i32
  }
}

module attributes {stable_mosaic.version = 11 : i64} {
  func.func @kernel(%arg0: i32, %arg1: i32, %arg2: memref<16x64xf32, #tpu.memory_space<vmem>>, %arg3: memref<1x64x29xbf16, #tpu.memory_space<vmem>>, %arg4: memref<1x1x29xf32, #tpu.memory_space<vmem>>, %arg5: memref<1x29xf32, #tpu.memory_space<vmem>>, %arg6: memref<1x29xf32, #tpu.memory_space<vmem>>, %arg7: memref<1x16x29xf32, #tpu.memory_space<vmem>>) attributes {dimension_semantics = [#tpu.dimension_semantics<parallel>, #tpu.dimension_semantics<arbitrary>], iteration_bounds = array<i64: 1, 1>, scalar_prefetch = 0 : i64, scratch_operands = 0 : i64, tpu.core_type = #tpu.core_type<tc>, window_params = [{transform_indices = @transform_0, window_bounds = array<i64: 16, 64>}, {transform_indices = @transform_1, window_bounds = array<i64: 1, 64, 29>}, {transform_indices = @transform_2, window_bounds = array<i64: 1, 1, 29>}, {pipeline_mode = #tpu.pipeline_mode<synchronous>, transform_indices = @transform_3, window_bounds = array<i64: 1, 29>}, {pipeline_mode = #tpu.pipeline_mode<synchronous>, transform_indices = @transform_4, window_bounds = array<i64: 1, 29>}, {transform_indices = @transform_5, window_bounds = array<i64: 1, 16, 29>}]} {
    %c0 = arith.constant 0 : index
    %c0_0 = arith.constant 0 : index
    %0 = vector.load %arg2[%c0, %c0_0] : memref<16x64xf32, #tpu.memory_space<vmem>>, vector<16x64xf32>
    %1 = arith.truncf %0 : vector<16x64xf32> to vector<16x64xbf16>
    %c0_1 = arith.constant 0 : index
    %c0_2 = arith.constant 0 : index
    %c0_3 = arith.constant 0 : index
    %2 = vector.load %arg3[%c0_1, %c0_2, %c0_3] : memref<1x64x29xbf16, #tpu.memory_space<vmem>>, vector<1x64x29xbf16>
    %3 = vector.shape_cast %2 : vector<1x64x29xbf16> to vector<64x29xbf16>
    %cst = arith.constant dense<0.000000e+00> : vector<16x29xf32>
    %4 = tpu.matmul %1, %3, %cst {dimension_numbers = #tpu.dot_dimension_numbers<[1], [0], [0], [1], [0, 0, 1, 1], [], []>} : vector<16x64xbf16>, vector<64x29xbf16>, vector<16x29xf32> -> vector<16x29xf32>
    %c0_4 = arith.constant 0 : index
    %c0_5 = arith.constant 0 : index
    %c0_6 = arith.constant 0 : index
    %5 = vector.load %arg4[%c0_4, %c0_5, %c0_6] : memref<1x1x29xf32, #tpu.memory_space<vmem>>, vector<1x1x29xf32>
    %6 = vector.shape_cast %5 : vector<1x1x29xf32> to vector<1x29xf32>
    %7 = vector.broadcast %6 : vector<1x29xf32> to vector<16x29xf32>
    %8 = arith.addf %4, %7 : vector<16x29xf32>
    %c0_7 = arith.constant 0 : index
    %c0_8 = arith.constant 0 : index
    %9 = vector.load %arg5[%c0_7, %c0_8] : memref<1x29xf32, #tpu.memory_space<vmem>>, vector<1x29xf32>
    %c0_9 = arith.constant 0 : index
    %c0_10 = arith.constant 0 : index
    %10 = vector.load %arg6[%c0_9, %c0_10] : memref<1x29xf32, #tpu.memory_space<vmem>>, vector<1x29xf32>
    %cst_11 = arith.constant dense<0.000000e+00> : vector<16xf32>
    %11 = vector.multi_reduction <add>, %8, %cst_11 [1] : vector<16x29xf32> to vector<16xf32>
    %12 = vector.shape_cast %11 : vector<16xf32> to vector<16x1xf32>
    %cst_12 = arith.constant 2.900000e+01 : f32
    %13 = vector.broadcast %cst_12 : f32 to vector<16x1xf32>
    %14 = arith.divf %12, %13 : vector<16x1xf32>
    %15 = vector.broadcast %14 : vector<16x1xf32> to vector<16x29xf32>
    %16 = arith.subf %8, %15 : vector<16x29xf32>
    %17 = arith.mulf %16, %16 : vector<16x29xf32>
    %cst_13 = arith.constant dense<0.000000e+00> : vector<16xf32>
    %18 = vector.multi_reduction <add>, %17, %cst_13 [1] : vector<16x29xf32> to vector<16xf32>
    %19 = vector.shape_cast %18 : vector<16xf32> to vector<16x1xf32>
    %cst_14 = arith.constant 2.900000e+01 : f32
    %20 = vector.broadcast %cst_14 : f32 to vector<16x1xf32>
    %21 = arith.divf %19, %20 : vector<16x1xf32>
    %22 = vector.broadcast %14 : vector<16x1xf32> to vector<16x29xf32>
    %23 = arith.subf %8, %22 : vector<16x29xf32>
    %cst_15 = arith.constant 9.99999974E-6 : f32
    %24 = vector.broadcast %cst_15 : f32 to vector<16x1xf32>
    %25 = arith.addf %21, %24 : vector<16x1xf32>
    %26 = math.rsqrt %25 : vector<16x1xf32>
    %27 = vector.broadcast %26 : vector<16x1xf32> to vector<16x29xf32>
    %28 = arith.mulf %23, %27 : vector<16x29xf32>
    %29 = vector.broadcast %9 : vector<1x29xf32> to vector<16x29xf32>
    %30 = arith.mulf %28, %29 : vector<16x29xf32>
    %31 = vector.broadcast %10 : vector<1x29xf32> to vector<16x29xf32>
    %32 = arith.addf %30, %31 : vector<16x29xf32>
    %cst_16 = arith.constant 5.000000e-01 : f32
    %33 = vector.broadcast %cst_16 : f32 to vector<16x29xf32>
    %34 = arith.mulf %33, %32 : vector<16x29xf32>
    %cst_17 = arith.constant 0.707106769 : f32
    %35 = vector.broadcast %cst_17 : f32 to vector<16x29xf32>
    %36 = arith.mulf %32, %35 : vector<16x29xf32>
    %cst_18 = arith.constant -4.000000e+00 : f32
    %cst_19 = arith.constant 4.000000e+00 : f32
    %37 = vector.broadcast %cst_18 : f32 to vector<16x29xf32>
    %38 = arith.maximumf %37, %36 : vector<16x29xf32>
    %39 = vector.broadcast %cst_19 : f32 to vector<16x29xf32>
    %40 = arith.minimumf %39, %38 : vector<16x29xf32>
    %41 = arith.mulf %40, %40 : vector<16x29xf32>
    %cst_20 = arith.constant -2.72614237E-10 : f32
    %42 = vector.broadcast %cst_20 : f32 to vector<16x29xf32>
    %43 = arith.mulf %42, %41 : vector<16x29xf32>
    %cst_21 = arith.constant 2.77068146E-8 : f32
    %44 = vector.broadcast %cst_21 : f32 to vector<16x29xf32>
    %45 = arith.addf %43, %44 : vector<16x29xf32>
    %46 = arith.mulf %45, %41 : vector<16x29xf32>
    %cst_22 = arith.constant -2.10102394E-6 : f32
    %47 = vector.broadcast %cst_22 : f32 to vector<16x29xf32>
    %48 = arith.addf %46, %47 : vector<16x29xf32>
    %49 = arith.mulf %48, %41 : vector<16x29xf32>
    %cst_23 = arith.constant -5.69250624E-5 : f32
    %50 = vector.broadcast %cst_23 : f32 to vector<16x29xf32>
    %51 = arith.addf %49, %50 : vector<16x29xf32>
    %52 = arith.mulf %51, %41 : vector<16x29xf32>
    %cst_24 = arith.constant -7.34990637E-4 : f32
    %53 = vector.broadcast %cst_24 : f32 to vector<16x29xf32>
    %54 = arith.addf %52, %53 : vector<16x29xf32>
    %55 = arith.mulf %54, %41 : vector<16x29xf32>
    %cst_25 = arith.constant -2.954600e-03 : f32
    %56 = vector.broadcast %cst_25 : f32 to vector<16x29xf32>
    %57 = arith.addf %55, %56 : vector<16x29xf32>
    %58 = arith.mulf %57, %41 : vector<16x29xf32>
    %cst_26 = arith.constant -0.0160960332 : f32
    %59 = vector.broadcast %cst_26 : f32 to vector<16x29xf32>
    %60 = arith.addf %58, %59 : vector<16x29xf32>
    %61 = arith.mulf %60, %40 : vector<16x29xf32>
    %cst_27 = arith.constant -1.45660715E-5 : f32
    %62 = vector.broadcast %cst_27 : f32 to vector<16x29xf32>
    %63 = arith.mulf %62, %41 : vector<16x29xf32>
    %cst_28 = arith.constant -2.13374049E-4 : f32
    %64 = vector.broadcast %cst_28 : f32 to vector<16x29xf32>
    %65 = arith.addf %63, %64 : vector<16x29xf32>
    %66 = arith.mulf %65, %41 : vector<16x29xf32>
    %cst_29 = arith.constant -0.00168282702 : f32
    %67 = vector.broadcast %cst_29 : f32 to vector<16x29xf32>
    %68 = arith.addf %66, %67 : vector<16x29xf32>
    %69 = arith.mulf %68, %41 : vector<16x29xf32>
    %cst_30 = arith.constant -0.00737332925 : f32
    %70 = vector.broadcast %cst_30 : f32 to vector<16x29xf32>
    %71 = arith.addf %69, %70 : vector<16x29xf32>
    %72 = arith.mulf %71, %41 : vector<16x29xf32>
    %cst_31 = arith.constant -0.0142647391 : f32
    %73 = vector.broadcast %cst_31 : f32 to vector<16x29xf32>
    %74 = arith.addf %72, %73 : vector<16x29xf32>
    %75 = arith.divf %61, %74 : vector<16x29xf32>
    %cst_32 = arith.constant 1.000000e+00 : f32
    %76 = vector.broadcast %cst_32 : f32 to vector<16x29xf32>
    %77 = arith.addf %76, %75 : vector<16x29xf32>
    %78 = arith.mulf %34, %77 : vector<16x29xf32>
    %c0_33 = arith.constant 0 : index
    %c0_34 = arith.constant 0 : index
    %c0_35 = arith.constant 0 : index
    %79 = vector.load %arg7[%c0_33, %c0_34, %c0_35] : memref<1x16x29xf32, #tpu.memory_space<vmem>>, vector<1x16x29xf32>
    %80 = vector.shape_cast %79 : vector<1x16x29xf32> to vector<16x29xf32>
    %81 = vector.shape_cast %78 : vector<16x29xf32> to vector<1x16x29xf32>
    tpu.vector_store %arg7[%c0_33, %c0_34, %c0_35], %81 {strides = array<i32>} : memref<1x16x29xf32, #tpu.memory_space<vmem>>, vector<1x16x29xf32>,
    return
  }
  func.func @transform_0(%arg0: i32, %arg1: i32) -> (i32, i32) {
    %c0_i32 = arith.constant 0 : i32
    %c0_i32_0 = arith.constant 0 : i32
    return %arg0, %c0_i32 : i32, i32
  }
  func.func @transform_1(%arg0: i32, %arg1: i32) -> (i32, i32, i32) {
    %c0_i32 = arith.constant 0 : i32
    %c0_i32_0 = arith.constant 0 : i32
    %c0_i32_1 = arith.constant 0 : i32
    return %arg1, %c0_i32, %c0_i32_0 : i32, i32, i32
  }
  func.func @transform_2(%arg0: i32, %arg1: i32) -> (i32, i32, i32) {
    %c0_i32 = arith.constant 0 : i32
    %c0_i32_0 = arith.constant 0 : i32
    %c0_i32_1 = arith.constant 0 : i32
    return %arg1, %c0_i32, %c0_i32_0 : i32, i32, i32
  }
  func.func @transform_3(%arg0: i32, %arg1: i32) -> (i32, i32) {
    %c0_i32 = arith.constant 0 : i32
    %c0_i32_0 = arith.constant 0 : i32
    %c0_i32_1 = arith.constant 0 : i32
    return %c0_i32, %c0_i32_0 : i32, i32
  }
  func.func @transform_4(%arg0: i32, %arg1: i32) -> (i32, i32) {
    %c0_i32 = arith.constant 0 : i32
    %c0_i32_0 = arith.constant 0 : i32
    %c0_i32_1 = arith.constant 0 : i32
    return %c0_i32, %c0_i32_0 : i32, i32
  }
  func.func @transform_5(%arg0: i32, %arg1: i32) -> (i32, i32, i32) {
    %c0_i32 = arith.constant 0 : i32
    %c0_i32_0 = arith.constant 0 : i32
    return %arg1, %arg0, %c0_i32 : i32, i32, i32
  }
}

</mosaic_0001>

<llo_original>
// kernel: asr_forward.11
$region0: #{asr_forward.11}
  #allocation0 [shape = 'u32[]', space=smem, size = 0x4, offset = 0x4, fixed_abs, tag = 'smem constant byte address 0x4 - core index']
  #allocation1 [shape = 'u32[144,128]{1,0:T(1,128)}', space=vmem, size = 0x12000, scoped, tag = 'internal scratch']
  %s0 = inlined_call_operand.vmem [shape: f32[128,9], index: 0, kind: input, shape index: {}]
  %s1 = inlined_call_operand.vmem [shape: bf16[1,9,32], index: 1, kind: input, shape index: {}]
  %s2 = inlined_call_operand.vmem [shape: f32[1,1,32], index: 2, kind: input, shape index: {}]
  %s3 = inlined_call_operand.vmem [shape: f32[1,128,32], index: 3, kind: output, shape index: {}]
  %s4 = sld [smem:[#allocation0]]
  $region22: #{asr_forward.11} parent=0
    _
  %s6 = ssub.s32 1, %s4
  %s7 = scalar_select 0, %s6, %s4
  // Predicated region
  $region2: #{asr_forward.11} parent=0 // pred_check
    _
  $region3: #{asr_forward.11} parent=0 // pred_check_branch
    %9 = sbr.rel (0) target = $region5
  $region4: #{asr_forward.11} parent=0 // pred_region
    _
  $region5: #{asr_forward.11} parent=0 // pred_fallthru
    _
  // Predicated region
  $region6: #{asr_forward.11} parent=0 // pred_check
    _
  $region7: #{asr_forward.11} parent=0 // pred_check_branch
    %11 = sbr.rel (0) target = $region9
  $region8: #{asr_forward.11} parent=0 // pred_region
    _
  $region9: #{asr_forward.11} parent=0 // pred_fallthru
    _
  // Predicated region
  $region10: #{asr_forward.11} parent=0 // pred_check
    _
  $region11: #{asr_forward.11} parent=0 // pred_check_branch
    %13 = sbr.rel (0) target = $region13
  $region12: #{asr_forward.11} parent=0 // pred_region
    _
  $region13: #{asr_forward.11} parent=0 // pred_fallthru
    _
  %v15 = vld [vmem:[%s0] sm:$0xff]
  %v16 = vld [vmem:[%s0 + $0x8] sm:$0xff]
  %v17 = vld [vmem:[%s0 + $0x10] sm:$0xff]
  %v18 = vld [vmem:[%s0 + $0x18] sm:$0xff]
  %v19 = vld [vmem:[%s0 + $0x20] sm:$0xff]
  %v20 = vld [vmem:[%s0 + $0x28] sm:$0xff]
  %v21 = vld [vmem:[%s0 + $0x30] sm:$0xff]
  %v22 = vld [vmem:[%s0 + $0x38] sm:$0xff]
  %v23 = vld [vmem:[%s0 + $0x40] sm:$0xff]
  %v24 = vld [vmem:[%s0 + $0x48] sm:$0xff]
  %v25 = vld [vmem:[%s0 + $0x50] sm:$0xff]
  %v26 = vld [vmem:[%s0 + $0x58] sm:$0xff]
  %v27 = vld [vmem:[%s0 + $0x60] sm:$0xff]
  %v28 = vld [vmem:[%s0 + $0x68] sm:$0xff]
  %v29 = vld [vmem:[%s0 + $0x70] sm:$0xff]
  %v30 = vld [vmem:[%s0 + $0x78] sm:$0xff]
  %v31 = vpack.c.bf16 %v16, %v15
  %v32 = vpack.c.bf16 %v18, %v17
  %v33 = vpack.c.bf16 %v20, %v19
  %v34 = vpack.c.bf16 %v22, %v21
  %v35 = vpack.c.bf16 %v24, %v23
  %v36 = vpack.c.bf16 %v26, %v25
  %v37 = vpack.c.bf16 %v28, %v27
  %v38 = vpack.c.bf16 %v30, %v29
  %v39 = vld [vmem:[%s1] sm:$0xf]
  %v40 = vld [vmem:[%s1 + $0x4] sm:$0x1]
  %v41 = vld [vmem:[%s2] sm:$0x1]
  %v43 = vlaneseq
  %v44 = vshrl.u32 %v43, 7
  %v45 = vsub.s32 0, %v44
  %v46 = vrot.slane %v41, %v45
  %v50 = vunpack.c.l.b16 %v39
  %v51 = vunpack.c.l.b16 %v40
  %v52 = vpack.c.b16 %v51, %v50
  %vm53 = vcmask 72704
  %v55 = vsel %vm53, %v31, 0
  %v58 = vsel %vm53, %v32, 0
  %v61 = vsel %vm53, %v33, 0
  %v64 = vsel %vm53, %v34, 0
  %v67 = vsel %vm53, %v35, 0
  %v70 = vsel %vm53, %v36, 0
  %v73 = vsel %vm53, %v37, 0
  %v76 = vsel %vm53, %v38, 0
  %vm78 = vcmask 1043456
  %vm79 = vcmask 1044480
  %v80 = vsel %vm78, 4294967295, 65535
  %v81 = vsel %vm79, %v80, 0
  %v83 = vand.u32 %v52, %v81
  %85 = vmatprep.subr.bf16.mxu0 0
  %86 = vmatpush1.bf16.msra.mxu0 0
  %87 = vmatprep.subr.bf16.mxu0 0
  %88 = vmatpush1.bf16.msra.mxu0 0
  %89 = vmatprep.subr.bf16.mxu0 0
  %90 = vmatpush1.bf16.msra.mxu0 0
  %91 = vmatprep.subr.bf16.mxu0 0
  %92 = vmatpush1.bf16.msra.mxu0 0
  %93 = vmatprep.subr.bf16.mxu0 0
  %94 = vmatpush1.bf16.msra.mxu0 0
  %95 = vmatprep.subr.bf16.mxu0 0
  %96 = vmatpush1.bf16.msra.mxu0 0
  %97 = vmatprep.subr.bf16.mxu0 0
  %98 = vmatpush1.bf16.msra.mxu0 0
  %99 = vmatprep.subr.bf16.mxu0 0
  %100 = vmatpush1.bf16.msra.mxu0 %v83
  %101 = vmatprep.subr.bf16.mxu0 0
  %102 = vmatpush2.bf16.msra.mxu0 0
  %103 = vmatprep.subr.bf16.mxu0 0
  %104 = vmatpush2.bf16.msra.mxu0 0
  %105 = vmatprep.subr.bf16.mxu0 0
  %106 = vmatpush2.bf16.msra.mxu0 0
  %107 = vmatprep.subr.bf16.mxu0 0
  %108 = vmatpush2.bf16.msra.mxu0 0
  %109 = vmatprep.subr.bf16.mxu0 0
  %110 = vmatpush2.bf16.msra.mxu0 0
  %111 = vmatprep.subr.bf16.mxu0 0
  %112 = vmatpush2.bf16.msra.mxu0 0
  %113 = vmatprep.subr.bf16.mxu0 0
  %114 = vmatpush2.bf16.msra.mxu0 0
  %115 = vmatprep.subr.bf16.mxu0 0
  %116 = vmatpush2.bf16.msra.mxu0 0
  %117 = vmatprep.mubr.bf16.mxu0 0
  %118 = vmatmul.mubr.bf16.gmra.mxu0 %v55
  %v119 = vpop.f32.mrf.mxu0
  %v120 = vadd.f32 %v46, %v119
  %v121 = vpop.f32.mrf.mxu0
  %v122 = vpop.f32.mrf.mxu0
  %v123 = vadd.f32 %v46, %v122
  %v124 = vpop.f32.mrf.mxu0
  %125 = vmatprep.mubr.bf16.mxu0 0
  %126 = vmatmul.mubr.bf16.gmra.mxu0 %v58
  %v127 = vpop.f32.mrf.mxu0
  %v128 = vadd.f32 %v46, %v127
  %v129 = vpop.f32.mrf.mxu0
  %v130 = vpop.f32.mrf.mxu0
  %v131 = vadd.f32 %v46, %v130
  %v132 = vpop.f32.mrf.mxu0
  %133 = vmatprep.mubr.bf16.mxu0 0
  %134 = vmatmul.mubr.bf16.gmra.mxu0 %v61
  %v135 = vpop.f32.mrf.mxu0
  %v136 = vadd.f32 %v46, %v135
  %v137 = vpop.f32.mrf.mxu0
  %v138 = vpop.f32.mrf.mxu0
  %v139 = vadd.f32 %v46, %v138
  %v140 = vpop.f32.mrf.mxu0
  %141 = vmatprep.mubr.bf16.mxu0 0
  %142 = vmatmul.mubr.bf16.gmra.mxu0 %v64
  %v143 = vpop.f32.mrf.mxu0
  %v144 = vadd.f32 %v46, %v143
  %v145 = vpop.f32.mrf.mxu0
  %v146 = vpop.f32.mrf.mxu0
  %v147 = vadd.f32 %v46, %v146
  %v148 = vpop.f32.mrf.mxu0
  %149 = vmatprep.mubr.bf16.mxu0 0
  %150 = vmatmul.mubr.bf16.gmra.mxu0 %v67
  %v151 = vpop.f32.mrf.mxu0
  %v152 = vadd.f32 %v46, %v151
  %v153 = vpop.f32.mrf.mxu0
  %v154 = vpop.f32.mrf.mxu0
  %v155 = vadd.f32 %v46, %v154
  %v156 = vpop.f32.mrf.mxu0
  %157 = vmatprep.mubr.bf16.mxu0 0
  %158 = vmatmul.mubr.bf16.gmra.mxu0 %v70
  %v159 = vpop.f32.mrf.mxu0
  %v160 = vadd.f32 %v46, %v159
  %v161 = vpop.f32.mrf.mxu0
  %v162 = vpop.f32.mrf.mxu0
  %v163 = vadd.f32 %v46, %v162
  %v164 = vpop.f32.mrf.mxu0
  %165 = vmatprep.mubr.bf16.mxu0 0
  %166 = vmatmul.mubr.bf16.gmra.mxu0 %v73
  %v167 = vpop.f32.mrf.mxu0
  %v168 = vadd.f32 %v46, %v167
  %v169 = vpop.f32.mrf.mxu0
  %v170 = vpop.f32.mrf.mxu0
  %v171 = vadd.f32 %v46, %v170
  %v172 = vpop.f32.mrf.mxu0
  %173 = vmatprep.mubr.bf16.mxu0 0
  %174 = vmatmul.mubr.bf16.gmra.mxu0 %v76
  %v175 = vpop.f32.mrf.mxu0
  %v176 = vadd.f32 %v46, %v175
  %v177 = vpop.f32.mrf.mxu0
  %v178 = vpop.f32.mrf.mxu0
  %v179 = vadd.f32 %v46, %v178
  %v180 = vpop.f32.mrf.mxu0
  %181 = vdwg.mxu0
  %vm182 = vcmask 261120
  %183 = vst.msk [vmem:[%s3] sm:$0xff] %vm182, %v120
  %184 = vst.msk [vmem:[%s3 + $0x8] sm:$0xff] %vm182, %v123
  %185 = vst.msk [vmem:[%s3 + $0x10] sm:$0xff] %vm182, %v128
  %186 = vst.msk [vmem:[%s3 + $0x18] sm:$0xff] %vm182, %v131
  %187 = vst.msk [vmem:[%s3 + $0x20] sm:$0xff] %vm182, %v136
  %188 = vst.msk [vmem:[%s3 + $0x28] sm:$0xff] %vm182, %v139
  %189 = vst.msk [vmem:[%s3 + $0x30] sm:$0xff] %vm182, %v144
  %190 = vst.msk [vmem:[%s3 + $0x38] sm:$0xff] %vm182, %v147
  %191 = vst.msk [vmem:[%s3 + $0x40] sm:$0xff] %vm182, %v152
  %192 = vst.msk [vmem:[%s3 + $0x48] sm:$0xff] %vm182, %v155
  %193 = vst.msk [vmem:[%s3 + $0x50] sm:$0xff] %vm182, %v160
  %194 = vst.msk [vmem:[%s3 + $0x58] sm:$0xff] %vm182, %v163
  %195 = vst.msk [vmem:[%s3 + $0x60] sm:$0xff] %vm182, %v168
  %196 = vst.msk [vmem:[%s3 + $0x68] sm:$0xff] %vm182, %v171
  %197 = vst.msk [vmem:[%s3 + $0x70] sm:$0xff] %vm182, %v176
  %198 = vst.msk [vmem:[%s3 + $0x78] sm:$0xff] %vm182, %v179
  // Predicated region
  $region14: #{asr_forward.11} parent=0 // pred_check
    _
  $region15: #{asr_forward.11} parent=0 // pred_check_branch
    %200 = sbr.rel (0) target = $region17
  $region16: #{asr_forward.11} parent=0 // pred_region
    _
  $region17: #{asr_forward.11} parent=0 // pred_fallthru
    _
  // Predicated region
  $region18: #{asr_forward.11} parent=0 // pred_check
    _
  $region19: #{asr_forward.11} parent=0 // pred_check_branch
    %202 = sbr.rel (0) target = $region21
  $region20: #{asr_forward.11} parent=0 // pred_region
    _
  $region21: #{asr_forward.11} parent=0 // pred_fallthru
    _

// kernel: asr_forward.12
$region0: #{asr_forward.12}
  #allocation0 [shape = 'u32[]', space=smem, size = 0x4, offset = 0x4, fixed_abs, tag = 'smem constant byte address 0x4 - core index']
  #allocation1 [shape = 'u32[144,128]{1,0:T(1,128)}', space=vmem, size = 0x12000, scoped, tag = 'internal scratch']
  #allocation2 [shape = 'f32[10,10,32]{2,1,0:T(8,128)}', space=vmem, size = 0x14000, scoped, tag = 'scratch operand']
  %s0 = inlined_call_operand.vmem [shape: f32[2,8,8,32], index: 0, kind: input, shape index: {}]
  %s1 = inlined_call_operand.vmem [shape: f32[8,1,1], index: 1, kind: input, shape index: {}]
  %s2 = inlined_call_operand.vmem [shape: f32[8,1,1], index: 2, kind: input, shape index: {}]
  %s3 = inlined_call_operand.vmem [shape: bf16[9,32,32], index: 3, kind: input, shape index: {}]
  %s4 = inlined_call_operand.vmem [shape: f32[1,32], index: 4, kind: input, shape index: {}]
  %s5 = inlined_call_operand.vmem [shape: f32[2,8,8,32], index: 5, kind: output, shape index: {}]
  %s6 = sld [smem:[#allocation0]]
  $region53: #{asr_forward.12} parent=0
    _
  %s8 = ssub.s32 1, %s6
  %s9 = scalar_select 0, %s8, %s6
  loop: start=0, step=1, limit=4
  $region2: #{asr_forward.12} parent=0 // loop_pre_header
    _
  $region3: #{asr_forward.12} parent=0 // loop_header
    %s11 = sphi 0, %s15
    %p12 = scmp.ge.s32.totalorder %s11, 4
    %s21 = sphi 0, %s23
    %s24 = sphi 0, %s21
    %s25 = sphi 0, %s24
    %s41 = sphi 0, %s25
    %s45 = sphi 0, %s45
    %s47 = sphi 0, %s45
    %s48 = sphi 0, %s47
    %s62 = sphi 0, %s48
    %s66 = sphi 0, %s66
    %s68 = sphi 0, %s66
    %s69 = sphi 0, %s68
    %s83 = sphi 0, %s69
    %s87 = sphi 0, %s87
    %s89 = sphi 0, %s87
    %s90 = sphi 0, %s89
    %s104 = sphi 0, %s90
    %s108 = sphi 0, %s108
    %s110 = sphi 0, %s108
    %s111 = sphi 0, %s110
    %s125 = sphi 0, %s111
    %s131 = sphi 0, %s133
    %s134 = sphi 0, %s131
    %s135 = sphi 0, %s134
    %s151 = sphi 0, %s135
  $region4: #{asr_forward.12} parent=0 // loop_header_branch
    %14 = sbr.rel (%p12) target = $region8
  $region5: #{asr_forward.12} parent=0 // loop_body
    %s16 = ssub.s32 %s11, 1
    %s17 = ssub.s32 %s11, 2
    %s18 = sadd.s32 %s11, 1
    %s19 = ssub.s32 %s11, %s18
    %p20 = scmp.eq.s32.totalorder %s19, 0
    %s22 = sadd.s32 %s21, 1
    %s23 = scalar_select %p20, %s21, %s22
    %p26 = pneg %p20
    %p27 = scmp.eq.s32.totalorder %s11, 1
    %p28 = por %p26, %p27
    %p29 = scmp.ne.s32.totalorder %s21, %s24
    %p30 = scmp.eq.s32.totalorder %s11, 0
    %p31 = por %p29, %p30
    %p32 = scmp.ne.s32.totalorder %s21, %s24
    %p33 = scmp.eq.s32.totalorder %s16, 1
    %p34 = por %p32, %p33
    %p35 = scmp.ne.s32.totalorder %s24, %s25
    %p36 = scmp.eq.s32.totalorder %s16, 0
    %p37 = por %p35, %p36
    %p38 = scmp.ne.s32.totalorder %s24, %s25
    %p39 = scmp.eq.s32.totalorder %s17, 1
    %p40 = por %p38, %p39
    %p42 = scmp.ne.s32.totalorder %s25, %s41
    %p43 = scmp.eq.s32.totalorder %s17, 0
    %p44 = por %p42, %p43
    %s46 = sadd.s32 %s45, 1
    %p49 = scmp.eq.s32.totalorder %s11, 1
    %p50 = scmp.ne.s32.totalorder %s45, %s47
    %p51 = scmp.eq.s32.totalorder %s11, 0
    %p52 = por %p50, %p51
    %p53 = scmp.ne.s32.totalorder %s45, %s47
    %p54 = scmp.eq.s32.totalorder %s16, 1
    %p55 = por %p53, %p54
    %p56 = scmp.ne.s32.totalorder %s47, %s48
    %p57 = scmp.eq.s32.totalorder %s16, 0
    %p58 = por %p56, %p57
    %p59 = scmp.ne.s32.totalorder %s47, %s48
    %p60 = scmp.eq.s32.totalorder %s17, 1
    %p61 = por %p59, %p60
    %p63 = scmp.ne.s32.totalorder %s48, %s62
    %p64 = scmp.eq.s32.totalorder %s17, 0
    %p65 = por %p63, %p64
    %s67 = sadd.s32 %s66, 1
    %p70 = scmp.eq.s32.totalorder %s11, 1
    %p71 = scmp.ne.s32.totalorder %s66, %s68
    %p72 = scmp.eq.s32.totalorder %s11, 0
    %p73 = por %p71, %p72
    %p74 = scmp.ne.s32.totalorder %s66, %s68
    %p75 = scmp.eq.s32.totalorder %s16, 1
    %p76 = por %p74, %p75
    %p77 = scmp.ne.s32.totalorder %s68, %s69
    %p78 = scmp.eq.s32.totalorder %s16, 0
    %p79 = por %p77, %p78
    %p80 = scmp.ne.s32.totalorder %s68, %s69
    %p81 = scmp.eq.s32.totalorder %s17, 1
    %p82 = por %p80, %p81
    %p84 = scmp.ne.s32.totalorder %s69, %s83
    %p85 = scmp.eq.s32.totalorder %s17, 0
    %p86 = por %p84, %p85
    %s88 = sadd.s32 %s87, 1
    %p91 = scmp.eq.s32.totalorder %s11, 1
    %p92 = scmp.ne.s32.totalorder %s87, %s89
    %p93 = scmp.eq.s32.totalorder %s11, 0
    %p94 = por %p92, %p93
    %p95 = scmp.ne.s32.totalorder %s87, %s89
    %p96 = scmp.eq.s32.totalorder %s16, 1
    %p97 = por %p95, %p96
    %p98 = scmp.ne.s32.totalorder %s89, %s90
    %p99 = scmp.eq.s32.totalorder %s16, 0
    %p100 = por %p98, %p99
    %p101 = scmp.ne.s32.totalorder %s89, %s90
    %p102 = scmp.eq.s32.totalorder %s17, 1
    %p103 = por %p101, %p102
    %p105 = scmp.ne.s32.totalorder %s90, %s104
    %p106 = scmp.eq.s32.totalorder %s17, 0
    %p107 = por %p105, %p106
    %s109 = sadd.s32 %s108, 1
    %p112 = scmp.eq.s32.totalorder %s11, 1
    %p113 = scmp.ne.s32.totalorder %s108, %s110
    %p114 = scmp.eq.s32.totalorder %s11, 0
    %p115 = por %p113, %p114
    %p116 = scmp.ne.s32.totalorder %s108, %s110
    %p117 = scmp.eq.s32.totalorder %s16, 1
    %p118 = por %p116, %p117
    %p119 = scmp.ne.s32.totalorder %s110, %s111
    %p120 = scmp.eq.s32.totalorder %s16, 0
    %p121 = por %p119, %p120
    %p122 = scmp.ne.s32.totalorder %s110, %s111
    %p123 = scmp.eq.s32.totalorder %s17, 1
    %p124 = por %p122, %p123
    %p126 = scmp.ne.s32.totalorder %s111, %s125
    %p127 = scmp.eq.s32.totalorder %s17, 0
    %p128 = por %p126, %p127
    %s129 = ssub.s32 %s11, %s18
    %p130 = scmp.eq.s32.totalorder %s129, 0
    %s132 = sadd.s32 %s131, 1
    %s133 = scalar_select %p130, %s131, %s132
    %p136 = pneg %p130
    %p137 = scmp.eq.s32.totalorder %s11, 1
    %p138 = por %p136, %p137
    %p139 = scmp.ne.s32.totalorder %s131, %s134
    %p140 = scmp.eq.s32.totalorder %s11, 0
    %p141 = por %p139, %p140
    %p142 = scmp.ne.s32.totalorder %s131, %s134
    %p143 = scmp.eq.s32.totalorder %s16, 1
    %p144 = por %p142, %p143
    %p145 = scmp.ne.s32.totalorder %s134, %s135
    %p146 = scmp.eq.s32.totalorder %s16, 0
    %p147 = por %p145, %p146
    %p148 = scmp.ne.s32.totalorder %s134, %s135
    %p149 = scmp.eq.s32.totalorder %s17, 1
    %p150 = por %p148, %p149
    %p152 = scmp.ne.s32.totalorder %s135, %s151
    %p153 = scmp.eq.s32.totalorder %s17, 0
    %p154 = por %p152, %p153
    %p155 = scmp.le.s32.totalorder 1, %s11
    %p156 = scmp.lt.s32.totalorder %s11, 3
    %p157 = pnand %p155, %p156
    %p158 = pneg %p157
    // Predicated region
    $region9: #{asr_forward.12} parent=5 // pred_check
      _
    $region10: #{asr_forward.12} parent=5 // pred_check_branch
      %160 = sbr.rel (%p157) target = $region12
    $region11: #{asr_forward.12} parent=5 // pred_region
      %s161 = ssub.s32 %s11, 1
      // Predicated region
      $region13: #{asr_forward.12} parent=11 // pred_check
        %p162 = pneg %p58
      $region14: #{asr_forward.12} parent=11 // pred_check_branch
        %164 = sbr.rel (%p162) target = $region16
      $region15: #{asr_forward.12} parent=11 // pred_region
        _
      $region16: #{asr_forward.12} parent=11 // pred_fallthru
        _
      // Predicated region
      $region17: #{asr_forward.12} parent=11 // pred_check
        %p165 = pneg %p79
      $region18: #{asr_forward.12} parent=11 // pred_check_branch
        %167 = sbr.rel (%p165) target = $region20
      $region19: #{asr_forward.12} parent=11 // pred_region
        _
      $region20: #{asr_forward.12} parent=11 // pred_fallthru
        _
      // Predicated region
      $region21: #{asr_forward.12} parent=11 // pred_check
        %p168 = pneg %p100
      $region22: #{asr_forward.12} parent=11 // pred_check_branch
        %170 = sbr.rel (%p168) target = $region24
      $region23: #{asr_forward.12} parent=11 // pred_region
        _
      $region24: #{asr_forward.12} parent=11 // pred_fallthru
        _
      // Predicated region
      $region25: #{asr_forward.12} parent=11 // pred_check
        %p171 = pneg %p121
      $region26: #{asr_forward.12} parent=11 // pred_check_branch
        %173 = sbr.rel (%p171) target = $region28
      $region27: #{asr_forward.12} parent=11 // pred_region
        _
      $region28: #{asr_forward.12} parent=11 // pred_fallthru
        _
    $region12: #{asr_forward.12} parent=5 // pred_fallthru
      _
    %p174 = scmp.lt.s32.totalorder %s11, 2
    // Predicated region
    $region29: #{asr_forward.12} parent=5 // pred_check
      %p175 = pneg %p174
    $region30: #{asr_forward.12} parent=5 // pred_check_branch
      %177 = sbr.rel (%p175) target = $region32
    $region31: #{asr_forward.12} parent=5 // pred_region
      // Predicated region
      $region33: #{asr_forward.12} parent=31 // pred_check
        %p178 = pneg %p31
      $region34: #{asr_forward.12} parent=31 // pred_check_branch
        %180 = sbr.rel (%p178) target = $region36
      $region35: #{asr_forward.12} parent=31 // pred_region
        %p181 = scmp.lt.s32.totalorder %s11, 1
        %s182 = scalar_select %p181, %s11, 1
        %s183 = smul.addr %s182, 8
        %s184 = smul.addr %s183, 8
        %s185 = scalar_lea.vmem %s0, %s184
      $region36: #{asr_forward.12} parent=31 // pred_fallthru
        _
    $region32: #{asr_forward.12} parent=5 // pred_fallthru
      _
    %p186 = scmp.le.s32.totalorder 1, %s11
    %p187 = scmp.lt.s32.totalorder %s11, 3
    %p188 = pnand %p186, %p187
    %p189 = pneg %p188
    // Predicated region
    $region37: #{asr_forward.12} parent=5 // pred_check
      _
    $region38: #{asr_forward.12} parent=5 // pred_check_branch
      %191 = sbr.rel (%p188) target = $region40
    $region39: #{asr_forward.12} parent=5 // pred_region
      %s192 = ssub.s32 %s11, 1
      %p193 = scmp.lt.s32.totalorder %s16, 1
      %s194 = scalar_select %p193, %s16, 1
      %s195 = smul.addr %s194, 8
      %s196 = smul.addr %s195, 8
      %s197 = scalar_lea.vmem %s0, %s196
      %p198 = pneg %p37
      %p199 = pneg %p34
      %p200 = pneg %p58
      %p201 = pneg %p55
      %p202 = pneg %p79
      %p203 = pneg %p76
      %p204 = pneg %p100
      %p205 = pneg %p97
      %p206 = pneg %p121
      %p207 = pneg %p118
      %p208 = pneg %p147
      %p209 = pneg %p144
      %p210 = scmp.lt.s32.totalorder %s16, 1
      %s211 = scalar_select %p210, %s16, 1
      %s212 = smul.addr %s211, 8
      %s213 = smul.addr %s212, 8
      %s214 = scalar_lea.vmem %s5, %s213
      %p215 = scmp.lt.s32.totalorder %s16, 1
      %s216 = scalar_select %p215, %s16, 1
      %s217 = smul.addr %s216, 8
      %s218 = smul.addr %s217, 8
      %s219 = scalar_lea.vmem %s0, %s218
      %p220 = scmp.lt.s32.totalorder %s16, 1
      %s221 = scalar_select %p220, %s16, 1
      %s222 = smul.addr %s221, 8
      %s223 = smul.addr %s222, 8
      %s224 = scalar_lea.vmem %s5, %s223
      %v226 = vld [vmem:[%s219] sm:$0xff]
      %v227 = vld [vmem:[%s219 + $0x8] sm:$0xff]
      %v228 = vld [vmem:[%s219 + $0x10] sm:$0xff]
      %v229 = vld [vmem:[%s219 + $0x18] sm:$0xff]
      %v230 = vld [vmem:[%s219 + $0x20] sm:$0xff]
      %v231 = vld [vmem:[%s219 + $0x28] sm:$0xff]
      %v232 = vld [vmem:[%s219 + $0x30] sm:$0xff]
      %v233 = vld [vmem:[%s219 + $0x38] sm:$0xff]
      %vm234 = vcmask 261120
      %v235 = vsel %vm234, %v226, 0.0
      %v236 = vsel %vm234, %v227, 0.0
      %v237 = vadd.f32 %v235, %v236
      %v238 = vsel %vm234, %v228, 0.0
      %v239 = vadd.f32 %v237, %v238
      %v240 = vsel %vm234, %v229, 0.0
      %v241 = vadd.f32 %v239, %v240
      %v242 = vsel %vm234, %v230, 0.0
      %v243 = vadd.f32 %v241, %v242
      %v244 = vsel %vm234, %v231, 0.0
      %v245 = vadd.f32 %v243, %v244
      %v246 = vsel %vm234, %v232, 0.0
      %v247 = vadd.f32 %v245, %v246
      %v248 = vsel %vm234, %v233, 0.0
      %v249 = vadd.f32 %v247, %v248
      %v250 = vrcp.pop 8.0
      %v251 = vmul.f32 %v249, %v250
      %v252 = vsub.f32 %v226, %v251
      %v253 = vsub.f32 %v227, %v251
      %v254 = vsub.f32 %v228, %v251
      %v255 = vsub.f32 %v229, %v251
      %v256 = vsub.f32 %v230, %v251
      %v257 = vsub.f32 %v231, %v251
      %v258 = vsub.f32 %v232, %v251
      %v259 = vsub.f32 %v233, %v251
      %v260 = vmul.f32 %v252, %v252
      %v261 = vmul.f32 %v253, %v253
      %v262 = vmul.f32 %v254, %v254
      %v263 = vmul.f32 %v255, %v255
      %v264 = vmul.f32 %v256, %v256
      %v265 = vmul.f32 %v257, %v257
      %v266 = vmul.f32 %v258, %v258
      %v267 = vmul.f32 %v259, %v259
      %v268 = vsel %vm234, %v260, 0.0
      %v269 = vsel %vm234, %v261, 0.0
      %v270 = vadd.f32 %v268, %v269
      %v271 = vsel %vm234, %v262, 0.0
      %v272 = vadd.f32 %v270, %v271
      %v273 = vsel %vm234, %v263, 0.0
      %v274 = vadd.f32 %v272, %v273
      %v275 = vsel %vm234, %v264, 0.0
      %v276 = vadd.f32 %v274, %v275
      %v277 = vsel %vm234, %v265, 0.0
      %v278 = vadd.f32 %v276, %v277
      %v279 = vsel %vm234, %v266, 0.0
      %v280 = vadd.f32 %v278, %v279
      %v281 = vsel %vm234, %v267, 0.0
      %v282 = vadd.f32 %v280, %v281
      %v283 = vmul.f32 %v282, %v250
      %v284 = vadd.f32 %v283, 1e-05
      %v285 = vrsqrt.pop %v284
      %v286 = vmul.f32 %v252, %v285
      %v287 = vmul.f32 %v253, %v285
      %v288 = vmul.f32 %v254, %v285
      %v289 = vmul.f32 %v255, %v285
      %v290 = vmul.f32 %v256, %v285
      %v291 = vmul.f32 %v257, %v285
      %v292 = vmul.f32 %v258, %v285
      %v293 = vmul.f32 %v259, %v285
      %v294 = vld [vmem:[%s1] sm:$0x1]
      %v295 = vld [vmem:[%s1 + $0x1] sm:$0x1]
      %v296 = vld [vmem:[%s1 + $0x2] sm:$0x1]
      %v297 = vld [vmem:[%s1 + $0x3] sm:$0x1]
      %v298 = vld [vmem:[%s1 + $0x4] sm:$0x1]
      %v299 = vld [vmem:[%s1 + $0x5] sm:$0x1]
      %v300 = vld [vmem:[%s1 + $0x6] sm:$0x1]
      %v301 = vld [vmem:[%s1 + $0x7] sm:$0x1]
      %v310 = vlaneseq
      %v311 = vshrl.u32 %v310, 7
      %v312 = vsub.s32 0, %v311
      %v313 = vrot.slane %v294, %v312
      %v314 = vlaneseq
      %v315 = vshrl.u32 %v314, 7
      %v316 = vsub.s32 0, %v315
      %v317 = vrot.slane %v295, %v316
      %v318 = vlaneseq
      %v319 = vshrl.u32 %v318, 7
      %v320 = vsub.s32 0, %v319
      %v321 = vrot.slane %v296, %v320
      %v322 = vlaneseq
      %v323 = vshrl.u32 %v322, 7
      %v324 = vsub.s32 0, %v323
      %v325 = vrot.slane %v297, %v324
      %v326 = vlaneseq
      %v327 = vshrl.u32 %v326, 7
      %v328 = vsub.s32 0, %v327
      %v329 = vrot.slane %v298, %v328
      %v330 = vlaneseq
      %v331 = vshrl.u32 %v330, 7
      %v332 = vsub.s32 0, %v331
      %v333 = vrot.slane %v299, %v332
      %v334 = vlaneseq
      %v335 = vshrl.u32 %v334, 7
      %v336 = vsub.s32 0, %v335
      %v337 = vrot.slane %v300, %v336
      %v338 = vlaneseq
      %v339 = vshrl.u32 %v338, 7
      %v340 = vsub.s32 0, %v339
      %v341 = vrot.slane %v301, %v340
      %342 = vset.pattern.permute.xlu0 0
      %343 = vperm.xlu0 %342, %v313
      %v344 = vpop.permute.xlu0 %343
      %346 = vset.pattern.permute.xlu0 0
      %347 = vperm.xlu0 %346, %v317
      %v348 = vpop.permute.xlu0 %347
      %350 = vset.pattern.permute.xlu0 0
      %351 = vperm.xlu0 %350, %v321
      %v352 = vpop.permute.xlu0 %351
      %354 = vset.pattern.permute.xlu0 0
      %355 = vperm.xlu0 %354, %v325
      %v356 = vpop.permute.xlu0 %355
      %358 = vset.pattern.permute.xlu0 0
      %359 = vperm.xlu0 %358, %v329
      %v360 = vpop.permute.xlu0 %359
      %362 = vset.pattern.permute.xlu0 0
      %363 = vperm.xlu0 %362, %v333
      %v364 = vpop.permute.xlu0 %363
      %366 = vset.pattern.permute.xlu0 0
      %367 = vperm.xlu0 %366, %v337
      %v368 = vpop.permute.xlu0 %367
      %370 = vset.pattern.permute.xlu0 0
      %371 = vperm.xlu0 %370, %v341
      %v372 = vpop.permute.xlu0 %371
      %v374 = vmul.f32 %v286, %v344
      %v375 = vmul.f32 %v287, %v348
      %v376 = vmul.f32 %v288, %v352
      %v377 = vmul.f32 %v289, %v356
      %v378 = vmul.f32 %v290, %v360
      %v379 = vmul.f32 %v291, %v364
      %v380 = vmul.f32 %v292, %v368
      %v381 = vmul.f32 %v293, %v372
      %v382 = vld [vmem:[%s2] sm:$0x1]
      %v383 = vld [vmem:[%s2 + $0x1] sm:$0x1]
      %v384 = vld [vmem:[%s2 + $0x2] sm:$0x1]
      %v385 = vld [vmem:[%s2 + $0x3] sm:$0x1]
      %v386 = vld [vmem:[%s2 + $0x4] sm:$0x1]
      %v387 = vld [vmem:[%s2 + $0x5] sm:$0x1]
      %v388 = vld [vmem:[%s2 + $0x6] sm:$0x1]
      %v389 = vld [vmem:[%s2 + $0x7] sm:$0x1]
      %v398 = vlaneseq
      %v399 = vshrl.u32 %v398, 7
      %v400 = vsub.s32 0, %v399
      %v401 = vrot.slane %v382, %v400
      %v402 = vlaneseq
      %v403 = vshrl.u32 %v402, 7
      %v404 = vsub.s32 0, %v403
      %v405 = vrot.slane %v383, %v404
      %v406 = vlaneseq
      %v407 = vshrl.u32 %v406, 7
      %v408 = vsub.s32 0, %v407
      %v409 = vrot.slane %v384, %v408
      %v410 = vlaneseq
      %v411 = vshrl.u32 %v410, 7
      %v412 = vsub.s32 0, %v411
      %v413 = vrot.slane %v385, %v412
      %v414 = vlaneseq
      %v415 = vshrl.u32 %v414, 7
      %v416 = vsub.s32 0, %v415
      %v417 = vrot.slane %v386, %v416
      %v418 = vlaneseq
      %v419 = vshrl.u32 %v418, 7
      %v420 = vsub.s32 0, %v419
      %v421 = vrot.slane %v387, %v420
      %v422 = vlaneseq
      %v423 = vshrl.u32 %v422, 7
      %v424 = vsub.s32 0, %v423
      %v425 = vrot.slane %v388, %v424
      %v426 = vlaneseq
      %v427 = vshrl.u32 %v426, 7
      %v428 = vsub.s32 0, %v427
      %v429 = vrot.slane %v389, %v428
      %430 = vset.pattern.permute.xlu0 0
      %431 = vperm.xlu0 %430, %v401
      %v432 = vpop.permute.xlu0 %431
      %434 = vset.pattern.permute.xlu0 0
      %435 = vperm.xlu0 %434, %v405
      %v436 = vpop.permute.xlu0 %435
      %438 = vset.pattern.permute.xlu0 0
      %439 = vperm.xlu0 %438, %v409
      %v440 = vpop.permute.xlu0 %439
      %442 = vset.pattern.permute.xlu0 0
      %443 = vperm.xlu0 %442, %v413
      %v444 = vpop.permute.xlu0 %443
      %446 = vset.pattern.permute.xlu0 0
      %447 = vperm.xlu0 %446, %v417
      %v448 = vpop.permute.xlu0 %447
      %450 = vset.pattern.permute.xlu0 0
      %451 = vperm.xlu0 %450, %v421
      %v452 = vpop.permute.xlu0 %451
      %454 = vset.pattern.permute.xlu0 0
      %455 = vperm.xlu0 %454, %v425
      %v456 = vpop.permute.xlu0 %455
      %458 = vset.pattern.permute.xlu0 0
      %459 = vperm.xlu0 %458, %v429
      %v460 = vpop.permute.xlu0 %459
      %v462 = vadd.f32 %v374, %v432
      %v463 = vadd.f32 %v375, %v436
      %v464 = vadd.f32 %v376, %v440
      %v465 = vadd.f32 %v377, %v444
      %v466 = vadd.f32 %v378, %v448
      %v467 = vadd.f32 %v379, %v452
      %v468 = vadd.f32 %v380, %v456
      %v469 = vadd.f32 %v381, %v460
      %v470 = vmul.f32 %v462, 0.5
      %v471 = vmul.f32 %v463, 0.5
      %v472 = vmul.f32 %v464, 0.5
      %v473 = vmul.f32 %v465, 0.5
      %v474 = vmul.f32 %v466, 0.5
      %v475 = vmul.f32 %v467, 0.5
      %v476 = vmul.f32 %v468, 0.5
      %v477 = vmul.f32 %v469, 0.5
      %v478 = vmul.f32 %v462, 0.70710677
      %v479 = vmul.f32 %v463, 0.70710677
      %v480 = vmul.f32 %v464, 0.70710677
      %v481 = vmul.f32 %v465, 0.70710677
      %v482 = vmul.f32 %v466, 0.70710677
      %v483 = vmul.f32 %v467, 0.70710677
      %v484 = vmul.f32 %v468, 0.70710677
      %v485 = vmul.f32 %v469, 0.70710677
      %v486 = vmax.f32 %v478, -4.0
      %v487 = vmax.f32 %v479, -4.0
      %v488 = vmax.f32 %v480, -4.0
      %v489 = vmax.f32 %v481, -4.0
      %v490 = vmax.f32 %v482, -4.0
      %v491 = vmax.f32 %v483, -4.0
      %v492 = vmax.f32 %v484, -4.0
      %v493 = vmax.f32 %v485, -4.0
      %v494 = vmin.f32 %v486, 4.0
      %v495 = vmin.f32 %v487, 4.0
      %v496 = vmin.f32 %v488, 4.0
      %v497 = vmin.f32 %v489, 4.0
      %v498 = vmin.f32 %v490, 4.0
      %v499 = vmin.f32 %v491, 4.0
      %v500 = vmin.f32 %v492, 4.0
      %v501 = vmin.f32 %v493, 4.0
      %v502 = vmul.f32 %v494, %v494
      %v503 = vmul.f32 %v495, %v495
      %v504 = vmul.f32 %v496, %v496
      %v505 = vmul.f32 %v497, %v497
      %v506 = vmul.f32 %v498, %v498
      %v507 = vmul.f32 %v499, %v499
      %v508 = vmul.f32 %v500, %v500
      %v509 = vmul.f32 %v501, %v501
      %v510 = vmul.f32 %v502, -2.7261424e-10
      %v511 = vmul.f32 %v503, -2.7261424e-10
      %v512 = vmul.f32 %v504, -2.7261424e-10
      %v513 = vmul.f32 %v505, -2.7261424e-10
      %v514 = vmul.f32 %v506, -2.7261424e-10
      %v515 = vmul.f32 %v507, -2.7261424e-10
      %v516 = vmul.f32 %v508, -2.7261424e-10
      %v517 = vmul.f32 %v509, -2.7261424e-10
      %v518 = vadd.f32 %v510, 2.7706815e-08
      %v519 = vadd.f32 %v511, 2.7706815e-08
      %v520 = vadd.f32 %v512, 2.7706815e-08
      %v521 = vadd.f32 %v513, 2.7706815e-08
      %v522 = vadd.f32 %v514, 2.7706815e-08
      %v523 = vadd.f32 %v515, 2.7706815e-08
      %v524 = vadd.f32 %v516, 2.7706815e-08
      %v525 = vadd.f32 %v517, 2.7706815e-08
      %v526 = vmul.f32 %v518, %v502
      %v527 = vmul.f32 %v519, %v503
      %v528 = vmul.f32 %v520, %v504
      %v529 = vmul.f32 %v521, %v505
      %v530 = vmul.f32 %v522, %v506
      %v531 = vmul.f32 %v523, %v507
      %v532 = vmul.f32 %v524, %v508
      %v533 = vmul.f32 %v525, %v509
      %v534 = vadd.f32 %v526, -2.101024e-06
      %v535 = vadd.f32 %v527, -2.101024e-06
      %v536 = vadd.f32 %v528, -2.101024e-06
      %v537 = vadd.f32 %v529, -2.101024e-06
      %v538 = vadd.f32 %v530, -2.101024e-06
      %v539 = vadd.f32 %v531, -2.101024e-06
      %v540 = vadd.f32 %v532, -2.101024e-06
      %v541 = vadd.f32 %v533, -2.101024e-06
      %v542 = vmul.f32 %v534, %v502
      %v543 = vmul.f32 %v535, %v503
      %v544 = vmul.f32 %v536, %v504
      %v545 = vmul.f32 %v537, %v505
      %v546 = vmul.f32 %v538, %v506
      %v547 = vmul.f32 %v539, %v507
      %v548 = vmul.f32 %v540, %v508
      %v549 = vmul.f32 %v541, %v509
      %v550 = vadd.f32 %v542, -5.6925062e-05
      %v551 = vadd.f32 %v543, -5.6925062e-05
      %v552 = vadd.f32 %v544, -5.6925062e-05
      %v553 = vadd.f32 %v545, -5.6925062e-05
      %v554 = vadd.f32 %v546, -5.6925062e-05
      %v555 = vadd.f32 %v547, -5.6925062e-05
      %v556 = vadd.f32 %v548, -5.6925062e-05
      %v557 = vadd.f32 %v549, -5.6925062e-05
      %v558 = vmul.f32 %v550, %v502
      %v559 = vmul.f32 %v551, %v503
      %v560 = vmul.f32 %v552, %v504
      %v561 = vmul.f32 %v553, %v505
      %v562 = vmul.f32 %v554, %v506
      %v563 = vmul.f32 %v555, %v507
      %v564 = vmul.f32 %v556, %v508
      %v565 = vmul.f32 %v557, %v509
      %v566 = vadd.f32 %v558, -0.00073499064
      %v567 = vadd.f32 %v559, -0.00073499064
      %v568 = vadd.f32 %v560, -0.00073499064
      %v569 = vadd.f32 %v561, -0.00073499064
      %v570 = vadd.f32 %v562, -0.00073499064
      %v571 = vadd.f32 %v563, -0.00073499064
      %v572 = vadd.f32 %v564, -0.00073499064
      %v573 = vadd.f32 %v565, -0.00073499064
      %v574 = vmul.f32 %v566, %v502
      %v575 = vmul.f32 %v567, %v503
      %v576 = vmul.f32 %v568, %v504
      %v577 = vmul.f32 %v569, %v505
      %v578 = vmul.f32 %v570, %v506
      %v579 = vmul.f32 %v571, %v507
      %v580 = vmul.f32 %v572, %v508
      %v581 = vmul.f32 %v573, %v509
      %v582 = vadd.f32 %v574, -0.0029546
      %v583 = vadd.f32 %v575, -0.0029546
      %v584 = vadd.f32 %v576, -0.0029546
      %v585 = vadd.f32 %v577, -0.0029546
      %v586 = vadd.f32 %v578, -0.0029546
      %v587 = vadd.f32 %v579, -0.0029546
      %v588 = vadd.f32 %v580, -0.0029546
      %v589 = vadd.f32 %v581, -0.0029546
      %v590 = vmul.f32 %v582, %v502
      %v591 = vmul.f32 %v583, %v503
      %v592 = vmul.f32 %v584, %v504
      %v593 = vmul.f32 %v585, %v505
      %v594 = vmul.f32 %v586, %v506
      %v595 = vmul.f32 %v587, %v507
      %v596 = vmul.f32 %v588, %v508
      %v597 = vmul.f32 %v589, %v509
      %v598 = vadd.f32 %v590, -0.016096033
      %v599 = vadd.f32 %v591, -0.016096033
      %v600 = vadd.f32 %v592, -0.016096033
      %v601 = vadd.f32 %v593, -0.016096033
      %v602 = vadd.f32 %v594, -0.016096033
      %v603 = vadd.f32 %v595, -0.016096033
      %v604 = vadd.f32 %v596, -0.016096033
      %v605 = vadd.f32 %v597, -0.016096033
      %v606 = vmul.f32 %v598, %v494
      %v607 = vmul.f32 %v599, %v495
      %v608 = vmul.f32 %v600, %v496
      %v609 = vmul.f32 %v601, %v497
      %v610 = vmul.f32 %v602, %v498
      %v611 = vmul.f32 %v603, %v499
      %v612 = vmul.f32 %v604, %v500
      %v613 = vmul.f32 %v605, %v501
      %v614 = vmul.f32 %v502, -1.45660715e-05
      %v615 = vmul.f32 %v503, -1.45660715e-05
      %v616 = vmul.f32 %v504, -1.45660715e-05
      %v617 = vmul.f32 %v505, -1.45660715e-05
      %v618 = vmul.f32 %v506, -1.45660715e-05
      %v619 = vmul.f32 %v507, -1.45660715e-05
      %v620 = vmul.f32 %v508, -1.45660715e-05
      %v621 = vmul.f32 %v509, -1.45660715e-05
      %v622 = vadd.f32 %v614, -0.00021337405
      %v623 = vadd.f32 %v615, -0.00021337405
      %v624 = vadd.f32 %v616, -0.00021337405
      %v625 = vadd.f32 %v617, -0.00021337405
      %v626 = vadd.f32 %v618, -0.00021337405
      %v627 = vadd.f32 %v619, -0.00021337405
      %v628 = vadd.f32 %v620, -0.00021337405
      %v629 = vadd.f32 %v621, -0.00021337405
      %v630 = vmul.f32 %v622, %v502
      %v631 = vmul.f32 %v623, %v503
      %v632 = vmul.f32 %v624, %v504
      %v633 = vmul.f32 %v625, %v505
      %v634 = vmul.f32 %v626, %v506
      %v635 = vmul.f32 %v627, %v507
      %v636 = vmul.f32 %v628, %v508
      %v637 = vmul.f32 %v629, %v509
      %v638 = vadd.f32 %v630, -0.001682827
      %v639 = vadd.f32 %v631, -0.001682827
      %v640 = vadd.f32 %v632, -0.001682827
      %v641 = vadd.f32 %v633, -0.001682827
      %v642 = vadd.f32 %v634, -0.001682827
      %v643 = vadd.f32 %v635, -0.001682827
      %v644 = vadd.f32 %v636, -0.001682827
      %v645 = vadd.f32 %v637, -0.001682827
      %v646 = vmul.f32 %v638, %v502
      %v647 = vmul.f32 %v639, %v503
      %v648 = vmul.f32 %v640, %v504
      %v649 = vmul.f32 %v641, %v505
      %v650 = vmul.f32 %v642, %v506
      %v651 = vmul.f32 %v643, %v507
      %v652 = vmul.f32 %v644, %v508
      %v653 = vmul.f32 %v645, %v509
      %v654 = vadd.f32 %v646, -0.0073733293
      %v655 = vadd.f32 %v647, -0.0073733293
      %v656 = vadd.f32 %v648, -0.0073733293
      %v657 = vadd.f32 %v649, -0.0073733293
      %v658 = vadd.f32 %v650, -0.0073733293
      %v659 = vadd.f32 %v651, -0.0073733293
      %v660 = vadd.f32 %v652, -0.0073733293
      %v661 = vadd.f32 %v653, -0.0073733293
      %v662 = vmul.f32 %v654, %v502
      %v663 = vmul.f32 %v655, %v503
      %v664 = vmul.f32 %v656, %v504
      %v665 = vmul.f32 %v657, %v505
      %v666 = vmul.f32 %v658, %v506
      %v667 = vmul.f32 %v659, %v507
      %v668 = vmul.f32 %v660, %v508
      %v669 = vmul.f32 %v661, %v509
      %v670 = vadd.f32 %v662, -0.014264739
      %v671 = vadd.f32 %v663, -0.014264739
      %v672 = vadd.f32 %v664, -0.014264739
      %v673 = vadd.f32 %v665, -0.014264739
      %v674 = vadd.f32 %v666, -0.014264739
      %v675 = vadd.f32 %v667, -0.014264739
      %v676 = vadd.f32 %v668, -0.014264739
      %v677 = vadd.f32 %v669, -0.014264739
      %v678 = vrcp.pop %v670
      %v679 = vmul.f32 %v606, %v678
      %v680 = vrcp.pop %v671
      %v681 = vmul.f32 %v607, %v680
      %v682 = vrcp.pop %v672
      %v683 = vmul.f32 %v608, %v682
      %v684 = vrcp.pop %v673
      %v685 = vmul.f32 %v609, %v684
      %v686 = vrcp.pop %v674
      %v687 = vmul.f32 %v610, %v686
      %v688 = vrcp.pop %v675
      %v689 = vmul.f32 %v611, %v688
      %v690 = vrcp.pop %v676
      %v691 = vmul.f32 %v612, %v690
      %v692 = vrcp.pop %v677
      %v693 = vmul.f32 %v613, %v692
      %v694 = vadd.f32 %v679, 1.0
      %v695 = vadd.f32 %v681, 1.0
      %v696 = vadd.f32 %v683, 1.0
      %v697 = vadd.f32 %v685, 1.0
      %v698 = vadd.f32 %v687, 1.0
      %v699 = vadd.f32 %v689, 1.0
      %v700 = vadd.f32 %v691, 1.0
      %v701 = vadd.f32 %v693, 1.0
      %v702 = vmul.f32 %v470, %v694
      %v703 = vmul.f32 %v471, %v695
      %v704 = vmul.f32 %v472, %v696
      %v705 = vmul.f32 %v473, %v697
      %v706 = vmul.f32 %v474, %v698
      %v707 = vmul.f32 %v475, %v699
      %v708 = vmul.f32 %v476, %v700
      %v709 = vmul.f32 %v477, %v701
      %710 = vst.msk [vmem:[#allocation2] sm:$0xff] %vm234, 0.0
      %vm711 = vcmask 254976
      %712 = vst.msk [vmem:[#allocation2 + $0x8] sm:$0x3] %vm711, 0.0
      %713 = vst.msk [vmem:[#allocation2 + $0x10] sm:$0xff] %vm234, 0.0
      %714 = vst.msk [vmem:[#allocation2 + $0x18] sm:$0x3] %vm711, 0.0
      %715 = vst.msk [vmem:[#allocation2 + $0x20] sm:$0xff] %vm234, 0.0
      %716 = vst.msk [vmem:[#allocation2 + $0x28] sm:$0x3] %vm711, 0.0
      %717 = vst.msk [vmem:[#allocation2 + $0x30] sm:$0xff] %vm234, 0.0
      %718 = vst.msk [vmem:[#allocation2 + $0x38] sm:$0x3] %vm711, 0.0
      %719 = vst.msk [vmem:[#allocation2 + $0x40] sm:$0xff] %vm234, 0.0
      %720 = vst.msk [vmem:[#allocation2 + $0x48] sm:$0x3] %vm711, 0.0
      %721 = vst.msk [vmem:[#allocation2 + $0x50] sm:$0xff] %vm234, 0.0
      %722 = vst.msk [vmem:[#allocation2 + $0x58] sm:$0x3] %vm711, 0.0
      %723 = vst.msk [vmem:[#allocation2 + $0x60] sm:$0xff] %vm234, 0.0
      %724 = vst.msk [vmem:[#allocation2 + $0x68] sm:$0x3] %vm711, 0.0
      %725 = vst.msk [vmem:[#allocation2 + $0x70] sm:$0xff] %vm234, 0.0
      %726 = vst.msk [vmem:[#allocation2 + $0x78] sm:$0x3] %vm711, 0.0
      %727 = vst.msk [vmem:[#allocation2 + $0x80] sm:$0xff] %vm234, 0.0
      %728 = vst.msk [vmem:[#allocation2 + $0x88] sm:$0x3] %vm711, 0.0
      %729 = vst.msk [vmem:[#allocation2 + $0x90] sm:$0xff] %vm234, 0.0
      %730 = vst.msk [vmem:[#allocation2 + $0x98] sm:$0x3] %vm711, 0.0
      %s731 = scalar_lea.vmem [#allocation2], 16
      %732 = vst.msk [vmem:[%s731 + $0x1] sm:$0xff] %vm234, %v702
      %733 = vst.msk [vmem:[%s731 + $0x11] sm:$0xff] %vm234, %v703
      %734 = vst.msk [vmem:[%s731 + $0x21] sm:$0xff] %vm234, %v704
      %735 = vst.msk [vmem:[%s731 + $0x31] sm:$0xff] %vm234, %v705
      %736 = vst.msk [vmem:[%s731 + $0x41] sm:$0xff] %vm234, %v706
      %737 = vst.msk [vmem:[%s731 + $0x51] sm:$0xff] %vm234, %v707
      %738 = vst.msk [vmem:[%s731 + $0x61] sm:$0xff] %vm234, %v708
      %739 = vst.msk [vmem:[%s731 + $0x71] sm:$0xff] %vm234, %v709
      %v740 = vld [vmem:[#allocation2] sm:$0xff]
      %v741 = vld [vmem:[#allocation2 + $0x10] sm:$0xff]
      %v742 = vld [vmem:[#allocation2 + $0x20] sm:$0xff]
      %v743 = vld [vmem:[#allocation2 + $0x30] sm:$0xff]
      %v744 = vld [vmem:[#allocation2 + $0x40] sm:$0xff]
      %v745 = vld [vmem:[#allocation2 + $0x50] sm:$0xff]
      %v746 = vld [vmem:[#allocation2 + $0x60] sm:$0xff]
      %v747 = vld [vmem:[#allocation2 + $0x70] sm:$0xff]
      %v748 = vpack.c.bf16 %v741, %v740
      %v749 = vpack.c.bf16 %v743, %v742
      %v750 = vpack.c.bf16 %v745, %v744
      %v751 = vpack.c.bf16 %v747, %v746
      %v752 = vld [vmem:[%s3] sm:$0xf]
      %v753 = vld [vmem:[%s3 + $0x4] sm:$0xf]
      %v754 = vld [vmem:[%s3 + $0x8] sm:$0xf]
      %v755 = vld [vmem:[%s3 + $0xc] sm:$0xf]
      %v756 = vld [vmem:[#allocation2 + $0x1] sm:$0xff]
      %v757 = vld [vmem:[#allocation2 + $0x11] sm:$0xff]
      %v758 = vld [vmem:[#allocation2 + $0x21] sm:$0xff]
      %v759 = vld [vmem:[#allocation2 + $0x31] sm:$0xff]
      %v760 = vld [vmem:[#allocation2 + $0x41] sm:$0xff]
      %v761 = vld [vmem:[#allocation2 + $0x51] sm:$0xff]
      %v762 = vld [vmem:[#allocation2 + $0x61] sm:$0xff]
      %v763 = vld [vmem:[#allocation2 + $0x71] sm:$0xff]
      %v764 = vpack.c.bf16 %v757, %v756
      %v765 = vpack.c.bf16 %v759, %v758
      %v766 = vpack.c.bf16 %v761, %v760
      %v767 = vpack.c.bf16 %v763, %v762
      %s768 = scalar_lea.vmem %s3, 16
      %v769 = vld [vmem:[%s768] sm:$0xf]
      %v770 = vld [vmem:[%s768 + $0x4] sm:$0xf]
      %v771 = vld [vmem:[%s768 + $0x8] sm:$0xf]
      %v772 = vld [vmem:[%s768 + $0xc] sm:$0xf]
      %v777 = vunpack.c.l.b16 %v769
      %v778 = vunpack.c.l.b16 %v770
      %v779 = vunpack.c.l.b16 %v771
      %v780 = vunpack.c.l.b16 %v772
      %v781 = vpack.c.b16 %v778, %v777
      %v782 = vpack.c.b16 %v780, %v779
      %v786 = vsel %vm234, %v764, 0
      %v789 = vsel %vm234, %v765, 0
      %v792 = vsel %vm234, %v766, 0
      %v795 = vsel %vm234, %v767, 0
      %797 = vmatprep.subr.bf16.mxu0 0
      %798 = vmatpush1.bf16.msra.mxu0 0
      %799 = vmatprep.subr.bf16.mxu0 0
      %800 = vmatpush1.bf16.msra.mxu0 0
      %801 = vmatprep.subr.bf16.mxu0 0
      %802 = vmatpush1.bf16.msra.mxu0 0
      %803 = vmatprep.subr.bf16.mxu0 0
      %804 = vmatpush1.bf16.msra.mxu0 0
      %805 = vmatprep.subr.bf16.mxu0 0
      %806 = vmatpush1.bf16.msra.mxu0 0
      %807 = vmatprep.subr.bf16.mxu0 0
      %808 = vmatpush1.bf16.msra.mxu0 0
      %809 = vmatprep.subr.bf16.mxu0 0
      %810 = vmatpush1.bf16.msra.mxu0 %v782
      %811 = vmatprep.subr.bf16.mxu0 0
      %812 = vmatpush1.bf16.msra.mxu0 %v781
      %813 = vmatprep.subr.bf16.mxu0 0
      %814 = vmatpush2.bf16.msra.mxu0 0
      %815 = vmatprep.subr.bf16.mxu0 0
      %816 = vmatpush2.bf16.msra.mxu0 0
      %817 = vmatprep.subr.bf16.mxu0 0
      %818 = vmatpush2.bf16.msra.mxu0 0
      %819 = vmatprep.subr.bf16.mxu0 0
      %820 = vmatpush2.bf16.msra.mxu0 0
      %821 = vmatprep.subr.bf16.mxu0 0
      %822 = vmatpush2.bf16.msra.mxu0 0
      %823 = vmatprep.subr.bf16.mxu0 0
      %824 = vmatpush2.bf16.msra.mxu0 0
      %825 = vmatprep.subr.bf16.mxu0 0
      %826 = vmatpush2.bf16.msra.mxu0 0
      %827 = vmatprep.subr.bf16.mxu0 0
      %828 = vmatpush2.bf16.msra.mxu0 0
      %829 = vmatprep.mubr.bf16.mxu0 0
      %830 = vmatmul.mubr.bf16.gmra.mxu0 %v786
      %v831 = vpop.f32.mrf.mxu0
      %v832 = vadd.f32 0.0, %v831
      %v833 = vpop.f32.mrf.mxu0
      %v834 = vpop.f32.mrf.mxu0
      %v835 = vadd.f32 0.0, %v834
      %v836 = vpop.f32.mrf.mxu0
      %837 = vmatprep.mubr.bf16.mxu0 0
      %838 = vmatmul.mubr.bf16.gmra.mxu0 %v789
      %v839 = vpop.f32.mrf.mxu0
      %v840 = vadd.f32 0.0, %v839
      %v841 = vpop.f32.mrf.mxu0
      %v842 = vpop.f32.mrf.mxu0
      %v843 = vadd.f32 0.0, %v842
      %v844 = vpop.f32.mrf.mxu0
      %845 = vmatprep.mubr.bf16.mxu0 0
      %846 = vmatmul.mubr.bf16.gmra.mxu0 %v792
      %v847 = vpop.f32.mrf.mxu0
      %v848 = vadd.f32 0.0, %v847
      %v849 = vpop.f32.mrf.mxu0
      %v850 = vpop.f32.mrf.mxu0
      %v851 = vadd.f32 0.0, %v850
      %v852 = vpop.f32.mrf.mxu0
      %853 = vmatprep.mubr.bf16.mxu0 0
      %854 = vmatmul.mubr.bf16.gmra.mxu0 %v795
      %v855 = vpop.f32.mrf.mxu0
      %v856 = vadd.f32 0.0, %v855
      %v857 = vpop.f32.mrf.mxu0
      %v858 = vpop.f32.mrf.mxu0
      %v859 = vadd.f32 0.0, %v858
      %v860 = vpop.f32.mrf.mxu0
      %861 = vdwg.mxu0
      %v866 = vunpack.c.l.b16 %v752
      %v867 = vunpack.c.l.b16 %v753
      %v868 = vunpack.c.l.b16 %v754
      %v869 = vunpack.c.l.b16 %v755
      %v870 = vpack.c.b16 %v867, %v866
      %v871 = vpack.c.b16 %v869, %v868
      %v875 = vsel %vm234, %v748, 0
      %v878 = vsel %vm234, %v749, 0
      %v881 = vsel %vm234, %v750, 0
      %v884 = vsel %vm234, %v751, 0
      %886 = vmatprep.subr.bf16.mxu0 0
      %887 = vmatpush1.bf16.msra.mxu0 0
      %888 = vmatprep.subr.bf16.mxu0 0
      %889 = vmatpush1.bf16.msra.mxu0 0
      %890 = vmatprep.subr.bf16.mxu0 0
      %891 = vmatpush1.bf16.msra.mxu0 0
      %892 = vmatprep.subr.bf16.mxu0 0
      %893 = vmatpush1.bf16.msra.mxu0 0
      %894 = vmatprep.subr.bf16.mxu0 0
      %895 = vmatpush1.bf16.msra.mxu0 0
      %896 = vmatprep.subr.bf16.mxu0 0
      %897 = vmatpush1.bf16.msra.mxu0 0
      %898 = vmatprep.subr.bf16.mxu0 0
      %899 = vmatpush1.bf16.msra.mxu0 %v871
      %900 = vmatprep.subr.bf16.mxu0 0
      %901 = vmatpush1.bf16.msra.mxu0 %v870
      %902 = vmatprep.subr.bf16.mxu0 0
      %903 = vmatpush2.bf16.msra.mxu0 0
      %904 = vmatprep.subr.bf16.mxu0 0
      %905 = vmatpush2.bf16.msra.mxu0 0
      %906 = vmatprep.subr.bf16.mxu0 0
      %907 = vmatpush2.bf16.msra.mxu0 0
      %908 = vmatprep.subr.bf16.mxu0 0
      %909 = vmatpush2.bf16.msra.mxu0 0
      %910 = vmatprep.subr.bf16.mxu0 0
      %911 = vmatpush2.bf16.msra.mxu0 0
      %912 = vmatprep.subr.bf16.mxu0 0
      %913 = vmatpush2.bf16.msra.mxu0 0
      %914 = vmatprep.subr.bf16.mxu0 0
      %915 = vmatpush2.bf16.msra.mxu0 0
      %916 = vmatprep.subr.bf16.mxu0 0
      %917 = vmatpush2.bf16.msra.mxu0 0
      %918 = vmatprep.mubr.bf16.mxu0 0
      %919 = vmatmul.mubr.bf16.gmra.mxu0 %v875
      %v920 = vpop.f32.mrf.mxu0
      %v921 = vadd.f32 %v832, %v920
      %v922 = vpop.f32.mrf.mxu0
      %v923 = vpop.f32.mrf.mxu0
      %v924 = vadd.f32 %v835, %v923
      %v925 = vpop.f32.mrf.mxu0
      %926 = vmatprep.mubr.bf16.mxu0 0
      %927 = vmatmul.mubr.bf16.gmra.mxu0 %v878
      %v928 = vpop.f32.mrf.mxu0
      %v929 = vadd.f32 %v840, %v928
      %v930 = vpop.f32.mrf.mxu0
      %v931 = vpop.f32.mrf.mxu0
      %v932 = vadd.f32 %v843, %v931
      %v933 = vpop.f32.mrf.mxu0
      %934 = vmatprep.mubr.bf16.mxu0 0
      %935 = vmatmul.mubr.bf16.gmra.mxu0 %v881
      %v936 = vpop.f32.mrf.mxu0
      %v937 = vadd.f32 %v848, %v936
      %v938 = vpop.f32.mrf.mxu0
      %v939 = vpop.f32.mrf.mxu0
      %v940 = vadd.f32 %v851, %v939
      %v941 = vpop.f32.mrf.mxu0
      %942 = vmatprep.mubr.bf16.mxu0 0
      %943 = vmatmul.mubr.bf16.gmra.mxu0 %v884
      %v944 = vpop.f32.mrf.mxu0
      %v945 = vadd.f32 %v856, %v944
      %v946 = vpop.f32.mrf.mxu0
      %v947 = vpop.f32.mrf.mxu0
      %v948 = vadd.f32 %v859, %v947
      %v949 = vpop.f32.mrf.mxu0
      %950 = vdwg.mxu0
      %v951 = vld [vmem:[#allocation2 + $0x2] sm:$0xff]
      %v952 = vld [vmem:[#allocation2 + $0x12] sm:$0xff]
      %v953 = vld [vmem:[#allocation2 + $0x22] sm:$0xff]
      %v954 = vld [vmem:[#allocation2 + $0x32] sm:$0xff]
      %v955 = vld [vmem:[#allocation2 + $0x42] sm:$0xff]
      %v956 = vld [vmem:[#allocation2 + $0x52] sm:$0xff]
      %v957 = vld [vmem:[#allocation2 + $0x62] sm:$0xff]
      %v958 = vld [vmem:[#allocation2 + $0x72] sm:$0xff]
      %v959 = vpack.c.bf16 %v952, %v951
      %v960 = vpack.c.bf16 %v954, %v953
      %v961 = vpack.c.bf16 %v956, %v955
      %v962 = vpack.c.bf16 %v958, %v957
      %s963 = scalar_lea.vmem %s3, 32
      %v964 = vld [vmem:[%s963] sm:$0xf]
      %v965 = vld [vmem:[%s963 + $0x4] sm:$0xf]
      %v966 = vld [vmem:[%s963 + $0x8] sm:$0xf]
      %v967 = vld [vmem:[%s963 + $0xc] sm:$0xf]
      %v972 = vunpack.c.l.b16 %v964
      %v973 = vunpack.c.l.b16 %v965
      %v974 = vunpack.c.l.b16 %v966
      %v975 = vunpack.c.l.b16 %v967
      %v976 = vpack.c.b16 %v973, %v972
      %v977 = vpack.c.b16 %v975, %v974
      %v981 = vsel %vm234, %v959, 0
      %v984 = vsel %vm234, %v960, 0
      %v987 = vsel %vm234, %v961, 0
      %v990 = vsel %vm234, %v962, 0
      %992 = vmatprep.subr.bf16.mxu0 0
      %993 = vmatpush1.bf16.msra.mxu0 0
      %994 = vmatprep.subr.bf16.mxu0 0
      %995 = vmatpush1.bf16.msra.mxu0 0
      %996 = vmatprep.subr.bf16.mxu0 0
      %997 = vmatpush1.bf16.msra.mxu0 0
      %998 = vmatprep.subr.bf16.mxu0 0
      %999 = vmatpush1.bf16.msra.mxu0 0
      %1000 = vmatprep.subr.bf16.mxu0 0
      %1001 = vmatpush1.bf16.msra.mxu0 0
      %1002 = vmatprep.subr.bf16.mxu0 0
      %1003 = vmatpush1.bf16.msra.mxu0 0
      %1004 = vmatprep.subr.bf16.mxu0 0
      %1005 = vmatpush1.bf16.msra.mxu0 %v977
      %1006 = vmatprep.subr.bf16.mxu0 0
      %1007 = vmatpush1.bf16.msra.mxu0 %v976
      %1008 = vmatprep.subr.bf16.mxu0 0
      %1009 = vmatpush2.bf16.msra.mxu0 0
      %1010 = vmatprep.subr.bf16.mxu0 0
      %1011 = vmatpush2.bf16.msra.mxu0 0
      %1012 = vmatprep.subr.bf16.mxu0 0
      %1013 = vmatpush2.bf16.msra.mxu0 0
      %1014 = vmatprep.subr.bf16.mxu0 0
      %1015 = vmatpush2.bf16.msra.mxu0 0
      %1016 = vmatprep.subr.bf16.mxu0 0
      %1017 = vmatpush2.bf16.msra.mxu0 0
      %1018 = vmatprep.subr.bf16.mxu0 0
      %1019 = vmatpush2.bf16.msra.mxu0 0
      %1020 = vmatprep.subr.bf16.mxu0 0
      %1021 = vmatpush2.bf16.msra.mxu0 0
      %1022 = vmatprep.subr.bf16.mxu0 0
      %1023 = vmatpush2.bf16.msra.mxu0 0
      %1024 = vmatprep.mubr.bf16.mxu0 0
      %1025 = vmatmul.mubr.bf16.gmra.mxu0 %v981
      %v1026 = vpop.f32.mrf.mxu0
      %v1027 = vadd.f32 0.0, %v1026
      %v1028 = vpop.f32.mrf.mxu0
      %v1029 = vpop.f32.mrf.mxu0
      %v1030 = vadd.f32 0.0, %v1029
      %v1031 = vpop.f32.mrf.mxu0
      %1032 = vmatprep.mubr.bf16.mxu0 0
      %1033 = vmatmul.mubr.bf16.gmra.mxu0 %v984
      %v1034 = vpop.f32.mrf.mxu0
      %v1035 = vadd.f32 0.0, %v1034
      %v1036 = vpop.f32.mrf.mxu0
      %v1037 = vpop.f32.mrf.mxu0
      %v1038 = vadd.f32 0.0, %v1037
      %v1039 = vpop.f32.mrf.mxu0
      %1040 = vmatprep.mubr.bf16.mxu0 0
      %1041 = vmatmul.mubr.bf16.gmra.mxu0 %v987
      %v1042 = vpop.f32.mrf.mxu0
      %v1043 = vadd.f32 0.0, %v1042
      %v1044 = vpop.f32.mrf.mxu0
      %v1045 = vpop.f32.mrf.mxu0
      %v1046 = vadd.f32 0.0, %v1045
      %v1047 = vpop.f32.mrf.mxu0
      %1048 = vmatprep.mubr.bf16.mxu0 0
      %1049 = vmatmul.mubr.bf16.gmra.mxu0 %v990
      %v1050 = vpop.f32.mrf.mxu0
      %v1051 = vadd.f32 0.0, %v1050
      %v1052 = vpop.f32.mrf.mxu0
      %v1053 = vpop.f32.mrf.mxu0
      %v1054 = vadd.f32 0.0, %v1053
      %v1055 = vpop.f32.mrf.mxu0
      %1056 = vdwg.mxu0
      %v1057 = vadd.f32 %v921, %v1027
      %v1058 = vadd.f32 %v924, %v1030
      %v1059 = vadd.f32 %v929, %v1035
      %v1060 = vadd.f32 %v932, %v1038
      %v1061 = vadd.f32 %v937, %v1043
      %v1062 = vadd.f32 %v940, %v1046
      %v1063 = vadd.f32 %v945, %v1051
      %v1064 = vadd.f32 %v948, %v1054
      %v1065 = vld [vmem:[%s731] sm:$0xff]
      %v1066 = vld [vmem:[%s731 + $0x10] sm:$0xff]
      %v1067 = vld [vmem:[%s731 + $0x20] sm:$0xff]
      %v1068 = vld [vmem:[%s731 + $0x30] sm:$0xff]
      %v1069 = vld [vmem:[%s731 + $0x40] sm:$0xff]
      %v1070 = vld [vmem:[%s731 + $0x50] sm:$0xff]
      %v1071 = vld [vmem:[%s731 + $0x60] sm:$0xff]
      %v1072 = vld [vmem:[%s731 + $0x70] sm:$0xff]
      %v1073 = vpack.c.bf16 %v1066, %v1065
      %v1074 = vpack.c.bf16 %v1068, %v1067
      %v1075 = vpack.c.bf16 %v1070, %v1069
      %v1076 = vpack.c.bf16 %v1072, %v1071
      %s1077 = scalar_lea.vmem %s3, 48
      %v1078 = vld [vmem:[%s1077] sm:$0xf]
      %v1079 = vld [vmem:[%s1077 + $0x4] sm:$0xf]
      %v1080 = vld [vmem:[%s1077 + $0x8] sm:$0xf]
      %v1081 = vld [vmem:[%s1077 + $0xc] sm:$0xf]
      %v1086 = vunpack.c.l.b16 %v1078
      %v1087 = vunpack.c.l.b16 %v1079
      %v1088 = vunpack.c.l.b16 %v1080
      %v1089 = vunpack.c.l.b16 %v1081
      %v1090 = vpack.c.b16 %v1087, %v1086
      %v1091 = vpack.c.b16 %v1089, %v1088
      %v1095 = vsel %vm234, %v1073, 0
      %v1098 = vsel %vm234, %v1074, 0
      %v1101 = vsel %vm234, %v1075, 0
      %v1104 = vsel %vm234, %v1076, 0
      %1106 = vmatprep.subr.bf16.mxu0 0
      %1107 = vmatpush1.bf16.msra.mxu0 0
      %1108 = vmatprep.subr.bf16.mxu0 0
      %1109 = vmatpush1.bf16.msra.mxu0 0
      %1110 = vmatprep.subr.bf16.mxu0 0
      %1111 = vmatpush1.bf16.msra.mxu0 0
      %1112 = vmatprep.subr.bf16.mxu0 0
      %1113 = vmatpush1.bf16.msra.mxu0 0
      %1114 = vmatprep.subr.bf16.mxu0 0
      %1115 = vmatpush1.bf16.msra.mxu0 0
      %1116 = vmatprep.subr.bf16.mxu0 0
      %1117 = vmatpush1.bf16.msra.mxu0 0
      %1118 = vmatprep.subr.bf16.mxu0 0
      %1119 = vmatpush1.bf16.msra.mxu0 %v1091
      %1120 = vmatprep.subr.bf16.mxu0 0
      %1121 = vmatpush1.bf16.msra.mxu0 %v1090
      %1122 = vmatprep.subr.bf16.mxu0 0
      %1123 = vmatpush2.bf16.msra.mxu0 0
      %1124 = vmatprep.subr.bf16.mxu0 0
      %1125 = vmatpush2.bf16.msra.mxu0 0
      %1126 = vmatprep.subr.bf16.mxu0 0
      %1127 = vmatpush2.bf16.msra.mxu0 0
      %1128 = vmatprep.subr.bf16.mxu0 0
      %1129 = vmatpush2.bf16.msra.mxu0 0
      %1130 = vmatprep.subr.bf16.mxu0 0
      %1131 = vmatpush2.bf16.msra.mxu0 0
      %1132 = vmatprep.subr.bf16.mxu0 0
      %1133 = vmatpush2.bf16.msra.mxu0 0
      %1134 = vmatprep.subr.bf16.mxu0 0
      %1135 = vmatpush2.bf16.msra.mxu0 0
      %1136 = vmatprep.subr.bf16.mxu0 0
      %1137 = vmatpush2.bf16.msra.mxu0 0
      %1138 = vmatprep.mubr.bf16.mxu0 0
      %1139 = vmatmul.mubr.bf16.gmra.mxu0 %v1095
      %v1140 = vpop.f32.mrf.mxu0
      %v1141 = vadd.f32 0.0, %v1140
      %v1142 = vpop.f32.mrf.mxu0
      %v1143 = vpop.f32.mrf.mxu0
      %v1144 = vadd.f32 0.0, %v1143
      %v1145 = vpop.f32.mrf.mxu0
      %1146 = vmatprep.mubr.bf16.mxu0 0
      %1147 = vmatmul.mubr.bf16.gmra.mxu0 %v1098
      %v1148 = vpop.f32.mrf.mxu0
      %v1149 = vadd.f32 0.0, %v1148
      %v1150 = vpop.f32.mrf.mxu0
      %v1151 = vpop.f32.mrf.mxu0
      %v1152 = vadd.f32 0.0, %v1151
      %v1153 = vpop.f32.mrf.mxu0
      %1154 = vmatprep.mubr.bf16.mxu0 0
      %1155 = vmatmul.mubr.bf16.gmra.mxu0 %v1101
      %v1156 = vpop.f32.mrf.mxu0
      %v1157 = vadd.f32 0.0, %v1156
      %v1158 = vpop.f32.mrf.mxu0
      %v1159 = vpop.f32.mrf.mxu0
      %v1160 = vadd.f32 0.0, %v1159
      %v1161 = vpop.f32.mrf.mxu0
      %1162 = vmatprep.mubr.bf16.mxu0 0
      %1163 = vmatmul.mubr.bf16.gmra.mxu0 %v1104
      %v1164 = vpop.f32.mrf.mxu0
      %v1165 = vadd.f32 0.0, %v1164
      %v1166 = vpop.f32.mrf.mxu0
      %v1167 = vpop.f32.mrf.mxu0
      %v1168 = vadd.f32 0.0, %v1167
      %v1169 = vpop.f32.mrf.mxu0
      %1170 = vdwg.mxu0
      %v1171 = vadd.f32 %v1057, %v1141
      %v1172 = vadd.f32 %v1058, %v1144
      %v1173 = vadd.f32 %v1059, %v1149
      %v1174 = vadd.f32 %v1060, %v1152
      %v1175 = vadd.f32 %v1061, %v1157
      %v1176 = vadd.f32 %v1062, %v1160
      %v1177 = vadd.f32 %v1063, %v1165
      %v1178 = vadd.f32 %v1064, %v1168
      %v1179 = vld [vmem:[%s731 + $0x1] sm:$0xff]
      %v1180 = vld [vmem:[%s731 + $0x11] sm:$0xff]
      %v1181 = vld [vmem:[%s731 + $0x21] sm:$0xff]
      %v1182 = vld [vmem:[%s731 + $0x31] sm:$0xff]
      %v1183 = vld [vmem:[%s731 + $0x41] sm:$0xff]
      %v1184 = vld [vmem:[%s731 + $0x51] sm:$0xff]
      %v1185 = vld [vmem:[%s731 + $0x61] sm:$0xff]
      %v1186 = vld [vmem:[%s731 + $0x71] sm:$0xff]
      %v1187 = vpack.c.bf16 %v1180, %v1179
      %v1188 = vpack.c.bf16 %v1182, %v1181
      %v1189 = vpack.c.bf16 %v1184, %v1183
      %v1190 = vpack.c.bf16 %v1186, %v1185
      %s1191 = scalar_lea.vmem %s3, 64
      %v1192 = vld [vmem:[%s1191] sm:$0xf]
      %v1193 = vld [vmem:[%s1191 + $0x4] sm:$0xf]
      %v1194 = vld [vmem:[%s1191 + $0x8] sm:$0xf]
      %v1195 = vld [vmem:[%s1191 + $0xc] sm:$0xf]
      %v1200 = vunpack.c.l.b16 %v1192
      %v1201 = vunpack.c.l.b16 %v1193
      %v1202 = vunpack.c.l.b16 %v1194
      %v1203 = vunpack.c.l.b16 %v1195
      %v1204 = vpack.c.b16 %v1201, %v1200
      %v1205 = vpack.c.b16 %v1203, %v1202
      %v1209 = vsel %vm234, %v1187, 0
      %v1212 = vsel %vm234, %v1188, 0
      %v1215 = vsel %vm234, %v1189, 0
      %v1218 = vsel %vm234, %v1190, 0
      %1220 = vmatprep.subr.bf16.mxu0 0
      %1221 = vmatpush1.bf16.msra.mxu0 0
      %1222 = vmatprep.subr.bf16.mxu0 0
      %1223 = vmatpush1.bf16.msra.mxu0 0
      %1224 = vmatprep.subr.bf16.mxu0 0
      %1225 = vmatpush1.bf16.msra.mxu0 0
      %1226 = vmatprep.subr.bf16.mxu0 0
      %1227 = vmatpush1.bf16.msra.mxu0 0
      %1228 = vmatprep.subr.bf16.mxu0 0
      %1229 = vmatpush1.bf16.msra.mxu0 0
      %1230 = vmatprep.subr.bf16.mxu0 0
      %1231 = vmatpush1.bf16.msra.mxu0 0
      %1232 = vmatprep.subr.bf16.mxu0 0
      %1233 = vmatpush1.bf16.msra.mxu0 %v1205
      %1234 = vmatprep.subr.bf16.mxu0 0
      %1235 = vmatpush1.bf16.msra.mxu0 %v1204
      %1236 = vmatprep.subr.bf16.mxu0 0
      %1237 = vmatpush2.bf16.msra.mxu0 0
      %1238 = vmatprep.subr.bf16.mxu0 0
      %1239 = vmatpush2.bf16.msra.mxu0 0
      %1240 = vmatprep.subr.bf16.mxu0 0
      %1241 = vmatpush2.bf16.msra.mxu0 0
      %1242 = vmatprep.subr.bf16.mxu0 0
      %1243 = vmatpush2.bf16.msra.mxu0 0
      %1244 = vmatprep.subr.bf16.mxu0 0
      %1245 = vmatpush2.bf16.msra.mxu0 0
      %1246 = vmatprep.subr.bf16.mxu0 0
      %1247 = vmatpush2.bf16.msra.mxu0 0
      %1248 = vmatprep.subr.bf16.mxu0 0
      %1249 = vmatpush2.bf16.msra.mxu0 0
      %1250 = vmatprep.subr.bf16.mxu0 0
      %1251 = vmatpush2.bf16.msra.mxu0 0
      %1252 = vmatprep.mubr.bf16.mxu0 0
      %1253 = vmatmul.mubr.bf16.gmra.mxu0 %v1209
      %v1254 = vpop.f32.mrf.mxu0
      %v1255 = vadd.f32 0.0, %v1254
      %v1256 = vpop.f32.mrf.mxu0
      %v1257 = vpop.f32.mrf.mxu0
      %v1258 = vadd.f32 0.0, %v1257
      %v1259 = vpop.f32.mrf.mxu0
      %1260 = vmatprep.mubr.bf16.mxu0 0
      %1261 = vmatmul.mubr.bf16.gmra.mxu0 %v1212
      %v1262 = vpop.f32.mrf.mxu0
      %v1263 = vadd.f32 0.0, %v1262
      %v1264 = vpop.f32.mrf.mxu0
      %v1265 = vpop.f32.mrf.mxu0
      %v1266 = vadd.f32 0.0, %v1265
      %v1267 = vpop.f32.mrf.mxu0
      %1268 = vmatprep.mubr.bf16.mxu0 0
      %1269 = vmatmul.mubr.bf16.gmra.mxu0 %v1215
      %v1270 = vpop.f32.mrf.mxu0
      %v1271 = vadd.f32 0.0, %v1270
      %v1272 = vpop.f32.mrf.mxu0
      %v1273 = vpop.f32.mrf.mxu0
      %v1274 = vadd.f32 0.0, %v1273
      %v1275 = vpop.f32.mrf.mxu0
      %1276 = vmatprep.mubr.bf16.mxu0 0
      %1277 = vmatmul.mubr.bf16.gmra.mxu0 %v1218
      %v1278 = vpop.f32.mrf.mxu0
      %v1279 = vadd.f32 0.0, %v1278
      %v1280 = vpop.f32.mrf.mxu0
      %v1281 = vpop.f32.mrf.mxu0
      %v1282 = vadd.f32 0.0, %v1281
      %v1283 = vpop.f32.mrf.mxu0
      %1284 = vdwg.mxu0
      %v1285 = vadd.f32 %v1171, %v1255
      %v1286 = vadd.f32 %v1172, %v1258
      %v1287 = vadd.f32 %v1173, %v1263
      %v1288 = vadd.f32 %v1174, %v1266
      %v1289 = vadd.f32 %v1175, %v1271
      %v1290 = vadd.f32 %v1176, %v1274
      %v1291 = vadd.f32 %v1177, %v1279
      %v1292 = vadd.f32 %v1178, %v1282
      %v1293 = vld [vmem:[%s731 + $0x2] sm:$0xff]
      %v1294 = vld [vmem:[%s731 + $0x12] sm:$0xff]
      %v1295 = vld [vmem:[%s731 + $0x22] sm:$0xff]
      %v1296 = vld [vmem:[%s731 + $0x32] sm:$0xff]
      %v1297 = vld [vmem:[%s731 + $0x42] sm:$0xff]
      %v1298 = vld [vmem:[%s731 + $0x52] sm:$0xff]
      %v1299 = vld [vmem:[%s731 + $0x62] sm:$0xff]
      %v1300 = vld [vmem:[%s731 + $0x72] sm:$0xff]
      %v1301 = vpack.c.bf16 %v1294, %v1293
      %v1302 = vpack.c.bf16 %v1296, %v1295
      %v1303 = vpack.c.bf16 %v1298, %v1297
      %v1304 = vpack.c.bf16 %v1300, %v1299
      %s1305 = scalar_lea.vmem %s3, 80
      %v1306 = vld [vmem:[%s1305] sm:$0xf]
      %v1307 = vld [vmem:[%s1305 + $0x4] sm:$0xf]
      %v1308 = vld [vmem:[%s1305 + $0x8] sm:$0xf]
      %v1309 = vld [vmem:[%s1305 + $0xc] sm:$0xf]
      %v1314 = vunpack.c.l.b16 %v1306
      %v1315 = vunpack.c.l.b16 %v1307
      %v1316 = vunpack.c.l.b16 %v1308
      %v1317 = vunpack.c.l.b16 %v1309
      %v1318 = vpack.c.b16 %v1315, %v1314
      %v1319 = vpack.c.b16 %v1317, %v1316
      %v1323 = vsel %vm234, %v1301, 0
      %v1326 = vsel %vm234, %v1302, 0
      %v1329 = vsel %vm234, %v1303, 0
      %v1332 = vsel %vm234, %v1304, 0
      %1334 = vmatprep.subr.bf16.mxu0 0
      %1335 = vmatpush1.bf16.msra.mxu0 0
      %1336 = vmatprep.subr.bf16.mxu0 0
      %1337 = vmatpush1.bf16.msra.mxu0 0
      %1338 = vmatprep.subr.bf16.mxu0 0
      %1339 = vmatpush1.bf16.msra.mxu0 0
      %1340 = vmatprep.subr.bf16.mxu0 0
      %1341 = vmatpush1.bf16.msra.mxu0 0
      %1342 = vmatprep.subr.bf16.mxu0 0
      %1343 = vmatpush1.bf16.msra.mxu0 0
      %1344 = vmatprep.subr.bf16.mxu0 0
      %1345 = vmatpush1.bf16.msra.mxu0 0
      %1346 = vmatprep.subr.bf16.mxu0 0
      %1347 = vmatpush1.bf16.msra.mxu0 %v1319
      %1348 = vmatprep.subr.bf16.mxu0 0
      %1349 = vmatpush1.bf16.msra.mxu0 %v1318
      %1350 = vmatprep.subr.bf16.mxu0 0
      %1351 = vmatpush2.bf16.msra.mxu0 0
      %1352 = vmatprep.subr.bf16.mxu0 0
      %1353 = vmatpush2.bf16.msra.mxu0 0
      %1354 = vmatprep.subr.bf16.mxu0 0
      %1355 = vmatpush2.bf16.msra.mxu0 0
      %1356 = vmatprep.subr.bf16.mxu0 0
      %1357 = vmatpush2.bf16.msra.mxu0 0
      %1358 = vmatprep.subr.bf16.mxu0 0
      %1359 = vmatpush2.bf16.msra.mxu0 0
      %1360 = vmatprep.subr.bf16.mxu0 0
      %1361 = vmatpush2.bf16.msra.mxu0 0
      %1362 = vmatprep.subr.bf16.mxu0 0
      %1363 = vmatpush2.bf16.msra.mxu0 0
      %1364 = vmatprep.subr.bf16.mxu0 0
      %1365 = vmatpush2.bf16.msra.mxu0 0
      %1366 = vmatprep.mubr.bf16.mxu0 0
      %1367 = vmatmul.mubr.bf16.gmra.mxu0 %v1323
      %v1368 = vpop.f32.mrf.mxu0
      %v1369 = vadd.f32 0.0, %v1368
      %v1370 = vpop.f32.mrf.mxu0
      %v1371 = vpop.f32.mrf.mxu0
      %v1372 = vadd.f32 0.0, %v1371
      %v1373 = vpop.f32.mrf.mxu0
      %1374 = vmatprep.mubr.bf16.mxu0 0
      %1375 = vmatmul.mubr.bf16.gmra.mxu0 %v1326
      %v1376 = vpop.f32.mrf.mxu0
      %v1377 = vadd.f32 0.0, %v1376
      %v1378 = vpop.f32.mrf.mxu0
      %v1379 = vpop.f32.mrf.mxu0
      %v1380 = vadd.f32 0.0, %v1379
      %v1381 = vpop.f32.mrf.mxu0
      %1382 = vmatprep.mubr.bf16.mxu0 0
      %1383 = vmatmul.mubr.bf16.gmra.mxu0 %v1329
      %v1384 = vpop.f32.mrf.mxu0
      %v1385 = vadd.f32 0.0, %v1384
      %v1386 = vpop.f32.mrf.mxu0
      %v1387 = vpop.f32.mrf.mxu0
      %v1388 = vadd.f32 0.0, %v1387
      %v1389 = vpop.f32.mrf.mxu0
      %1390 = vmatprep.mubr.bf16.mxu0 0
      %1391 = vmatmul.mubr.bf16.gmra.mxu0 %v1332
      %v1392 = vpop.f32.mrf.mxu0
      %v1393 = vadd.f32 0.0, %v1392
      %v1394 = vpop.f32.mrf.mxu0
      %v1395 = vpop.f32.mrf.mxu0
      %v1396 = vadd.f32 0.0, %v1395
      %v1397 = vpop.f32.mrf.mxu0
      %1398 = vdwg.mxu0
      %v1399 = vadd.f32 %v1285, %v1369
      %v1400 = vadd.f32 %v1286, %v1372
      %v1401 = vadd.f32 %v1287, %v1377
      %v1402 = vadd.f32 %v1288, %v1380
      %v1403 = vadd.f32 %v1289, %v1385
      %v1404 = vadd.f32 %v1290, %v1388
      %v1405 = vadd.f32 %v1291, %v1393
      %v1406 = vadd.f32 %v1292, %v1396
      %s1407 = scalar_lea.vmem [#allocation2], 32
      %v1408 = vld [vmem:[%s1407] sm:$0xff]
      %v1409 = vld [vmem:[%s1407 + $0x10] sm:$0xff]
      %v1410 = vld [vmem:[%s1407 + $0x20] sm:$0xff]
      %v1411 = vld [vmem:[%s1407 + $0x30] sm:$0xff]
      %v1412 = vld [vmem:[%s1407 + $0x40] sm:$0xff]
      %v1413 = vld [vmem:[%s1407 + $0x50] sm:$0xff]
      %v1414 = vld [vmem:[%s1407 + $0x60] sm:$0xff]
      %v1415 = vld [vmem:[%s1407 + $0x70] sm:$0xff]
      %v1416 = vpack.c.bf16 %v1409, %v1408
      %v1417 = vpack.c.bf16 %v1411, %v1410
      %v1418 = vpack.c.bf16 %v1413, %v1412
      %v1419 = vpack.c.bf16 %v1415, %v1414
      %s1420 = scalar_lea.vmem %s3, 96
      %v1421 = vld [vmem:[%s1420] sm:$0xf]
      %v1422 = vld [vmem:[%s1420 + $0x4] sm:$0xf]
      %v1423 = vld [vmem:[%s1420 + $0x8] sm:$0xf]
      %v1424 = vld [vmem:[%s1420 + $0xc] sm:$0xf]
      %v1429 = vunpack.c.l.b16 %v1421
      %v1430 = vunpack.c.l.b16 %v1422
      %v1431 = vunpack.c.l.b16 %v1423
      %v1432 = vunpack.c.l.b16 %v1424
      %v1433 = vpack.c.b16 %v1430, %v1429
      %v1434 = vpack.c.b16 %v1432, %v1431
      %v1438 = vsel %vm234, %v1416, 0
      %v1441 = vsel %vm234, %v1417, 0
      %v1444 = vsel %vm234, %v1418, 0
      %v1447 = vsel %vm234, %v1419, 0
      %1449 = vmatprep.subr.bf16.mxu0 0
      %1450 = vmatpush1.bf16.msra.mxu0 0
      %1451 = vmatprep.subr.bf16.mxu0 0
      %1452 = vmatpush1.bf16.msra.mxu0 0
      %1453 = vmatprep.subr.bf16.mxu0 0
      %1454 = vmatpush1.bf16.msra.mxu0 0
      %1455 = vmatprep.subr.bf16.mxu0 0
      %1456 = vmatpush1.bf16.msra.mxu0 0
      %1457 = vmatprep.subr.bf16.mxu0 0
      %1458 = vmatpush1.bf16.msra.mxu0 0
      %1459 = vmatprep.subr.bf16.mxu0 0
      %1460 = vmatpush1.bf16.msra.mxu0 0
      %1461 = vmatprep.subr.bf16.mxu0 0
      %1462 = vmatpush1.bf16.msra.mxu0 %v1434
      %1463 = vmatprep.subr.bf16.mxu0 0
      %1464 = vmatpush1.bf16.msra.mxu0 %v1433
      %1465 = vmatprep.subr.bf16.mxu0 0
      %1466 = vmatpush2.bf16.msra.mxu0 0
      %1467 = vmatprep.subr.bf16.mxu0 0
      %1468 = vmatpush2.bf16.msra.mxu0 0
      %1469 = vmatprep.subr.bf16.mxu0 0
      %1470 = vmatpush2.bf16.msra.mxu0 0
      %1471 = vmatprep.subr.bf16.mxu0 0
      %1472 = vmatpush2.bf16.msra.mxu0 0
      %1473 = vmatprep.subr.bf16.mxu0 0
      %1474 = vmatpush2.bf16.msra.mxu0 0
      %1475 = vmatprep.subr.bf16.mxu0 0
      %1476 = vmatpush2.bf16.msra.mxu0 0
      %1477 = vmatprep.subr.bf16.mxu0 0
      %1478 = vmatpush2.bf16.msra.mxu0 0
      %1479 = vmatprep.subr.bf16.mxu0 0
      %1480 = vmatpush2.bf16.msra.mxu0 0
      %1481 = vmatprep.mubr.bf16.mxu0 0
      %1482 = vmatmul.mubr.bf16.gmra.mxu0 %v1438
      %v1483 = vpop.f32.mrf.mxu0
      %v1484 = vadd.f32 0.0, %v1483
      %v1485 = vpop.f32.mrf.mxu0
      %v1486 = vpop.f32.mrf.mxu0
      %v1487 = vadd.f32 0.0, %v1486
      %v1488 = vpop.f32.mrf.mxu0
      %1489 = vmatprep.mubr.bf16.mxu0 0
      %1490 = vmatmul.mubr.bf16.gmra.mxu0 %v1441
      %v1491 = vpop.f32.mrf.mxu0
      %v1492 = vadd.f32 0.0, %v1491
      %v1493 = vpop.f32.mrf.mxu0
      %v1494 = vpop.f32.mrf.mxu0
      %v1495 = vadd.f32 0.0, %v1494
      %v1496 = vpop.f32.mrf.mxu0
      %1497 = vmatprep.mubr.bf16.mxu0 0
      %1498 = vmatmul.mubr.bf16.gmra.mxu0 %v1444
      %v1499 = vpop.f32.mrf.mxu0
      %v1500 = vadd.f32 0.0, %v1499
      %v1501 = vpop.f32.mrf.mxu0
      %v1502 = vpop.f32.mrf.mxu0
      %v1503 = vadd.f32 0.0, %v1502
      %v1504 = vpop.f32.mrf.mxu0
      %1505 = vmatprep.mubr.bf16.mxu0 0
      %1506 = vmatmul.mubr.bf16.gmra.mxu0 %v1447
      %v1507 = vpop.f32.mrf.mxu0
      %v1508 = vadd.f32 0.0, %v1507
      %v1509 = vpop.f32.mrf.mxu0
      %v1510 = vpop.f32.mrf.mxu0
      %v1511 = vadd.f32 0.0, %v1510
      %v1512 = vpop.f32.mrf.mxu0
      %1513 = vdwg.mxu0
      %v1514 = vadd.f32 %v1399, %v1484
      %v1515 = vadd.f32 %v1400, %v1487
      %v1516 = vadd.f32 %v1401, %v1492
      %v1517 = vadd.f32 %v1402, %v1495
      %v1518 = vadd.f32 %v1403, %v1500
      %v1519 = vadd.f32 %v1404, %v1503
      %v1520 = vadd.f32 %v1405, %v1508
      %v1521 = vadd.f32 %v1406, %v1511
      %v1522 = vld [vmem:[%s1407 + $0x1] sm:$0xff]
      %v1523 = vld [vmem:[%s1407 + $0x11] sm:$0xff]
      %v1524 = vld [vmem:[%s1407 + $0x21] sm:$0xff]
      %v1525 = vld [vmem:[%s1407 + $0x31] sm:$0xff]
      %v1526 = vld [vmem:[%s1407 + $0x41] sm:$0xff]
      %v1527 = vld [vmem:[%s1407 + $0x51] sm:$0xff]
      %v1528 = vld [vmem:[%s1407 + $0x61] sm:$0xff]
      %v1529 = vld [vmem:[%s1407 + $0x71] sm:$0xff]
      %v1530 = vpack.c.bf16 %v1523, %v1522
      %v1531 = vpack.c.bf16 %v1525, %v1524
      %v1532 = vpack.c.bf16 %v1527, %v1526
      %v1533 = vpack.c.bf16 %v1529, %v1528
      %s1534 = scalar_lea.vmem %s3, 112
      %v1535 = vld [vmem:[%s1534] sm:$0xf]
      %v1536 = vld [vmem:[%s1534 + $0x4] sm:$0xf]
      %v1537 = vld [vmem:[%s1534 + $0x8] sm:$0xf]
      %v1538 = vld [vmem:[%s1534 + $0xc] sm:$0xf]
      %v1543 = vunpack.c.l.b16 %v1535
      %v1544 = vunpack.c.l.b16 %v1536
      %v1545 = vunpack.c.l.b16 %v1537
      %v1546 = vunpack.c.l.b16 %v1538
      %v1547 = vpack.c.b16 %v1544, %v1543
      %v1548 = vpack.c.b16 %v1546, %v1545
      %v1552 = vsel %vm234, %v1530, 0
      %v1555 = vsel %vm234, %v1531, 0
      %v1558 = vsel %vm234, %v1532, 0
      %v1561 = vsel %vm234, %v1533, 0
      %1563 = vmatprep.subr.bf16.mxu0 0
      %1564 = vmatpush1.bf16.msra.mxu0 0
      %1565 = vmatprep.subr.bf16.mxu0 0
      %1566 = vmatpush1.bf16.msra.mxu0 0
      %1567 = vmatprep.subr.bf16.mxu0 0
      %1568 = vmatpush1.bf16.msra.mxu0 0
      %1569 = vmatprep.subr.bf16.mxu0 0
      %1570 = vmatpush1.bf16.msra.mxu0 0
      %1571 = vmatprep.subr.bf16.mxu0 0
      %1572 = vmatpush1.bf16.msra.mxu0 0
      %1573 = vmatprep.subr.bf16.mxu0 0
      %1574 = vmatpush1.bf16.msra.mxu0 0
      %1575 = vmatprep.subr.bf16.mxu0 0
      %1576 = vmatpush1.bf16.msra.mxu0 %v1548
      %1577 = vmatprep.subr.bf16.mxu0 0
      %1578 = vmatpush1.bf16.msra.mxu0 %v1547
      %1579 = vmatprep.subr.bf16.mxu0 0
      %1580 = vmatpush2.bf16.msra.mxu0 0
      %1581 = vmatprep.subr.bf16.mxu0 0
      %1582 = vmatpush2.bf16.msra.mxu0 0
      %1583 = vmatprep.subr.bf16.mxu0 0
      %1584 = vmatpush2.bf16.msra.mxu0 0
      %1585 = vmatprep.subr.bf16.mxu0 0
      %1586 = vmatpush2.bf16.msra.mxu0 0
      %1587 = vmatprep.subr.bf16.mxu0 0
      %1588 = vmatpush2.bf16.msra.mxu0 0
      %1589 = vmatprep.subr.bf16.mxu0 0
      %1590 = vmatpush2.bf16.msra.mxu0 0
      %1591 = vmatprep.subr.bf16.mxu0 0
      %1592 = vmatpush2.bf16.msra.mxu0 0
      %1593 = vmatprep.subr.bf16.mxu0 0
      %1594 = vmatpush2.bf16.msra.mxu0 0
      %1595 = vmatprep.mubr.bf16.mxu0 0
      %1596 = vmatmul.mubr.bf16.gmra.mxu0 %v1552
      %v1597 = vpop.f32.mrf.mxu0
      %v1598 = vadd.f32 0.0, %v1597
      %v1599 = vpop.f32.mrf.mxu0
      %v1600 = vpop.f32.mrf.mxu0
      %v1601 = vadd.f32 0.0, %v1600
      %v1602 = vpop.f32.mrf.mxu0
      %1603 = vmatprep.mubr.bf16.mxu0 0
      %1604 = vmatmul.mubr.bf16.gmra.mxu0 %v1555
      %v1605 = vpop.f32.mrf.mxu0
      %v1606 = vadd.f32 0.0, %v1605
      %v1607 = vpop.f32.mrf.mxu0
      %v1608 = vpop.f32.mrf.mxu0
      %v1609 = vadd.f32 0.0, %v1608
      %v1610 = vpop.f32.mrf.mxu0
      %1611 = vmatprep.mubr.bf16.mxu0 0
      %1612 = vmatmul.mubr.bf16.gmra.mxu0 %v1558
      %v1613 = vpop.f32.mrf.mxu0
      %v1614 = vadd.f32 0.0, %v1613
      %v1615 = vpop.f32.mrf.mxu0
      %v1616 = vpop.f32.mrf.mxu0
      %v1617 = vadd.f32 0.0, %v1616
      %v1618 = vpop.f32.mrf.mxu0
      %1619 = vmatprep.mubr.bf16.mxu0 0
      %1620 = vmatmul.mubr.bf16.gmra.mxu0 %v1561
      %v1621 = vpop.f32.mrf.mxu0
      %v1622 = vadd.f32 0.0, %v1621
      %v1623 = vpop.f32.mrf.mxu0
      %v1624 = vpop.f32.mrf.mxu0
      %v1625 = vadd.f32 0.0, %v1624
      %v1626 = vpop.f32.mrf.mxu0
      %1627 = vdwg.mxu0
      %v1628 = vadd.f32 %v1514, %v1598
      %v1629 = vadd.f32 %v1515, %v1601
      %v1630 = vadd.f32 %v1516, %v1606
      %v1631 = vadd.f32 %v1517, %v1609
      %v1632 = vadd.f32 %v1518, %v1614
      %v1633 = vadd.f32 %v1519, %v1617
      %v1634 = vadd.f32 %v1520, %v1622
      %v1635 = vadd.f32 %v1521, %v1625
      %v1636 = vld [vmem:[%s1407 + $0x2] sm:$0xff]
      %v1637 = vld [vmem:[%s1407 + $0x12] sm:$0xff]
      %v1638 = vld [vmem:[%s1407 + $0x22] sm:$0xff]
      %v1639 = vld [vmem:[%s1407 + $0x32] sm:$0xff]
      %v1640 = vld [vmem:[%s1407 + $0x42] sm:$0xff]
      %v1641 = vld [vmem:[%s1407 + $0x52] sm:$0xff]
      %v1642 = vld [vmem:[%s1407 + $0x62] sm:$0xff]
      %v1643 = vld [vmem:[%s1407 + $0x72] sm:$0xff]
      %v1644 = vpack.c.bf16 %v1637, %v1636
      %v1645 = vpack.c.bf16 %v1639, %v1638
      %v1646 = vpack.c.bf16 %v1641, %v1640
      %v1647 = vpack.c.bf16 %v1643, %v1642
      %s1648 = scalar_lea.vmem %s3, 128
      %v1649 = vld [vmem:[%s1648] sm:$0xf]
      %v1650 = vld [vmem:[%s1648 + $0x4] sm:$0xf]
      %v1651 = vld [vmem:[%s1648 + $0x8] sm:$0xf]
      %v1652 = vld [vmem:[%s1648 + $0xc] sm:$0xf]
      %v1657 = vunpack.c.l.b16 %v1649
      %v1658 = vunpack.c.l.b16 %v1650
      %v1659 = vunpack.c.l.b16 %v1651
      %v1660 = vunpack.c.l.b16 %v1652
      %v1661 = vpack.c.b16 %v1658, %v1657
      %v1662 = vpack.c.b16 %v1660, %v1659
      %v1666 = vsel %vm234, %v1644, 0
      %v1669 = vsel %vm234, %v1645, 0
      %v1672 = vsel %vm234, %v1646, 0
      %v1675 = vsel %vm234, %v1647, 0
      %1677 = vmatprep.subr.bf16.mxu0 0
      %1678 = vmatpush1.bf16.msra.mxu0 0
      %1679 = vmatprep.subr.bf16.mxu0 0
      %1680 = vmatpush1.bf16.msra.mxu0 0
      %1681 = vmatprep.subr.bf16.mxu0 0
      %1682 = vmatpush1.bf16.msra.mxu0 0
      %1683 = vmatprep.subr.bf16.mxu0 0
      %1684 = vmatpush1.bf16.msra.mxu0 0
      %1685 = vmatprep.subr.bf16.mxu0 0
      %1686 = vmatpush1.bf16.msra.mxu0 0
      %1687 = vmatprep.subr.bf16.mxu0 0
      %1688 = vmatpush1.bf16.msra.mxu0 0
      %1689 = vmatprep.subr.bf16.mxu0 0
      %1690 = vmatpush1.bf16.msra.mxu0 %v1662
      %1691 = vmatprep.subr.bf16.mxu0 0
      %1692 = vmatpush1.bf16.msra.mxu0 %v1661
      %1693 = vmatprep.subr.bf16.mxu0 0
      %1694 = vmatpush2.bf16.msra.mxu0 0
      %1695 = vmatprep.subr.bf16.mxu0 0
      %1696 = vmatpush2.bf16.msra.mxu0 0
      %1697 = vmatprep.subr.bf16.mxu0 0
      %1698 = vmatpush2.bf16.msra.mxu0 0
      %1699 = vmatprep.subr.bf16.mxu0 0
      %1700 = vmatpush2.bf16.msra.mxu0 0
      %1701 = vmatprep.subr.bf16.mxu0 0
      %1702 = vmatpush2.bf16.msra.mxu0 0
      %1703 = vmatprep.subr.bf16.mxu0 0
      %1704 = vmatpush2.bf16.msra.mxu0 0
      %1705 = vmatprep.subr.bf16.mxu0 0
      %1706 = vmatpush2.bf16.msra.mxu0 0
      %1707 = vmatprep.subr.bf16.mxu0 0
      %1708 = vmatpush2.bf16.msra.mxu0 0
      %1709 = vmatprep.mubr.bf16.mxu0 0
      %1710 = vmatmul.mubr.bf16.gmra.mxu0 %v1666
      %v1711 = vpop.f32.mrf.mxu0
      %v1712 = vadd.f32 0.0, %v1711
      %v1713 = vpop.f32.mrf.mxu0
      %v1714 = vpop.f32.mrf.mxu0
      %v1715 = vadd.f32 0.0, %v1714
      %v1716 = vpop.f32.mrf.mxu0
      %1717 = vmatprep.mubr.bf16.mxu0 0
      %1718 = vmatmul.mubr.bf16.gmra.mxu0 %v1669
      %v1719 = vpop.f32.mrf.mxu0
      %v1720 = vadd.f32 0.0, %v1719
      %v1721 = vpop.f32.mrf.mxu0
      %v1722 = vpop.f32.mrf.mxu0
      %v1723 = vadd.f32 0.0, %v1722
      %v1724 = vpop.f32.mrf.mxu0
      %1725 = vmatprep.mubr.bf16.mxu0 0
      %1726 = vmatmul.mubr.bf16.gmra.mxu0 %v1672
      %v1727 = vpop.f32.mrf.mxu0
      %v1728 = vadd.f32 0.0, %v1727
      %v1729 = vpop.f32.mrf.mxu0
      %v1730 = vpop.f32.mrf.mxu0
      %v1731 = vadd.f32 0.0, %v1730
      %v1732 = vpop.f32.mrf.mxu0
      %1733 = vmatprep.mubr.bf16.mxu0 0
      %1734 = vmatmul.mubr.bf16.gmra.mxu0 %v1675
      %v1735 = vpop.f32.mrf.mxu0
      %v1736 = vadd.f32 0.0, %v1735
      %v1737 = vpop.f32.mrf.mxu0
      %v1738 = vpop.f32.mrf.mxu0
      %v1739 = vadd.f32 0.0, %v1738
      %v1740 = vpop.f32.mrf.mxu0
      %1741 = vdwg.mxu0
      %v1742 = vadd.f32 %v1628, %v1712
      %v1743 = vadd.f32 %v1629, %v1715
      %v1744 = vadd.f32 %v1630, %v1720
      %v1745 = vadd.f32 %v1631, %v1723
      %v1746 = vadd.f32 %v1632, %v1728
      %v1747 = vadd.f32 %v1633, %v1731
      %v1748 = vadd.f32 %v1634, %v1736
      %v1749 = vadd.f32 %v1635, %v1739
      %v1750 = vld [vmem:[%s4] sm:$0x1]
      %v1752 = vlaneseq
      %v1753 = vshrl.u32 %v1752, 7
      %v1754 = vsub.s32 0, %v1753
      %v1755 = vrot.slane %v1750, %v1754
      %v1757 = vadd.f32 %v1742, %v1755
      %v1758 = vadd.f32 %v1743, %v1755
      %v1759 = vadd.f32 %v1744, %v1755
      %v1760 = vadd.f32 %v1745, %v1755
      %v1761 = vadd.f32 %v1746, %v1755
      %v1762 = vadd.f32 %v1747, %v1755
      %v1763 = vadd.f32 %v1748, %v1755
      %v1764 = vadd.f32 %v1749, %v1755
      %1765 = vst.msk [vmem:[%s224] sm:$0xff] %vm234, %v1757
      %1766 = vst.msk [vmem:[%s224 + $0x8] sm:$0xff] %vm234, %v1758
      %1767 = vst.msk [vmem:[%s224 + $0x10] sm:$0xff] %vm234, %v1759
      %1768 = vst.msk [vmem:[%s224 + $0x18] sm:$0xff] %vm234, %v1760
      %1769 = vst.msk [vmem:[%s224 + $0x20] sm:$0xff] %vm234, %v1761
      %1770 = vst.msk [vmem:[%s224 + $0x28] sm:$0xff] %vm234, %v1762
      %1771 = vst.msk [vmem:[%s224 + $0x30] sm:$0xff] %vm234, %v1763
      %1772 = vst.msk [vmem:[%s224 + $0x38] sm:$0xff] %vm234, %v1764
      %p1773 = scmp.lt.s32.totalorder %s16, 1
      %s1774 = scalar_select %p1773, %s16, 1
      %s1775 = smul.addr %s1774, 8
      %s1776 = smul.addr %s1775, 8
      %s1777 = scalar_lea.vmem %s5, %s1776
      // Predicated region
      $region41: #{asr_forward.12} parent=39 // pred_check
        %p1778 = pneg %p144
      $region42: #{asr_forward.12} parent=39 // pred_check_branch
        %1780 = sbr.rel (%p1778) target = $region44
      $region43: #{asr_forward.12} parent=39 // pred_region
        _
      $region44: #{asr_forward.12} parent=39 // pred_fallthru
        _
    $region40: #{asr_forward.12} parent=5 // pred_fallthru
      _
    %p1781 = scmp.le.s32.totalorder 2, %s11
    // Predicated region
    $region45: #{asr_forward.12} parent=5 // pred_check
      %p1782 = pneg %p1781
    $region46: #{asr_forward.12} parent=5 // pred_check_branch
      %1784 = sbr.rel (%p1782) target = $region48
    $region47: #{asr_forward.12} parent=5 // pred_region
      %s1785 = ssub.s32 %s11, 2
      // Predicated region
      $region49: #{asr_forward.12} parent=47 // pred_check
        %p1786 = pneg %p150
      $region50: #{asr_forward.12} parent=47 // pred_check_branch
        %1788 = sbr.rel (%p1786) target = $region52
      $region51: #{asr_forward.12} parent=47 // pred_region
        %p1789 = scmp.lt.s32.totalorder %s17, 1
        %s1790 = scalar_select %p1789, %s17, 1
        %s1791 = smul.addr %s1790, 8
        %s1792 = smul.addr %s1791, 8
        %s1793 = scalar_lea.vmem %s5, %s1792
      $region52: #{asr_forward.12} parent=47 // pred_fallthru
        _
    $region48: #{asr_forward.12} parent=5 // pred_fallthru
      _
  $region6: #{asr_forward.12} parent=0 // loop_footer
    %s15 = sadd.s32 1, %s11
  $region7: #{asr_forward.12} parent=0 // loop_footer_branch
    %10 = sbr.rel target = $region3
  $region8: #{asr_forward.12} parent=0 // loop_exit
    _

// kernel: asr_forward.13
$region0: #{asr_forward.13}
  #allocation0 [shape = 'u32[]', space=smem, size = 0x4, offset = 0x4, fixed_abs, tag = 'smem constant byte address 0x4 - core index']
  #allocation1 [shape = 'u32[144,128]{1,0:T(1,128)}', space=vmem, size = 0x12000, scoped, tag = 'internal scratch']
  #allocation2 [shape = 'f32[10,10,32]{2,1,0:T(8,128)}', space=vmem, size = 0x14000, scoped, tag = 'scratch operand']
  %s0 = inlined_call_operand.vmem [shape: f32[2,8,8,32], index: 0, kind: input, shape index: {}]
  %s1 = inlined_call_operand.vmem [shape: f32[8,1,1], index: 1, kind: input, shape index: {}]
  %s2 = inlined_call_operand.vmem [shape: f32[8,1,1], index: 2, kind: input, shape index: {}]
  %s3 = inlined_call_operand.vmem [shape: bf16[9,32,32], index: 3, kind: input, shape index: {}]
  %s4 = inlined_call_operand.vmem [shape: f32[1,32], index: 4, kind: input, shape index: {}]
  %s5 = inlined_call_operand.vmem [shape: f32[2,8,8,32], index: 5, kind: input, shape index: {}]
  %s6 = inlined_call_operand.vmem [shape: f32[2,8,8,32], index: 6, kind: output, shape index: {}]
  %s7 = sld [smem:[#allocation0]]
  $region57: #{asr_forward.13} parent=0
    _
  %s9 = ssub.s32 1, %s7
  %s10 = scalar_select 0, %s9, %s7
  loop: start=0, step=1, limit=4
  $region2: #{asr_forward.13} parent=0 // loop_pre_header
    _
  $region3: #{asr_forward.13} parent=0 // loop_header
    %s12 = sphi 0, %s16
    %p13 = scmp.ge.s32.totalorder %s12, 4
    %s22 = sphi 0, %s24
    %s25 = sphi 0, %s22
    %s26 = sphi 0, %s25
    %s42 = sphi 0, %s26
    %s46 = sphi 0, %s46
    %s48 = sphi 0, %s46
    %s49 = sphi 0, %s48
    %s63 = sphi 0, %s49
    %s67 = sphi 0, %s67
    %s69 = sphi 0, %s67
    %s70 = sphi 0, %s69
    %s84 = sphi 0, %s70
    %s88 = sphi 0, %s88
    %s90 = sphi 0, %s88
    %s91 = sphi 0, %s90
    %s105 = sphi 0, %s91
    %s109 = sphi 0, %s109
    %s111 = sphi 0, %s109
    %s112 = sphi 0, %s111
    %s126 = sphi 0, %s112
    %s132 = sphi 0, %s134
    %s135 = sphi 0, %s132
    %s136 = sphi 0, %s135
    %s152 = sphi 0, %s136
    %s158 = sphi 0, %s160
    %s161 = sphi 0, %s158
    %s162 = sphi 0, %s161
    %s178 = sphi 0, %s162
  $region4: #{asr_forward.13} parent=0 // loop_header_branch
    %15 = sbr.rel (%p13) target = $region8
  $region5: #{asr_forward.13} parent=0 // loop_body
    %s17 = ssub.s32 %s12, 1
    %s18 = ssub.s32 %s12, 2
    %s19 = sadd.s32 %s12, 1
    %s20 = ssub.s32 %s12, %s19
    %p21 = scmp.eq.s32.totalorder %s20, 0
    %s23 = sadd.s32 %s22, 1
    %s24 = scalar_select %p21, %s22, %s23
    %p27 = pneg %p21
    %p28 = scmp.eq.s32.totalorder %s12, 1
    %p29 = por %p27, %p28
    %p30 = scmp.ne.s32.totalorder %s22, %s25
    %p31 = scmp.eq.s32.totalorder %s12, 0
    %p32 = por %p30, %p31
    %p33 = scmp.ne.s32.totalorder %s22, %s25
    %p34 = scmp.eq.s32.totalorder %s17, 1
    %p35 = por %p33, %p34
    %p36 = scmp.ne.s32.totalorder %s25, %s26
    %p37 = scmp.eq.s32.totalorder %s17, 0
    %p38 = por %p36, %p37
    %p39 = scmp.ne.s32.totalorder %s25, %s26
    %p40 = scmp.eq.s32.totalorder %s18, 1
    %p41 = por %p39, %p40
    %p43 = scmp.ne.s32.totalorder %s26, %s42
    %p44 = scmp.eq.s32.totalorder %s18, 0
    %p45 = por %p43, %p44
    %s47 = sadd.s32 %s46, 1
    %p50 = scmp.eq.s32.totalorder %s12, 1
    %p51 = scmp.ne.s32.totalorder %s46, %s48
    %p52 = scmp.eq.s32.totalorder %s12, 0
    %p53 = por %p51, %p52
    %p54 = scmp.ne.s32.totalorder %s46, %s48
    %p55 = scmp.eq.s32.totalorder %s17, 1
    %p56 = por %p54, %p55
    %p57 = scmp.ne.s32.totalorder %s48, %s49
    %p58 = scmp.eq.s32.totalorder %s17, 0
    %p59 = por %p57, %p58
    %p60 = scmp.ne.s32.totalorder %s48, %s49
    %p61 = scmp.eq.s32.totalorder %s18, 1
    %p62 = por %p60, %p61
    %p64 = scmp.ne.s32.totalorder %s49, %s63
    %p65 = scmp.eq.s32.totalorder %s18, 0
    %p66 = por %p64, %p65
    %s68 = sadd.s32 %s67, 1
    %p71 = scmp.eq.s32.totalorder %s12, 1
    %p72 = scmp.ne.s32.totalorder %s67, %s69
    %p73 = scmp.eq.s32.totalorder %s12, 0
    %p74 = por %p72, %p73
    %p75 = scmp.ne.s32.totalorder %s67, %s69
    %p76 = scmp.eq.s32.totalorder %s17, 1
    %p77 = por %p75, %p76
    %p78 = scmp.ne.s32.totalorder %s69, %s70
    %p79 = scmp.eq.s32.totalorder %s17, 0
    %p80 = por %p78, %p79
    %p81 = scmp.ne.s32.totalorder %s69, %s70
    %p82 = scmp.eq.s32.totalorder %s18, 1
    %p83 = por %p81, %p82
    %p85 = scmp.ne.s32.totalorder %s70, %s84
    %p86 = scmp.eq.s32.totalorder %s18, 0
    %p87 = por %p85, %p86
    %s89 = sadd.s32 %s88, 1
    %p92 = scmp.eq.s32.totalorder %s12, 1
    %p93 = scmp.ne.s32.totalorder %s88, %s90
    %p94 = scmp.eq.s32.totalorder %s12, 0
    %p95 = por %p93, %p94
    %p96 = scmp.ne.s32.totalorder %s88, %s90
    %p97 = scmp.eq.s32.totalorder %s17, 1
    %p98 = por %p96, %p97
    %p99 = scmp.ne.s32.totalorder %s90, %s91
    %p100 = scmp.eq.s32.totalorder %s17, 0
    %p101 = por %p99, %p100
    %p102 = scmp.ne.s32.totalorder %s90, %s91
    %p103 = scmp.eq.s32.totalorder %s18, 1
    %p104 = por %p102, %p103
    %p106 = scmp.ne.s32.totalorder %s91, %s105
    %p107 = scmp.eq.s32.totalorder %s18, 0
    %p108 = por %p106, %p107
    %s110 = sadd.s32 %s109, 1
    %p113 = scmp.eq.s32.totalorder %s12, 1
    %p114 = scmp.ne.s32.totalorder %s109, %s111
    %p115 = scmp.eq.s32.totalorder %s12, 0
    %p116 = por %p114, %p115
    %p117 = scmp.ne.s32.totalorder %s109, %s111
    %p118 = scmp.eq.s32.totalorder %s17, 1
    %p119 = por %p117, %p118
    %p120 = scmp.ne.s32.totalorder %s111, %s112
    %p121 = scmp.eq.s32.totalorder %s17, 0
    %p122 = por %p120, %p121
    %p123 = scmp.ne.s32.totalorder %s111, %s112
    %p124 = scmp.eq.s32.totalorder %s18, 1
    %p125 = por %p123, %p124
    %p127 = scmp.ne.s32.totalorder %s112, %s126
    %p128 = scmp.eq.s32.totalorder %s18, 0
    %p129 = por %p127, %p128
    %s130 = ssub.s32 %s12, %s19
    %p131 = scmp.eq.s32.totalorder %s130, 0
    %s133 = sadd.s32 %s132, 1
    %s134 = scalar_select %p131, %s132, %s133
    %p137 = pneg %p131
    %p138 = scmp.eq.s32.totalorder %s12, 1
    %p139 = por %p137, %p138
    %p140 = scmp.ne.s32.totalorder %s132, %s135
    %p141 = scmp.eq.s32.totalorder %s12, 0
    %p142 = por %p140, %p141
    %p143 = scmp.ne.s32.totalorder %s132, %s135
    %p144 = scmp.eq.s32.totalorder %s17, 1
    %p145 = por %p143, %p144
    %p146 = scmp.ne.s32.totalorder %s135, %s136
    %p147 = scmp.eq.s32.totalorder %s17, 0
    %p148 = por %p146, %p147
    %p149 = scmp.ne.s32.totalorder %s135, %s136
    %p150 = scmp.eq.s32.totalorder %s18, 1
    %p151 = por %p149, %p150
    %p153 = scmp.ne.s32.totalorder %s136, %s152
    %p154 = scmp.eq.s32.totalorder %s18, 0
    %p155 = por %p153, %p154
    %s156 = ssub.s32 %s12, %s19
    %p157 = scmp.eq.s32.totalorder %s156, 0
    %s159 = sadd.s32 %s158, 1
    %s160 = scalar_select %p157, %s158, %s159
    %p163 = pneg %p157
    %p164 = scmp.eq.s32.totalorder %s12, 1
    %p165 = por %p163, %p164
    %p166 = scmp.ne.s32.totalorder %s158, %s161
    %p167 = scmp.eq.s32.totalorder %s12, 0
    %p168 = por %p166, %p167
    %p169 = scmp.ne.s32.totalorder %s158, %s161
    %p170 = scmp.eq.s32.totalorder %s17, 1
    %p171 = por %p169, %p170
    %p172 = scmp.ne.s32.totalorder %s161, %s162
    %p173 = scmp.eq.s32.totalorder %s17, 0
    %p174 = por %p172, %p173
    %p175 = scmp.ne.s32.totalorder %s161, %s162
    %p176 = scmp.eq.s32.totalorder %s18, 1
    %p177 = por %p175, %p176
    %p179 = scmp.ne.s32.totalorder %s162, %s178
    %p180 = scmp.eq.s32.totalorder %s18, 0
    %p181 = por %p179, %p180
    %p182 = scmp.le.s32.totalorder 1, %s12
    %p183 = scmp.lt.s32.totalorder %s12, 3
    %p184 = pnand %p182, %p183
    %p185 = pneg %p184
    // Predicated region
    $region9: #{asr_forward.13} parent=5 // pred_check
      _
    $region10: #{asr_forward.13} parent=5 // pred_check_branch
      %187 = sbr.rel (%p184) target = $region12
    $region11: #{asr_forward.13} parent=5 // pred_region
      %s188 = ssub.s32 %s12, 1
      // Predicated region
      $region13: #{asr_forward.13} parent=11 // pred_check
        %p189 = pneg %p59
      $region14: #{asr_forward.13} parent=11 // pred_check_branch
        %191 = sbr.rel (%p189) target = $region16
      $region15: #{asr_forward.13} parent=11 // pred_region
        _
      $region16: #{asr_forward.13} parent=11 // pred_fallthru
        _
      // Predicated region
      $region17: #{asr_forward.13} parent=11 // pred_check
        %p192 = pneg %p80
      $region18: #{asr_forward.13} parent=11 // pred_check_branch
        %194 = sbr.rel (%p192) target = $region20
      $region19: #{asr_forward.13} parent=11 // pred_region
        _
      $region20: #{asr_forward.13} parent=11 // pred_fallthru
        _
      // Predicated region
      $region21: #{asr_forward.13} parent=11 // pred_check
        %p195 = pneg %p101
      $region22: #{asr_forward.13} parent=11 // pred_check_branch
        %197 = sbr.rel (%p195) target = $region24
      $region23: #{asr_forward.13} parent=11 // pred_region
        _
      $region24: #{asr_forward.13} parent=11 // pred_fallthru
        _
      // Predicated region
      $region25: #{asr_forward.13} parent=11 // pred_check
        %p198 = pneg %p122
      $region26: #{asr_forward.13} parent=11 // pred_check_branch
        %200 = sbr.rel (%p198) target = $region28
      $region27: #{asr_forward.13} parent=11 // pred_region
        _
      $region28: #{asr_forward.13} parent=11 // pred_fallthru
        _
    $region12: #{asr_forward.13} parent=5 // pred_fallthru
      _
    %p201 = scmp.lt.s32.totalorder %s12, 2
    // Predicated region
    $region29: #{asr_forward.13} parent=5 // pred_check
      %p202 = pneg %p201
    $region30: #{asr_forward.13} parent=5 // pred_check_branch
      %204 = sbr.rel (%p202) target = $region32
    $region31: #{asr_forward.13} parent=5 // pred_region
      // Predicated region
      $region33: #{asr_forward.13} parent=31 // pred_check
        %p205 = pneg %p32
      $region34: #{asr_forward.13} parent=31 // pred_check_branch
        %207 = sbr.rel (%p205) target = $region36
      $region35: #{asr_forward.13} parent=31 // pred_region
        %p208 = scmp.lt.s32.totalorder %s12, 1
        %s209 = scalar_select %p208, %s12, 1
        %s210 = smul.addr %s209, 8
        %s211 = smul.addr %s210, 8
        %s212 = scalar_lea.vmem %s0, %s211
      $region36: #{asr_forward.13} parent=31 // pred_fallthru
        _
      // Predicated region
      $region37: #{asr_forward.13} parent=31 // pred_check
        %p213 = pneg %p142
      $region38: #{asr_forward.13} parent=31 // pred_check_branch
        %215 = sbr.rel (%p213) target = $region40
      $region39: #{asr_forward.13} parent=31 // pred_region
        %p216 = scmp.lt.s32.totalorder %s12, 1
        %s217 = scalar_select %p216, %s12, 1
        %s218 = smul.addr %s217, 8
        %s219 = smul.addr %s218, 8
        %s220 = scalar_lea.vmem %s5, %s219
      $region40: #{asr_forward.13} parent=31 // pred_fallthru
        _
    $region32: #{asr_forward.13} parent=5 // pred_fallthru
      _
    %p221 = scmp.le.s32.totalorder 1, %s12
    %p222 = scmp.lt.s32.totalorder %s12, 3
    %p223 = pnand %p221, %p222
    %p224 = pneg %p223
    // Predicated region
    $region41: #{asr_forward.13} parent=5 // pred_check
      _
    $region42: #{asr_forward.13} parent=5 // pred_check_branch
      %226 = sbr.rel (%p223) target = $region44
    $region43: #{asr_forward.13} parent=5 // pred_region
      %s227 = ssub.s32 %s12, 1
      %p228 = scmp.lt.s32.totalorder %s17, 1
      %s229 = scalar_select %p228, %s17, 1
      %s230 = smul.addr %s229, 8
      %s231 = smul.addr %s230, 8
      %s232 = scalar_lea.vmem %s0, %s231
      %p233 = pneg %p38
      %p234 = pneg %p35
      %p235 = pneg %p59
      %p236 = pneg %p56
      %p237 = pneg %p80
      %p238 = pneg %p77
      %p239 = pneg %p101
      %p240 = pneg %p98
      %p241 = pneg %p122
      %p242 = pneg %p119
      %p243 = scmp.lt.s32.totalorder %s17, 1
      %s244 = scalar_select %p243, %s17, 1
      %s245 = smul.addr %s244, 8
      %s246 = smul.addr %s245, 8
      %s247 = scalar_lea.vmem %s5, %s246
      %p248 = pneg %p148
      %p249 = pneg %p145
      %p250 = pneg %p174
      %p251 = pneg %p171
      %p252 = scmp.lt.s32.totalorder %s17, 1
      %s253 = scalar_select %p252, %s17, 1
      %s254 = smul.addr %s253, 8
      %s255 = smul.addr %s254, 8
      %s256 = scalar_lea.vmem %s6, %s255
      %p257 = scmp.lt.s32.totalorder %s17, 1
      %s258 = scalar_select %p257, %s17, 1
      %s259 = smul.addr %s258, 8
      %s260 = smul.addr %s259, 8
      %s261 = scalar_lea.vmem %s0, %s260
      %p262 = scmp.lt.s32.totalorder %s17, 1
      %s263 = scalar_select %p262, %s17, 1
      %s264 = smul.addr %s263, 8
      %s265 = smul.addr %s264, 8
      %s266 = scalar_lea.vmem %s5, %s265
      %p267 = scmp.lt.s32.totalorder %s17, 1
      %s268 = scalar_select %p267, %s17, 1
      %s269 = smul.addr %s268, 8
      %s270 = smul.addr %s269, 8
      %s271 = scalar_lea.vmem %s6, %s270
      %v273 = vld [vmem:[%s261] sm:$0xff]
      %v274 = vld [vmem:[%s261 + $0x8] sm:$0xff]
      %v275 = vld [vmem:[%s261 + $0x10] sm:$0xff]
      %v276 = vld [vmem:[%s261 + $0x18] sm:$0xff]
      %v277 = vld [vmem:[%s261 + $0x20] sm:$0xff]
      %v278 = vld [vmem:[%s261 + $0x28] sm:$0xff]
      %v279 = vld [vmem:[%s261 + $0x30] sm:$0xff]
      %v280 = vld [vmem:[%s261 + $0x38] sm:$0xff]
      %vm281 = vcmask 261120
      %v282 = vsel %vm281, %v273, 0.0
      %v283 = vsel %vm281, %v274, 0.0
      %v284 = vadd.f32 %v282, %v283
      %v285 = vsel %vm281, %v275, 0.0
      %v286 = vadd.f32 %v284, %v285
      %v287 = vsel %vm281, %v276, 0.0
      %v288 = vadd.f32 %v286, %v287
      %v289 = vsel %vm281, %v277, 0.0
      %v290 = vadd.f32 %v288, %v289
      %v291 = vsel %vm281, %v278, 0.0
      %v292 = vadd.f32 %v290, %v291
      %v293 = vsel %vm281, %v279, 0.0
      %v294 = vadd.f32 %v292, %v293
      %v295 = vsel %vm281, %v280, 0.0
      %v296 = vadd.f32 %v294, %v295
      %v297 = vrcp.pop 8.0
      %v298 = vmul.f32 %v296, %v297
      %v299 = vsub.f32 %v273, %v298
      %v300 = vsub.f32 %v274, %v298
      %v301 = vsub.f32 %v275, %v298
      %v302 = vsub.f32 %v276, %v298
      %v303 = vsub.f32 %v277, %v298
      %v304 = vsub.f32 %v278, %v298
      %v305 = vsub.f32 %v279, %v298
      %v306 = vsub.f32 %v280, %v298
      %v307 = vmul.f32 %v299, %v299
      %v308 = vmul.f32 %v300, %v300
      %v309 = vmul.f32 %v301, %v301
      %v310 = vmul.f32 %v302, %v302
      %v311 = vmul.f32 %v303, %v303
      %v312 = vmul.f32 %v304, %v304
      %v313 = vmul.f32 %v305, %v305
      %v314 = vmul.f32 %v306, %v306
      %v315 = vsel %vm281, %v307, 0.0
      %v316 = vsel %vm281, %v308, 0.0
      %v317 = vadd.f32 %v315, %v316
      %v318 = vsel %vm281, %v309, 0.0
      %v319 = vadd.f32 %v317, %v318
      %v320 = vsel %vm281, %v310, 0.0
      %v321 = vadd.f32 %v319, %v320
      %v322 = vsel %vm281, %v311, 0.0
      %v323 = vadd.f32 %v321, %v322
      %v324 = vsel %vm281, %v312, 0.0
      %v325 = vadd.f32 %v323, %v324
      %v326 = vsel %vm281, %v313, 0.0
      %v327 = vadd.f32 %v325, %v326
      %v328 = vsel %vm281, %v314, 0.0
      %v329 = vadd.f32 %v327, %v328
      %v330 = vmul.f32 %v329, %v297
      %v331 = vadd.f32 %v330, 1e-05
      %v332 = vrsqrt.pop %v331
      %v333 = vmul.f32 %v299, %v332
      %v334 = vmul.f32 %v300, %v332
      %v335 = vmul.f32 %v301, %v332
      %v336 = vmul.f32 %v302, %v332
      %v337 = vmul.f32 %v303, %v332
      %v338 = vmul.f32 %v304, %v332
      %v339 = vmul.f32 %v305, %v332
      %v340 = vmul.f32 %v306, %v332
      %v341 = vld [vmem:[%s1] sm:$0x1]
      %v342 = vld [vmem:[%s1 + $0x1] sm:$0x1]
      %v343 = vld [vmem:[%s1 + $0x2] sm:$0x1]
      %v344 = vld [vmem:[%s1 + $0x3] sm:$0x1]
      %v345 = vld [vmem:[%s1 + $0x4] sm:$0x1]
      %v346 = vld [vmem:[%s1 + $0x5] sm:$0x1]
      %v347 = vld [vmem:[%s1 + $0x6] sm:$0x1]
      %v348 = vld [vmem:[%s1 + $0x7] sm:$0x1]
      %v357 = vlaneseq
      %v358 = vshrl.u32 %v357, 7
      %v359 = vsub.s32 0, %v358
      %v360 = vrot.slane %v341, %v359
      %v361 = vlaneseq
      %v362 = vshrl.u32 %v361, 7
      %v363 = vsub.s32 0, %v362
      %v364 = vrot.slane %v342, %v363
      %v365 = vlaneseq
      %v366 = vshrl.u32 %v365, 7
      %v367 = vsub.s32 0, %v366
      %v368 = vrot.slane %v343, %v367
      %v369 = vlaneseq
      %v370 = vshrl.u32 %v369, 7
      %v371 = vsub.s32 0, %v370
      %v372 = vrot.slane %v344, %v371
      %v373 = vlaneseq
      %v374 = vshrl.u32 %v373, 7
      %v375 = vsub.s32 0, %v374
      %v376 = vrot.slane %v345, %v375
      %v377 = vlaneseq
      %v378 = vshrl.u32 %v377, 7
      %v379 = vsub.s32 0, %v378
      %v380 = vrot.slane %v346, %v379
      %v381 = vlaneseq
      %v382 = vshrl.u32 %v381, 7
      %v383 = vsub.s32 0, %v382
      %v384 = vrot.slane %v347, %v383
      %v385 = vlaneseq
      %v386 = vshrl.u32 %v385, 7
      %v387 = vsub.s32 0, %v386
      %v388 = vrot.slane %v348, %v387
      %389 = vset.pattern.permute.xlu0 0
      %390 = vperm.xlu0 %389, %v360
      %v391 = vpop.permute.xlu0 %390
      %393 = vset.pattern.permute.xlu0 0
      %394 = vperm.xlu0 %393, %v364
      %v395 = vpop.permute.xlu0 %394
      %397 = vset.pattern.permute.xlu0 0
      %398 = vperm.xlu0 %397, %v368
      %v399 = vpop.permute.xlu0 %398
      %401 = vset.pattern.permute.xlu0 0
      %402 = vperm.xlu0 %401, %v372
      %v403 = vpop.permute.xlu0 %402
      %405 = vset.pattern.permute.xlu0 0
      %406 = vperm.xlu0 %405, %v376
      %v407 = vpop.permute.xlu0 %406
      %409 = vset.pattern.permute.xlu0 0
      %410 = vperm.xlu0 %409, %v380
      %v411 = vpop.permute.xlu0 %410
      %413 = vset.pattern.permute.xlu0 0
      %414 = vperm.xlu0 %413, %v384
      %v415 = vpop.permute.xlu0 %414
      %417 = vset.pattern.permute.xlu0 0
      %418 = vperm.xlu0 %417, %v388
      %v419 = vpop.permute.xlu0 %418
      %v421 = vmul.f32 %v333, %v391
      %v422 = vmul.f32 %v334, %v395
      %v423 = vmul.f32 %v335, %v399
      %v424 = vmul.f32 %v336, %v403
      %v425 = vmul.f32 %v337, %v407
      %v426 = vmul.f32 %v338, %v411
      %v427 = vmul.f32 %v339, %v415
      %v428 = vmul.f32 %v340, %v419
      %v429 = vld [vmem:[%s2] sm:$0x1]
      %v430 = vld [vmem:[%s2 + $0x1] sm:$0x1]
      %v431 = vld [vmem:[%s2 + $0x2] sm:$0x1]
      %v432 = vld [vmem:[%s2 + $0x3] sm:$0x1]
      %v433 = vld [vmem:[%s2 + $0x4] sm:$0x1]
      %v434 = vld [vmem:[%s2 + $0x5] sm:$0x1]
      %v435 = vld [vmem:[%s2 + $0x6] sm:$0x1]
      %v436 = vld [vmem:[%s2 + $0x7] sm:$0x1]
      %v445 = vlaneseq
      %v446 = vshrl.u32 %v445, 7
      %v447 = vsub.s32 0, %v446
      %v448 = vrot.slane %v429, %v447
      %v449 = vlaneseq
      %v450 = vshrl.u32 %v449, 7
      %v451 = vsub.s32 0, %v450
      %v452 = vrot.slane %v430, %v451
      %v453 = vlaneseq
      %v454 = vshrl.u32 %v453, 7
      %v455 = vsub.s32 0, %v454
      %v456 = vrot.slane %v431, %v455
      %v457 = vlaneseq
      %v458 = vshrl.u32 %v457, 7
      %v459 = vsub.s32 0, %v458
      %v460 = vrot.slane %v432, %v459
      %v461 = vlaneseq
      %v462 = vshrl.u32 %v461, 7
      %v463 = vsub.s32 0, %v462
      %v464 = vrot.slane %v433, %v463
      %v465 = vlaneseq
      %v466 = vshrl.u32 %v465, 7
      %v467 = vsub.s32 0, %v466
      %v468 = vrot.slane %v434, %v467
      %v469 = vlaneseq
      %v470 = vshrl.u32 %v469, 7
      %v471 = vsub.s32 0, %v470
      %v472 = vrot.slane %v435, %v471
      %v473 = vlaneseq
      %v474 = vshrl.u32 %v473, 7
      %v475 = vsub.s32 0, %v474
      %v476 = vrot.slane %v436, %v475
      %477 = vset.pattern.permute.xlu0 0
      %478 = vperm.xlu0 %477, %v448
      %v479 = vpop.permute.xlu0 %478
      %481 = vset.pattern.permute.xlu0 0
      %482 = vperm.xlu0 %481, %v452
      %v483 = vpop.permute.xlu0 %482
      %485 = vset.pattern.permute.xlu0 0
      %486 = vperm.xlu0 %485, %v456
      %v487 = vpop.permute.xlu0 %486
      %489 = vset.pattern.permute.xlu0 0
      %490 = vperm.xlu0 %489, %v460
      %v491 = vpop.permute.xlu0 %490
      %493 = vset.pattern.permute.xlu0 0
      %494 = vperm.xlu0 %493, %v464
      %v495 = vpop.permute.xlu0 %494
      %497 = vset.pattern.permute.xlu0 0
      %498 = vperm.xlu0 %497, %v468
      %v499 = vpop.permute.xlu0 %498
      %501 = vset.pattern.permute.xlu0 0
      %502 = vperm.xlu0 %501, %v472
      %v503 = vpop.permute.xlu0 %502
      %505 = vset.pattern.permute.xlu0 0
      %506 = vperm.xlu0 %505, %v476
      %v507 = vpop.permute.xlu0 %506
      %v509 = vadd.f32 %v421, %v479
      %v510 = vadd.f32 %v422, %v483
      %v511 = vadd.f32 %v423, %v487
      %v512 = vadd.f32 %v424, %v491
      %v513 = vadd.f32 %v425, %v495
      %v514 = vadd.f32 %v426, %v499
      %v515 = vadd.f32 %v427, %v503
      %v516 = vadd.f32 %v428, %v507
      %v517 = vmul.f32 %v509, 0.5
      %v518 = vmul.f32 %v510, 0.5
      %v519 = vmul.f32 %v511, 0.5
      %v520 = vmul.f32 %v512, 0.5
      %v521 = vmul.f32 %v513, 0.5
      %v522 = vmul.f32 %v514, 0.5
      %v523 = vmul.f32 %v515, 0.5
      %v524 = vmul.f32 %v516, 0.5
      %v525 = vmul.f32 %v509, 0.70710677
      %v526 = vmul.f32 %v510, 0.70710677
      %v527 = vmul.f32 %v511, 0.70710677
      %v528 = vmul.f32 %v512, 0.70710677
      %v529 = vmul.f32 %v513, 0.70710677
      %v530 = vmul.f32 %v514, 0.70710677
      %v531 = vmul.f32 %v515, 0.70710677
      %v532 = vmul.f32 %v516, 0.70710677
      %v533 = vmax.f32 %v525, -4.0
      %v534 = vmax.f32 %v526, -4.0
      %v535 = vmax.f32 %v527, -4.0
      %v536 = vmax.f32 %v528, -4.0
      %v537 = vmax.f32 %v529, -4.0
      %v538 = vmax.f32 %v530, -4.0
      %v539 = vmax.f32 %v531, -4.0
      %v540 = vmax.f32 %v532, -4.0
      %v541 = vmin.f32 %v533, 4.0
      %v542 = vmin.f32 %v534, 4.0
      %v543 = vmin.f32 %v535, 4.0
      %v544 = vmin.f32 %v536, 4.0
      %v545 = vmin.f32 %v537, 4.0
      %v546 = vmin.f32 %v538, 4.0
      %v547 = vmin.f32 %v539, 4.0
      %v548 = vmin.f32 %v540, 4.0
      %v549 = vmul.f32 %v541, %v541
      %v550 = vmul.f32 %v542, %v542
      %v551 = vmul.f32 %v543, %v543
      %v552 = vmul.f32 %v544, %v544
      %v553 = vmul.f32 %v545, %v545
      %v554 = vmul.f32 %v546, %v546
      %v555 = vmul.f32 %v547, %v547
      %v556 = vmul.f32 %v548, %v548
      %v557 = vmul.f32 %v549, -2.7261424e-10
      %v558 = vmul.f32 %v550, -2.7261424e-10
      %v559 = vmul.f32 %v551, -2.7261424e-10
      %v560 = vmul.f32 %v552, -2.7261424e-10
      %v561 = vmul.f32 %v553, -2.7261424e-10
      %v562 = vmul.f32 %v554, -2.7261424e-10
      %v563 = vmul.f32 %v555, -2.7261424e-10
      %v564 = vmul.f32 %v556, -2.7261424e-10
      %v565 = vadd.f32 %v557, 2.7706815e-08
      %v566 = vadd.f32 %v558, 2.7706815e-08
      %v567 = vadd.f32 %v559, 2.7706815e-08
      %v568 = vadd.f32 %v560, 2.7706815e-08
      %v569 = vadd.f32 %v561, 2.7706815e-08
      %v570 = vadd.f32 %v562, 2.7706815e-08
      %v571 = vadd.f32 %v563, 2.7706815e-08
      %v572 = vadd.f32 %v564, 2.7706815e-08
      %v573 = vmul.f32 %v565, %v549
      %v574 = vmul.f32 %v566, %v550
      %v575 = vmul.f32 %v567, %v551
      %v576 = vmul.f32 %v568, %v552
      %v577 = vmul.f32 %v569, %v553
      %v578 = vmul.f32 %v570, %v554
      %v579 = vmul.f32 %v571, %v555
      %v580 = vmul.f32 %v572, %v556
      %v581 = vadd.f32 %v573, -2.101024e-06
      %v582 = vadd.f32 %v574, -2.101024e-06
      %v583 = vadd.f32 %v575, -2.101024e-06
      %v584 = vadd.f32 %v576, -2.101024e-06
      %v585 = vadd.f32 %v577, -2.101024e-06
      %v586 = vadd.f32 %v578, -2.101024e-06
      %v587 = vadd.f32 %v579, -2.101024e-06
      %v588 = vadd.f32 %v580, -2.101024e-06
      %v589 = vmul.f32 %v581, %v549
      %v590 = vmul.f32 %v582, %v550
      %v591 = vmul.f32 %v583, %v551
      %v592 = vmul.f32 %v584, %v552
      %v593 = vmul.f32 %v585, %v553
      %v594 = vmul.f32 %v586, %v554
      %v595 = vmul.f32 %v587, %v555
      %v596 = vmul.f32 %v588, %v556
      %v597 = vadd.f32 %v589, -5.6925062e-05
      %v598 = vadd.f32 %v590, -5.6925062e-05
      %v599 = vadd.f32 %v591, -5.6925062e-05
      %v600 = vadd.f32 %v592, -5.6925062e-05
      %v601 = vadd.f32 %v593, -5.6925062e-05
      %v602 = vadd.f32 %v594, -5.6925062e-05
      %v603 = vadd.f32 %v595, -5.6925062e-05
      %v604 = vadd.f32 %v596, -5.6925062e-05
      %v605 = vmul.f32 %v597, %v549
      %v606 = vmul.f32 %v598, %v550
      %v607 = vmul.f32 %v599, %v551
      %v608 = vmul.f32 %v600, %v552
      %v609 = vmul.f32 %v601, %v553
      %v610 = vmul.f32 %v602, %v554
      %v611 = vmul.f32 %v603, %v555
      %v612 = vmul.f32 %v604, %v556
      %v613 = vadd.f32 %v605, -0.00073499064
      %v614 = vadd.f32 %v606, -0.00073499064
      %v615 = vadd.f32 %v607, -0.00073499064
      %v616 = vadd.f32 %v608, -0.00073499064
      %v617 = vadd.f32 %v609, -0.00073499064
      %v618 = vadd.f32 %v610, -0.00073499064
      %v619 = vadd.f32 %v611, -0.00073499064
      %v620 = vadd.f32 %v612, -0.00073499064
      %v621 = vmul.f32 %v613, %v549
      %v622 = vmul.f32 %v614, %v550
      %v623 = vmul.f32 %v615, %v551
      %v624 = vmul.f32 %v616, %v552
      %v625 = vmul.f32 %v617, %v553
      %v626 = vmul.f32 %v618, %v554
      %v627 = vmul.f32 %v619, %v555
      %v628 = vmul.f32 %v620, %v556
      %v629 = vadd.f32 %v621, -0.0029546
      %v630 = vadd.f32 %v622, -0.0029546
      %v631 = vadd.f32 %v623, -0.0029546
      %v632 = vadd.f32 %v624, -0.0029546
      %v633 = vadd.f32 %v625, -0.0029546
      %v634 = vadd.f32 %v626, -0.0029546
      %v635 = vadd.f32 %v627, -0.0029546
      %v636 = vadd.f32 %v628, -0.0029546
      %v637 = vmul.f32 %v629, %v549
      %v638 = vmul.f32 %v630, %v550
      %v639 = vmul.f32 %v631, %v551
      %v640 = vmul.f32 %v632, %v552
      %v641 = vmul.f32 %v633, %v553
      %v642 = vmul.f32 %v634, %v554
      %v643 = vmul.f32 %v635, %v555
      %v644 = vmul.f32 %v636, %v556
      %v645 = vadd.f32 %v637, -0.016096033
      %v646 = vadd.f32 %v638, -0.016096033
      %v647 = vadd.f32 %v639, -0.016096033
      %v648 = vadd.f32 %v640, -0.016096033
      %v649 = vadd.f32 %v641, -0.016096033
      %v650 = vadd.f32 %v642, -0.016096033
      %v651 = vadd.f32 %v643, -0.016096033
      %v652 = vadd.f32 %v644, -0.016096033
      %v653 = vmul.f32 %v645, %v541
      %v654 = vmul.f32 %v646, %v542
      %v655 = vmul.f32 %v647, %v543
      %v656 = vmul.f32 %v648, %v544
      %v657 = vmul.f32 %v649, %v545
      %v658 = vmul.f32 %v650, %v546
      %v659 = vmul.f32 %v651, %v547
      %v660 = vmul.f32 %v652, %v548
      %v661 = vmul.f32 %v549, -1.45660715e-05
      %v662 = vmul.f32 %v550, -1.45660715e-05
      %v663 = vmul.f32 %v551, -1.45660715e-05
      %v664 = vmul.f32 %v552, -1.45660715e-05
      %v665 = vmul.f32 %v553, -1.45660715e-05
      %v666 = vmul.f32 %v554, -1.45660715e-05
      %v667 = vmul.f32 %v555, -1.45660715e-05
      %v668 = vmul.f32 %v556, -1.45660715e-05
      %v669 = vadd.f32 %v661, -0.00021337405
      %v670 = vadd.f32 %v662, -0.00021337405
      %v671 = vadd.f32 %v663, -0.00021337405
      %v672 = vadd.f32 %v664, -0.00021337405
      %v673 = vadd.f32 %v665, -0.00021337405
      %v674 = vadd.f32 %v666, -0.00021337405
      %v675 = vadd.f32 %v667, -0.00021337405
      %v676 = vadd.f32 %v668, -0.00021337405
      %v677 = vmul.f32 %v669, %v549
      %v678 = vmul.f32 %v670, %v550
      %v679 = vmul.f32 %v671, %v551
      %v680 = vmul.f32 %v672, %v552
      %v681 = vmul.f32 %v673, %v553
      %v682 = vmul.f32 %v674, %v554
      %v683 = vmul.f32 %v675, %v555
      %v684 = vmul.f32 %v676, %v556
      %v685 = vadd.f32 %v677, -0.001682827
      %v686 = vadd.f32 %v678, -0.001682827
      %v687 = vadd.f32 %v679, -0.001682827
      %v688 = vadd.f32 %v680, -0.001682827
      %v689 = vadd.f32 %v681, -0.001682827
      %v690 = vadd.f32 %v682, -0.001682827
      %v691 = vadd.f32 %v683, -0.001682827
      %v692 = vadd.f32 %v684, -0.001682827
      %v693 = vmul.f32 %v685, %v549
      %v694 = vmul.f32 %v686, %v550
      %v695 = vmul.f32 %v687, %v551
      %v696 = vmul.f32 %v688, %v552
      %v697 = vmul.f32 %v689, %v553
      %v698 = vmul.f32 %v690, %v554
      %v699 = vmul.f32 %v691, %v555
      %v700 = vmul.f32 %v692, %v556
      %v701 = vadd.f32 %v693, -0.0073733293
      %v702 = vadd.f32 %v694, -0.0073733293
      %v703 = vadd.f32 %v695, -0.0073733293
      %v704 = vadd.f32 %v696, -0.0073733293
      %v705 = vadd.f32 %v697, -0.0073733293
      %v706 = vadd.f32 %v698, -0.0073733293
      %v707 = vadd.f32 %v699, -0.0073733293
      %v708 = vadd.f32 %v700, -0.0073733293
      %v709 = vmul.f32 %v701, %v549
      %v710 = vmul.f32 %v702, %v550
      %v711 = vmul.f32 %v703, %v551
      %v712 = vmul.f32 %v704, %v552
      %v713 = vmul.f32 %v705, %v553
      %v714 = vmul.f32 %v706, %v554
      %v715 = vmul.f32 %v707, %v555
      %v716 = vmul.f32 %v708, %v556
      %v717 = vadd.f32 %v709, -0.014264739
      %v718 = vadd.f32 %v710, -0.014264739
      %v719 = vadd.f32 %v711, -0.014264739
      %v720 = vadd.f32 %v712, -0.014264739
      %v721 = vadd.f32 %v713, -0.014264739
      %v722 = vadd.f32 %v714, -0.014264739
      %v723 = vadd.f32 %v715, -0.014264739
      %v724 = vadd.f32 %v716, -0.014264739
      %v725 = vrcp.pop %v717
      %v726 = vmul.f32 %v653, %v725
      %v727 = vrcp.pop %v718
      %v728 = vmul.f32 %v654, %v727
      %v729 = vrcp.pop %v719
      %v730 = vmul.f32 %v655, %v729
      %v731 = vrcp.pop %v720
      %v732 = vmul.f32 %v656, %v731
      %v733 = vrcp.pop %v721
      %v734 = vmul.f32 %v657, %v733
      %v735 = vrcp.pop %v722
      %v736 = vmul.f32 %v658, %v735
      %v737 = vrcp.pop %v723
      %v738 = vmul.f32 %v659, %v737
      %v739 = vrcp.pop %v724
      %v740 = vmul.f32 %v660, %v739
      %v741 = vadd.f32 %v726, 1.0
      %v742 = vadd.f32 %v728, 1.0
      %v743 = vadd.f32 %v730, 1.0
      %v744 = vadd.f32 %v732, 1.0
      %v745 = vadd.f32 %v734, 1.0
      %v746 = vadd.f32 %v736, 1.0
      %v747 = vadd.f32 %v738, 1.0
      %v748 = vadd.f32 %v740, 1.0
      %v749 = vmul.f32 %v517, %v741
      %v750 = vmul.f32 %v518, %v742
      %v751 = vmul.f32 %v519, %v743
      %v752 = vmul.f32 %v520, %v744
      %v753 = vmul.f32 %v521, %v745
      %v754 = vmul.f32 %v522, %v746
      %v755 = vmul.f32 %v523, %v747
      %v756 = vmul.f32 %v524, %v748
      %757 = vst.msk [vmem:[#allocation2] sm:$0xff] %vm281, 0.0
      %vm758 = vcmask 254976
      %759 = vst.msk [vmem:[#allocation2 + $0x8] sm:$0x3] %vm758, 0.0
      %760 = vst.msk [vmem:[#allocation2 + $0x10] sm:$0xff] %vm281, 0.0
      %761 = vst.msk [vmem:[#allocation2 + $0x18] sm:$0x3] %vm758, 0.0
      %762 = vst.msk [vmem:[#allocation2 + $0x20] sm:$0xff] %vm281, 0.0
      %763 = vst.msk [vmem:[#allocation2 + $0x28] sm:$0x3] %vm758, 0.0
      %764 = vst.msk [vmem:[#allocation2 + $0x30] sm:$0xff] %vm281, 0.0
      %765 = vst.msk [vmem:[#allocation2 + $0x38] sm:$0x3] %vm758, 0.0
      %766 = vst.msk [vmem:[#allocation2 + $0x40] sm:$0xff] %vm281, 0.0
      %767 = vst.msk [vmem:[#allocation2 + $0x48] sm:$0x3] %vm758, 0.0
      %768 = vst.msk [vmem:[#allocation2 + $0x50] sm:$0xff] %vm281, 0.0
      %769 = vst.msk [vmem:[#allocation2 + $0x58] sm:$0x3] %vm758, 0.0
      %770 = vst.msk [vmem:[#allocation2 + $0x60] sm:$0xff] %vm281, 0.0
      %771 = vst.msk [vmem:[#allocation2 + $0x68] sm:$0x3] %vm758, 0.0
      %772 = vst.msk [vmem:[#allocation2 + $0x70] sm:$0xff] %vm281, 0.0
      %773 = vst.msk [vmem:[#allocation2 + $0x78] sm:$0x3] %vm758, 0.0
      %774 = vst.msk [vmem:[#allocation2 + $0x80] sm:$0xff] %vm281, 0.0
      %775 = vst.msk [vmem:[#allocation2 + $0x88] sm:$0x3] %vm758, 0.0
      %776 = vst.msk [vmem:[#allocation2 + $0x90] sm:$0xff] %vm281, 0.0
      %777 = vst.msk [vmem:[#allocation2 + $0x98] sm:$0x3] %vm758, 0.0
      %s778 = scalar_lea.vmem [#allocation2], 16
      %779 = vst.msk [vmem:[%s778 + $0x1] sm:$0xff] %vm281, %v749
      %780 = vst.msk [vmem:[%s778 + $0x11] sm:$0xff] %vm281, %v750
      %781 = vst.msk [vmem:[%s778 + $0x21] sm:$0xff] %vm281, %v751
      %782 = vst.msk [vmem:[%s778 + $0x31] sm:$0xff] %vm281, %v752
      %783 = vst.msk [vmem:[%s778 + $0x41] sm:$0xff] %vm281, %v753
      %784 = vst.msk [vmem:[%s778 + $0x51] sm:$0xff] %vm281, %v754
      %785 = vst.msk [vmem:[%s778 + $0x61] sm:$0xff] %vm281, %v755
      %786 = vst.msk [vmem:[%s778 + $0x71] sm:$0xff] %vm281, %v756
      %v787 = vld [vmem:[#allocation2] sm:$0xff]
      %v788 = vld [vmem:[#allocation2 + $0x10] sm:$0xff]
      %v789 = vld [vmem:[#allocation2 + $0x20] sm:$0xff]
      %v790 = vld [vmem:[#allocation2 + $0x30] sm:$0xff]
      %v791 = vld [vmem:[#allocation2 + $0x40] sm:$0xff]
      %v792 = vld [vmem:[#allocation2 + $0x50] sm:$0xff]
      %v793 = vld [vmem:[#allocation2 + $0x60] sm:$0xff]
      %v794 = vld [vmem:[#allocation2 + $0x70] sm:$0xff]
      %v795 = vpack.c.bf16 %v788, %v787
      %v796 = vpack.c.bf16 %v790, %v789
      %v797 = vpack.c.bf16 %v792, %v791
      %v798 = vpack.c.bf16 %v794, %v793
      %v799 = vld [vmem:[%s3] sm:$0xf]
      %v800 = vld [vmem:[%s3 + $0x4] sm:$0xf]
      %v801 = vld [vmem:[%s3 + $0x8] sm:$0xf]
      %v802 = vld [vmem:[%s3 + $0xc] sm:$0xf]
      %v803 = vld [vmem:[#allocation2 + $0x1] sm:$0xff]
      %v804 = vld [vmem:[#allocation2 + $0x11] sm:$0xff]
      %v805 = vld [vmem:[#allocation2 + $0x21] sm:$0xff]
      %v806 = vld [vmem:[#allocation2 + $0x31] sm:$0xff]
      %v807 = vld [vmem:[#allocation2 + $0x41] sm:$0xff]
      %v808 = vld [vmem:[#allocation2 + $0x51] sm:$0xff]
      %v809 = vld [vmem:[#allocation2 + $0x61] sm:$0xff]
      %v810 = vld [vmem:[#allocation2 + $0x71] sm:$0xff]
      %v811 = vpack.c.bf16 %v804, %v803
      %v812 = vpack.c.bf16 %v806, %v805
      %v813 = vpack.c.bf16 %v808, %v807
      %v814 = vpack.c.bf16 %v810, %v809
      %s815 = scalar_lea.vmem %s3, 16
      %v816 = vld [vmem:[%s815] sm:$0xf]
      %v817 = vld [vmem:[%s815 + $0x4] sm:$0xf]
      %v818 = vld [vmem:[%s815 + $0x8] sm:$0xf]
      %v819 = vld [vmem:[%s815 + $0xc] sm:$0xf]
      %v824 = vunpack.c.l.b16 %v816
      %v825 = vunpack.c.l.b16 %v817
      %v826 = vunpack.c.l.b16 %v818
      %v827 = vunpack.c.l.b16 %v819
      %v828 = vpack.c.b16 %v825, %v824
      %v829 = vpack.c.b16 %v827, %v826
      %v833 = vsel %vm281, %v811, 0
      %v836 = vsel %vm281, %v812, 0
      %v839 = vsel %vm281, %v813, 0
      %v842 = vsel %vm281, %v814, 0
      %844 = vmatprep.subr.bf16.mxu0 0
      %845 = vmatpush1.bf16.msra.mxu0 0
      %846 = vmatprep.subr.bf16.mxu0 0
      %847 = vmatpush1.bf16.msra.mxu0 0
      %848 = vmatprep.subr.bf16.mxu0 0
      %849 = vmatpush1.bf16.msra.mxu0 0
      %850 = vmatprep.subr.bf16.mxu0 0
      %851 = vmatpush1.bf16.msra.mxu0 0
      %852 = vmatprep.subr.bf16.mxu0 0
      %853 = vmatpush1.bf16.msra.mxu0 0
      %854 = vmatprep.subr.bf16.mxu0 0
      %855 = vmatpush1.bf16.msra.mxu0 0
      %856 = vmatprep.subr.bf16.mxu0 0
      %857 = vmatpush1.bf16.msra.mxu0 %v829
      %858 = vmatprep.subr.bf16.mxu0 0
      %859 = vmatpush1.bf16.msra.mxu0 %v828
      %860 = vmatprep.subr.bf16.mxu0 0
      %861 = vmatpush2.bf16.msra.mxu0 0
      %862 = vmatprep.subr.bf16.mxu0 0
      %863 = vmatpush2.bf16.msra.mxu0 0
      %864 = vmatprep.subr.bf16.mxu0 0
      %865 = vmatpush2.bf16.msra.mxu0 0
      %866 = vmatprep.subr.bf16.mxu0 0
      %867 = vmatpush2.bf16.msra.mxu0 0
      %868 = vmatprep.subr.bf16.mxu0 0
      %869 = vmatpush2.bf16.msra.mxu0 0
      %870 = vmatprep.subr.bf16.mxu0 0
      %871 = vmatpush2.bf16.msra.mxu0 0
      %872 = vmatprep.subr.bf16.mxu0 0
      %873 = vmatpush2.bf16.msra.mxu0 0
      %874 = vmatprep.subr.bf16.mxu0 0
      %875 = vmatpush2.bf16.msra.mxu0 0
      %876 = vmatprep.mubr.bf16.mxu0 0
      %877 = vmatmul.mubr.bf16.gmra.mxu0 %v833
      %v878 = vpop.f32.mrf.mxu0
      %v879 = vadd.f32 0.0, %v878
      %v880 = vpop.f32.mrf.mxu0
      %v881 = vpop.f32.mrf.mxu0
      %v882 = vadd.f32 0.0, %v881
      %v883 = vpop.f32.mrf.mxu0
      %884 = vmatprep.mubr.bf16.mxu0 0
      %885 = vmatmul.mubr.bf16.gmra.mxu0 %v836
      %v886 = vpop.f32.mrf.mxu0
      %v887 = vadd.f32 0.0, %v886
      %v888 = vpop.f32.mrf.mxu0
      %v889 = vpop.f32.mrf.mxu0
      %v890 = vadd.f32 0.0, %v889
      %v891 = vpop.f32.mrf.mxu0
      %892 = vmatprep.mubr.bf16.mxu0 0
      %893 = vmatmul.mubr.bf16.gmra.mxu0 %v839
      %v894 = vpop.f32.mrf.mxu0
      %v895 = vadd.f32 0.0, %v894
      %v896 = vpop.f32.mrf.mxu0
      %v897 = vpop.f32.mrf.mxu0
      %v898 = vadd.f32 0.0, %v897
      %v899 = vpop.f32.mrf.mxu0
      %900 = vmatprep.mubr.bf16.mxu0 0
      %901 = vmatmul.mubr.bf16.gmra.mxu0 %v842
      %v902 = vpop.f32.mrf.mxu0
      %v903 = vadd.f32 0.0, %v902
      %v904 = vpop.f32.mrf.mxu0
      %v905 = vpop.f32.mrf.mxu0
      %v906 = vadd.f32 0.0, %v905
      %v907 = vpop.f32.mrf.mxu0
      %908 = vdwg.mxu0
      %v913 = vunpack.c.l.b16 %v799
      %v914 = vunpack.c.l.b16 %v800
      %v915 = vunpack.c.l.b16 %v801
      %v916 = vunpack.c.l.b16 %v802
      %v917 = vpack.c.b16 %v914, %v913
      %v918 = vpack.c.b16 %v916, %v915
      %v922 = vsel %vm281, %v795, 0
      %v925 = vsel %vm281, %v796, 0
      %v928 = vsel %vm281, %v797, 0
      %v931 = vsel %vm281, %v798, 0
      %933 = vmatprep.subr.bf16.mxu0 0
      %934 = vmatpush1.bf16.msra.mxu0 0
      %935 = vmatprep.subr.bf16.mxu0 0
      %936 = vmatpush1.bf16.msra.mxu0 0
      %937 = vmatprep.subr.bf16.mxu0 0
      %938 = vmatpush1.bf16.msra.mxu0 0
      %939 = vmatprep.subr.bf16.mxu0 0
      %940 = vmatpush1.bf16.msra.mxu0 0
      %941 = vmatprep.subr.bf16.mxu0 0
      %942 = vmatpush1.bf16.msra.mxu0 0
      %943 = vmatprep.subr.bf16.mxu0 0
      %944 = vmatpush1.bf16.msra.mxu0 0
      %945 = vmatprep.subr.bf16.mxu0 0
      %946 = vmatpush1.bf16.msra.mxu0 %v918
      %947 = vmatprep.subr.bf16.mxu0 0
      %948 = vmatpush1.bf16.msra.mxu0 %v917
      %949 = vmatprep.subr.bf16.mxu0 0
      %950 = vmatpush2.bf16.msra.mxu0 0
      %951 = vmatprep.subr.bf16.mxu0 0
      %952 = vmatpush2.bf16.msra.mxu0 0
      %953 = vmatprep.subr.bf16.mxu0 0
      %954 = vmatpush2.bf16.msra.mxu0 0
      %955 = vmatprep.subr.bf16.mxu0 0
      %956 = vmatpush2.bf16.msra.mxu0 0
      %957 = vmatprep.subr.bf16.mxu0 0
      %958 = vmatpush2.bf16.msra.mxu0 0
      %959 = vmatprep.subr.bf16.mxu0 0
      %960 = vmatpush2.bf16.msra.mxu0 0
      %961 = vmatprep.subr.bf16.mxu0 0
      %962 = vmatpush2.bf16.msra.mxu0 0
      %963 = vmatprep.subr.bf16.mxu0 0
      %964 = vmatpush2.bf16.msra.mxu0 0
      %965 = vmatprep.mubr.bf16.mxu0 0
      %966 = vmatmul.mubr.bf16.gmra.mxu0 %v922
      %v967 = vpop.f32.mrf.mxu0
      %v968 = vadd.f32 %v879, %v967
      %v969 = vpop.f32.mrf.mxu0
      %v970 = vpop.f32.mrf.mxu0
      %v971 = vadd.f32 %v882, %v970
      %v972 = vpop.f32.mrf.mxu0
      %973 = vmatprep.mubr.bf16.mxu0 0
      %974 = vmatmul.mubr.bf16.gmra.mxu0 %v925
      %v975 = vpop.f32.mrf.mxu0
      %v976 = vadd.f32 %v887, %v975
      %v977 = vpop.f32.mrf.mxu0
      %v978 = vpop.f32.mrf.mxu0
      %v979 = vadd.f32 %v890, %v978
      %v980 = vpop.f32.mrf.mxu0
      %981 = vmatprep.mubr.bf16.mxu0 0
      %982 = vmatmul.mubr.bf16.gmra.mxu0 %v928
      %v983 = vpop.f32.mrf.mxu0
      %v984 = vadd.f32 %v895, %v983
      %v985 = vpop.f32.mrf.mxu0
      %v986 = vpop.f32.mrf.mxu0
      %v987 = vadd.f32 %v898, %v986
      %v988 = vpop.f32.mrf.mxu0
      %989 = vmatprep.mubr.bf16.mxu0 0
      %990 = vmatmul.mubr.bf16.gmra.mxu0 %v931
      %v991 = vpop.f32.mrf.mxu0
      %v992 = vadd.f32 %v903, %v991
      %v993 = vpop.f32.mrf.mxu0
      %v994 = vpop.f32.mrf.mxu0
      %v995 = vadd.f32 %v906, %v994
      %v996 = vpop.f32.mrf.mxu0
      %997 = vdwg.mxu0
      %v998 = vld [vmem:[#allocation2 + $0x2] sm:$0xff]
      %v999 = vld [vmem:[#allocation2 + $0x12] sm:$0xff]
      %v1000 = vld [vmem:[#allocation2 + $0x22] sm:$0xff]
      %v1001 = vld [vmem:[#allocation2 + $0x32] sm:$0xff]
      %v1002 = vld [vmem:[#allocation2 + $0x42] sm:$0xff]
      %v1003 = vld [vmem:[#allocation2 + $0x52] sm:$0xff]
      %v1004 = vld [vmem:[#allocation2 + $0x62] sm:$0xff]
      %v1005 = vld [vmem:[#allocation2 + $0x72] sm:$0xff]
      %v1006 = vpack.c.bf16 %v999, %v998
      %v1007 = vpack.c.bf16 %v1001, %v1000
      %v1008 = vpack.c.bf16 %v1003, %v1002
      %v1009 = vpack.c.bf16 %v1005, %v1004
      %s1010 = scalar_lea.vmem %s3, 32
      %v1011 = vld [vmem:[%s1010] sm:$0xf]
      %v1012 = vld [vmem:[%s1010 + $0x4] sm:$0xf]
      %v1013 = vld [vmem:[%s1010 + $0x8] sm:$0xf]
      %v1014 = vld [vmem:[%s1010 + $0xc] sm:$0xf]
      %v1019 = vunpack.c.l.b16 %v1011
      %v1020 = vunpack.c.l.b16 %v1012
      %v1021 = vunpack.c.l.b16 %v1013
      %v1022 = vunpack.c.l.b16 %v1014
      %v1023 = vpack.c.b16 %v1020, %v1019
      %v1024 = vpack.c.b16 %v1022, %v1021
      %v1028 = vsel %vm281, %v1006, 0
      %v1031 = vsel %vm281, %v1007, 0
      %v1034 = vsel %vm281, %v1008, 0
      %v1037 = vsel %vm281, %v1009, 0
      %1039 = vmatprep.subr.bf16.mxu0 0
      %1040 = vmatpush1.bf16.msra.mxu0 0
      %1041 = vmatprep.subr.bf16.mxu0 0
      %1042 = vmatpush1.bf16.msra.mxu0 0
      %1043 = vmatprep.subr.bf16.mxu0 0
      %1044 = vmatpush1.bf16.msra.mxu0 0
      %1045 = vmatprep.subr.bf16.mxu0 0
      %1046 = vmatpush1.bf16.msra.mxu0 0
      %1047 = vmatprep.subr.bf16.mxu0 0
      %1048 = vmatpush1.bf16.msra.mxu0 0
      %1049 = vmatprep.subr.bf16.mxu0 0
      %1050 = vmatpush1.bf16.msra.mxu0 0
      %1051 = vmatprep.subr.bf16.mxu0 0
      %1052 = vmatpush1.bf16.msra.mxu0 %v1024
      %1053 = vmatprep.subr.bf16.mxu0 0
      %1054 = vmatpush1.bf16.msra.mxu0 %v1023
      %1055 = vmatprep.subr.bf16.mxu0 0
      %1056 = vmatpush2.bf16.msra.mxu0 0
      %1057 = vmatprep.subr.bf16.mxu0 0
      %1058 = vmatpush2.bf16.msra.mxu0 0
      %1059 = vmatprep.subr.bf16.mxu0 0
      %1060 = vmatpush2.bf16.msra.mxu0 0
      %1061 = vmatprep.subr.bf16.mxu0 0
      %1062 = vmatpush2.bf16.msra.mxu0 0
      %1063 = vmatprep.subr.bf16.mxu0 0
      %1064 = vmatpush2.bf16.msra.mxu0 0
      %1065 = vmatprep.subr.bf16.mxu0 0
      %1066 = vmatpush2.bf16.msra.mxu0 0
      %1067 = vmatprep.subr.bf16.mxu0 0
      %1068 = vmatpush2.bf16.msra.mxu0 0
      %1069 = vmatprep.subr.bf16.mxu0 0
      %1070 = vmatpush2.bf16.msra.mxu0 0
      %1071 = vmatprep.mubr.bf16.mxu0 0
      %1072 = vmatmul.mubr.bf16.gmra.mxu0 %v1028
      %v1073 = vpop.f32.mrf.mxu0
      %v1074 = vadd.f32 0.0, %v1073
      %v1075 = vpop.f32.mrf.mxu0
      %v1076 = vpop.f32.mrf.mxu0
      %v1077 = vadd.f32 0.0, %v1076
      %v1078 = vpop.f32.mrf.mxu0
      %1079 = vmatprep.mubr.bf16.mxu0 0
      %1080 = vmatmul.mubr.bf16.gmra.mxu0 %v1031
      %v1081 = vpop.f32.mrf.mxu0
      %v1082 = vadd.f32 0.0, %v1081
      %v1083 = vpop.f32.mrf.mxu0
      %v1084 = vpop.f32.mrf.mxu0
      %v1085 = vadd.f32 0.0, %v1084
      %v1086 = vpop.f32.mrf.mxu0
      %1087 = vmatprep.mubr.bf16.mxu0 0
      %1088 = vmatmul.mubr.bf16.gmra.mxu0 %v1034
      %v1089 = vpop.f32.mrf.mxu0
      %v1090 = vadd.f32 0.0, %v1089
      %v1091 = vpop.f32.mrf.mxu0
      %v1092 = vpop.f32.mrf.mxu0
      %v1093 = vadd.f32 0.0, %v1092
      %v1094 = vpop.f32.mrf.mxu0
      %1095 = vmatprep.mubr.bf16.mxu0 0
      %1096 = vmatmul.mubr.bf16.gmra.mxu0 %v1037
      %v1097 = vpop.f32.mrf.mxu0
      %v1098 = vadd.f32 0.0, %v1097
      %v1099 = vpop.f32.mrf.mxu0
      %v1100 = vpop.f32.mrf.mxu0
      %v1101 = vadd.f32 0.0, %v1100
      %v1102 = vpop.f32.mrf.mxu0
      %1103 = vdwg.mxu0
      %v1104 = vadd.f32 %v968, %v1074
      %v1105 = vadd.f32 %v971, %v1077
      %v1106 = vadd.f32 %v976, %v1082
      %v1107 = vadd.f32 %v979, %v1085
      %v1108 = vadd.f32 %v984, %v1090
      %v1109 = vadd.f32 %v987, %v1093
      %v1110 = vadd.f32 %v992, %v1098
      %v1111 = vadd.f32 %v995, %v1101
      %v1112 = vld [vmem:[%s778] sm:$0xff]
      %v1113 = vld [vmem:[%s778 + $0x10] sm:$0xff]
      %v1114 = vld [vmem:[%s778 + $0x20] sm:$0xff]
      %v1115 = vld [vmem:[%s778 + $0x30] sm:$0xff]
      %v1116 = vld [vmem:[%s778 + $0x40] sm:$0xff]
      %v1117 = vld [vmem:[%s778 + $0x50] sm:$0xff]
      %v1118 = vld [vmem:[%s778 + $0x60] sm:$0xff]
      %v1119 = vld [vmem:[%s778 + $0x70] sm:$0xff]
      %v1120 = vpack.c.bf16 %v1113, %v1112
      %v1121 = vpack.c.bf16 %v1115, %v1114
      %v1122 = vpack.c.bf16 %v1117, %v1116
      %v1123 = vpack.c.bf16 %v1119, %v1118
      %s1124 = scalar_lea.vmem %s3, 48
      %v1125 = vld [vmem:[%s1124] sm:$0xf]
      %v1126 = vld [vmem:[%s1124 + $0x4] sm:$0xf]
      %v1127 = vld [vmem:[%s1124 + $0x8] sm:$0xf]
      %v1128 = vld [vmem:[%s1124 + $0xc] sm:$0xf]
      %v1133 = vunpack.c.l.b16 %v1125
      %v1134 = vunpack.c.l.b16 %v1126
      %v1135 = vunpack.c.l.b16 %v1127
      %v1136 = vunpack.c.l.b16 %v1128
      %v1137 = vpack.c.b16 %v1134, %v1133
      %v1138 = vpack.c.b16 %v1136, %v1135
      %v1142 = vsel %vm281, %v1120, 0
      %v1145 = vsel %vm281, %v1121, 0
      %v1148 = vsel %vm281, %v1122, 0
      %v1151 = vsel %vm281, %v1123, 0
      %1153 = vmatprep.subr.bf16.mxu0 0
      %1154 = vmatpush1.bf16.msra.mxu0 0
      %1155 = vmatprep.subr.bf16.mxu0 0
      %1156 = vmatpush1.bf16.msra.mxu0 0
      %1157 = vmatprep.subr.bf16.mxu0 0
      %1158 = vmatpush1.bf16.msra.mxu0 0
      %1159 = vmatprep.subr.bf16.mxu0 0
      %1160 = vmatpush1.bf16.msra.mxu0 0
      %1161 = vmatprep.subr.bf16.mxu0 0
      %1162 = vmatpush1.bf16.msra.mxu0 0
      %1163 = vmatprep.subr.bf16.mxu0 0
      %1164 = vmatpush1.bf16.msra.mxu0 0
      %1165 = vmatprep.subr.bf16.mxu0 0
      %1166 = vmatpush1.bf16.msra.mxu0 %v1138
      %1167 = vmatprep.subr.bf16.mxu0 0
      %1168 = vmatpush1.bf16.msra.mxu0 %v1137
      %1169 = vmatprep.subr.bf16.mxu0 0
      %1170 = vmatpush2.bf16.msra.mxu0 0
      %1171 = vmatprep.subr.bf16.mxu0 0
      %1172 = vmatpush2.bf16.msra.mxu0 0
      %1173 = vmatprep.subr.bf16.mxu0 0
      %1174 = vmatpush2.bf16.msra.mxu0 0
      %1175 = vmatprep.subr.bf16.mxu0 0
      %1176 = vmatpush2.bf16.msra.mxu0 0
      %1177 = vmatprep.subr.bf16.mxu0 0
      %1178 = vmatpush2.bf16.msra.mxu0 0
      %1179 = vmatprep.subr.bf16.mxu0 0
      %1180 = vmatpush2.bf16.msra.mxu0 0
      %1181 = vmatprep.subr.bf16.mxu0 0
      %1182 = vmatpush2.bf16.msra.mxu0 0
      %1183 = vmatprep.subr.bf16.mxu0 0
      %1184 = vmatpush2.bf16.msra.mxu0 0
      %1185 = vmatprep.mubr.bf16.mxu0 0
      %1186 = vmatmul.mubr.bf16.gmra.mxu0 %v1142
      %v1187 = vpop.f32.mrf.mxu0
      %v1188 = vadd.f32 0.0, %v1187
      %v1189 = vpop.f32.mrf.mxu0
      %v1190 = vpop.f32.mrf.mxu0
      %v1191 = vadd.f32 0.0, %v1190
      %v1192 = vpop.f32.mrf.mxu0
      %1193 = vmatprep.mubr.bf16.mxu0 0
      %1194 = vmatmul.mubr.bf16.gmra.mxu0 %v1145
      %v1195 = vpop.f32.mrf.mxu0
      %v1196 = vadd.f32 0.0, %v1195
      %v1197 = vpop.f32.mrf.mxu0
      %v1198 = vpop.f32.mrf.mxu0
      %v1199 = vadd.f32 0.0, %v1198
      %v1200 = vpop.f32.mrf.mxu0
      %1201 = vmatprep.mubr.bf16.mxu0 0
      %1202 = vmatmul.mubr.bf16.gmra.mxu0 %v1148
      %v1203 = vpop.f32.mrf.mxu0
      %v1204 = vadd.f32 0.0, %v1203
      %v1205 = vpop.f32.mrf.mxu0
      %v1206 = vpop.f32.mrf.mxu0
      %v1207 = vadd.f32 0.0, %v1206
      %v1208 = vpop.f32.mrf.mxu0
      %1209 = vmatprep.mubr.bf16.mxu0 0
      %1210 = vmatmul.mubr.bf16.gmra.mxu0 %v1151
      %v1211 = vpop.f32.mrf.mxu0
      %v1212 = vadd.f32 0.0, %v1211
      %v1213 = vpop.f32.mrf.mxu0
      %v1214 = vpop.f32.mrf.mxu0
      %v1215 = vadd.f32 0.0, %v1214
      %v1216 = vpop.f32.mrf.mxu0
      %1217 = vdwg.mxu0
      %v1218 = vadd.f32 %v1104, %v1188
      %v1219 = vadd.f32 %v1105, %v1191
      %v1220 = vadd.f32 %v1106, %v1196
      %v1221 = vadd.f32 %v1107, %v1199
      %v1222 = vadd.f32 %v1108, %v1204
      %v1223 = vadd.f32 %v1109, %v1207
      %v1224 = vadd.f32 %v1110, %v1212
      %v1225 = vadd.f32 %v1111, %v1215
      %v1226 = vld [vmem:[%s778 + $0x1] sm:$0xff]
      %v1227 = vld [vmem:[%s778 + $0x11] sm:$0xff]
      %v1228 = vld [vmem:[%s778 + $0x21] sm:$0xff]
      %v1229 = vld [vmem:[%s778 + $0x31] sm:$0xff]
      %v1230 = vld [vmem:[%s778 + $0x41] sm:$0xff]
      %v1231 = vld [vmem:[%s778 + $0x51] sm:$0xff]
      %v1232 = vld [vmem:[%s778 + $0x61] sm:$0xff]
      %v1233 = vld [vmem:[%s778 + $0x71] sm:$0xff]
      %v1234 = vpack.c.bf16 %v1227, %v1226
      %v1235 = vpack.c.bf16 %v1229, %v1228
      %v1236 = vpack.c.bf16 %v1231, %v1230
      %v1237 = vpack.c.bf16 %v1233, %v1232
      %s1238 = scalar_lea.vmem %s3, 64
      %v1239 = vld [vmem:[%s1238] sm:$0xf]
      %v1240 = vld [vmem:[%s1238 + $0x4] sm:$0xf]
      %v1241 = vld [vmem:[%s1238 + $0x8] sm:$0xf]
      %v1242 = vld [vmem:[%s1238 + $0xc] sm:$0xf]
      %v1247 = vunpack.c.l.b16 %v1239
      %v1248 = vunpack.c.l.b16 %v1240
      %v1249 = vunpack.c.l.b16 %v1241
      %v1250 = vunpack.c.l.b16 %v1242
      %v1251 = vpack.c.b16 %v1248, %v1247
      %v1252 = vpack.c.b16 %v1250, %v1249
      %v1256 = vsel %vm281, %v1234, 0
      %v1259 = vsel %vm281, %v1235, 0
      %v1262 = vsel %vm281, %v1236, 0
      %v1265 = vsel %vm281, %v1237, 0
      %1267 = vmatprep.subr.bf16.mxu0 0
      %1268 = vmatpush1.bf16.msra.mxu0 0
      %1269 = vmatprep.subr.bf16.mxu0 0
      %1270 = vmatpush1.bf16.msra.mxu0 0
      %1271 = vmatprep.subr.bf16.mxu0 0
      %1272 = vmatpush1.bf16.msra.mxu0 0
      %1273 = vmatprep.subr.bf16.mxu0 0
      %1274 = vmatpush1.bf16.msra.mxu0 0
      %1275 = vmatprep.subr.bf16.mxu0 0
      %1276 = vmatpush1.bf16.msra.mxu0 0
      %1277 = vmatprep.subr.bf16.mxu0 0
      %1278 = vmatpush1.bf16.msra.mxu0 0
      %1279 = vmatprep.subr.bf16.mxu0 0
      %1280 = vmatpush1.bf16.msra.mxu0 %v1252
      %1281 = vmatprep.subr.bf16.mxu0 0
      %1282 = vmatpush1.bf16.msra.mxu0 %v1251
      %1283 = vmatprep.subr.bf16.mxu0 0
      %1284 = vmatpush2.bf16.msra.mxu0 0
      %1285 = vmatprep.subr.bf16.mxu0 0
      %1286 = vmatpush2.bf16.msra.mxu0 0
      %1287 = vmatprep.subr.bf16.mxu0 0
      %1288 = vmatpush2.bf16.msra.mxu0 0
      %1289 = vmatprep.subr.bf16.mxu0 0
      %1290 = vmatpush2.bf16.msra.mxu0 0
      %1291 = vmatprep.subr.bf16.mxu0 0
      %1292 = vmatpush2.bf16.msra.mxu0 0
      %1293 = vmatprep.subr.bf16.mxu0 0
      %1294 = vmatpush2.bf16.msra.mxu0 0
      %1295 = vmatprep.subr.bf16.mxu0 0
      %1296 = vmatpush2.bf16.msra.mxu0 0
      %1297 = vmatprep.subr.bf16.mxu0 0
      %1298 = vmatpush2.bf16.msra.mxu0 0
      %1299 = vmatprep.mubr.bf16.mxu0 0
      %1300 = vmatmul.mubr.bf16.gmra.mxu0 %v1256
      %v1301 = vpop.f32.mrf.mxu0
      %v1302 = vadd.f32 0.0, %v1301
      %v1303 = vpop.f32.mrf.mxu0
      %v1304 = vpop.f32.mrf.mxu0
      %v1305 = vadd.f32 0.0, %v1304
      %v1306 = vpop.f32.mrf.mxu0
      %1307 = vmatprep.mubr.bf16.mxu0 0
      %1308 = vmatmul.mubr.bf16.gmra.mxu0 %v1259
      %v1309 = vpop.f32.mrf.mxu0
      %v1310 = vadd.f32 0.0, %v1309
      %v1311 = vpop.f32.mrf.mxu0
      %v1312 = vpop.f32.mrf.mxu0
      %v1313 = vadd.f32 0.0, %v1312
      %v1314 = vpop.f32.mrf.mxu0
      %1315 = vmatprep.mubr.bf16.mxu0 0
      %1316 = vmatmul.mubr.bf16.gmra.mxu0 %v1262
      %v1317 = vpop.f32.mrf.mxu0
      %v1318 = vadd.f32 0.0, %v1317
      %v1319 = vpop.f32.mrf.mxu0
      %v1320 = vpop.f32.mrf.mxu0
      %v1321 = vadd.f32 0.0, %v1320
      %v1322 = vpop.f32.mrf.mxu0
      %1323 = vmatprep.mubr.bf16.mxu0 0
      %1324 = vmatmul.mubr.bf16.gmra.mxu0 %v1265
      %v1325 = vpop.f32.mrf.mxu0
      %v1326 = vadd.f32 0.0, %v1325
      %v1327 = vpop.f32.mrf.mxu0
      %v1328 = vpop.f32.mrf.mxu0
      %v1329 = vadd.f32 0.0, %v1328
      %v1330 = vpop.f32.mrf.mxu0
      %1331 = vdwg.mxu0
      %v1332 = vadd.f32 %v1218, %v1302
      %v1333 = vadd.f32 %v1219, %v1305
      %v1334 = vadd.f32 %v1220, %v1310
      %v1335 = vadd.f32 %v1221, %v1313
      %v1336 = vadd.f32 %v1222, %v1318
      %v1337 = vadd.f32 %v1223, %v1321
      %v1338 = vadd.f32 %v1224, %v1326
      %v1339 = vadd.f32 %v1225, %v1329
      %v1340 = vld [vmem:[%s778 + $0x2] sm:$0xff]
      %v1341 = vld [vmem:[%s778 + $0x12] sm:$0xff]
      %v1342 = vld [vmem:[%s778 + $0x22] sm:$0xff]
      %v1343 = vld [vmem:[%s778 + $0x32] sm:$0xff]
      %v1344 = vld [vmem:[%s778 + $0x42] sm:$0xff]
      %v1345 = vld [vmem:[%s778 + $0x52] sm:$0xff]
      %v1346 = vld [vmem:[%s778 + $0x62] sm:$0xff]
      %v1347 = vld [vmem:[%s778 + $0x72] sm:$0xff]
      %v1348 = vpack.c.bf16 %v1341, %v1340
      %v1349 = vpack.c.bf16 %v1343, %v1342
      %v1350 = vpack.c.bf16 %v1345, %v1344
      %v1351 = vpack.c.bf16 %v1347, %v1346
      %s1352 = scalar_lea.vmem %s3, 80
      %v1353 = vld [vmem:[%s1352] sm:$0xf]
      %v1354 = vld [vmem:[%s1352 + $0x4] sm:$0xf]
      %v1355 = vld [vmem:[%s1352 + $0x8] sm:$0xf]
      %v1356 = vld [vmem:[%s1352 + $0xc] sm:$0xf]
      %v1361 = vunpack.c.l.b16 %v1353
      %v1362 = vunpack.c.l.b16 %v1354
      %v1363 = vunpack.c.l.b16 %v1355
      %v1364 = vunpack.c.l.b16 %v1356
      %v1365 = vpack.c.b16 %v1362, %v1361
      %v1366 = vpack.c.b16 %v1364, %v1363
      %v1370 = vsel %vm281, %v1348, 0
      %v1373 = vsel %vm281, %v1349, 0
      %v1376 = vsel %vm281, %v1350, 0
      %v1379 = vsel %vm281, %v1351, 0
      %1381 = vmatprep.subr.bf16.mxu0 0
      %1382 = vmatpush1.bf16.msra.mxu0 0
      %1383 = vmatprep.subr.bf16.mxu0 0
      %1384 = vmatpush1.bf16.msra.mxu0 0
      %1385 = vmatprep.subr.bf16.mxu0 0
      %1386 = vmatpush1.bf16.msra.mxu0 0
      %1387 = vmatprep.subr.bf16.mxu0 0
      %1388 = vmatpush1.bf16.msra.mxu0 0
      %1389 = vmatprep.subr.bf16.mxu0 0
      %1390 = vmatpush1.bf16.msra.mxu0 0
      %1391 = vmatprep.subr.bf16.mxu0 0
      %1392 = vmatpush1.bf16.msra.mxu0 0
      %1393 = vmatprep.subr.bf16.mxu0 0
      %1394 = vmatpush1.bf16.msra.mxu0 %v1366
      %1395 = vmatprep.subr.bf16.mxu0 0
      %1396 = vmatpush1.bf16.msra.mxu0 %v1365
      %1397 = vmatprep.subr.bf16.mxu0 0
      %1398 = vmatpush2.bf16.msra.mxu0 0
      %1399 = vmatprep.subr.bf16.mxu0 0
      %1400 = vmatpush2.bf16.msra.mxu0 0
      %1401 = vmatprep.subr.bf16.mxu0 0
      %1402 = vmatpush2.bf16.msra.mxu0 0
      %1403 = vmatprep.subr.bf16.mxu0 0
      %1404 = vmatpush2.bf16.msra.mxu0 0
      %1405 = vmatprep.subr.bf16.mxu0 0
      %1406 = vmatpush2.bf16.msra.mxu0 0
      %1407 = vmatprep.subr.bf16.mxu0 0
      %1408 = vmatpush2.bf16.msra.mxu0 0
      %1409 = vmatprep.subr.bf16.mxu0 0
      %1410 = vmatpush2.bf16.msra.mxu0 0
      %1411 = vmatprep.subr.bf16.mxu0 0
      %1412 = vmatpush2.bf16.msra.mxu0 0
      %1413 = vmatprep.mubr.bf16.mxu0 0
      %1414 = vmatmul.mubr.bf16.gmra.mxu0 %v1370
      %v1415 = vpop.f32.mrf.mxu0
      %v1416 = vadd.f32 0.0, %v1415
      %v1417 = vpop.f32.mrf.mxu0
      %v1418 = vpop.f32.mrf.mxu0
      %v1419 = vadd.f32 0.0, %v1418
      %v1420 = vpop.f32.mrf.mxu0
      %1421 = vmatprep.mubr.bf16.mxu0 0
      %1422 = vmatmul.mubr.bf16.gmra.mxu0 %v1373
      %v1423 = vpop.f32.mrf.mxu0
      %v1424 = vadd.f32 0.0, %v1423
      %v1425 = vpop.f32.mrf.mxu0
      %v1426 = vpop.f32.mrf.mxu0
      %v1427 = vadd.f32 0.0, %v1426
      %v1428 = vpop.f32.mrf.mxu0
      %1429 = vmatprep.mubr.bf16.mxu0 0
      %1430 = vmatmul.mubr.bf16.gmra.mxu0 %v1376
      %v1431 = vpop.f32.mrf.mxu0
      %v1432 = vadd.f32 0.0, %v1431
      %v1433 = vpop.f32.mrf.mxu0
      %v1434 = vpop.f32.mrf.mxu0
      %v1435 = vadd.f32 0.0, %v1434
      %v1436 = vpop.f32.mrf.mxu0
      %1437 = vmatprep.mubr.bf16.mxu0 0
      %1438 = vmatmul.mubr.bf16.gmra.mxu0 %v1379
      %v1439 = vpop.f32.mrf.mxu0
      %v1440 = vadd.f32 0.0, %v1439
      %v1441 = vpop.f32.mrf.mxu0
      %v1442 = vpop.f32.mrf.mxu0
      %v1443 = vadd.f32 0.0, %v1442
      %v1444 = vpop.f32.mrf.mxu0
      %1445 = vdwg.mxu0
      %v1446 = vadd.f32 %v1332, %v1416
      %v1447 = vadd.f32 %v1333, %v1419
      %v1448 = vadd.f32 %v1334, %v1424
      %v1449 = vadd.f32 %v1335, %v1427
      %v1450 = vadd.f32 %v1336, %v1432
      %v1451 = vadd.f32 %v1337, %v1435
      %v1452 = vadd.f32 %v1338, %v1440
      %v1453 = vadd.f32 %v1339, %v1443
      %s1454 = scalar_lea.vmem [#allocation2], 32
      %v1455 = vld [vmem:[%s1454] sm:$0xff]
      %v1456 = vld [vmem:[%s1454 + $0x10] sm:$0xff]
      %v1457 = vld [vmem:[%s1454 + $0x20] sm:$0xff]
      %v1458 = vld [vmem:[%s1454 + $0x30] sm:$0xff]
      %v1459 = vld [vmem:[%s1454 + $0x40] sm:$0xff]
      %v1460 = vld [vmem:[%s1454 + $0x50] sm:$0xff]
      %v1461 = vld [vmem:[%s1454 + $0x60] sm:$0xff]
      %v1462 = vld [vmem:[%s1454 + $0x70] sm:$0xff]
      %v1463 = vpack.c.bf16 %v1456, %v1455
      %v1464 = vpack.c.bf16 %v1458, %v1457
      %v1465 = vpack.c.bf16 %v1460, %v1459
      %v1466 = vpack.c.bf16 %v1462, %v1461
      %s1467 = scalar_lea.vmem %s3, 96
      %v1468 = vld [vmem:[%s1467] sm:$0xf]
      %v1469 = vld [vmem:[%s1467 + $0x4] sm:$0xf]
      %v1470 = vld [vmem:[%s1467 + $0x8] sm:$0xf]
      %v1471 = vld [vmem:[%s1467 + $0xc] sm:$0xf]
      %v1476 = vunpack.c.l.b16 %v1468
      %v1477 = vunpack.c.l.b16 %v1469
      %v1478 = vunpack.c.l.b16 %v1470
      %v1479 = vunpack.c.l.b16 %v1471
      %v1480 = vpack.c.b16 %v1477, %v1476
      %v1481 = vpack.c.b16 %v1479, %v1478
      %v1485 = vsel %vm281, %v1463, 0
      %v1488 = vsel %vm281, %v1464, 0
      %v1491 = vsel %vm281, %v1465, 0
      %v1494 = vsel %vm281, %v1466, 0
      %1496 = vmatprep.subr.bf16.mxu0 0
      %1497 = vmatpush1.bf16.msra.mxu0 0
      %1498 = vmatprep.subr.bf16.mxu0 0
      %1499 = vmatpush1.bf16.msra.mxu0 0
      %1500 = vmatprep.subr.bf16.mxu0 0
      %1501 = vmatpush1.bf16.msra.mxu0 0
      %1502 = vmatprep.subr.bf16.mxu0 0
      %1503 = vmatpush1.bf16.msra.mxu0 0
      %1504 = vmatprep.subr.bf16.mxu0 0
      %1505 = vmatpush1.bf16.msra.mxu0 0
      %1506 = vmatprep.subr.bf16.mxu0 0
      %1507 = vmatpush1.bf16.msra.mxu0 0
      %1508 = vmatprep.subr.bf16.mxu0 0
      %1509 = vmatpush1.bf16.msra.mxu0 %v1481
      %1510 = vmatprep.subr.bf16.mxu0 0
      %1511 = vmatpush1.bf16.msra.mxu0 %v1480
      %1512 = vmatprep.subr.bf16.mxu0 0
      %1513 = vmatpush2.bf16.msra.mxu0 0
      %1514 = vmatprep.subr.bf16.mxu0 0
      %1515 = vmatpush2.bf16.msra.mxu0 0
      %1516 = vmatprep.subr.bf16.mxu0 0
      %1517 = vmatpush2.bf16.msra.mxu0 0
      %1518 = vmatprep.subr.bf16.mxu0 0
      %1519 = vmatpush2.bf16.msra.mxu0 0
      %1520 = vmatprep.subr.bf16.mxu0 0
      %1521 = vmatpush2.bf16.msra.mxu0 0
      %1522 = vmatprep.subr.bf16.mxu0 0
      %1523 = vmatpush2.bf16.msra.mxu0 0
      %1524 = vmatprep.subr.bf16.mxu0 0
      %1525 = vmatpush2.bf16.msra.mxu0 0
      %1526 = vmatprep.subr.bf16.mxu0 0
      %1527 = vmatpush2.bf16.msra.mxu0 0
      %1528 = vmatprep.mubr.bf16.mxu0 0
      %1529 = vmatmul.mubr.bf16.gmra.mxu0 %v1485
      %v1530 = vpop.f32.mrf.mxu0
      %v1531 = vadd.f32 0.0, %v1530
      %v1532 = vpop.f32.mrf.mxu0
      %v1533 = vpop.f32.mrf.mxu0
      %v1534 = vadd.f32 0.0, %v1533
      %v1535 = vpop.f32.mrf.mxu0
      %1536 = vmatprep.mubr.bf16.mxu0 0
      %1537 = vmatmul.mubr.bf16.gmra.mxu0 %v1488
      %v1538 = vpop.f32.mrf.mxu0
      %v1539 = vadd.f32 0.0, %v1538
      %v1540 = vpop.f32.mrf.mxu0
      %v1541 = vpop.f32.mrf.mxu0
      %v1542 = vadd.f32 0.0, %v1541
      %v1543 = vpop.f32.mrf.mxu0
      %1544 = vmatprep.mubr.bf16.mxu0 0
      %1545 = vmatmul.mubr.bf16.gmra.mxu0 %v1491
      %v1546 = vpop.f32.mrf.mxu0
      %v1547 = vadd.f32 0.0, %v1546
      %v1548 = vpop.f32.mrf.mxu0
      %v1549 = vpop.f32.mrf.mxu0
      %v1550 = vadd.f32 0.0, %v1549
      %v1551 = vpop.f32.mrf.mxu0
      %1552 = vmatprep.mubr.bf16.mxu0 0
      %1553 = vmatmul.mubr.bf16.gmra.mxu0 %v1494
      %v1554 = vpop.f32.mrf.mxu0
      %v1555 = vadd.f32 0.0, %v1554
      %v1556 = vpop.f32.mrf.mxu0
      %v1557 = vpop.f32.mrf.mxu0
      %v1558 = vadd.f32 0.0, %v1557
      %v1559 = vpop.f32.mrf.mxu0
      %1560 = vdwg.mxu0
      %v1561 = vadd.f32 %v1446, %v1531
      %v1562 = vadd.f32 %v1447, %v1534
      %v1563 = vadd.f32 %v1448, %v1539
      %v1564 = vadd.f32 %v1449, %v1542
      %v1565 = vadd.f32 %v1450, %v1547
      %v1566 = vadd.f32 %v1451, %v1550
      %v1567 = vadd.f32 %v1452, %v1555
      %v1568 = vadd.f32 %v1453, %v1558
      %v1569 = vld [vmem:[%s1454 + $0x1] sm:$0xff]
      %v1570 = vld [vmem:[%s1454 + $0x11] sm:$0xff]
      %v1571 = vld [vmem:[%s1454 + $0x21] sm:$0xff]
      %v1572 = vld [vmem:[%s1454 + $0x31] sm:$0xff]
      %v1573 = vld [vmem:[%s1454 + $0x41] sm:$0xff]
      %v1574 = vld [vmem:[%s1454 + $0x51] sm:$0xff]
      %v1575 = vld [vmem:[%s1454 + $0x61] sm:$0xff]
      %v1576 = vld [vmem:[%s1454 + $0x71] sm:$0xff]
      %v1577 = vpack.c.bf16 %v1570, %v1569
      %v1578 = vpack.c.bf16 %v1572, %v1571
      %v1579 = vpack.c.bf16 %v1574, %v1573
      %v1580 = vpack.c.bf16 %v1576, %v1575
      %s1581 = scalar_lea.vmem %s3, 112
      %v1582 = vld [vmem:[%s1581] sm:$0xf]
      %v1583 = vld [vmem:[%s1581 + $0x4] sm:$0xf]
      %v1584 = vld [vmem:[%s1581 + $0x8] sm:$0xf]
      %v1585 = vld [vmem:[%s1581 + $0xc] sm:$0xf]
      %v1590 = vunpack.c.l.b16 %v1582
      %v1591 = vunpack.c.l.b16 %v1583
      %v1592 = vunpack.c.l.b16 %v1584
      %v1593 = vunpack.c.l.b16 %v1585
      %v1594 = vpack.c.b16 %v1591, %v1590
      %v1595 = vpack.c.b16 %v1593, %v1592
      %v1599 = vsel %vm281, %v1577, 0
      %v1602 = vsel %vm281, %v1578, 0
      %v1605 = vsel %vm281, %v1579, 0
      %v1608 = vsel %vm281, %v1580, 0
      %1610 = vmatprep.subr.bf16.mxu0 0
      %1611 = vmatpush1.bf16.msra.mxu0 0
      %1612 = vmatprep.subr.bf16.mxu0 0
      %1613 = vmatpush1.bf16.msra.mxu0 0
      %1614 = vmatprep.subr.bf16.mxu0 0
      %1615 = vmatpush1.bf16.msra.mxu0 0
      %1616 = vmatprep.subr.bf16.mxu0 0
      %1617 = vmatpush1.bf16.msra.mxu0 0
      %1618 = vmatprep.subr.bf16.mxu0 0
      %1619 = vmatpush1.bf16.msra.mxu0 0
      %1620 = vmatprep.subr.bf16.mxu0 0
      %1621 = vmatpush1.bf16.msra.mxu0 0
      %1622 = vmatprep.subr.bf16.mxu0 0
      %1623 = vmatpush1.bf16.msra.mxu0 %v1595
      %1624 = vmatprep.subr.bf16.mxu0 0
      %1625 = vmatpush1.bf16.msra.mxu0 %v1594
      %1626 = vmatprep.subr.bf16.mxu0 0
      %1627 = vmatpush2.bf16.msra.mxu0 0
      %1628 = vmatprep.subr.bf16.mxu0 0
      %1629 = vmatpush2.bf16.msra.mxu0 0
      %1630 = vmatprep.subr.bf16.mxu0 0
      %1631 = vmatpush2.bf16.msra.mxu0 0
      %1632 = vmatprep.subr.bf16.mxu0 0
      %1633 = vmatpush2.bf16.msra.mxu0 0
      %1634 = vmatprep.subr.bf16.mxu0 0
      %1635 = vmatpush2.bf16.msra.mxu0 0
      %1636 = vmatprep.subr.bf16.mxu0 0
      %1637 = vmatpush2.bf16.msra.mxu0 0
      %1638 = vmatprep.subr.bf16.mxu0 0
      %1639 = vmatpush2.bf16.msra.mxu0 0
      %1640 = vmatprep.subr.bf16.mxu0 0
      %1641 = vmatpush2.bf16.msra.mxu0 0
      %1642 = vmatprep.mubr.bf16.mxu0 0
      %1643 = vmatmul.mubr.bf16.gmra.mxu0 %v1599
      %v1644 = vpop.f32.mrf.mxu0
      %v1645 = vadd.f32 0.0, %v1644
      %v1646 = vpop.f32.mrf.mxu0
      %v1647 = vpop.f32.mrf.mxu0
      %v1648 = vadd.f32 0.0, %v1647
      %v1649 = vpop.f32.mrf.mxu0
      %1650 = vmatprep.mubr.bf16.mxu0 0
      %1651 = vmatmul.mubr.bf16.gmra.mxu0 %v1602
      %v1652 = vpop.f32.mrf.mxu0
      %v1653 = vadd.f32 0.0, %v1652
      %v1654 = vpop.f32.mrf.mxu0
      %v1655 = vpop.f32.mrf.mxu0
      %v1656 = vadd.f32 0.0, %v1655
      %v1657 = vpop.f32.mrf.mxu0
      %1658 = vmatprep.mubr.bf16.mxu0 0
      %1659 = vmatmul.mubr.bf16.gmra.mxu0 %v1605
      %v1660 = vpop.f32.mrf.mxu0
      %v1661 = vadd.f32 0.0, %v1660
      %v1662 = vpop.f32.mrf.mxu0
      %v1663 = vpop.f32.mrf.mxu0
      %v1664 = vadd.f32 0.0, %v1663
      %v1665 = vpop.f32.mrf.mxu0
      %1666 = vmatprep.mubr.bf16.mxu0 0
      %1667 = vmatmul.mubr.bf16.gmra.mxu0 %v1608
      %v1668 = vpop.f32.mrf.mxu0
      %v1669 = vadd.f32 0.0, %v1668
      %v1670 = vpop.f32.mrf.mxu0
      %v1671 = vpop.f32.mrf.mxu0
      %v1672 = vadd.f32 0.0, %v1671
      %v1673 = vpop.f32.mrf.mxu0
      %1674 = vdwg.mxu0
      %v1675 = vadd.f32 %v1561, %v1645
      %v1676 = vadd.f32 %v1562, %v1648
      %v1677 = vadd.f32 %v1563, %v1653
      %v1678 = vadd.f32 %v1564, %v1656
      %v1679 = vadd.f32 %v1565, %v1661
      %v1680 = vadd.f32 %v1566, %v1664
      %v1681 = vadd.f32 %v1567, %v1669
      %v1682 = vadd.f32 %v1568, %v1672
      %v1683 = vld [vmem:[%s1454 + $0x2] sm:$0xff]
      %v1684 = vld [vmem:[%s1454 + $0x12] sm:$0xff]
      %v1685 = vld [vmem:[%s1454 + $0x22] sm:$0xff]
      %v1686 = vld [vmem:[%s1454 + $0x32] sm:$0xff]
      %v1687 = vld [vmem:[%s1454 + $0x42] sm:$0xff]
      %v1688 = vld [vmem:[%s1454 + $0x52] sm:$0xff]
      %v1689 = vld [vmem:[%s1454 + $0x62] sm:$0xff]
      %v1690 = vld [vmem:[%s1454 + $0x72] sm:$0xff]
      %v1691 = vpack.c.bf16 %v1684, %v1683
      %v1692 = vpack.c.bf16 %v1686, %v1685
      %v1693 = vpack.c.bf16 %v1688, %v1687
      %v1694 = vpack.c.bf16 %v1690, %v1689
      %s1695 = scalar_lea.vmem %s3, 128
      %v1696 = vld [vmem:[%s1695] sm:$0xf]
      %v1697 = vld [vmem:[%s1695 + $0x4] sm:$0xf]
      %v1698 = vld [vmem:[%s1695 + $0x8] sm:$0xf]
      %v1699 = vld [vmem:[%s1695 + $0xc] sm:$0xf]
      %v1704 = vunpack.c.l.b16 %v1696
      %v1705 = vunpack.c.l.b16 %v1697
      %v1706 = vunpack.c.l.b16 %v1698
      %v1707 = vunpack.c.l.b16 %v1699
      %v1708 = vpack.c.b16 %v1705, %v1704
      %v1709 = vpack.c.b16 %v1707, %v1706
      %v1713 = vsel %vm281, %v1691, 0
      %v1716 = vsel %vm281, %v1692, 0
      %v1719 = vsel %vm281, %v1693, 0
      %v1722 = vsel %vm281, %v1694, 0
      %1724 = vmatprep.subr.bf16.mxu0 0
      %1725 = vmatpush1.bf16.msra.mxu0 0
      %1726 = vmatprep.subr.bf16.mxu0 0
      %1727 = vmatpush1.bf16.msra.mxu0 0
      %1728 = vmatprep.subr.bf16.mxu0 0
      %1729 = vmatpush1.bf16.msra.mxu0 0
      %1730 = vmatprep.subr.bf16.mxu0 0
      %1731 = vmatpush1.bf16.msra.mxu0 0
      %1732 = vmatprep.subr.bf16.mxu0 0
      %1733 = vmatpush1.bf16.msra.mxu0 0
      %1734 = vmatprep.subr.bf16.mxu0 0
      %1735 = vmatpush1.bf16.msra.mxu0 0
      %1736 = vmatprep.subr.bf16.mxu0 0
      %1737 = vmatpush1.bf16.msra.mxu0 %v1709
      %1738 = vmatprep.subr.bf16.mxu0 0
      %1739 = vmatpush1.bf16.msra.mxu0 %v1708
      %1740 = vmatprep.subr.bf16.mxu0 0
      %1741 = vmatpush2.bf16.msra.mxu0 0
      %1742 = vmatprep.subr.bf16.mxu0 0
      %1743 = vmatpush2.bf16.msra.mxu0 0
      %1744 = vmatprep.subr.bf16.mxu0 0
      %1745 = vmatpush2.bf16.msra.mxu0 0
      %1746 = vmatprep.subr.bf16.mxu0 0
      %1747 = vmatpush2.bf16.msra.mxu0 0
      %1748 = vmatprep.subr.bf16.mxu0 0
      %1749 = vmatpush2.bf16.msra.mxu0 0
      %1750 = vmatprep.subr.bf16.mxu0 0
      %1751 = vmatpush2.bf16.msra.mxu0 0
      %1752 = vmatprep.subr.bf16.mxu0 0
      %1753 = vmatpush2.bf16.msra.mxu0 0
      %1754 = vmatprep.subr.bf16.mxu0 0
      %1755 = vmatpush2.bf16.msra.mxu0 0
      %1756 = vmatprep.mubr.bf16.mxu0 0
      %1757 = vmatmul.mubr.bf16.gmra.mxu0 %v1713
      %v1758 = vpop.f32.mrf.mxu0
      %v1759 = vadd.f32 0.0, %v1758
      %v1760 = vpop.f32.mrf.mxu0
      %v1761 = vpop.f32.mrf.mxu0
      %v1762 = vadd.f32 0.0, %v1761
      %v1763 = vpop.f32.mrf.mxu0
      %1764 = vmatprep.mubr.bf16.mxu0 0
      %1765 = vmatmul.mubr.bf16.gmra.mxu0 %v1716
      %v1766 = vpop.f32.mrf.mxu0
      %v1767 = vadd.f32 0.0, %v1766
      %v1768 = vpop.f32.mrf.mxu0
      %v1769 = vpop.f32.mrf.mxu0
      %v1770 = vadd.f32 0.0, %v1769
      %v1771 = vpop.f32.mrf.mxu0
      %1772 = vmatprep.mubr.bf16.mxu0 0
      %1773 = vmatmul.mubr.bf16.gmra.mxu0 %v1719
      %v1774 = vpop.f32.mrf.mxu0
      %v1775 = vadd.f32 0.0, %v1774
      %v1776 = vpop.f32.mrf.mxu0
      %v1777 = vpop.f32.mrf.mxu0
      %v1778 = vadd.f32 0.0, %v1777
      %v1779 = vpop.f32.mrf.mxu0
      %1780 = vmatprep.mubr.bf16.mxu0 0
      %1781 = vmatmul.mubr.bf16.gmra.mxu0 %v1722
      %v1782 = vpop.f32.mrf.mxu0
      %v1783 = vadd.f32 0.0, %v1782
      %v1784 = vpop.f32.mrf.mxu0
      %v1785 = vpop.f32.mrf.mxu0
      %v1786 = vadd.f32 0.0, %v1785
      %v1787 = vpop.f32.mrf.mxu0
      %1788 = vdwg.mxu0
      %v1789 = vadd.f32 %v1675, %v1759
      %v1790 = vadd.f32 %v1676, %v1762
      %v1791 = vadd.f32 %v1677, %v1767
      %v1792 = vadd.f32 %v1678, %v1770
      %v1793 = vadd.f32 %v1679, %v1775
      %v1794 = vadd.f32 %v1680, %v1778
      %v1795 = vadd.f32 %v1681, %v1783
      %v1796 = vadd.f32 %v1682, %v1786
      %v1797 = vld [vmem:[%s4] sm:$0x1]
      %v1799 = vlaneseq
      %v1800 = vshrl.u32 %v1799, 7
      %v1801 = vsub.s32 0, %v1800
      %v1802 = vrot.slane %v1797, %v1801
      %v1804 = vadd.f32 %v1789, %v1802
      %v1805 = vadd.f32 %v1790, %v1802
      %v1806 = vadd.f32 %v1791, %v1802
      %v1807 = vadd.f32 %v1792, %v1802
      %v1808 = vadd.f32 %v1793, %v1802
      %v1809 = vadd.f32 %v1794, %v1802
      %v1810 = vadd.f32 %v1795, %v1802
      %v1811 = vadd.f32 %v1796, %v1802
      %v1812 = vld [vmem:[%s266] sm:$0xff]
      %v1813 = vld [vmem:[%s266 + $0x8] sm:$0xff]
      %v1814 = vld [vmem:[%s266 + $0x10] sm:$0xff]
      %v1815 = vld [vmem:[%s266 + $0x18] sm:$0xff]
      %v1816 = vld [vmem:[%s266 + $0x20] sm:$0xff]
      %v1817 = vld [vmem:[%s266 + $0x28] sm:$0xff]
      %v1818 = vld [vmem:[%s266 + $0x30] sm:$0xff]
      %v1819 = vld [vmem:[%s266 + $0x38] sm:$0xff]
      %v1820 = vadd.f32 %v1804, %v1812
      %v1821 = vadd.f32 %v1805, %v1813
      %v1822 = vadd.f32 %v1806, %v1814
      %v1823 = vadd.f32 %v1807, %v1815
      %v1824 = vadd.f32 %v1808, %v1816
      %v1825 = vadd.f32 %v1809, %v1817
      %v1826 = vadd.f32 %v1810, %v1818
      %v1827 = vadd.f32 %v1811, %v1819
      %1828 = vst.msk [vmem:[%s271] sm:$0xff] %vm281, %v1820
      %1829 = vst.msk [vmem:[%s271 + $0x8] sm:$0xff] %vm281, %v1821
      %1830 = vst.msk [vmem:[%s271 + $0x10] sm:$0xff] %vm281, %v1822
      %1831 = vst.msk [vmem:[%s271 + $0x18] sm:$0xff] %vm281, %v1823
      %1832 = vst.msk [vmem:[%s271 + $0x20] sm:$0xff] %vm281, %v1824
      %1833 = vst.msk [vmem:[%s271 + $0x28] sm:$0xff] %vm281, %v1825
      %1834 = vst.msk [vmem:[%s271 + $0x30] sm:$0xff] %vm281, %v1826
      %1835 = vst.msk [vmem:[%s271 + $0x38] sm:$0xff] %vm281, %v1827
      %p1836 = scmp.lt.s32.totalorder %s17, 1
      %s1837 = scalar_select %p1836, %s17, 1
      %s1838 = smul.addr %s1837, 8
      %s1839 = smul.addr %s1838, 8
      %s1840 = scalar_lea.vmem %s6, %s1839
      // Predicated region
      $region45: #{asr_forward.13} parent=43 // pred_check
        %p1841 = pneg %p171
      $region46: #{asr_forward.13} parent=43 // pred_check_branch
        %1843 = sbr.rel (%p1841) target = $region48
      $region47: #{asr_forward.13} parent=43 // pred_region
        _
      $region48: #{asr_forward.13} parent=43 // pred_fallthru
        _
    $region44: #{asr_forward.13} parent=5 // pred_fallthru
      _
    %p1844 = scmp.le.s32.totalorder 2, %s12
    // Predicated region
    $region49: #{asr_forward.13} parent=5 // pred_check
      %p1845 = pneg %p1844
    $region50: #{asr_forward.13} parent=5 // pred_check_branch
      %1847 = sbr.rel (%p1845) target = $region52
    $region51: #{asr_forward.13} parent=5 // pred_region
      %s1848 = ssub.s32 %s12, 2
      // Predicated region
      $region53: #{asr_forward.13} parent=51 // pred_check
        %p1849 = pneg %p177
      $region54: #{asr_forward.13} parent=51 // pred_check_branch
        %1851 = sbr.rel (%p1849) target = $region56
      $region55: #{asr_forward.13} parent=51 // pred_region
        %p1852 = scmp.lt.s32.totalorder %s18, 1
        %s1853 = scalar_select %p1852, %s18, 1
        %s1854 = smul.addr %s1853, 8
        %s1855 = smul.addr %s1854, 8
        %s1856 = scalar_lea.vmem %s6, %s1855
      $region56: #{asr_forward.13} parent=51 // pred_fallthru
        _
    $region52: #{asr_forward.13} parent=5 // pred_fallthru
      _
  $region6: #{asr_forward.13} parent=0 // loop_footer
    %s16 = sadd.s32 1, %s12
  $region7: #{asr_forward.13} parent=0 // loop_footer_branch
    %11 = sbr.rel target = $region3
  $region8: #{asr_forward.13} parent=0 // loop_exit
    _

// kernel: asr_forward.17
$region0: #{asr_forward.17}
  #allocation0 [shape = 'u32[]', space=smem, size = 0x4, offset = 0x4, fixed_abs, tag = 'smem constant byte address 0x4 - core index']
  #allocation1 [shape = 'u32[144,128]{1,0:T(1,128)}', space=vmem, size = 0x12000, scoped, tag = 'internal scratch']
  %s0 = inlined_call_operand.vmem [shape: f32[16,32], index: 0, kind: input, shape index: {}]
  %s1 = inlined_call_operand.vmem [shape: f32[1,32], index: 1, kind: input, shape index: {}]
  %s2 = inlined_call_operand.vmem [shape: f32[1,32], index: 2, kind: input, shape index: {}]
  %s3 = inlined_call_operand.vmem [shape: bf16[2,32,96], index: 3, kind: input, shape index: {}]
  %s4 = inlined_call_operand.vmem [shape: f32[2,1,96], index: 4, kind: input, shape index: {}]
  %s5 = inlined_call_operand.vmem [shape: f32[2,16,96], index: 5, kind: output, shape index: {}]
  %s6 = sld [smem:[#allocation0]]
  $region53: #{asr_forward.17} parent=0
    _
  %s8 = ssub.s32 1, %s6
  %s9 = scalar_select 0, %s8, %s6
  loop: start=0, step=1, limit=4
  $region2: #{asr_forward.17} parent=0 // loop_pre_header
    _
  $region3: #{asr_forward.17} parent=0 // loop_header
    %s11 = sphi 0, %s15
    %p12 = scmp.ge.s32.totalorder %s11, 4
    %s18 = sphi 0, %s30
    %s19 = sphi 0, %s26
    %s20 = sphi 0, %s18
    %s21 = sphi 0, %s19
    %s22 = sphi 0, %s20
    %s23 = sphi 0, %s21
    %s33 = sphi 0, %s35
    %s36 = sphi 0, %s33
    %s37 = sphi 0, %s36
    %s53 = sphi 0, %s37
    %s57 = sphi 0, %s57
    %s59 = sphi 0, %s57
    %s60 = sphi 0, %s59
    %s74 = sphi 0, %s60
    %s78 = sphi 0, %s78
    %s80 = sphi 0, %s78
    %s81 = sphi 0, %s80
    %s95 = sphi 0, %s81
    %s101 = sphi 0, %s103
    %s104 = sphi 0, %s101
    %s105 = sphi 0, %s104
    %s121 = sphi 0, %s105
    %s127 = sphi 0, %s129
    %s130 = sphi 0, %s127
    %s131 = sphi 0, %s130
    %s147 = sphi 0, %s131
    %s155 = sphi 0, %s157
    %s158 = sphi 0, %s155
    %s159 = sphi 0, %s158
    %s175 = sphi 0, %s159
  $region4: #{asr_forward.17} parent=0 // loop_header_branch
    %14 = sbr.rel (%p12) target = $region8
  $region5: #{asr_forward.17} parent=0 // loop_body
    %s16 = ssub.s32 %s11, 1
    %s17 = ssub.s32 %s11, 2
    %s24 = sadd.s32 1, %s19
    %p25 = scmp.ge.s32.totalorder %s24, 2
    %s26 = scalar_select %p25, 0, %s24
    %s27 = sadd.s32 1, %s18
    %s28 = scalar_select %p25, %s27, %s18
    %p29 = scmp.ge.s32.totalorder %s28, 1
    %s30 = scalar_select %p29, 0, %s28
    %s31 = ssub.s32 %s18, %s30
    %p32 = scmp.eq.s32.totalorder %s31, 0
    %s34 = sadd.s32 %s33, 1
    %s35 = scalar_select %p32, %s33, %s34
    %p38 = pneg %p32
    %p39 = scmp.eq.s32.totalorder %s11, 1
    %p40 = por %p38, %p39
    %p41 = scmp.ne.s32.totalorder %s33, %s36
    %p42 = scmp.eq.s32.totalorder %s11, 0
    %p43 = por %p41, %p42
    %p44 = scmp.ne.s32.totalorder %s33, %s36
    %p45 = scmp.eq.s32.totalorder %s16, 1
    %p46 = por %p44, %p45
    %p47 = scmp.ne.s32.totalorder %s36, %s37
    %p48 = scmp.eq.s32.totalorder %s16, 0
    %p49 = por %p47, %p48
    %p50 = scmp.ne.s32.totalorder %s36, %s37
    %p51 = scmp.eq.s32.totalorder %s17, 1
    %p52 = por %p50, %p51
    %p54 = scmp.ne.s32.totalorder %s37, %s53
    %p55 = scmp.eq.s32.totalorder %s17, 0
    %p56 = por %p54, %p55
    %s58 = sadd.s32 %s57, 1
    %p61 = scmp.eq.s32.totalorder %s11, 1
    %p62 = scmp.ne.s32.totalorder %s57, %s59
    %p63 = scmp.eq.s32.totalorder %s11, 0
    %p64 = por %p62, %p63
    %p65 = scmp.ne.s32.totalorder %s57, %s59
    %p66 = scmp.eq.s32.totalorder %s16, 1
    %p67 = por %p65, %p66
    %p68 = scmp.ne.s32.totalorder %s59, %s60
    %p69 = scmp.eq.s32.totalorder %s16, 0
    %p70 = por %p68, %p69
    %p71 = scmp.ne.s32.totalorder %s59, %s60
    %p72 = scmp.eq.s32.totalorder %s17, 1
    %p73 = por %p71, %p72
    %p75 = scmp.ne.s32.totalorder %s60, %s74
    %p76 = scmp.eq.s32.totalorder %s17, 0
    %p77 = por %p75, %p76
    %s79 = sadd.s32 %s78, 1
    %p82 = scmp.eq.s32.totalorder %s11, 1
    %p83 = scmp.ne.s32.totalorder %s78, %s80
    %p84 = scmp.eq.s32.totalorder %s11, 0
    %p85 = por %p83, %p84
    %p86 = scmp.ne.s32.totalorder %s78, %s80
    %p87 = scmp.eq.s32.totalorder %s16, 1
    %p88 = por %p86, %p87
    %p89 = scmp.ne.s32.totalorder %s80, %s81
    %p90 = scmp.eq.s32.totalorder %s16, 0
    %p91 = por %p89, %p90
    %p92 = scmp.ne.s32.totalorder %s80, %s81
    %p93 = scmp.eq.s32.totalorder %s17, 1
    %p94 = por %p92, %p93
    %p96 = scmp.ne.s32.totalorder %s81, %s95
    %p97 = scmp.eq.s32.totalorder %s17, 0
    %p98 = por %p96, %p97
    %s99 = ssub.s32 %s19, %s26
    %p100 = scmp.eq.s32.totalorder %s99, 0
    %s102 = sadd.s32 %s101, 1
    %s103 = scalar_select %p100, %s101, %s102
    %p106 = pneg %p100
    %p107 = scmp.eq.s32.totalorder %s11, 1
    %p108 = por %p106, %p107
    %p109 = scmp.ne.s32.totalorder %s101, %s104
    %p110 = scmp.eq.s32.totalorder %s11, 0
    %p111 = por %p109, %p110
    %p112 = scmp.ne.s32.totalorder %s101, %s104
    %p113 = scmp.eq.s32.totalorder %s16, 1
    %p114 = por %p112, %p113
    %p115 = scmp.ne.s32.totalorder %s104, %s105
    %p116 = scmp.eq.s32.totalorder %s16, 0
    %p117 = por %p115, %p116
    %p118 = scmp.ne.s32.totalorder %s104, %s105
    %p119 = scmp.eq.s32.totalorder %s17, 1
    %p120 = por %p118, %p119
    %p122 = scmp.ne.s32.totalorder %s105, %s121
    %p123 = scmp.eq.s32.totalorder %s17, 0
    %p124 = por %p122, %p123
    %s125 = ssub.s32 %s19, %s26
    %p126 = scmp.eq.s32.totalorder %s125, 0
    %s128 = sadd.s32 %s127, 1
    %s129 = scalar_select %p126, %s127, %s128
    %p132 = pneg %p126
    %p133 = scmp.eq.s32.totalorder %s11, 1
    %p134 = por %p132, %p133
    %p135 = scmp.ne.s32.totalorder %s127, %s130
    %p136 = scmp.eq.s32.totalorder %s11, 0
    %p137 = por %p135, %p136
    %p138 = scmp.ne.s32.totalorder %s127, %s130
    %p139 = scmp.eq.s32.totalorder %s16, 1
    %p140 = por %p138, %p139
    %p141 = scmp.ne.s32.totalorder %s130, %s131
    %p142 = scmp.eq.s32.totalorder %s16, 0
    %p143 = por %p141, %p142
    %p144 = scmp.ne.s32.totalorder %s130, %s131
    %p145 = scmp.eq.s32.totalorder %s17, 1
    %p146 = por %p144, %p145
    %p148 = scmp.ne.s32.totalorder %s131, %s147
    %p149 = scmp.eq.s32.totalorder %s17, 0
    %p150 = por %p148, %p149
    %s151 = ssub.s32 %s19, %s26
    %s152 = ssub.s32 %s18, %s30
    %s153 = sor.u32 %s151, %s152
    %p154 = scmp.eq.s32.totalorder %s153, 0
    %s156 = sadd.s32 %s155, 1
    %s157 = scalar_select %p154, %s155, %s156
    %p160 = pneg %p154
    %p161 = scmp.eq.s32.totalorder %s11, 1
    %p162 = por %p160, %p161
    %p163 = scmp.ne.s32.totalorder %s155, %s158
    %p164 = scmp.eq.s32.totalorder %s11, 0
    %p165 = por %p163, %p164
    %p166 = scmp.ne.s32.totalorder %s155, %s158
    %p167 = scmp.eq.s32.totalorder %s16, 1
    %p168 = por %p166, %p167
    %p169 = scmp.ne.s32.totalorder %s158, %s159
    %p170 = scmp.eq.s32.totalorder %s16, 0
    %p171 = por %p169, %p170
    %p172 = scmp.ne.s32.totalorder %s158, %s159
    %p173 = scmp.eq.s32.totalorder %s17, 1
    %p174 = por %p172, %p173
    %p176 = scmp.ne.s32.totalorder %s159, %s175
    %p177 = scmp.eq.s32.totalorder %s17, 0
    %p178 = por %p176, %p177
    %p179 = scmp.le.s32.totalorder 1, %s11
    %p180 = scmp.lt.s32.totalorder %s11, 3
    %p181 = pnand %p179, %p180
    %p182 = pneg %p181
    // Predicated region
    $region9: #{asr_forward.17} parent=5 // pred_check
      _
    $region10: #{asr_forward.17} parent=5 // pred_check_branch
      %184 = sbr.rel (%p181) target = $region12
    $region11: #{asr_forward.17} parent=5 // pred_region
      %s185 = ssub.s32 %s11, 1
      // Predicated region
      $region13: #{asr_forward.17} parent=11 // pred_check
        %p186 = pneg %p49
      $region14: #{asr_forward.17} parent=11 // pred_check_branch
        %188 = sbr.rel (%p186) target = $region16
      $region15: #{asr_forward.17} parent=11 // pred_region
        %s189 = smul.u32 2, %s20
        %p190 = scmp.lt.s32.totalorder %s189, 1
        %s191 = scalar_select %p190, %s189, 1
        %s192 = smul.addr %s191, 8
        %s193 = scalar_lea.vmem %s0, %s192
        %s194 = smul.u32 2, %s20
      $region16: #{asr_forward.17} parent=11 // pred_fallthru
        _
      // Predicated region
      $region17: #{asr_forward.17} parent=11 // pred_check
        %p195 = pneg %p70
      $region18: #{asr_forward.17} parent=11 // pred_check_branch
        %197 = sbr.rel (%p195) target = $region20
      $region19: #{asr_forward.17} parent=11 // pred_region
        _
      $region20: #{asr_forward.17} parent=11 // pred_fallthru
        _
      // Predicated region
      $region21: #{asr_forward.17} parent=11 // pred_check
        %p198 = pneg %p91
      $region22: #{asr_forward.17} parent=11 // pred_check_branch
        %200 = sbr.rel (%p198) target = $region24
      $region23: #{asr_forward.17} parent=11 // pred_region
        _
      $region24: #{asr_forward.17} parent=11 // pred_fallthru
        _
    $region12: #{asr_forward.17} parent=5 // pred_fallthru
      _
    %p201 = scmp.lt.s32.totalorder %s11, 2
    // Predicated region
    $region25: #{asr_forward.17} parent=5 // pred_check
      %p202 = pneg %p201
    $region26: #{asr_forward.17} parent=5 // pred_check_branch
      %204 = sbr.rel (%p202) target = $region28
    $region27: #{asr_forward.17} parent=5 // pred_region
      // Predicated region
      $region29: #{asr_forward.17} parent=27 // pred_check
        %p205 = pneg %p111
      $region30: #{asr_forward.17} parent=27 // pred_check_branch
        %207 = sbr.rel (%p205) target = $region32
      $region31: #{asr_forward.17} parent=27 // pred_region
        %p208 = scmp.lt.s32.totalorder %s19, 1
        %s209 = scalar_select %p208, %s19, 1
        %s210 = smul.addr %s209, 4
        %s211 = smul.addr %s210, 4
        %s212 = scalar_lea.vmem %s3, %s211
      $region32: #{asr_forward.17} parent=27 // pred_fallthru
        _
      // Predicated region
      $region33: #{asr_forward.17} parent=27 // pred_check
        %p213 = pneg %p137
      $region34: #{asr_forward.17} parent=27 // pred_check_branch
        %215 = sbr.rel (%p213) target = $region36
      $region35: #{asr_forward.17} parent=27 // pred_region
        %p216 = scmp.lt.s32.totalorder %s19, 1
        %s217 = scalar_select %p216, %s19, 1
        %s218 = scalar_lea.vmem %s4, %s217
      $region36: #{asr_forward.17} parent=27 // pred_fallthru
        _
    $region28: #{asr_forward.17} parent=5 // pred_fallthru
      _
    %p219 = scmp.le.s32.totalorder 1, %s11
    %p220 = scmp.lt.s32.totalorder %s11, 3
    %p221 = pnand %p219, %p220
    %p222 = pneg %p221
    // Predicated region
    $region37: #{asr_forward.17} parent=5 // pred_check
      _
    $region38: #{asr_forward.17} parent=5 // pred_check_branch
      %224 = sbr.rel (%p221) target = $region40
    $region39: #{asr_forward.17} parent=5 // pred_region
      %s225 = ssub.s32 %s11, 1
      %s226 = smul.u32 2, %s20
      %p227 = scmp.lt.s32.totalorder %s226, 1
      %s228 = scalar_select %p227, %s226, 1
      %s229 = smul.addr %s228, 8
      %s230 = scalar_lea.vmem %s0, %s229
      %p231 = pneg %p49
      %p232 = pneg %p46
      %p233 = pneg %p70
      %p234 = pneg %p67
      %p235 = pneg %p91
      %p236 = pneg %p88
      %p237 = scmp.lt.s32.totalorder %s21, 1
      %s238 = scalar_select %p237, %s21, 1
      %s239 = smul.addr %s238, 4
      %s240 = smul.addr %s239, 4
      %s241 = scalar_lea.vmem %s3, %s240
      %p242 = pneg %p117
      %p243 = pneg %p114
      %p244 = scmp.lt.s32.totalorder %s21, 1
      %s245 = scalar_select %p244, %s21, 1
      %s246 = scalar_lea.vmem %s4, %s245
      %p247 = pneg %p143
      %p248 = pneg %p140
      %p249 = pneg %p171
      %p250 = pneg %p168
      %s251 = smul.u32 2, %s20
      %p252 = scmp.lt.s32.totalorder %s21, 1
      %s253 = scalar_select %p252, %s21, 1
      %p254 = scmp.lt.s32.totalorder %s251, 1
      %s255 = scalar_select %p254, %s251, 1
      %s256 = smul.addr %s253, 2
      %s257 = sadd.s32 %s255, %s256
      %s258 = smul.addr %s257, 8
      %s259 = scalar_lea.vmem %s5, %s258
      %s260 = smul.u32 2, %s20
      %p261 = scmp.lt.s32.totalorder %s260, 1
      %s262 = scalar_select %p261, %s260, 1
      %s263 = smul.addr %s262, 8
      %s264 = scalar_lea.vmem %s0, %s263
      %s265 = smul.u32 2, %s20
      %p266 = scmp.lt.s32.totalorder %s21, 1
      %s267 = scalar_select %p266, %s21, 1
      %s268 = smul.addr %s267, 4
      %s269 = smul.addr %s268, 4
      %s270 = scalar_lea.vmem %s3, %s269
      %p271 = scmp.lt.s32.totalorder %s21, 1
      %s272 = scalar_select %p271, %s21, 1
      %s273 = scalar_lea.vmem %s4, %s272
      %s274 = smul.u32 2, %s20
      %p275 = scmp.lt.s32.totalorder %s21, 1
      %s276 = scalar_select %p275, %s21, 1
      %p277 = scmp.lt.s32.totalorder %s274, 1
      %s278 = scalar_select %p277, %s274, 1
      %s279 = smul.addr %s276, 2
      %s280 = sadd.s32 %s278, %s279
      %s281 = smul.addr %s280, 8
      %s282 = scalar_lea.vmem %s5, %s281
      %s283 = smul.u32 2, %s20
      %v285 = vld [vmem:[%s264] sm:$0xff]
      %v286 = vld [vmem:[%s264 + $0x8] sm:$0xff]
      %v287 = vld [vmem:[%s1] sm:$0x1]
      %v288 = vld [vmem:[%s2] sm:$0x1]
      %vm289 = vcmask 261120
      %v290 = vsel %vm289, %v285, 0.0
      %291 = vadd.xlane.f32.xlu0 %v290
      %v292 = vpop.xlane.xlu0 %291
      %v293 = vsel %vm289, %v286, 0.0
      %294 = vadd.xlane.f32.xlu0 %v293
      %v295 = vpop.xlane.xlu0 %294
      %v296 = vrcp.pop 32.0
      %v297 = vmul.f32 %v292, %v296
      %v298 = vmul.f32 %v295, %v296
      %v299 = vsub.f32 %v285, %v297
      %v300 = vsub.f32 %v286, %v298
      %v301 = vmul.f32 %v299, %v299
      %v302 = vmul.f32 %v300, %v300
      %v303 = vsel %vm289, %v301, 0.0
      %304 = vadd.xlane.f32.xlu0 %v303
      %v305 = vpop.xlane.xlu0 %304
      %v306 = vsel %vm289, %v302, 0.0
      %307 = vadd.xlane.f32.xlu0 %v306
      %v308 = vpop.xlane.xlu0 %307
      %v309 = vmul.f32 %v305, %v296
      %v310 = vmul.f32 %v308, %v296
      %v311 = vadd.f32 %v309, 1e-05
      %v312 = vadd.f32 %v310, 1e-05
      %v313 = vrsqrt.pop %v311
      %v314 = vrsqrt.pop %v312
      %v315 = vmul.f32 %v299, %v313
      %v316 = vmul.f32 %v300, %v314
      %v318 = vlaneseq
      %v319 = vshrl.u32 %v318, 7
      %v320 = vsub.s32 0, %v319
      %v321 = vrot.slane %v287, %v320
      %v323 = vmul.f32 %v315, %v321
      %v324 = vmul.f32 %v316, %v321
      %v326 = vlaneseq
      %v327 = vshrl.u32 %v326, 7
      %v328 = vsub.s32 0, %v327
      %v329 = vrot.slane %v288, %v328
      %v331 = vadd.f32 %v323, %v329
      %v332 = vadd.f32 %v324, %v329
      %v333 = vmul.f32 %v331, 0.5
      %v334 = vmul.f32 %v332, 0.5
      %v335 = vmul.f32 %v331, 0.70710677
      %v336 = vmul.f32 %v332, 0.70710677
      %v337 = vmax.f32 %v335, -4.0
      %v338 = vmax.f32 %v336, -4.0
      %v339 = vmin.f32 %v337, 4.0
      %v340 = vmin.f32 %v338, 4.0
      %v341 = vmul.f32 %v339, %v339
      %v342 = vmul.f32 %v340, %v340
      %v343 = vmul.f32 %v341, -2.7261424e-10
      %v344 = vmul.f32 %v342, -2.7261424e-10
      %v345 = vadd.f32 %v343, 2.7706815e-08
      %v346 = vadd.f32 %v344, 2.7706815e-08
      %v347 = vmul.f32 %v345, %v341
      %v348 = vmul.f32 %v346, %v342
      %v349 = vadd.f32 %v347, -2.101024e-06
      %v350 = vadd.f32 %v348, -2.101024e-06
      %v351 = vmul.f32 %v349, %v341
      %v352 = vmul.f32 %v350, %v342
      %v353 = vadd.f32 %v351, -5.6925062e-05
      %v354 = vadd.f32 %v352, -5.6925062e-05
      %v355 = vmul.f32 %v353, %v341
      %v356 = vmul.f32 %v354, %v342
      %v357 = vadd.f32 %v355, -0.00073499064
      %v358 = vadd.f32 %v356, -0.00073499064
      %v359 = vmul.f32 %v357, %v341
      %v360 = vmul.f32 %v358, %v342
      %v361 = vadd.f32 %v359, -0.0029546
      %v362 = vadd.f32 %v360, -0.0029546
      %v363 = vmul.f32 %v361, %v341
      %v364 = vmul.f32 %v362, %v342
      %v365 = vadd.f32 %v363, -0.016096033
      %v366 = vadd.f32 %v364, -0.016096033
      %v367 = vmul.f32 %v365, %v339
      %v368 = vmul.f32 %v366, %v340
      %v369 = vmul.f32 %v341, -1.45660715e-05
      %v370 = vmul.f32 %v342, -1.45660715e-05
      %v371 = vadd.f32 %v369, -0.00021337405
      %v372 = vadd.f32 %v370, -0.00021337405
      %v373 = vmul.f32 %v371, %v341
      %v374 = vmul.f32 %v372, %v342
      %v375 = vadd.f32 %v373, -0.001682827
      %v376 = vadd.f32 %v374, -0.001682827
      %v377 = vmul.f32 %v375, %v341
      %v378 = vmul.f32 %v376, %v342
      %v379 = vadd.f32 %v377, -0.0073733293
      %v380 = vadd.f32 %v378, -0.0073733293
      %v381 = vmul.f32 %v379, %v341
      %v382 = vmul.f32 %v380, %v342
      %v383 = vadd.f32 %v381, -0.014264739
      %v384 = vadd.f32 %v382, -0.014264739
      %v385 = vrcp.pop %v383
      %v386 = vmul.f32 %v367, %v385
      %v387 = vrcp.pop %v384
      %v388 = vmul.f32 %v368, %v387
      %v389 = vadd.f32 %v386, 1.0
      %v390 = vadd.f32 %v388, 1.0
      %v391 = vmul.f32 %v333, %v389
      %v392 = vmul.f32 %v334, %v390
      %v393 = vpack.c.bf16 %v392, %v391
      %v394 = vld [vmem:[%s270] sm:$0xf]
      %v395 = vld [vmem:[%s270 + $0x4] sm:$0xf]
      %v396 = vld [vmem:[%s270 + $0x8] sm:$0xf]
      %v397 = vld [vmem:[%s270 + $0xc] sm:$0xf]
      %v398 = vld [vmem:[%s273] sm:$0x1]
      %v400 = vlaneseq
      %v401 = vshrl.u32 %v400, 7
      %v402 = vsub.s32 0, %v401
      %v403 = vrot.slane %v398, %v402
      %v409 = vunpack.c.l.b16 %v394
      %v410 = vunpack.c.l.b16 %v395
      %v411 = vunpack.c.l.b16 %v396
      %v412 = vunpack.c.l.b16 %v397
      %v413 = vpack.c.b16 %v410, %v409
      %v414 = vpack.c.b16 %v412, %v411
      %v418 = vsel %vm289, %v393, 0
      %420 = vmatprep.subr.bf16.mxu0 0
      %421 = vmatpush1.bf16.msra.mxu0 0
      %422 = vmatprep.subr.bf16.mxu0 0
      %423 = vmatpush1.bf16.msra.mxu0 0
      %424 = vmatprep.subr.bf16.mxu0 0
      %425 = vmatpush1.bf16.msra.mxu0 0
      %426 = vmatprep.subr.bf16.mxu0 0
      %427 = vmatpush1.bf16.msra.mxu0 0
      %428 = vmatprep.subr.bf16.mxu0 0
      %429 = vmatpush1.bf16.msra.mxu0 0
      %430 = vmatprep.subr.bf16.mxu0 0
      %431 = vmatpush1.bf16.msra.mxu0 0
      %432 = vmatprep.subr.bf16.mxu0 0
      %433 = vmatpush1.bf16.msra.mxu0 %v414
      %434 = vmatprep.subr.bf16.mxu0 0
      %435 = vmatpush1.bf16.msra.mxu0 %v413
      %436 = vmatprep.subr.bf16.mxu0 0
      %437 = vmatpush2.bf16.msra.mxu0 0
      %438 = vmatprep.subr.bf16.mxu0 0
      %439 = vmatpush2.bf16.msra.mxu0 0
      %440 = vmatprep.subr.bf16.mxu0 0
      %441 = vmatpush2.bf16.msra.mxu0 0
      %442 = vmatprep.subr.bf16.mxu0 0
      %443 = vmatpush2.bf16.msra.mxu0 0
      %444 = vmatprep.subr.bf16.mxu0 0
      %445 = vmatpush2.bf16.msra.mxu0 0
      %446 = vmatprep.subr.bf16.mxu0 0
      %447 = vmatpush2.bf16.msra.mxu0 0
      %448 = vmatprep.subr.bf16.mxu0 0
      %449 = vmatpush2.bf16.msra.mxu0 0
      %450 = vmatprep.subr.bf16.mxu0 0
      %451 = vmatpush2.bf16.msra.mxu0 0
      %452 = vmatprep.mubr.bf16.mxu0 0
      %453 = vmatmul.mubr.bf16.gmra.mxu0 %v418
      %v454 = vpop.f32.mrf.mxu0
      %v455 = vadd.f32 %v403, %v454
      %v456 = vpop.f32.mrf.mxu0
      %v457 = vpop.f32.mrf.mxu0
      %v458 = vadd.f32 %v403, %v457
      %v459 = vpop.f32.mrf.mxu0
      %460 = vdwg.mxu0
      %vm461 = vcmask 785408
      %462 = vst.msk [vmem:[%s282] sm:$0xff] %vm461, %v455
      %463 = vst.msk [vmem:[%s282 + $0x8] sm:$0xff] %vm461, %v458
      %s464 = smul.u32 2, %s20
      %p465 = scmp.lt.s32.totalorder %s21, 1
      %s466 = scalar_select %p465, %s21, 1
      %p467 = scmp.lt.s32.totalorder %s464, 1
      %s468 = scalar_select %p467, %s464, 1
      %s469 = smul.addr %s466, 2
      %s470 = sadd.s32 %s468, %s469
      %s471 = smul.addr %s470, 8
      %s472 = scalar_lea.vmem %s5, %s471
      // Predicated region
      $region41: #{asr_forward.17} parent=39 // pred_check
        %p473 = pneg %p168
      $region42: #{asr_forward.17} parent=39 // pred_check_branch
        %475 = sbr.rel (%p473) target = $region44
      $region43: #{asr_forward.17} parent=39 // pred_region
        %s476 = smul.u32 2, %s20
      $region44: #{asr_forward.17} parent=39 // pred_fallthru
        _
    $region40: #{asr_forward.17} parent=5 // pred_fallthru
      _
    %p477 = scmp.le.s32.totalorder 2, %s11
    // Predicated region
    $region45: #{asr_forward.17} parent=5 // pred_check
      %p478 = pneg %p477
    $region46: #{asr_forward.17} parent=5 // pred_check_branch
      %480 = sbr.rel (%p478) target = $region48
    $region47: #{asr_forward.17} parent=5 // pred_region
      %s481 = ssub.s32 %s11, 2
      // Predicated region
      $region49: #{asr_forward.17} parent=47 // pred_check
        %p482 = pneg %p174
      $region50: #{asr_forward.17} parent=47 // pred_check_branch
        %484 = sbr.rel (%p482) target = $region52
      $region51: #{asr_forward.17} parent=47 // pred_region
        %s485 = smul.u32 2, %s22
        %p486 = scmp.lt.s32.totalorder %s23, 1
        %s487 = scalar_select %p486, %s23, 1
        %p488 = scmp.lt.s32.totalorder %s485, 1
        %s489 = scalar_select %p488, %s485, 1
        %s490 = smul.addr %s487, 2
        %s491 = sadd.s32 %s489, %s490
        %s492 = smul.addr %s491, 8
        %s493 = scalar_lea.vmem %s5, %s492
      $region52: #{asr_forward.17} parent=47 // pred_fallthru
        _
    $region48: #{asr_forward.17} parent=5 // pred_fallthru
      _
  $region6: #{asr_forward.17} parent=0 // loop_footer
    %s15 = sadd.s32 1, %s11
  $region7: #{asr_forward.17} parent=0 // loop_footer_branch
    %10 = sbr.rel target = $region3
  $region8: #{asr_forward.17} parent=0 // loop_exit
    _

// kernel: asr_forward.16
$region0: #{asr_forward.16}
  #allocation0 [shape = 'u32[]', space=smem, size = 0x4, offset = 0x4, fixed_abs, tag = 'smem constant byte address 0x4 - core index']
  #allocation1 [shape = 'u32[144,128]{1,0:T(1,128)}', space=vmem, size = 0x12000, scoped, tag = 'internal scratch']
  %s0 = inlined_call_operand.vmem [shape: f32[16,256], index: 0, kind: input, shape index: {}]
  %s1 = inlined_call_operand.vmem [shape: f32[1,256], index: 1, kind: input, shape index: {}]
  %s2 = inlined_call_operand.vmem [shape: f32[1,256], index: 2, kind: input, shape index: {}]
  %s3 = inlined_call_operand.vmem [shape: bf16[1,256,32], index: 3, kind: input, shape index: {}]
  %s4 = inlined_call_operand.vmem [shape: f32[1,1,32], index: 4, kind: input, shape index: {}]
  %s5 = inlined_call_operand.vmem [shape: f32[1,32], index: 5, kind: input, shape index: {}]
  %s6 = inlined_call_operand.vmem [shape: f32[1,32], index: 6, kind: input, shape index: {}]
  %s7 = inlined_call_operand.vmem [shape: f32[1,16,32], index: 7, kind: output, shape index: {}]
  %s8 = sld [smem:[#allocation0]]
  $region38: #{asr_forward.16} parent=0
    _
  %s10 = ssub.s32 1, %s8
  %s11 = scalar_select 0, %s10, %s8
  // Predicated region
  $region2: #{asr_forward.16} parent=0 // pred_check
    _
  $region3: #{asr_forward.16} parent=0 // pred_check_branch
    %13 = sbr.rel (0) target = $region5
  $region4: #{asr_forward.16} parent=0 // pred_region
    _
  $region5: #{asr_forward.16} parent=0 // pred_fallthru
    _
  // Predicated region
  $region6: #{asr_forward.16} parent=0 // pred_check
    _
  $region7: #{asr_forward.16} parent=0 // pred_check_branch
    %15 = sbr.rel (0) target = $region9
  $region8: #{asr_forward.16} parent=0 // pred_region
    _
  $region9: #{asr_forward.16} parent=0 // pred_fallthru
    _
  // Predicated region
  $region10: #{asr_forward.16} parent=0 // pred_check
    _
  $region11: #{asr_forward.16} parent=0 // pred_check_branch
    %17 = sbr.rel (0) target = $region13
  $region12: #{asr_forward.16} parent=0 // pred_region
    _
  $region13: #{asr_forward.16} parent=0 // pred_fallthru
    _
  // Predicated region
  $region14: #{asr_forward.16} parent=0 // pred_check
    _
  $region15: #{asr_forward.16} parent=0 // pred_check_branch
    %19 = sbr.rel (0) target = $region17
  $region16: #{asr_forward.16} parent=0 // pred_region
    _
  $region17: #{asr_forward.16} parent=0 // pred_fallthru
    _
  // Predicated region
  $region18: #{asr_forward.16} parent=0 // pred_check
    _
  $region19: #{asr_forward.16} parent=0 // pred_check_branch
    %21 = sbr.rel (0) target = $region21
  $region20: #{asr_forward.16} parent=0 // pred_region
    _
  $region21: #{asr_forward.16} parent=0 // pred_fallthru
    _
  // Predicated region
  $region22: #{asr_forward.16} parent=0 // pred_check
    _
  $region23: #{asr_forward.16} parent=0 // pred_check_branch
    %23 = sbr.rel (0) target = $region25
  $region24: #{asr_forward.16} parent=0 // pred_region
    _
  $region25: #{asr_forward.16} parent=0 // pred_fallthru
    _
  // Predicated region
  $region26: #{asr_forward.16} parent=0 // pred_check
    _
  $region27: #{asr_forward.16} parent=0 // pred_check_branch
    %25 = sbr.rel (0) target = $region29
  $region28: #{asr_forward.16} parent=0 // pred_region
    _
  $region29: #{asr_forward.16} parent=0 // pred_fallthru
    _
  %v27 = vld [vmem:[%s0] sm:$0xff]
  %v28 = vld [vmem:[%s0 + $0x8] sm:$0xff]
  %v29 = vld [vmem:[%s0 + $0x10] sm:$0xff]
  %v30 = vld [vmem:[%s0 + $0x18] sm:$0xff]
  %v31 = vld [vmem:[%s1] sm:$0x3]
  %v32 = vld [vmem:[%s2] sm:$0x3]
  %v33 = vadd.f32 %v27, %v28
  %34 = vadd.xlane.f32.xlu0 %v33
  %v35 = vpop.xlane.xlu0 %34
  %v36 = vadd.f32 %v29, %v30
  %37 = vadd.xlane.f32.xlu0 %v36
  %v38 = vpop.xlane.xlu0 %37
  %v39 = vrcp.pop 256.0
  %v40 = vmul.f32 %v35, %v39
  %v41 = vmul.f32 %v38, %v39
  %v42 = vsub.f32 %v27, %v40
  %v43 = vsub.f32 %v28, %v40
  %v44 = vsub.f32 %v29, %v41
  %v45 = vsub.f32 %v30, %v41
  %v46 = vmul.f32 %v42, %v42
  %v47 = vmul.f32 %v43, %v43
  %v48 = vmul.f32 %v44, %v44
  %v49 = vmul.f32 %v45, %v45
  %v50 = vadd.f32 %v46, %v47
  %51 = vadd.xlane.f32.xlu0 %v50
  %v52 = vpop.xlane.xlu0 %51
  %v53 = vadd.f32 %v48, %v49
  %54 = vadd.xlane.f32.xlu0 %v53
  %v55 = vpop.xlane.xlu0 %54
  %v56 = vmul.f32 %v52, %v39
  %v57 = vmul.f32 %v55, %v39
  %v58 = vadd.f32 %v56, 1e-05
  %v59 = vadd.f32 %v57, 1e-05
  %v60 = vrsqrt.pop %v58
  %v61 = vrsqrt.pop %v59
  %v62 = vmul.f32 %v42, %v60
  %v63 = vmul.f32 %v43, %v60
  %v64 = vmul.f32 %v44, %v61
  %v65 = vmul.f32 %v45, %v61
  %v67 = vlaneseq
  %v68 = vshrl.u32 %v67, 7
  %v69 = vsub.s32 0, %v68
  %v70 = vrot.slane %v31, %v69
  %v71 = vlaneseq
  %v72 = vshrl.u32 %v71, 7
  %v73 = vsub.s32 1, %v72
  %v74 = vrot.slane %v31, %v73
  %v77 = vmul.f32 %v62, %v70
  %v78 = vmul.f32 %v63, %v74
  %v79 = vmul.f32 %v64, %v70
  %v80 = vmul.f32 %v65, %v74
  %v82 = vlaneseq
  %v83 = vshrl.u32 %v82, 7
  %v84 = vsub.s32 0, %v83
  %v85 = vrot.slane %v32, %v84
  %v86 = vlaneseq
  %v87 = vshrl.u32 %v86, 7
  %v88 = vsub.s32 1, %v87
  %v89 = vrot.slane %v32, %v88
  %v92 = vadd.f32 %v77, %v85
  %v93 = vadd.f32 %v78, %v89
  %v94 = vadd.f32 %v79, %v85
  %v95 = vadd.f32 %v80, %v89
  %v96 = vmul.f32 %v92, 0.5
  %v97 = vmul.f32 %v93, 0.5
  %v98 = vmul.f32 %v94, 0.5
  %v99 = vmul.f32 %v95, 0.5
  %v100 = vmul.f32 %v92, 0.70710677
  %v101 = vmul.f32 %v93, 0.70710677
  %v102 = vmul.f32 %v94, 0.70710677
  %v103 = vmul.f32 %v95, 0.70710677
  %v104 = vmax.f32 %v100, -4.0
  %v105 = vmax.f32 %v101, -4.0
  %v106 = vmax.f32 %v102, -4.0
  %v107 = vmax.f32 %v103, -4.0
  %v108 = vmin.f32 %v104, 4.0
  %v109 = vmin.f32 %v105, 4.0
  %v110 = vmin.f32 %v106, 4.0
  %v111 = vmin.f32 %v107, 4.0
  %v112 = vmul.f32 %v108, %v108
  %v113 = vmul.f32 %v109, %v109
  %v114 = vmul.f32 %v110, %v110
  %v115 = vmul.f32 %v111, %v111
  %v116 = vmul.f32 %v112, -2.7261424e-10
  %v117 = vmul.f32 %v113, -2.7261424e-10
  %v118 = vmul.f32 %v114, -2.7261424e-10
  %v119 = vmul.f32 %v115, -2.7261424e-10
  %v120 = vadd.f32 %v116, 2.7706815e-08
  %v121 = vadd.f32 %v117, 2.7706815e-08
  %v122 = vadd.f32 %v118, 2.7706815e-08
  %v123 = vadd.f32 %v119, 2.7706815e-08
  %v124 = vmul.f32 %v120, %v112
  %v125 = vmul.f32 %v121, %v113
  %v126 = vmul.f32 %v122, %v114
  %v127 = vmul.f32 %v123, %v115
  %v128 = vadd.f32 %v124, -2.101024e-06
  %v129 = vadd.f32 %v125, -2.101024e-06
  %v130 = vadd.f32 %v126, -2.101024e-06
  %v131 = vadd.f32 %v127, -2.101024e-06
  %v132 = vmul.f32 %v128, %v112
  %v133 = vmul.f32 %v129, %v113
  %v134 = vmul.f32 %v130, %v114
  %v135 = vmul.f32 %v131, %v115
  %v136 = vadd.f32 %v132, -5.6925062e-05
  %v137 = vadd.f32 %v133, -5.6925062e-05
  %v138 = vadd.f32 %v134, -5.6925062e-05
  %v139 = vadd.f32 %v135, -5.6925062e-05
  %v140 = vmul.f32 %v136, %v112
  %v141 = vmul.f32 %v137, %v113
  %v142 = vmul.f32 %v138, %v114
  %v143 = vmul.f32 %v139, %v115
  %v144 = vadd.f32 %v140, -0.00073499064
  %v145 = vadd.f32 %v141, -0.00073499064
  %v146 = vadd.f32 %v142, -0.00073499064
  %v147 = vadd.f32 %v143, -0.00073499064
  %v148 = vmul.f32 %v144, %v112
  %v149 = vmul.f32 %v145, %v113
  %v150 = vmul.f32 %v146, %v114
  %v151 = vmul.f32 %v147, %v115
  %v152 = vadd.f32 %v148, -0.0029546
  %v153 = vadd.f32 %v149, -0.0029546
  %v154 = vadd.f32 %v150, -0.0029546
  %v155 = vadd.f32 %v151, -0.0029546
  %v156 = vmul.f32 %v152, %v112
  %v157 = vmul.f32 %v153, %v113
  %v158 = vmul.f32 %v154, %v114
  %v159 = vmul.f32 %v155, %v115
  %v160 = vadd.f32 %v156, -0.016096033
  %v161 = vadd.f32 %v157, -0.016096033
  %v162 = vadd.f32 %v158, -0.016096033
  %v163 = vadd.f32 %v159, -0.016096033
  %v164 = vmul.f32 %v160, %v108
  %v165 = vmul.f32 %v161, %v109
  %v166 = vmul.f32 %v162, %v110
  %v167 = vmul.f32 %v163, %v111
  %v168 = vmul.f32 %v112, -1.45660715e-05
  %v169 = vmul.f32 %v113, -1.45660715e-05
  %v170 = vmul.f32 %v114, -1.45660715e-05
  %v171 = vmul.f32 %v115, -1.45660715e-05
  %v172 = vadd.f32 %v168, -0.00021337405
  %v173 = vadd.f32 %v169, -0.00021337405
  %v174 = vadd.f32 %v170, -0.00021337405
  %v175 = vadd.f32 %v171, -0.00021337405
  %v176 = vmul.f32 %v172, %v112
  %v177 = vmul.f32 %v173, %v113
  %v178 = vmul.f32 %v174, %v114
  %v179 = vmul.f32 %v175, %v115
  %v180 = vadd.f32 %v176, -0.001682827
  %v181 = vadd.f32 %v177, -0.001682827
  %v182 = vadd.f32 %v178, -0.001682827
  %v183 = vadd.f32 %v179, -0.001682827
  %v184 = vmul.f32 %v180, %v112
  %v185 = vmul.f32 %v181, %v113
  %v186 = vmul.f32 %v182, %v114
  %v187 = vmul.f32 %v183, %v115
  %v188 = vadd.f32 %v184, -0.0073733293
  %v189 = vadd.f32 %v185, -0.0073733293
  %v190 = vadd.f32 %v186, -0.0073733293
  %v191 = vadd.f32 %v187, -0.0073733293
  %v192 = vmul.f32 %v188, %v112
  %v193 = vmul.f32 %v189, %v113
  %v194 = vmul.f32 %v190, %v114
  %v195 = vmul.f32 %v191, %v115
  %v196 = vadd.f32 %v192, -0.014264739
  %v197 = vadd.f32 %v193, -0.014264739
  %v198 = vadd.f32 %v194, -0.014264739
  %v199 = vadd.f32 %v195, -0.014264739
  %v200 = vrcp.pop %v196
  %v201 = vmul.f32 %v164, %v200
  %v202 = vrcp.pop %v197
  %v203 = vmul.f32 %v165, %v202
  %v204 = vrcp.pop %v198
  %v205 = vmul.f32 %v166, %v204
  %v206 = vrcp.pop %v199
  %v207 = vmul.f32 %v167, %v206
  %v208 = vadd.f32 %v201, 1.0
  %v209 = vadd.f32 %v203, 1.0
  %v210 = vadd.f32 %v205, 1.0
  %v211 = vadd.f32 %v207, 1.0
  %v212 = vmul.f32 %v96, %v208
  %v213 = vmul.f32 %v97, %v209
  %v214 = vmul.f32 %v98, %v210
  %v215 = vmul.f32 %v99, %v211
  %v216 = vpack.c.bf16 %v214, %v212
  %v217 = vpack.c.bf16 %v215, %v213
  %v218 = vld [vmem:[%s3] sm:$0xf]
  %v219 = vld [vmem:[%s3 + $0x4] sm:$0xf]
  %v220 = vld [vmem:[%s3 + $0x8] sm:$0xf]
  %v221 = vld [vmem:[%s3 + $0xc] sm:$0xf]
  %v222 = vld [vmem:[%s3 + $0x10] sm:$0xf]
  %v223 = vld [vmem:[%s3 + $0x14] sm:$0xf]
  %v224 = vld [vmem:[%s3 + $0x18] sm:$0xf]
  %v225 = vld [vmem:[%s3 + $0x1c] sm:$0xf]
  %v226 = vld [vmem:[%s3 + $0x20] sm:$0xf]
  %v227 = vld [vmem:[%s3 + $0x24] sm:$0xf]
  %v228 = vld [vmem:[%s3 + $0x28] sm:$0xf]
  %v229 = vld [vmem:[%s3 + $0x2c] sm:$0xf]
  %v230 = vld [vmem:[%s3 + $0x30] sm:$0xf]
  %v231 = vld [vmem:[%s3 + $0x34] sm:$0xf]
  %v232 = vld [vmem:[%s3 + $0x38] sm:$0xf]
  %v233 = vld [vmem:[%s3 + $0x3c] sm:$0xf]
  %v234 = vld [vmem:[%s3 + $0x40] sm:$0xf]
  %v235 = vld [vmem:[%s3 + $0x44] sm:$0xf]
  %v236 = vld [vmem:[%s3 + $0x48] sm:$0xf]
  %v237 = vld [vmem:[%s3 + $0x4c] sm:$0xf]
  %v238 = vld [vmem:[%s3 + $0x50] sm:$0xf]
  %v239 = vld [vmem:[%s3 + $0x54] sm:$0xf]
  %v240 = vld [vmem:[%s3 + $0x58] sm:$0xf]
  %v241 = vld [vmem:[%s3 + $0x5c] sm:$0xf]
  %v242 = vld [vmem:[%s3 + $0x60] sm:$0xf]
  %v243 = vld [vmem:[%s3 + $0x64] sm:$0xf]
  %v244 = vld [vmem:[%s3 + $0x68] sm:$0xf]
  %v245 = vld [vmem:[%s3 + $0x6c] sm:$0xf]
  %v246 = vld [vmem:[%s3 + $0x70] sm:$0xf]
  %v247 = vld [vmem:[%s3 + $0x74] sm:$0xf]
  %v248 = vld [vmem:[%s3 + $0x78] sm:$0xf]
  %v249 = vld [vmem:[%s3 + $0x7c] sm:$0xf]
  %v250 = vld [vmem:[%s4] sm:$0x1]
  %v252 = vlaneseq
  %v253 = vshrl.u32 %v252, 7
  %v254 = vsub.s32 0, %v253
  %v255 = vrot.slane %v250, %v254
  %v289 = vunpack.c.l.b16 %v218
  %v290 = vunpack.c.l.b16 %v219
  %v291 = vunpack.c.l.b16 %v220
  %v292 = vunpack.c.l.b16 %v221
  %v293 = vunpack.c.l.b16 %v222
  %v294 = vunpack.c.l.b16 %v223
  %v295 = vunpack.c.l.b16 %v224
  %v296 = vunpack.c.l.b16 %v225
  %v297 = vunpack.c.l.b16 %v226
  %v298 = vunpack.c.l.b16 %v227
  %v299 = vunpack.c.l.b16 %v228
  %v300 = vunpack.c.l.b16 %v229
  %v301 = vunpack.c.l.b16 %v230
  %v302 = vunpack.c.l.b16 %v231
  %v303 = vunpack.c.l.b16 %v232
  %v304 = vunpack.c.l.b16 %v233
  %v305 = vunpack.c.l.b16 %v234
  %v306 = vunpack.c.l.b16 %v235
  %v307 = vunpack.c.l.b16 %v236
  %v308 = vunpack.c.l.b16 %v237
  %v309 = vunpack.c.l.b16 %v238
  %v310 = vunpack.c.l.b16 %v239
  %v311 = vunpack.c.l.b16 %v240
  %v312 = vunpack.c.l.b16 %v241
  %v313 = vunpack.c.l.b16 %v242
  %v314 = vunpack.c.l.b16 %v243
  %v315 = vunpack.c.l.b16 %v244
  %v316 = vunpack.c.l.b16 %v245
  %v317 = vunpack.c.l.b16 %v246
  %v318 = vunpack.c.l.b16 %v247
  %v319 = vunpack.c.l.b16 %v248
  %v320 = vunpack.c.l.b16 %v249
  %v321 = vpack.c.b16 %v290, %v289
  %v322 = vpack.c.b16 %v292, %v291
  %v323 = vpack.c.b16 %v294, %v293
  %v324 = vpack.c.b16 %v296, %v295
  %v325 = vpack.c.b16 %v298, %v297
  %v326 = vpack.c.b16 %v300, %v299
  %v327 = vpack.c.b16 %v302, %v301
  %v328 = vpack.c.b16 %v304, %v303
  %v329 = vpack.c.b16 %v306, %v305
  %v330 = vpack.c.b16 %v308, %v307
  %v331 = vpack.c.b16 %v310, %v309
  %v332 = vpack.c.b16 %v312, %v311
  %v333 = vpack.c.b16 %v314, %v313
  %v334 = vpack.c.b16 %v316, %v315
  %v335 = vpack.c.b16 %v318, %v317
  %v336 = vpack.c.b16 %v320, %v319
  %353 = vmatprep.subr.bf16.mxu0 0
  %354 = vmatpush1.bf16.msra.mxu0 %v328
  %355 = vmatprep.subr.bf16.mxu0 0
  %356 = vmatpush1.bf16.msra.mxu0 %v327
  %357 = vmatprep.subr.bf16.mxu0 0
  %358 = vmatpush1.bf16.msra.mxu0 %v326
  %359 = vmatprep.subr.bf16.mxu0 0
  %360 = vmatpush1.bf16.msra.mxu0 %v325
  %361 = vmatprep.subr.bf16.mxu0 0
  %362 = vmatpush1.bf16.msra.mxu0 %v324
  %363 = vmatprep.subr.bf16.mxu0 0
  %364 = vmatpush1.bf16.msra.mxu0 %v323
  %365 = vmatprep.subr.bf16.mxu0 0
  %366 = vmatpush1.bf16.msra.mxu0 %v322
  %367 = vmatprep.subr.bf16.mxu0 0
  %368 = vmatpush1.bf16.msra.mxu0 %v321
  %369 = vmatprep.subr.bf16.mxu0 0
  %370 = vmatpush2.bf16.msra.mxu0 %v336
  %371 = vmatprep.subr.bf16.mxu0 0
  %372 = vmatpush2.bf16.msra.mxu0 %v335
  %373 = vmatprep.subr.bf16.mxu0 0
  %374 = vmatpush2.bf16.msra.mxu0 %v334
  %375 = vmatprep.subr.bf16.mxu0 0
  %376 = vmatpush2.bf16.msra.mxu0 %v333
  %377 = vmatprep.subr.bf16.mxu0 0
  %378 = vmatpush2.bf16.msra.mxu0 %v332
  %379 = vmatprep.subr.bf16.mxu0 0
  %380 = vmatpush2.bf16.msra.mxu0 %v331
  %381 = vmatprep.subr.bf16.mxu0 0
  %382 = vmatpush2.bf16.msra.mxu0 %v330
  %383 = vmatprep.subr.bf16.mxu0 0
  %384 = vmatpush2.bf16.msra.mxu0 %v329
  %385 = vmatprep.mubr.bf16.mxu0 %v217
  %386 = vmatmul.mubr.bf16.gmra.mxu0 %v216
  %v387 = vpop.f32.mrf.mxu0
  %v388 = vadd.f32 %v255, %v387
  %v389 = vpop.f32.mrf.mxu0
  %v390 = vpop.f32.mrf.mxu0
  %v391 = vadd.f32 %v255, %v390
  %v392 = vpop.f32.mrf.mxu0
  %393 = vdwg.mxu0
  %v394 = vld [vmem:[%s5] sm:$0x1]
  %v395 = vld [vmem:[%s6] sm:$0x1]
  %vm396 = vcmask 261120
  %v397 = vsel %vm396, %v388, 0.0
  %398 = vadd.xlane.f32.xlu0 %v397
  %v399 = vpop.xlane.xlu0 %398
  %v400 = vsel %vm396, %v391, 0.0
  %401 = vadd.xlane.f32.xlu0 %v400
  %v402 = vpop.xlane.xlu0 %401
  %v403 = vrcp.pop 32.0
  %v404 = vmul.f32 %v399, %v403
  %v405 = vmul.f32 %v402, %v403
  %v406 = vsub.f32 %v388, %v404
  %v407 = vsub.f32 %v391, %v405
  %v408 = vmul.f32 %v406, %v406
  %v409 = vmul.f32 %v407, %v407
  %v410 = vsel %vm396, %v408, 0.0
  %411 = vadd.xlane.f32.xlu0 %v410
  %v412 = vpop.xlane.xlu0 %411
  %v413 = vsel %vm396, %v409, 0.0
  %414 = vadd.xlane.f32.xlu0 %v413
  %v415 = vpop.xlane.xlu0 %414
  %v416 = vmul.f32 %v412, %v403
  %v417 = vmul.f32 %v415, %v403
  %v418 = vadd.f32 %v416, 1e-05
  %v419 = vadd.f32 %v417, 1e-05
  %v420 = vrsqrt.pop %v418
  %v421 = vrsqrt.pop %v419
  %v422 = vmul.f32 %v406, %v420
  %v423 = vmul.f32 %v407, %v421
  %v425 = vlaneseq
  %v426 = vshrl.u32 %v425, 7
  %v427 = vsub.s32 0, %v426
  %v428 = vrot.slane %v394, %v427
  %v430 = vmul.f32 %v422, %v428
  %v431 = vmul.f32 %v423, %v428
  %v433 = vlaneseq
  %v434 = vshrl.u32 %v433, 7
  %v435 = vsub.s32 0, %v434
  %v436 = vrot.slane %v395, %v435
  %v438 = vadd.f32 %v430, %v436
  %v439 = vadd.f32 %v431, %v436
  %v440 = vmul.f32 %v438, 0.5
  %v441 = vmul.f32 %v439, 0.5
  %v442 = vmul.f32 %v438, 0.70710677
  %v443 = vmul.f32 %v439, 0.70710677
  %v444 = vmax.f32 %v442, -4.0
  %v445 = vmax.f32 %v443, -4.0
  %v446 = vmin.f32 %v444, 4.0
  %v447 = vmin.f32 %v445, 4.0
  %v448 = vmul.f32 %v446, %v446
  %v449 = vmul.f32 %v447, %v447
  %v450 = vmul.f32 %v448, -2.7261424e-10
  %v451 = vmul.f32 %v449, -2.7261424e-10
  %v452 = vadd.f32 %v450, 2.7706815e-08
  %v453 = vadd.f32 %v451, 2.7706815e-08
  %v454 = vmul.f32 %v452, %v448
  %v455 = vmul.f32 %v453, %v449
  %v456 = vadd.f32 %v454, -2.101024e-06
  %v457 = vadd.f32 %v455, -2.101024e-06
  %v458 = vmul.f32 %v456, %v448
  %v459 = vmul.f32 %v457, %v449
  %v460 = vadd.f32 %v458, -5.6925062e-05
  %v461 = vadd.f32 %v459, -5.6925062e-05
  %v462 = vmul.f32 %v460, %v448
  %v463 = vmul.f32 %v461, %v449
  %v464 = vadd.f32 %v462, -0.00073499064
  %v465 = vadd.f32 %v463, -0.00073499064
  %v466 = vmul.f32 %v464, %v448
  %v467 = vmul.f32 %v465, %v449
  %v468 = vadd.f32 %v466, -0.0029546
  %v469 = vadd.f32 %v467, -0.0029546
  %v470 = vmul.f32 %v468, %v448
  %v471 = vmul.f32 %v469, %v449
  %v472 = vadd.f32 %v470, -0.016096033
  %v473 = vadd.f32 %v471, -0.016096033
  %v474 = vmul.f32 %v472, %v446
  %v475 = vmul.f32 %v473, %v447
  %v476 = vmul.f32 %v448, -1.45660715e-05
  %v477 = vmul.f32 %v449, -1.45660715e-05
  %v478 = vadd.f32 %v476, -0.00021337405
  %v479 = vadd.f32 %v477, -0.00021337405
  %v480 = vmul.f32 %v478, %v448
  %v481 = vmul.f32 %v479, %v449
  %v482 = vadd.f32 %v480, -0.001682827
  %v483 = vadd.f32 %v481, -0.001682827
  %v484 = vmul.f32 %v482, %v448
  %v485 = vmul.f32 %v483, %v449
  %v486 = vadd.f32 %v484, -0.0073733293
  %v487 = vadd.f32 %v485, -0.0073733293
  %v488 = vmul.f32 %v486, %v448
  %v489 = vmul.f32 %v487, %v449
  %v490 = vadd.f32 %v488, -0.014264739
  %v491 = vadd.f32 %v489, -0.014264739
  %v492 = vrcp.pop %v490
  %v493 = vmul.f32 %v474, %v492
  %v494 = vrcp.pop %v491
  %v495 = vmul.f32 %v475, %v494
  %v496 = vadd.f32 %v493, 1.0
  %v497 = vadd.f32 %v495, 1.0
  %v498 = vmul.f32 %v440, %v496
  %v499 = vmul.f32 %v441, %v497
  %500 = vst.msk [vmem:[%s7] sm:$0xff] %vm396, %v498
  %501 = vst.msk [vmem:[%s7 + $0x8] sm:$0xff] %vm396, %v499
  // Predicated region
  $region30: #{asr_forward.16} parent=0 // pred_check
    _
  $region31: #{asr_forward.16} parent=0 // pred_check_branch
    %503 = sbr.rel (0) target = $region33
  $region32: #{asr_forward.16} parent=0 // pred_region
    _
  $region33: #{asr_forward.16} parent=0 // pred_fallthru
    _
  // Predicated region
  $region34: #{asr_forward.16} parent=0 // pred_check
    _
  $region35: #{asr_forward.16} parent=0 // pred_check_branch
    %505 = sbr.rel (0) target = $region37
  $region36: #{asr_forward.16} parent=0 // pred_region
    _
  $region37: #{asr_forward.16} parent=0 // pred_fallthru
    _

// kernel: asr_forward.19
$region0: #{asr_forward.19}
  #allocation0 [shape = 'u32[]', space=smem, size = 0x4, offset = 0x4, fixed_abs, tag = 'smem constant byte address 0x4 - core index']
  #allocation1 [shape = 'u32[144,128]{1,0:T(1,128)}', space=vmem, size = 0x12000, scoped, tag = 'internal scratch']
  %s0 = inlined_call_operand.vmem [shape: f32[16,64], index: 0, kind: input, shape index: {}]
  %s1 = inlined_call_operand.vmem [shape: f32[1,64], index: 1, kind: input, shape index: {}]
  %s2 = inlined_call_operand.vmem [shape: f32[1,64], index: 2, kind: input, shape index: {}]
  %s3 = inlined_call_operand.vmem [shape: bf16[2,64,96], index: 3, kind: input, shape index: {}]
  %s4 = inlined_call_operand.vmem [shape: f32[2,1,96], index: 4, kind: input, shape index: {}]
  %s5 = inlined_call_operand.vmem [shape: f32[2,16,96], index: 5, kind: output, shape index: {}]
  %s6 = sld [smem:[#allocation0]]
  $region53: #{asr_forward.19} parent=0
    _
  %s8 = ssub.s32 1, %s6
  %s9 = scalar_select 0, %s8, %s6
  loop: start=0, step=1, limit=4
  $region2: #{asr_forward.19} parent=0 // loop_pre_header
    _
  $region3: #{asr_forward.19} parent=0 // loop_header
    %s11 = sphi 0, %s15
    %p12 = scmp.ge.s32.totalorder %s11, 4
    %s18 = sphi 0, %s30
    %s19 = sphi 0, %s26
    %s20 = sphi 0, %s18
    %s21 = sphi 0, %s19
    %s22 = sphi 0, %s20
    %s23 = sphi 0, %s21
    %s33 = sphi 0, %s35
    %s36 = sphi 0, %s33
    %s37 = sphi 0, %s36
    %s53 = sphi 0, %s37
    %s57 = sphi 0, %s57
    %s59 = sphi 0, %s57
    %s60 = sphi 0, %s59
    %s74 = sphi 0, %s60
    %s78 = sphi 0, %s78
    %s80 = sphi 0, %s78
    %s81 = sphi 0, %s80
    %s95 = sphi 0, %s81
    %s101 = sphi 0, %s103
    %s104 = sphi 0, %s101
    %s105 = sphi 0, %s104
    %s121 = sphi 0, %s105
    %s127 = sphi 0, %s129
    %s130 = sphi 0, %s127
    %s131 = sphi 0, %s130
    %s147 = sphi 0, %s131
    %s155 = sphi 0, %s157
    %s158 = sphi 0, %s155
    %s159 = sphi 0, %s158
    %s175 = sphi 0, %s159
  $region4: #{asr_forward.19} parent=0 // loop_header_branch
    %14 = sbr.rel (%p12) target = $region8
  $region5: #{asr_forward.19} parent=0 // loop_body
    %s16 = ssub.s32 %s11, 1
    %s17 = ssub.s32 %s11, 2
    %s24 = sadd.s32 1, %s19
    %p25 = scmp.ge.s32.totalorder %s24, 2
    %s26 = scalar_select %p25, 0, %s24
    %s27 = sadd.s32 1, %s18
    %s28 = scalar_select %p25, %s27, %s18
    %p29 = scmp.ge.s32.totalorder %s28, 1
    %s30 = scalar_select %p29, 0, %s28
    %s31 = ssub.s32 %s18, %s30
    %p32 = scmp.eq.s32.totalorder %s31, 0
    %s34 = sadd.s32 %s33, 1
    %s35 = scalar_select %p32, %s33, %s34
    %p38 = pneg %p32
    %p39 = scmp.eq.s32.totalorder %s11, 1
    %p40 = por %p38, %p39
    %p41 = scmp.ne.s32.totalorder %s33, %s36
    %p42 = scmp.eq.s32.totalorder %s11, 0
    %p43 = por %p41, %p42
    %p44 = scmp.ne.s32.totalorder %s33, %s36
    %p45 = scmp.eq.s32.totalorder %s16, 1
    %p46 = por %p44, %p45
    %p47 = scmp.ne.s32.totalorder %s36, %s37
    %p48 = scmp.eq.s32.totalorder %s16, 0
    %p49 = por %p47, %p48
    %p50 = scmp.ne.s32.totalorder %s36, %s37
    %p51 = scmp.eq.s32.totalorder %s17, 1
    %p52 = por %p50, %p51
    %p54 = scmp.ne.s32.totalorder %s37, %s53
    %p55 = scmp.eq.s32.totalorder %s17, 0
    %p56 = por %p54, %p55
    %s58 = sadd.s32 %s57, 1
    %p61 = scmp.eq.s32.totalorder %s11, 1
    %p62 = scmp.ne.s32.totalorder %s57, %s59
    %p63 = scmp.eq.s32.totalorder %s11, 0
    %p64 = por %p62, %p63
    %p65 = scmp.ne.s32.totalorder %s57, %s59
    %p66 = scmp.eq.s32.totalorder %s16, 1
    %p67 = por %p65, %p66
    %p68 = scmp.ne.s32.totalorder %s59, %s60
    %p69 = scmp.eq.s32.totalorder %s16, 0
    %p70 = por %p68, %p69
    %p71 = scmp.ne.s32.totalorder %s59, %s60
    %p72 = scmp.eq.s32.totalorder %s17, 1
    %p73 = por %p71, %p72
    %p75 = scmp.ne.s32.totalorder %s60, %s74
    %p76 = scmp.eq.s32.totalorder %s17, 0
    %p77 = por %p75, %p76
    %s79 = sadd.s32 %s78, 1
    %p82 = scmp.eq.s32.totalorder %s11, 1
    %p83 = scmp.ne.s32.totalorder %s78, %s80
    %p84 = scmp.eq.s32.totalorder %s11, 0
    %p85 = por %p83, %p84
    %p86 = scmp.ne.s32.totalorder %s78, %s80
    %p87 = scmp.eq.s32.totalorder %s16, 1
    %p88 = por %p86, %p87
    %p89 = scmp.ne.s32.totalorder %s80, %s81
    %p90 = scmp.eq.s32.totalorder %s16, 0
    %p91 = por %p89, %p90
    %p92 = scmp.ne.s32.totalorder %s80, %s81
    %p93 = scmp.eq.s32.totalorder %s17, 1
    %p94 = por %p92, %p93
    %p96 = scmp.ne.s32.totalorder %s81, %s95
    %p97 = scmp.eq.s32.totalorder %s17, 0
    %p98 = por %p96, %p97
    %s99 = ssub.s32 %s19, %s26
    %p100 = scmp.eq.s32.totalorder %s99, 0
    %s102 = sadd.s32 %s101, 1
    %s103 = scalar_select %p100, %s101, %s102
    %p106 = pneg %p100
    %p107 = scmp.eq.s32.totalorder %s11, 1
    %p108 = por %p106, %p107
    %p109 = scmp.ne.s32.totalorder %s101, %s104
    %p110 = scmp.eq.s32.totalorder %s11, 0
    %p111 = por %p109, %p110
    %p112 = scmp.ne.s32.totalorder %s101, %s104
    %p113 = scmp.eq.s32.totalorder %s16, 1
    %p114 = por %p112, %p113
    %p115 = scmp.ne.s32.totalorder %s104, %s105
    %p116 = scmp.eq.s32.totalorder %s16, 0
    %p117 = por %p115, %p116
    %p118 = scmp.ne.s32.totalorder %s104, %s105
    %p119 = scmp.eq.s32.totalorder %s17, 1
    %p120 = por %p118, %p119
    %p122 = scmp.ne.s32.totalorder %s105, %s121
    %p123 = scmp.eq.s32.totalorder %s17, 0
    %p124 = por %p122, %p123
    %s125 = ssub.s32 %s19, %s26
    %p126 = scmp.eq.s32.totalorder %s125, 0
    %s128 = sadd.s32 %s127, 1
    %s129 = scalar_select %p126, %s127, %s128
    %p132 = pneg %p126
    %p133 = scmp.eq.s32.totalorder %s11, 1
    %p134 = por %p132, %p133
    %p135 = scmp.ne.s32.totalorder %s127, %s130
    %p136 = scmp.eq.s32.totalorder %s11, 0
    %p137 = por %p135, %p136
    %p138 = scmp.ne.s32.totalorder %s127, %s130
    %p139 = scmp.eq.s32.totalorder %s16, 1
    %p140 = por %p138, %p139
    %p141 = scmp.ne.s32.totalorder %s130, %s131
    %p142 = scmp.eq.s32.totalorder %s16, 0
    %p143 = por %p141, %p142
    %p144 = scmp.ne.s32.totalorder %s130, %s131
    %p145 = scmp.eq.s32.totalorder %s17, 1
    %p146 = por %p144, %p145
    %p148 = scmp.ne.s32.totalorder %s131, %s147
    %p149 = scmp.eq.s32.totalorder %s17, 0
    %p150 = por %p148, %p149
    %s151 = ssub.s32 %s19, %s26
    %s152 = ssub.s32 %s18, %s30
    %s153 = sor.u32 %s151, %s152
    %p154 = scmp.eq.s32.totalorder %s153, 0
    %s156 = sadd.s32 %s155, 1
    %s157 = scalar_select %p154, %s155, %s156
    %p160 = pneg %p154
    %p161 = scmp.eq.s32.totalorder %s11, 1
    %p162 = por %p160, %p161
    %p163 = scmp.ne.s32.totalorder %s155, %s158
    %p164 = scmp.eq.s32.totalorder %s11, 0
    %p165 = por %p163, %p164
    %p166 = scmp.ne.s32.totalorder %s155, %s158
    %p167 = scmp.eq.s32.totalorder %s16, 1
    %p168 = por %p166, %p167
    %p169 = scmp.ne.s32.totalorder %s158, %s159
    %p170 = scmp.eq.s32.totalorder %s16, 0
    %p171 = por %p169, %p170
    %p172 = scmp.ne.s32.totalorder %s158, %s159
    %p173 = scmp.eq.s32.totalorder %s17, 1
    %p174 = por %p172, %p173
    %p176 = scmp.ne.s32.totalorder %s159, %s175
    %p177 = scmp.eq.s32.totalorder %s17, 0
    %p178 = por %p176, %p177
    %p179 = scmp.le.s32.totalorder 1, %s11
    %p180 = scmp.lt.s32.totalorder %s11, 3
    %p181 = pnand %p179, %p180
    %p182 = pneg %p181
    // Predicated region
    $region9: #{asr_forward.19} parent=5 // pred_check
      _
    $region10: #{asr_forward.19} parent=5 // pred_check_branch
      %184 = sbr.rel (%p181) target = $region12
    $region11: #{asr_forward.19} parent=5 // pred_region
      %s185 = ssub.s32 %s11, 1
      // Predicated region
      $region13: #{asr_forward.19} parent=11 // pred_check
        %p186 = pneg %p49
      $region14: #{asr_forward.19} parent=11 // pred_check_branch
        %188 = sbr.rel (%p186) target = $region16
      $region15: #{asr_forward.19} parent=11 // pred_region
        %s189 = smul.u32 2, %s20
        %p190 = scmp.lt.s32.totalorder %s189, 1
        %s191 = scalar_select %p190, %s189, 1
        %s192 = smul.addr %s191, 8
        %s193 = scalar_lea.vmem %s0, %s192
        %s194 = smul.u32 2, %s20
      $region16: #{asr_forward.19} parent=11 // pred_fallthru
        _
      // Predicated region
      $region17: #{asr_forward.19} parent=11 // pred_check
        %p195 = pneg %p70
      $region18: #{asr_forward.19} parent=11 // pred_check_branch
        %197 = sbr.rel (%p195) target = $region20
      $region19: #{asr_forward.19} parent=11 // pred_region
        _
      $region20: #{asr_forward.19} parent=11 // pred_fallthru
        _
      // Predicated region
      $region21: #{asr_forward.19} parent=11 // pred_check
        %p198 = pneg %p91
      $region22: #{asr_forward.19} parent=11 // pred_check_branch
        %200 = sbr.rel (%p198) target = $region24
      $region23: #{asr_forward.19} parent=11 // pred_region
        _
      $region24: #{asr_forward.19} parent=11 // pred_fallthru
        _
    $region12: #{asr_forward.19} parent=5 // pred_fallthru
      _
    %p201 = scmp.lt.s32.totalorder %s11, 2
    // Predicated region
    $region25: #{asr_forward.19} parent=5 // pred_check
      %p202 = pneg %p201
    $region26: #{asr_forward.19} parent=5 // pred_check_branch
      %204 = sbr.rel (%p202) target = $region28
    $region27: #{asr_forward.19} parent=5 // pred_region
      // Predicated region
      $region29: #{asr_forward.19} parent=27 // pred_check
        %p205 = pneg %p111
      $region30: #{asr_forward.19} parent=27 // pred_check_branch
        %207 = sbr.rel (%p205) target = $region32
      $region31: #{asr_forward.19} parent=27 // pred_region
        %p208 = scmp.lt.s32.totalorder %s19, 1
        %s209 = scalar_select %p208, %s19, 1
        %s210 = smul.addr %s209, 8
        %s211 = smul.addr %s210, 4
        %s212 = scalar_lea.vmem %s3, %s211
      $region32: #{asr_forward.19} parent=27 // pred_fallthru
        _
      // Predicated region
      $region33: #{asr_forward.19} parent=27 // pred_check
        %p213 = pneg %p137
      $region34: #{asr_forward.19} parent=27 // pred_check_branch
        %215 = sbr.rel (%p213) target = $region36
      $region35: #{asr_forward.19} parent=27 // pred_region
        %p216 = scmp.lt.s32.totalorder %s19, 1
        %s217 = scalar_select %p216, %s19, 1
        %s218 = scalar_lea.vmem %s4, %s217
      $region36: #{asr_forward.19} parent=27 // pred_fallthru
        _
    $region28: #{asr_forward.19} parent=5 // pred_fallthru
      _
    %p219 = scmp.le.s32.totalorder 1, %s11
    %p220 = scmp.lt.s32.totalorder %s11, 3
    %p221 = pnand %p219, %p220
    %p222 = pneg %p221
    // Predicated region
    $region37: #{asr_forward.19} parent=5 // pred_check
      _
    $region38: #{asr_forward.19} parent=5 // pred_check_branch
      %224 = sbr.rel (%p221) target = $region40
    $region39: #{asr_forward.19} parent=5 // pred_region
      %s225 = ssub.s32 %s11, 1
      %s226 = smul.u32 2, %s20
      %p227 = scmp.lt.s32.totalorder %s226, 1
      %s228 = scalar_select %p227, %s226, 1
      %s229 = smul.addr %s228, 8
      %s230 = scalar_lea.vmem %s0, %s229
      %p231 = pneg %p49
      %p232 = pneg %p46
      %p233 = pneg %p70
      %p234 = pneg %p67
      %p235 = pneg %p91
      %p236 = pneg %p88
      %p237 = scmp.lt.s32.totalorder %s21, 1
      %s238 = scalar_select %p237, %s21, 1
      %s239 = smul.addr %s238, 8
      %s240 = smul.addr %s239, 4
      %s241 = scalar_lea.vmem %s3, %s240
      %p242 = pneg %p117
      %p243 = pneg %p114
      %p244 = scmp.lt.s32.totalorder %s21, 1
      %s245 = scalar_select %p244, %s21, 1
      %s246 = scalar_lea.vmem %s4, %s245
      %p247 = pneg %p143
      %p248 = pneg %p140
      %p249 = pneg %p171
      %p250 = pneg %p168
      %s251 = smul.u32 2, %s20
      %p252 = scmp.lt.s32.totalorder %s21, 1
      %s253 = scalar_select %p252, %s21, 1
      %p254 = scmp.lt.s32.totalorder %s251, 1
      %s255 = scalar_select %p254, %s251, 1
      %s256 = smul.addr %s253, 2
      %s257 = sadd.s32 %s255, %s256
      %s258 = smul.addr %s257, 8
      %s259 = scalar_lea.vmem %s5, %s258
      %s260 = smul.u32 2, %s20
      %p261 = scmp.lt.s32.totalorder %s260, 1
      %s262 = scalar_select %p261, %s260, 1
      %s263 = smul.addr %s262, 8
      %s264 = scalar_lea.vmem %s0, %s263
      %s265 = smul.u32 2, %s20
      %p266 = scmp.lt.s32.totalorder %s21, 1
      %s267 = scalar_select %p266, %s21, 1
      %s268 = smul.addr %s267, 8
      %s269 = smul.addr %s268, 4
      %s270 = scalar_lea.vmem %s3, %s269
      %p271 = scmp.lt.s32.totalorder %s21, 1
      %s272 = scalar_select %p271, %s21, 1
      %s273 = scalar_lea.vmem %s4, %s272
      %s274 = smul.u32 2, %s20
      %p275 = scmp.lt.s32.totalorder %s21, 1
      %s276 = scalar_select %p275, %s21, 1
      %p277 = scmp.lt.s32.totalorder %s274, 1
      %s278 = scalar_select %p277, %s274, 1
      %s279 = smul.addr %s276, 2
      %s280 = sadd.s32 %s278, %s279
      %s281 = smul.addr %s280, 8
      %s282 = scalar_lea.vmem %s5, %s281
      %s283 = smul.u32 2, %s20
      %v285 = vld [vmem:[%s264] sm:$0xff]
      %v286 = vld [vmem:[%s264 + $0x8] sm:$0xff]
      %v287 = vld [vmem:[%s1] sm:$0x1]
      %v288 = vld [vmem:[%s2] sm:$0x1]
      %vm289 = vcmask 523264
      %v290 = vsel %vm289, %v285, 0.0
      %291 = vadd.xlane.f32.xlu0 %v290
      %v292 = vpop.xlane.xlu0 %291
      %v293 = vsel %vm289, %v286, 0.0
      %294 = vadd.xlane.f32.xlu0 %v293
      %v295 = vpop.xlane.xlu0 %294
      %v296 = vrcp.pop 64.0
      %v297 = vmul.f32 %v292, %v296
      %v298 = vmul.f32 %v295, %v296
      %v299 = vsub.f32 %v285, %v297
      %v300 = vsub.f32 %v286, %v298
      %v301 = vmul.f32 %v299, %v299
      %v302 = vmul.f32 %v300, %v300
      %v303 = vsel %vm289, %v301, 0.0
      %304 = vadd.xlane.f32.xlu0 %v303
      %v305 = vpop.xlane.xlu0 %304
      %v306 = vsel %vm289, %v302, 0.0
      %307 = vadd.xlane.f32.xlu0 %v306
      %v308 = vpop.xlane.xlu0 %307
      %v309 = vmul.f32 %v305, %v296
      %v310 = vmul.f32 %v308, %v296
      %v311 = vadd.f32 %v309, 1e-05
      %v312 = vadd.f32 %v310, 1e-05
      %v313 = vrsqrt.pop %v311
      %v314 = vrsqrt.pop %v312
      %v315 = vmul.f32 %v299, %v313
      %v316 = vmul.f32 %v300, %v314
      %v318 = vlaneseq
      %v319 = vshrl.u32 %v318, 7
      %v320 = vsub.s32 0, %v319
      %v321 = vrot.slane %v287, %v320
      %v323 = vmul.f32 %v315, %v321
      %v324 = vmul.f32 %v316, %v321
      %v326 = vlaneseq
      %v327 = vshrl.u32 %v326, 7
      %v328 = vsub.s32 0, %v327
      %v329 = vrot.slane %v288, %v328
      %v331 = vadd.f32 %v323, %v329
      %v332 = vadd.f32 %v324, %v329
      %v333 = vmul.f32 %v331, 0.5
      %v334 = vmul.f32 %v332, 0.5
      %v335 = vmul.f32 %v331, 0.70710677
      %v336 = vmul.f32 %v332, 0.70710677
      %v337 = vmax.f32 %v335, -4.0
      %v338 = vmax.f32 %v336, -4.0
      %v339 = vmin.f32 %v337, 4.0
      %v340 = vmin.f32 %v338, 4.0
      %v341 = vmul.f32 %v339, %v339
      %v342 = vmul.f32 %v340, %v340
      %v343 = vmul.f32 %v341, -2.7261424e-10
      %v344 = vmul.f32 %v342, -2.7261424e-10
      %v345 = vadd.f32 %v343, 2.7706815e-08
      %v346 = vadd.f32 %v344, 2.7706815e-08
      %v347 = vmul.f32 %v345, %v341
      %v348 = vmul.f32 %v346, %v342
      %v349 = vadd.f32 %v347, -2.101024e-06
      %v350 = vadd.f32 %v348, -2.101024e-06
      %v351 = vmul.f32 %v349, %v341
      %v352 = vmul.f32 %v350, %v342
      %v353 = vadd.f32 %v351, -5.6925062e-05
      %v354 = vadd.f32 %v352, -5.6925062e-05
      %v355 = vmul.f32 %v353, %v341
      %v356 = vmul.f32 %v354, %v342
      %v357 = vadd.f32 %v355, -0.00073499064
      %v358 = vadd.f32 %v356, -0.00073499064
      %v359 = vmul.f32 %v357, %v341
      %v360 = vmul.f32 %v358, %v342
      %v361 = vadd.f32 %v359, -0.0029546
      %v362 = vadd.f32 %v360, -0.0029546
      %v363 = vmul.f32 %v361, %v341
      %v364 = vmul.f32 %v362, %v342
      %v365 = vadd.f32 %v363, -0.016096033
      %v366 = vadd.f32 %v364, -0.016096033
      %v367 = vmul.f32 %v365, %v339
      %v368 = vmul.f32 %v366, %v340
      %v369 = vmul.f32 %v341, -1.45660715e-05
      %v370 = vmul.f32 %v342, -1.45660715e-05
      %v371 = vadd.f32 %v369, -0.00021337405
      %v372 = vadd.f32 %v370, -0.00021337405
      %v373 = vmul.f32 %v371, %v341
      %v374 = vmul.f32 %v372, %v342
      %v375 = vadd.f32 %v373, -0.001682827
      %v376 = vadd.f32 %v374, -0.001682827
      %v377 = vmul.f32 %v375, %v341
      %v378 = vmul.f32 %v376, %v342
      %v379 = vadd.f32 %v377, -0.0073733293
      %v380 = vadd.f32 %v378, -0.0073733293
      %v381 = vmul.f32 %v379, %v341
      %v382 = vmul.f32 %v380, %v342
      %v383 = vadd.f32 %v381, -0.014264739
      %v384 = vadd.f32 %v382, -0.014264739
      %v385 = vrcp.pop %v383
      %v386 = vmul.f32 %v367, %v385
      %v387 = vrcp.pop %v384
      %v388 = vmul.f32 %v368, %v387
      %v389 = vadd.f32 %v386, 1.0
      %v390 = vadd.f32 %v388, 1.0
      %v391 = vmul.f32 %v333, %v389
      %v392 = vmul.f32 %v334, %v390
      %v393 = vpack.c.bf16 %v392, %v391
      %v394 = vld [vmem:[%s270] sm:$0xf]
      %v395 = vld [vmem:[%s270 + $0x4] sm:$0xf]
      %v396 = vld [vmem:[%s270 + $0x8] sm:$0xf]
      %v397 = vld [vmem:[%s270 + $0xc] sm:$0xf]
      %v398 = vld [vmem:[%s270 + $0x10] sm:$0xf]
      %v399 = vld [vmem:[%s270 + $0x14] sm:$0xf]
      %v400 = vld [vmem:[%s270 + $0x18] sm:$0xf]
      %v401 = vld [vmem:[%s270 + $0x1c] sm:$0xf]
      %v402 = vld [vmem:[%s273] sm:$0x1]
      %v404 = vlaneseq
      %v405 = vshrl.u32 %v404, 7
      %v406 = vsub.s32 0, %v405
      %v407 = vrot.slane %v402, %v406
      %v417 = vunpack.c.l.b16 %v394
      %v418 = vunpack.c.l.b16 %v395
      %v419 = vunpack.c.l.b16 %v396
      %v420 = vunpack.c.l.b16 %v397
      %v421 = vunpack.c.l.b16 %v398
      %v422 = vunpack.c.l.b16 %v399
      %v423 = vunpack.c.l.b16 %v400
      %v424 = vunpack.c.l.b16 %v401
      %v425 = vpack.c.b16 %v418, %v417
      %v426 = vpack.c.b16 %v420, %v419
      %v427 = vpack.c.b16 %v422, %v421
      %v428 = vpack.c.b16 %v424, %v423
      %v434 = vsel %vm289, %v393, 0
      %436 = vmatprep.subr.bf16.mxu0 0
      %437 = vmatpush1.bf16.msra.mxu0 0
      %438 = vmatprep.subr.bf16.mxu0 0
      %439 = vmatpush1.bf16.msra.mxu0 0
      %440 = vmatprep.subr.bf16.mxu0 0
      %441 = vmatpush1.bf16.msra.mxu0 0
      %442 = vmatprep.subr.bf16.mxu0 0
      %443 = vmatpush1.bf16.msra.mxu0 0
      %444 = vmatprep.subr.bf16.mxu0 0
      %445 = vmatpush1.bf16.msra.mxu0 %v428
      %446 = vmatprep.subr.bf16.mxu0 0
      %447 = vmatpush1.bf16.msra.mxu0 %v427
      %448 = vmatprep.subr.bf16.mxu0 0
      %449 = vmatpush1.bf16.msra.mxu0 %v426
      %450 = vmatprep.subr.bf16.mxu0 0
      %451 = vmatpush1.bf16.msra.mxu0 %v425
      %452 = vmatprep.subr.bf16.mxu0 0
      %453 = vmatpush2.bf16.msra.mxu0 0
      %454 = vmatprep.subr.bf16.mxu0 0
      %455 = vmatpush2.bf16.msra.mxu0 0
      %456 = vmatprep.subr.bf16.mxu0 0
      %457 = vmatpush2.bf16.msra.mxu0 0
      %458 = vmatprep.subr.bf16.mxu0 0
      %459 = vmatpush2.bf16.msra.mxu0 0
      %460 = vmatprep.subr.bf16.mxu0 0
      %461 = vmatpush2.bf16.msra.mxu0 0
      %462 = vmatprep.subr.bf16.mxu0 0
      %463 = vmatpush2.bf16.msra.mxu0 0
      %464 = vmatprep.subr.bf16.mxu0 0
      %465 = vmatpush2.bf16.msra.mxu0 0
      %466 = vmatprep.subr.bf16.mxu0 0
      %467 = vmatpush2.bf16.msra.mxu0 0
      %468 = vmatprep.mubr.bf16.mxu0 0
      %469 = vmatmul.mubr.bf16.gmra.mxu0 %v434
      %v470 = vpop.f32.mrf.mxu0
      %v471 = vadd.f32 %v407, %v470
      %v472 = vpop.f32.mrf.mxu0
      %v473 = vpop.f32.mrf.mxu0
      %v474 = vadd.f32 %v407, %v473
      %v475 = vpop.f32.mrf.mxu0
      %476 = vdwg.mxu0
      %vm477 = vcmask 785408
      %478 = vst.msk [vmem:[%s282] sm:$0xff] %vm477, %v471
      %479 = vst.msk [vmem:[%s282 + $0x8] sm:$0xff] %vm477, %v474
      %s480 = smul.u32 2, %s20
      %p481 = scmp.lt.s32.totalorder %s21, 1
      %s482 = scalar_select %p481, %s21, 1
      %p483 = scmp.lt.s32.totalorder %s480, 1
      %s484 = scalar_select %p483, %s480, 1
      %s485 = smul.addr %s482, 2
      %s486 = sadd.s32 %s484, %s485
      %s487 = smul.addr %s486, 8
      %s488 = scalar_lea.vmem %s5, %s487
      // Predicated region
      $region41: #{asr_forward.19} parent=39 // pred_check
        %p489 = pneg %p168
      $region42: #{asr_forward.19} parent=39 // pred_check_branch
        %491 = sbr.rel (%p489) target = $region44
      $region43: #{asr_forward.19} parent=39 // pred_region
        %s492 = smul.u32 2, %s20
      $region44: #{asr_forward.19} parent=39 // pred_fallthru
        _
    $region40: #{asr_forward.19} parent=5 // pred_fallthru
      _
    %p493 = scmp.le.s32.totalorder 2, %s11
    // Predicated region
    $region45: #{asr_forward.19} parent=5 // pred_check
      %p494 = pneg %p493
    $region46: #{asr_forward.19} parent=5 // pred_check_branch
      %496 = sbr.rel (%p494) target = $region48
    $region47: #{asr_forward.19} parent=5 // pred_region
      %s497 = ssub.s32 %s11, 2
      // Predicated region
      $region49: #{asr_forward.19} parent=47 // pred_check
        %p498 = pneg %p174
      $region50: #{asr_forward.19} parent=47 // pred_check_branch
        %500 = sbr.rel (%p498) target = $region52
      $region51: #{asr_forward.19} parent=47 // pred_region
        %s501 = smul.u32 2, %s22
        %p502 = scmp.lt.s32.totalorder %s23, 1
        %s503 = scalar_select %p502, %s23, 1
        %p504 = scmp.lt.s32.totalorder %s501, 1
        %s505 = scalar_select %p504, %s501, 1
        %s506 = smul.addr %s503, 2
        %s507 = sadd.s32 %s505, %s506
        %s508 = smul.addr %s507, 8
        %s509 = scalar_lea.vmem %s5, %s508
      $region52: #{asr_forward.19} parent=47 // pred_fallthru
        _
    $region48: #{asr_forward.19} parent=5 // pred_fallthru
      _
  $region6: #{asr_forward.19} parent=0 // loop_footer
    %s15 = sadd.s32 1, %s11
  $region7: #{asr_forward.19} parent=0 // loop_footer_branch
    %10 = sbr.rel target = $region3
  $region8: #{asr_forward.19} parent=0 // loop_exit
    _

// kernel: asr_forward.21
$region0: #{asr_forward.21}
  #allocation0 [shape = 'u32[]', space=smem, size = 0x4, offset = 0x4, fixed_abs, tag = 'smem constant byte address 0x4 - core index']
  #allocation1 [shape = 'u32[144,128]{1,0:T(1,128)}', space=vmem, size = 0x12000, scoped, tag = 'internal scratch']
  %s0 = inlined_call_operand.vmem [shape: f32[16,64], index: 0, kind: input, shape index: {}]
  %s1 = inlined_call_operand.vmem [shape: bf16[1,64,29], index: 1, kind: input, shape index: {}]
  %s2 = inlined_call_operand.vmem [shape: f32[1,1,29], index: 2, kind: input, shape index: {}]
  %s3 = inlined_call_operand.vmem [shape: f32[1,29], index: 3, kind: input, shape index: {}]
  %s4 = inlined_call_operand.vmem [shape: f32[1,29], index: 4, kind: input, shape index: {}]
  %s5 = inlined_call_operand.vmem [shape: f32[1,16,29], index: 5, kind: output, shape index: {}]
  %s6 = sld [smem:[#allocation0]]
  $region30: #{asr_forward.21} parent=0
    _
  %s8 = ssub.s32 1, %s6
  %s9 = scalar_select 0, %s8, %s6
  // Predicated region
  $region2: #{asr_forward.21} parent=0 // pred_check
    _
  $region3: #{asr_forward.21} parent=0 // pred_check_branch
    %11 = sbr.rel (0) target = $region5
  $region4: #{asr_forward.21} parent=0 // pred_region
    _
  $region5: #{asr_forward.21} parent=0 // pred_fallthru
    _
  // Predicated region
  $region6: #{asr_forward.21} parent=0 // pred_check
    _
  $region7: #{asr_forward.21} parent=0 // pred_check_branch
    %13 = sbr.rel (0) target = $region9
  $region8: #{asr_forward.21} parent=0 // pred_region
    _
  $region9: #{asr_forward.21} parent=0 // pred_fallthru
    _
  // Predicated region
  $region10: #{asr_forward.21} parent=0 // pred_check
    _
  $region11: #{asr_forward.21} parent=0 // pred_check_branch
    %15 = sbr.rel (0) target = $region13
  $region12: #{asr_forward.21} parent=0 // pred_region
    _
  $region13: #{asr_forward.21} parent=0 // pred_fallthru
    _
  // Predicated region
  $region14: #{asr_forward.21} parent=0 // pred_check
    _
  $region15: #{asr_forward.21} parent=0 // pred_check_branch
    %17 = sbr.rel (0) target = $region17
  $region16: #{asr_forward.21} parent=0 // pred_region
    _
  $region17: #{asr_forward.21} parent=0 // pred_fallthru
    _
  // Predicated region
  $region18: #{asr_forward.21} parent=0 // pred_check
    _
  $region19: #{asr_forward.21} parent=0 // pred_check_branch
    %19 = sbr.rel (0) target = $region21
  $region20: #{asr_forward.21} parent=0 // pred_region
    _
  $region21: #{asr_forward.21} parent=0 // pred_fallthru
    _
  %v21 = vld [vmem:[%s0] sm:$0xff]
  %v22 = vld [vmem:[%s0 + $0x8] sm:$0xff]
  %v23 = vpack.c.bf16 %v22, %v21
  %v24 = vld [vmem:[%s1] sm:$0xf]
  %v25 = vld [vmem:[%s1 + $0x4] sm:$0xf]
  %v26 = vld [vmem:[%s1 + $0x8] sm:$0xf]
  %v27 = vld [vmem:[%s1 + $0xc] sm:$0xf]
  %v28 = vld [vmem:[%s1 + $0x10] sm:$0xf]
  %v29 = vld [vmem:[%s1 + $0x14] sm:$0xf]
  %v30 = vld [vmem:[%s1 + $0x18] sm:$0xf]
  %v31 = vld [vmem:[%s1 + $0x1c] sm:$0xf]
  %v32 = vld [vmem:[%s2] sm:$0x1]
  %v34 = vlaneseq
  %v35 = vshrl.u32 %v34, 7
  %v36 = vsub.s32 0, %v35
  %v37 = vrot.slane %v32, %v36
  %v47 = vunpack.c.l.b16 %v24
  %v48 = vunpack.c.l.b16 %v25
  %v49 = vunpack.c.l.b16 %v26
  %v50 = vunpack.c.l.b16 %v27
  %v51 = vunpack.c.l.b16 %v28
  %v52 = vunpack.c.l.b16 %v29
  %v53 = vunpack.c.l.b16 %v30
  %v54 = vunpack.c.l.b16 %v31
  %v55 = vpack.c.b16 %v48, %v47
  %v56 = vpack.c.b16 %v50, %v49
  %v57 = vpack.c.b16 %v52, %v51
  %v58 = vpack.c.b16 %v54, %v53
  %vm63 = vcmask 523264
  %v65 = vsel %vm63, %v23, 0
  %67 = vmatprep.subr.bf16.mxu0 0
  %68 = vmatpush1.bf16.msra.mxu0 0
  %69 = vmatprep.subr.bf16.mxu0 0
  %70 = vmatpush1.bf16.msra.mxu0 0
  %71 = vmatprep.subr.bf16.mxu0 0
  %72 = vmatpush1.bf16.msra.mxu0 0
  %73 = vmatprep.subr.bf16.mxu0 0
  %74 = vmatpush1.bf16.msra.mxu0 0
  %75 = vmatprep.subr.bf16.mxu0 0
  %76 = vmatpush1.bf16.msra.mxu0 %v58
  %77 = vmatprep.subr.bf16.mxu0 0
  %78 = vmatpush1.bf16.msra.mxu0 %v57
  %79 = vmatprep.subr.bf16.mxu0 0
  %80 = vmatpush1.bf16.msra.mxu0 %v56
  %81 = vmatprep.subr.bf16.mxu0 0
  %82 = vmatpush1.bf16.msra.mxu0 %v55
  %83 = vmatprep.subr.bf16.mxu0 0
  %84 = vmatpush2.bf16.msra.mxu0 0
  %85 = vmatprep.subr.bf16.mxu0 0
  %86 = vmatpush2.bf16.msra.mxu0 0
  %87 = vmatprep.subr.bf16.mxu0 0
  %88 = vmatpush2.bf16.msra.mxu0 0
  %89 = vmatprep.subr.bf16.mxu0 0
  %90 = vmatpush2.bf16.msra.mxu0 0
  %91 = vmatprep.subr.bf16.mxu0 0
  %92 = vmatpush2.bf16.msra.mxu0 0
  %93 = vmatprep.subr.bf16.mxu0 0
  %94 = vmatpush2.bf16.msra.mxu0 0
  %95 = vmatprep.subr.bf16.mxu0 0
  %96 = vmatpush2.bf16.msra.mxu0 0
  %97 = vmatprep.subr.bf16.mxu0 0
  %98 = vmatpush2.bf16.msra.mxu0 0
  %99 = vmatprep.mubr.bf16.mxu0 0
  %100 = vmatmul.mubr.bf16.gmra.mxu0 %v65
  %v101 = vpop.f32.mrf.mxu0
  %v102 = vadd.f32 %v37, %v101
  %v103 = vpop.f32.mrf.mxu0
  %v104 = vpop.f32.mrf.mxu0
  %v105 = vadd.f32 %v37, %v104
  %v106 = vpop.f32.mrf.mxu0
  %107 = vdwg.mxu0
  %v108 = vld [vmem:[%s3] sm:$0x1]
  %v109 = vld [vmem:[%s4] sm:$0x1]
  %vm110 = vcmask 236544
  %v111 = vsel %vm110, %v102, 0.0
  %112 = vadd.xlane.f32.xlu0 %v111
  %v113 = vpop.xlane.xlu0 %112
  %v114 = vsel %vm110, %v105, 0.0
  %115 = vadd.xlane.f32.xlu0 %v114
  %v116 = vpop.xlane.xlu0 %115
  %v117 = vrcp.pop 29.0
  %v118 = vmul.f32 %v113, %v117
  %v119 = vmul.f32 %v116, %v117
  %v120 = vsub.f32 %v102, %v118
  %v121 = vsub.f32 %v105, %v119
  %v122 = vmul.f32 %v120, %v120
  %v123 = vmul.f32 %v121, %v121
  %v124 = vsel %vm110, %v122, 0.0
  %125 = vadd.xlane.f32.xlu0 %v124
  %v126 = vpop.xlane.xlu0 %125
  %v127 = vsel %vm110, %v123, 0.0
  %128 = vadd.xlane.f32.xlu0 %v127
  %v129 = vpop.xlane.xlu0 %128
  %v130 = vmul.f32 %v126, %v117
  %v131 = vmul.f32 %v129, %v117
  %v132 = vadd.f32 %v130, 1e-05
  %v133 = vadd.f32 %v131, 1e-05
  %v134 = vrsqrt.pop %v132
  %v135 = vrsqrt.pop %v133
  %v136 = vmul.f32 %v120, %v134
  %v137 = vmul.f32 %v121, %v135
  %v139 = vlaneseq
  %v140 = vshrl.u32 %v139, 7
  %v141 = vsub.s32 0, %v140
  %v142 = vrot.slane %v108, %v141
  %v144 = vmul.f32 %v136, %v142
  %v145 = vmul.f32 %v137, %v142
  %v147 = vlaneseq
  %v148 = vshrl.u32 %v147, 7
  %v149 = vsub.s32 0, %v148
  %v150 = vrot.slane %v109, %v149
  %v152 = vadd.f32 %v144, %v150
  %v153 = vadd.f32 %v145, %v150
  %v154 = vmul.f32 %v152, 0.5
  %v155 = vmul.f32 %v153, 0.5
  %v156 = vmul.f32 %v152, 0.70710677
  %v157 = vmul.f32 %v153, 0.70710677
  %v158 = vmax.f32 %v156, -4.0
  %v159 = vmax.f32 %v157, -4.0
  %v160 = vmin.f32 %v158, 4.0
  %v161 = vmin.f32 %v159, 4.0
  %v162 = vmul.f32 %v160, %v160
  %v163 = vmul.f32 %v161, %v161
  %v164 = vmul.f32 %v162, -2.7261424e-10
  %v165 = vmul.f32 %v163, -2.7261424e-10
  %v166 = vadd.f32 %v164, 2.7706815e-08
  %v167 = vadd.f32 %v165, 2.7706815e-08
  %v168 = vmul.f32 %v166, %v162
  %v169 = vmul.f32 %v167, %v163
  %v170 = vadd.f32 %v168, -2.101024e-06
  %v171 = vadd.f32 %v169, -2.101024e-06
  %v172 = vmul.f32 %v170, %v162
  %v173 = vmul.f32 %v171, %v163
  %v174 = vadd.f32 %v172, -5.6925062e-05
  %v175 = vadd.f32 %v173, -5.6925062e-05
  %v176 = vmul.f32 %v174, %v162
  %v177 = vmul.f32 %v175, %v163
  %v178 = vadd.f32 %v176, -0.00073499064
  %v179 = vadd.f32 %v177, -0.00073499064
  %v180 = vmul.f32 %v178, %v162
  %v181 = vmul.f32 %v179, %v163
  %v182 = vadd.f32 %v180, -0.0029546
  %v183 = vadd.f32 %v181, -0.0029546
  %v184 = vmul.f32 %v182, %v162
  %v185 = vmul.f32 %v183, %v163
  %v186 = vadd.f32 %v184, -0.016096033
  %v187 = vadd.f32 %v185, -0.016096033
  %v188 = vmul.f32 %v186, %v160
  %v189 = vmul.f32 %v187, %v161
  %v190 = vmul.f32 %v162, -1.45660715e-05
  %v191 = vmul.f32 %v163, -1.45660715e-05
  %v192 = vadd.f32 %v190, -0.00021337405
  %v193 = vadd.f32 %v191, -0.00021337405
  %v194 = vmul.f32 %v192, %v162
  %v195 = vmul.f32 %v193, %v163
  %v196 = vadd.f32 %v194, -0.001682827
  %v197 = vadd.f32 %v195, -0.001682827
  %v198 = vmul.f32 %v196, %v162
  %v199 = vmul.f32 %v197, %v163
  %v200 = vadd.f32 %v198, -0.0073733293
  %v201 = vadd.f32 %v199, -0.0073733293
  %v202 = vmul.f32 %v200, %v162
  %v203 = vmul.f32 %v201, %v163
  %v204 = vadd.f32 %v202, -0.014264739
  %v205 = vadd.f32 %v203, -0.014264739
  %v206 = vrcp.pop %v204
  %v207 = vmul.f32 %v188, %v206
  %v208 = vrcp.pop %v205
  %v209 = vmul.f32 %v189, %v208
  %v210 = vadd.f32 %v207, 1.0
  %v211 = vadd.f32 %v209, 1.0
  %v212 = vmul.f32 %v154, %v210
  %v213 = vmul.f32 %v155, %v211
  %214 = vst.msk [vmem:[%s5] sm:$0xff] %vm110, %v212
  %215 = vst.msk [vmem:[%s5 + $0x8] sm:$0xff] %vm110, %v213
  // Predicated region
  $region22: #{asr_forward.21} parent=0 // pred_check
    _
  $region23: #{asr_forward.21} parent=0 // pred_check_branch
    %217 = sbr.rel (0) target = $region25
  $region24: #{asr_forward.21} parent=0 // pred_region
    _
  $region25: #{asr_forward.21} parent=0 // pred_fallthru
    _
  // Predicated region
  $region26: #{asr_forward.21} parent=0 // pred_check
    _
  $region27: #{asr_forward.21} parent=0 // pred_check_branch
    %219 = sbr.rel (0) target = $region29
  $region28: #{asr_forward.21} parent=0 // pred_region
    _
  $region29: #{asr_forward.21} parent=0 // pred_fallthru
    _

// kernel: asr_forward.18
$region0: #{asr_forward.18}
  #allocation0 [shape = 'u32[]', space=smem, size = 0x4, offset = 0x4, fixed_abs, tag = 'smem constant byte address 0x4 - core index']
  #allocation1 [shape = 'u32[144,128]{1,0:T(1,128)}', space=vmem, size = 0x12000, scoped, tag = 'internal scratch']
  #allocation2 [shape = 'f32[2,2,32]{2,1,0:T(2,128)}', space=vmem, size = 0x800, scoped, tag = 'scratch operand']
  %s0 = inlined_call_operand.vmem [shape: f32[2,8,2,96], index: 0, kind: input, shape index: {}, may-alias: {0,1}]
  %s1 = inlined_call_operand.vmem [shape: f32[2,8,2,96], index: 1, kind: input, shape index: {}, may-alias: {0,1}]
  %s2 = inlined_call_operand.vmem [shape: bf16[2,32,96], index: 2, kind: input, shape index: {}]
  %s3 = inlined_call_operand.vmem [shape: f32[2,1,96], index: 3, kind: input, shape index: {}]
  %s4 = inlined_call_operand.vmem [shape: f32[8,2,32], index: 4, kind: output, shape index: {0}]
  %s5 = inlined_call_operand.vmem [shape: f32[8,2,32], index: 5, kind: output, shape index: {1}]
  %6 = xla_tuple %s4, %s5
  %s7 = sld [smem:[#allocation0]]
  $region38: #{asr_forward.18} parent=0
    _
  %s9 = ssub.s32 1, %s7
  %s10 = scalar_select 0, %s9, %s7
  // Predicated region
  $region2: #{asr_forward.18} parent=0 // pred_check
    _
  $region3: #{asr_forward.18} parent=0 // pred_check_branch
    %12 = sbr.rel (0) target = $region5
  $region4: #{asr_forward.18} parent=0 // pred_region
    _
  $region5: #{asr_forward.18} parent=0 // pred_fallthru
    _
  // Predicated region
  $region6: #{asr_forward.18} parent=0 // pred_check
    _
  $region7: #{asr_forward.18} parent=0 // pred_check_branch
    %14 = sbr.rel (0) target = $region9
  $region8: #{asr_forward.18} parent=0 // pred_region
    %s15 = ssub.s32 0, 0
    %s16 = smul.u32 8, %s15
    %p17 = scmp.lt.s32.totalorder %s16, 7
    %s18 = scalar_select %p17, %s16, 7
    %s19 = sadd.s32 %s18, 8
    %s20 = smul.addr %s19, 2
    %s21 = scalar_lea.vmem %s1, %s20
    %s22 = ssub.s32 0, 0
    %s23 = smul.u32 8, %s22
  $region9: #{asr_forward.18} parent=0 // pred_fallthru
    _
  // Predicated region
  $region10: #{asr_forward.18} parent=0 // pred_check
    _
  $region11: #{asr_forward.18} parent=0 // pred_check_branch
    %25 = sbr.rel (0) target = $region13
  $region12: #{asr_forward.18} parent=0 // pred_region
    _
  $region13: #{asr_forward.18} parent=0 // pred_fallthru
    _
  // Predicated region
  $region14: #{asr_forward.18} parent=0 // pred_check
    _
  $region15: #{asr_forward.18} parent=0 // pred_check_branch
    %27 = sbr.rel (0) target = $region17
  $region16: #{asr_forward.18} parent=0 // pred_region
    _
  $region17: #{asr_forward.18} parent=0 // pred_fallthru
    _
  %s28 = ssub.s32 0, 0
  %s29 = smul.u32 8, %s28
  %p30 = scmp.lt.s32.totalorder %s29, 7
  %s31 = scalar_select %p30, %s29, 7
  %s32 = sadd.s32 %s31, 8
  %s33 = smul.addr %s32, 2
  %s34 = scalar_lea.vmem %s1, %s33
  %s35 = ssub.s32 0, 0
  %s36 = smul.u32 8, %s35
  %p37 = scmp.lt.s32.totalorder %s36, 7
  %s38 = scalar_select %p37, %s36, 7
  %s39 = smul.addr %s38, 2
  %s40 = scalar_lea.vmem %s5, %s39
  %s41 = ssub.s32 0, 0
  %s42 = smul.u32 8, %s41
  %p43 = scmp.lt.s32.totalorder %s42, 7
  %s44 = scalar_select %p43, %s42, 7
  %s45 = sadd.s32 %s44, 8
  %s46 = smul.addr %s45, 2
  %s47 = scalar_lea.vmem %s1, %s46
  %s48 = ssub.s32 0, 0
  %s49 = smul.u32 8, %s48
  %s50 = ssub.s32 0, 0
  %s51 = smul.u32 8, %s50
  %p52 = scmp.lt.s32.totalorder %s51, 7
  %s53 = scalar_select %p52, %s51, 7
  %s54 = smul.addr %s53, 2
  %s55 = scalar_lea.vmem %s5, %s54
  %s56 = ssub.s32 0, 0
  %s57 = smul.u32 8, %s56
  %p59 = scmp.eq.s32.totalorder 0, 0
  // Predicated region
  $region18: #{asr_forward.18} parent=0 // pred_check
    %p60 = pneg %p59
  $region19: #{asr_forward.18} parent=0 // pred_check_branch
    %62 = sbr.rel (%p60) target = $region21
  $region20: #{asr_forward.18} parent=0 // pred_region
    %vm63 = vcmask 254976
    %64 = vst.msk [vmem:[#allocation2] sm:$0x3] %vm63, 0.0
    %65 = vst.msk [vmem:[#allocation2 + $0x2] sm:$0x3] %vm63, 0.0
  $region21: #{asr_forward.18} parent=0 // pred_fallthru
    _
  %v66 = vld [vmem:[%s2] sm:$0xf]
  %v67 = vld [vmem:[%s2 + $0x4] sm:$0xf]
  %v68 = vld [vmem:[%s2 + $0x8] sm:$0xf]
  %v69 = vld [vmem:[%s2 + $0xc] sm:$0xf]
  %s70 = scalar_lea.vmem %s2, 16
  %v71 = vld [vmem:[%s70] sm:$0xf]
  %v72 = vld [vmem:[%s70 + $0x4] sm:$0xf]
  %v73 = vld [vmem:[%s70 + $0x8] sm:$0xf]
  %v74 = vld [vmem:[%s70 + $0xc] sm:$0xf]
  %v75 = vld [vmem:[%s3] sm:$0x1]
  %s76 = scalar_lea.vmem %s3, 1
  %v77 = vld [vmem:[%s76] sm:$0x1]
  %v78 = vld [vmem:[#allocation2] sm:$0x3]
  %s79 = scalar_lea.vmem [#allocation2], 2
  %v80 = vld [vmem:[%s79] sm:$0x3]
  %v81 = vpack.c.bf16 %v78, %v78
  %v83 = vlaneseq
  %v84 = vshrl.u32 %v83, 7
  %v85 = vsub.s32 0, %v84
  %v86 = vrot.slane %v75, %v85
  %v92 = vunpack.c.l.b16 %v66
  %v93 = vunpack.c.l.b16 %v67
  %v94 = vunpack.c.l.b16 %v68
  %v95 = vunpack.c.l.b16 %v69
  %v96 = vpack.c.b16 %v93, %v92
  %v97 = vpack.c.b16 %v95, %v94
  %vm100 = vcmask 261120
  %v102 = vsel %vm100, %v81, 0
  %104 = vmatprep.subr.bf16.mxu0 0
  %105 = vmatpush1.bf16.msra.mxu0 0
  %106 = vmatprep.subr.bf16.mxu0 0
  %107 = vmatpush1.bf16.msra.mxu0 0
  %108 = vmatprep.subr.bf16.mxu0 0
  %109 = vmatpush1.bf16.msra.mxu0 0
  %110 = vmatprep.subr.bf16.mxu0 0
  %111 = vmatpush1.bf16.msra.mxu0 0
  %112 = vmatprep.subr.bf16.mxu0 0
  %113 = vmatpush1.bf16.msra.mxu0 0
  %114 = vmatprep.subr.bf16.mxu0 0
  %115 = vmatpush1.bf16.msra.mxu0 0
  %116 = vmatprep.subr.bf16.mxu0 0
  %117 = vmatpush1.bf16.msra.mxu0 %v97
  %118 = vmatprep.subr.bf16.mxu0 0
  %119 = vmatpush1.bf16.msra.mxu0 %v96
  %120 = vmatprep.subr.bf16.mxu0 0
  %121 = vmatpush2.bf16.msra.mxu0 0
  %122 = vmatprep.subr.bf16.mxu0 0
  %123 = vmatpush2.bf16.msra.mxu0 0
  %124 = vmatprep.subr.bf16.mxu0 0
  %125 = vmatpush2.bf16.msra.mxu0 0
  %126 = vmatprep.subr.bf16.mxu0 0
  %127 = vmatpush2.bf16.msra.mxu0 0
  %128 = vmatprep.subr.bf16.mxu0 0
  %129 = vmatpush2.bf16.msra.mxu0 0
  %130 = vmatprep.subr.bf16.mxu0 0
  %131 = vmatpush2.bf16.msra.mxu0 0
  %132 = vmatprep.subr.bf16.mxu0 0
  %133 = vmatpush2.bf16.msra.mxu0 0
  %134 = vmatprep.subr.bf16.mxu0 0
  %135 = vmatpush2.bf16.msra.mxu0 0
  %136 = vmatprep.mubr.bf16.mxu0 0
  %137 = vmatmul.mubr.bf16.gmra.mxu0 %v102
  %v138 = vpop.f32.mrf.mxu0
  %v139 = vadd.f32 %v86, %v138
  %v140 = vpop.f32.mrf.mxu0
  %v141 = vpop.f32.mrf.mxu0
  %v142 = vpop.f32.mrf.mxu0
  %143 = vdwg.mxu0
  %v144 = vpack.c.bf16 %v80, %v80
  %v146 = vlaneseq
  %v147 = vshrl.u32 %v146, 7
  %v148 = vsub.s32 0, %v147
  %v149 = vrot.slane %v77, %v148
  %v155 = vunpack.c.l.b16 %v71
  %v156 = vunpack.c.l.b16 %v72
  %v157 = vunpack.c.l.b16 %v73
  %v158 = vunpack.c.l.b16 %v74
  %v159 = vpack.c.b16 %v156, %v155
  %v160 = vpack.c.b16 %v158, %v157
  %v164 = vsel %vm100, %v144, 0
  %166 = vmatprep.subr.bf16.mxu0 0
  %167 = vmatpush1.bf16.msra.mxu0 0
  %168 = vmatprep.subr.bf16.mxu0 0
  %169 = vmatpush1.bf16.msra.mxu0 0
  %170 = vmatprep.subr.bf16.mxu0 0
  %171 = vmatpush1.bf16.msra.mxu0 0
  %172 = vmatprep.subr.bf16.mxu0 0
  %173 = vmatpush1.bf16.msra.mxu0 0
  %174 = vmatprep.subr.bf16.mxu0 0
  %175 = vmatpush1.bf16.msra.mxu0 0
  %176 = vmatprep.subr.bf16.mxu0 0
  %177 = vmatpush1.bf16.msra.mxu0 0
  %178 = vmatprep.subr.bf16.mxu0 0
  %179 = vmatpush1.bf16.msra.mxu0 %v160
  %180 = vmatprep.subr.bf16.mxu0 0
  %181 = vmatpush1.bf16.msra.mxu0 %v159
  %182 = vmatprep.subr.bf16.mxu0 0
  %183 = vmatpush2.bf16.msra.mxu0 0
  %184 = vmatprep.subr.bf16.mxu0 0
  %185 = vmatpush2.bf16.msra.mxu0 0
  %186 = vmatprep.subr.bf16.mxu0 0
  %187 = vmatpush2.bf16.msra.mxu0 0
  %188 = vmatprep.subr.bf16.mxu0 0
  %189 = vmatpush2.bf16.msra.mxu0 0
  %190 = vmatprep.subr.bf16.mxu0 0
  %191 = vmatpush2.bf16.msra.mxu0 0
  %192 = vmatprep.subr.bf16.mxu0 0
  %193 = vmatpush2.bf16.msra.mxu0 0
  %194 = vmatprep.subr.bf16.mxu0 0
  %195 = vmatpush2.bf16.msra.mxu0 0
  %196 = vmatprep.subr.bf16.mxu0 0
  %197 = vmatpush2.bf16.msra.mxu0 0
  %198 = vmatprep.mubr.bf16.mxu0 0
  %199 = vmatmul.mubr.bf16.gmra.mxu0 %v164
  %v200 = vpop.f32.mrf.mxu0
  %v201 = vadd.f32 %v149, %v200
  %v202 = vpop.f32.mrf.mxu0
  %v203 = vpop.f32.mrf.mxu0
  %v204 = vpop.f32.mrf.mxu0
  %205 = vdwg.mxu0
  %v206 = vld [vmem:[%s0] sm:$0x3]
  %v207 = vadd.f32 %v206, %v139
  %v208 = vxor.u32 %v207, 2147483648
  %v209 = vmul.f32 %v208, 1.442695
  %v210 = vpow.pop %v209
  %v211 = vadd.f32 %v210, 1.0
  %v212 = vrcp.pop %v211
  %v213 = vmul.f32 1.0, %v212
  %215 = vrot.lane.b32.xlu0 %v139, 64
  %v216 = vpop.permute.xlu0 %215
  %v218 = vmul.f32 %v213, %v216
  %220 = vrot.lane.b32.xlu0 %v218, 64
  %v221 = vpop.permute.xlu0 %220
  %v223 = vadd.f32 %v206, %v221
  %v224 = vtanh.pop %v223
  %v225 = vsub.f32 1.0, %v213
  %227 = vrot.lane.b32.xlu0 %v224, 96
  %v228 = vpop.permute.xlu0 %227
  %v230 = vmul.f32 %v225, %v228
  %232 = vrot.lane.b32.xlu0 %v78, 32
  %v233 = vpop.permute.xlu0 %232
  %v235 = vmul.f32 %v213, %v233
  %v236 = vadd.f32 %v230, %v235
  %s237 = scalar_lea.vmem %s47, 14
  %v238 = vld [vmem:[%s237] sm:$0x3]
  %v239 = vadd.f32 %v238, %v201
  %v240 = vxor.u32 %v239, 2147483648
  %v241 = vmul.f32 %v240, 1.442695
  %v242 = vpow.pop %v241
  %v243 = vadd.f32 %v242, 1.0
  %v244 = vrcp.pop %v243
  %v245 = vmul.f32 1.0, %v244
  %247 = vrot.lane.b32.xlu0 %v201, 64
  %v248 = vpop.permute.xlu0 %247
  %v250 = vmul.f32 %v245, %v248
  %252 = vrot.lane.b32.xlu0 %v250, 64
  %v253 = vpop.permute.xlu0 %252
  %v255 = vadd.f32 %v238, %v253
  %v256 = vtanh.pop %v255
  %v257 = vsub.f32 1.0, %v245
  %259 = vrot.lane.b32.xlu0 %v256, 96
  %v260 = vpop.permute.xlu0 %259
  %v262 = vmul.f32 %v257, %v260
  %264 = vrot.lane.b32.xlu0 %v80, 32
  %v265 = vpop.permute.xlu0 %264
  %v267 = vmul.f32 %v245, %v265
  %v268 = vadd.f32 %v262, %v267
  %270 = vrot.lane.b32.xlu0 %v236, 96
  %v271 = vpop.permute.xlu0 %270
  %vm273 = vcmask 254976
  %274 = vst.msk [vmem:[%s4] sm:$0x3] %vm273, %v271
  %276 = vrot.lane.b32.xlu0 %v268, 96
  %v277 = vpop.permute.xlu0 %276
  %s279 = scalar_lea.vmem %s55, 14
  %280 = vst.msk [vmem:[%s279] sm:$0x3] %vm273, %v277
  %v281 = vpack.c.bf16 %v236, %v236
  %283 = vrot.lane.b32.xlu0 %v281, 96
  %v284 = vpop.permute.xlu0 %283
  %v286 = vsel %vm100, %v284, 0
  %288 = vmatprep.subr.bf16.mxu0 0
  %289 = vmatpush1.bf16.msra.mxu0 0
  %290 = vmatprep.subr.bf16.mxu0 0
  %291 = vmatpush1.bf16.msra.mxu0 0
  %292 = vmatprep.subr.bf16.mxu0 0
  %293 = vmatpush1.bf16.msra.mxu0 0
  %294 = vmatprep.subr.bf16.mxu0 0
  %295 = vmatpush1.bf16.msra.mxu0 0
  %296 = vmatprep.subr.bf16.mxu0 0
  %297 = vmatpush1.bf16.msra.mxu0 0
  %298 = vmatprep.subr.bf16.mxu0 0
  %299 = vmatpush1.bf16.msra.mxu0 0
  %300 = vmatprep.subr.bf16.mxu0 0
  %301 = vmatpush1.bf16.msra.mxu0 %v97
  %302 = vmatprep.subr.bf16.mxu0 0
  %303 = vmatpush1.bf16.msra.mxu0 %v96
  %304 = vmatprep.subr.bf16.mxu0 0
  %305 = vmatpush2.bf16.msra.mxu0 0
  %306 = vmatprep.subr.bf16.mxu0 0
  %307 = vmatpush2.bf16.msra.mxu0 0
  %308 = vmatprep.subr.bf16.mxu0 0
  %309 = vmatpush2.bf16.msra.mxu0 0
  %310 = vmatprep.subr.bf16.mxu0 0
  %311 = vmatpush2.bf16.msra.mxu0 0
  %312 = vmatprep.subr.bf16.mxu0 0
  %313 = vmatpush2.bf16.msra.mxu0 0
  %314 = vmatprep.subr.bf16.mxu0 0
  %315 = vmatpush2.bf16.msra.mxu0 0
  %316 = vmatprep.subr.bf16.mxu0 0
  %317 = vmatpush2.bf16.msra.mxu0 0
  %318 = vmatprep.subr.bf16.mxu0 0
  %319 = vmatpush2.bf16.msra.mxu0 0
  %320 = vmatprep.mubr.bf16.mxu0 0
  %321 = vmatmul.mubr.bf16.gmra.mxu0 %v286
  %v322 = vpop.f32.mrf.mxu0
  %v323 = vadd.f32 %v86, %v322
  %v324 = vpop.f32.mrf.mxu0
  %v325 = vpop.f32.mrf.mxu0
  %v326 = vpop.f32.mrf.mxu0
  %327 = vdwg.mxu0
  %v328 = vpack.c.bf16 %v268, %v268
  %330 = vrot.lane.b32.xlu0 %v328, 96
  %v331 = vpop.permute.xlu0 %330
  %v333 = vsel %vm100, %v331, 0
  %335 = vmatprep.subr.bf16.mxu0 0
  %336 = vmatpush1.bf16.msra.mxu0 0
  %337 = vmatprep.subr.bf16.mxu0 0
  %338 = vmatpush1.bf16.msra.mxu0 0
  %339 = vmatprep.subr.bf16.mxu0 0
  %340 = vmatpush1.bf16.msra.mxu0 0
  %341 = vmatprep.subr.bf16.mxu0 0
  %342 = vmatpush1.bf16.msra.mxu0 0
  %343 = vmatprep.subr.bf16.mxu0 0
  %344 = vmatpush1.bf16.msra.mxu0 0
  %345 = vmatprep.subr.bf16.mxu0 0
  %346 = vmatpush1.bf16.msra.mxu0 0
  %347 = vmatprep.subr.bf16.mxu0 0
  %348 = vmatpush1.bf16.msra.mxu0 %v160
  %349 = vmatprep.subr.bf16.mxu0 0
  %350 = vmatpush1.bf16.msra.mxu0 %v159
  %351 = vmatprep.subr.bf16.mxu0 0
  %352 = vmatpush2.bf16.msra.mxu0 0
  %353 = vmatprep.subr.bf16.mxu0 0
  %354 = vmatpush2.bf16.msra.mxu0 0
  %355 = vmatprep.subr.bf16.mxu0 0
  %356 = vmatpush2.bf16.msra.mxu0 0
  %357 = vmatprep.subr.bf16.mxu0 0
  %358 = vmatpush2.bf16.msra.mxu0 0
  %359 = vmatprep.subr.bf16.mxu0 0
  %360 = vmatpush2.bf16.msra.mxu0 0
  %361 = vmatprep.subr.bf16.mxu0 0
  %362 = vmatpush2.bf16.msra.mxu0 0
  %363 = vmatprep.subr.bf16.mxu0 0
  %364 = vmatpush2.bf16.msra.mxu0 0
  %365 = vmatprep.subr.bf16.mxu0 0
  %366 = vmatpush2.bf16.msra.mxu0 0
  %367 = vmatprep.mubr.bf16.mxu0 0
  %368 = vmatmul.mubr.bf16.gmra.mxu0 %v333
  %v369 = vpop.f32.mrf.mxu0
  %v370 = vadd.f32 %v149, %v369
  %v371 = vpop.f32.mrf.mxu0
  %v372 = vpop.f32.mrf.mxu0
  %v373 = vpop.f32.mrf.mxu0
  %374 = vdwg.mxu0
  %s375 = scalar_lea.vmem %s0, 2
  %v376 = vld [vmem:[%s375] sm:$0x3]
  %v377 = vadd.f32 %v376, %v323
  %v378 = vxor.u32 %v377, 2147483648
  %v379 = vmul.f32 %v378, 1.442695
  %v380 = vpow.pop %v379
  %v381 = vadd.f32 %v380, 1.0
  %v382 = vrcp.pop %v381
  %v383 = vmul.f32 1.0, %v382
  %385 = vrot.lane.b32.xlu0 %v323, 64
  %v386 = vpop.permute.xlu0 %385
  %v388 = vmul.f32 %v383, %v386
  %390 = vrot.lane.b32.xlu0 %v388, 64
  %v391 = vpop.permute.xlu0 %390
  %v393 = vadd.f32 %v376, %v391
  %v394 = vtanh.pop %v393
  %v395 = vsub.f32 1.0, %v383
  %397 = vrot.lane.b32.xlu0 %v394, 96
  %v398 = vpop.permute.xlu0 %397
  %v400 = vmul.f32 %v395, %v398
  %v401 = vmul.f32 %v383, %v236
  %v402 = vadd.f32 %v400, %v401
  %s403 = scalar_lea.vmem %s47, 12
  %v404 = vld [vmem:[%s403] sm:$0x3]
  %v405 = vadd.f32 %v404, %v370
  %v406 = vxor.u32 %v405, 2147483648
  %v407 = vmul.f32 %v406, 1.442695
  %v408 = vpow.pop %v407
  %v409 = vadd.f32 %v408, 1.0
  %v410 = vrcp.pop %v409
  %v411 = vmul.f32 1.0, %v410
  %413 = vrot.lane.b32.xlu0 %v370, 64
  %v414 = vpop.permute.xlu0 %413
  %v416 = vmul.f32 %v411, %v414
  %418 = vrot.lane.b32.xlu0 %v416, 64
  %v419 = vpop.permute.xlu0 %418
  %v421 = vadd.f32 %v404, %v419
  %v422 = vtanh.pop %v421
  %v423 = vsub.f32 1.0, %v411
  %425 = vrot.lane.b32.xlu0 %v422, 96
  %v426 = vpop.permute.xlu0 %425
  %v428 = vmul.f32 %v423, %v426
  %v429 = vmul.f32 %v411, %v268
  %v430 = vadd.f32 %v428, %v429
  %432 = vrot.lane.b32.xlu0 %v402, 96
  %v433 = vpop.permute.xlu0 %432
  %s435 = scalar_lea.vmem %s4, 2
  %436 = vst.msk [vmem:[%s435] sm:$0x3] %vm273, %v433
  %438 = vrot.lane.b32.xlu0 %v430, 96
  %v439 = vpop.permute.xlu0 %438
  %s441 = scalar_lea.vmem %s55, 12
  %442 = vst.msk [vmem:[%s441] sm:$0x3] %vm273, %v439
  %v443 = vpack.c.bf16 %v402, %v402
  %445 = vrot.lane.b32.xlu0 %v443, 96
  %v446 = vpop.permute.xlu0 %445
  %v448 = vsel %vm100, %v446, 0
  %450 = vmatprep.subr.bf16.mxu0 0
  %451 = vmatpush1.bf16.msra.mxu0 0
  %452 = vmatprep.subr.bf16.mxu0 0
  %453 = vmatpush1.bf16.msra.mxu0 0
  %454 = vmatprep.subr.bf16.mxu0 0
  %455 = vmatpush1.bf16.msra.mxu0 0
  %456 = vmatprep.subr.bf16.mxu0 0
  %457 = vmatpush1.bf16.msra.mxu0 0
  %458 = vmatprep.subr.bf16.mxu0 0
  %459 = vmatpush1.bf16.msra.mxu0 0
  %460 = vmatprep.subr.bf16.mxu0 0
  %461 = vmatpush1.bf16.msra.mxu0 0
  %462 = vmatprep.subr.bf16.mxu0 0
  %463 = vmatpush1.bf16.msra.mxu0 %v97
  %464 = vmatprep.subr.bf16.mxu0 0
  %465 = vmatpush1.bf16.msra.mxu0 %v96
  %466 = vmatprep.subr.bf16.mxu0 0
  %467 = vmatpush2.bf16.msra.mxu0 0
  %468 = vmatprep.subr.bf16.mxu0 0
  %469 = vmatpush2.bf16.msra.mxu0 0
  %470 = vmatprep.subr.bf16.mxu0 0
  %471 = vmatpush2.bf16.msra.mxu0 0
  %472 = vmatprep.subr.bf16.mxu0 0
  %473 = vmatpush2.bf16.msra.mxu0 0
  %474 = vmatprep.subr.bf16.mxu0 0
  %475 = vmatpush2.bf16.msra.mxu0 0
  %476 = vmatprep.subr.bf16.mxu0 0
  %477 = vmatpush2.bf16.msra.mxu0 0
  %478 = vmatprep.subr.bf16.mxu0 0
  %479 = vmatpush2.bf16.msra.mxu0 0
  %480 = vmatprep.subr.bf16.mxu0 0
  %481 = vmatpush2.bf16.msra.mxu0 0
  %482 = vmatprep.mubr.bf16.mxu0 0
  %483 = vmatmul.mubr.bf16.gmra.mxu0 %v448
  %v484 = vpop.f32.mrf.mxu0
  %v485 = vadd.f32 %v86, %v484
  %v486 = vpop.f32.mrf.mxu0
  %v487 = vpop.f32.mrf.mxu0
  %v488 = vpop.f32.mrf.mxu0
  %489 = vdwg.mxu0
  %v490 = vpack.c.bf16 %v430, %v430
  %492 = vrot.lane.b32.xlu0 %v490, 96
  %v493 = vpop.permute.xlu0 %492
  %v495 = vsel %vm100, %v493, 0
  %497 = vmatprep.subr.bf16.mxu0 0
  %498 = vmatpush1.bf16.msra.mxu0 0
  %499 = vmatprep.subr.bf16.mxu0 0
  %500 = vmatpush1.bf16.msra.mxu0 0
  %501 = vmatprep.subr.bf16.mxu0 0
  %502 = vmatpush1.bf16.msra.mxu0 0
  %503 = vmatprep.subr.bf16.mxu0 0
  %504 = vmatpush1.bf16.msra.mxu0 0
  %505 = vmatprep.subr.bf16.mxu0 0
  %506 = vmatpush1.bf16.msra.mxu0 0
  %507 = vmatprep.subr.bf16.mxu0 0
  %508 = vmatpush1.bf16.msra.mxu0 0
  %509 = vmatprep.subr.bf16.mxu0 0
  %510 = vmatpush1.bf16.msra.mxu0 %v160
  %511 = vmatprep.subr.bf16.mxu0 0
  %512 = vmatpush1.bf16.msra.mxu0 %v159
  %513 = vmatprep.subr.bf16.mxu0 0
  %514 = vmatpush2.bf16.msra.mxu0 0
  %515 = vmatprep.subr.bf16.mxu0 0
  %516 = vmatpush2.bf16.msra.mxu0 0
  %517 = vmatprep.subr.bf16.mxu0 0
  %518 = vmatpush2.bf16.msra.mxu0 0
  %519 = vmatprep.subr.bf16.mxu0 0
  %520 = vmatpush2.bf16.msra.mxu0 0
  %521 = vmatprep.subr.bf16.mxu0 0
  %522 = vmatpush2.bf16.msra.mxu0 0
  %523 = vmatprep.subr.bf16.mxu0 0
  %524 = vmatpush2.bf16.msra.mxu0 0
  %525 = vmatprep.subr.bf16.mxu0 0
  %526 = vmatpush2.bf16.msra.mxu0 0
  %527 = vmatprep.subr.bf16.mxu0 0
  %528 = vmatpush2.bf16.msra.mxu0 0
  %529 = vmatprep.mubr.bf16.mxu0 0
  %530 = vmatmul.mubr.bf16.gmra.mxu0 %v495
  %v531 = vpop.f32.mrf.mxu0
  %v532 = vadd.f32 %v149, %v531
  %v533 = vpop.f32.mrf.mxu0
  %v534 = vpop.f32.mrf.mxu0
  %v535 = vpop.f32.mrf.mxu0
  %536 = vdwg.mxu0
  %s537 = scalar_lea.vmem %s0, 4
  %v538 = vld [vmem:[%s537] sm:$0x3]
  %v539 = vadd.f32 %v538, %v485
  %v540 = vxor.u32 %v539, 2147483648
  %v541 = vmul.f32 %v540, 1.442695
  %v542 = vpow.pop %v541
  %v543 = vadd.f32 %v542, 1.0
  %v544 = vrcp.pop %v543
  %v545 = vmul.f32 1.0, %v544
  %547 = vrot.lane.b32.xlu0 %v485, 64
  %v548 = vpop.permute.xlu0 %547
  %v550 = vmul.f32 %v545, %v548
  %552 = vrot.lane.b32.xlu0 %v550, 64
  %v553 = vpop.permute.xlu0 %552
  %v555 = vadd.f32 %v538, %v553
  %v556 = vtanh.pop %v555
  %v557 = vsub.f32 1.0, %v545
  %559 = vrot.lane.b32.xlu0 %v556, 96
  %v560 = vpop.permute.xlu0 %559
  %v562 = vmul.f32 %v557, %v560
  %v563 = vmul.f32 %v545, %v402
  %v564 = vadd.f32 %v562, %v563
  %s565 = scalar_lea.vmem %s47, 10
  %v566 = vld [vmem:[%s565] sm:$0x3]
  %v567 = vadd.f32 %v566, %v532
  %v568 = vxor.u32 %v567, 2147483648
  %v569 = vmul.f32 %v568, 1.442695
  %v570 = vpow.pop %v569
  %v571 = vadd.f32 %v570, 1.0
  %v572 = vrcp.pop %v571
  %v573 = vmul.f32 1.0, %v572
  %575 = vrot.lane.b32.xlu0 %v532, 64
  %v576 = vpop.permute.xlu0 %575
  %v578 = vmul.f32 %v573, %v576
  %580 = vrot.lane.b32.xlu0 %v578, 64
  %v581 = vpop.permute.xlu0 %580
  %v583 = vadd.f32 %v566, %v581
  %v584 = vtanh.pop %v583
  %v585 = vsub.f32 1.0, %v573
  %587 = vrot.lane.b32.xlu0 %v584, 96
  %v588 = vpop.permute.xlu0 %587
  %v590 = vmul.f32 %v585, %v588
  %v591 = vmul.f32 %v573, %v430
  %v592 = vadd.f32 %v590, %v591
  %594 = vrot.lane.b32.xlu0 %v564, 96
  %v595 = vpop.permute.xlu0 %594
  %s597 = scalar_lea.vmem %s4, 4
  %598 = vst.msk [vmem:[%s597] sm:$0x3] %vm273, %v595
  %600 = vrot.lane.b32.xlu0 %v592, 96
  %v601 = vpop.permute.xlu0 %600
  %s603 = scalar_lea.vmem %s55, 10
  %604 = vst.msk [vmem:[%s603] sm:$0x3] %vm273, %v601
  %v605 = vpack.c.bf16 %v564, %v564
  %607 = vrot.lane.b32.xlu0 %v605, 96
  %v608 = vpop.permute.xlu0 %607
  %v610 = vsel %vm100, %v608, 0
  %612 = vmatprep.subr.bf16.mxu0 0
  %613 = vmatpush1.bf16.msra.mxu0 0
  %614 = vmatprep.subr.bf16.mxu0 0
  %615 = vmatpush1.bf16.msra.mxu0 0
  %616 = vmatprep.subr.bf16.mxu0 0
  %617 = vmatpush1.bf16.msra.mxu0 0
  %618 = vmatprep.subr.bf16.mxu0 0
  %619 = vmatpush1.bf16.msra.mxu0 0
  %620 = vmatprep.subr.bf16.mxu0 0
  %621 = vmatpush1.bf16.msra.mxu0 0
  %622 = vmatprep.subr.bf16.mxu0 0
  %623 = vmatpush1.bf16.msra.mxu0 0
  %624 = vmatprep.subr.bf16.mxu0 0
  %625 = vmatpush1.bf16.msra.mxu0 %v97
  %626 = vmatprep.subr.bf16.mxu0 0
  %627 = vmatpush1.bf16.msra.mxu0 %v96
  %628 = vmatprep.subr.bf16.mxu0 0
  %629 = vmatpush2.bf16.msra.mxu0 0
  %630 = vmatprep.subr.bf16.mxu0 0
  %631 = vmatpush2.bf16.msra.mxu0 0
  %632 = vmatprep.subr.bf16.mxu0 0
  %633 = vmatpush2.bf16.msra.mxu0 0
  %634 = vmatprep.subr.bf16.mxu0 0
  %635 = vmatpush2.bf16.msra.mxu0 0
  %636 = vmatprep.subr.bf16.mxu0 0
  %637 = vmatpush2.bf16.msra.mxu0 0
  %638 = vmatprep.subr.bf16.mxu0 0
  %639 = vmatpush2.bf16.msra.mxu0 0
  %640 = vmatprep.subr.bf16.mxu0 0
  %641 = vmatpush2.bf16.msra.mxu0 0
  %642 = vmatprep.subr.bf16.mxu0 0
  %643 = vmatpush2.bf16.msra.mxu0 0
  %644 = vmatprep.mubr.bf16.mxu0 0
  %645 = vmatmul.mubr.bf16.gmra.mxu0 %v610
  %v646 = vpop.f32.mrf.mxu0
  %v647 = vadd.f32 %v86, %v646
  %v648 = vpop.f32.mrf.mxu0
  %v649 = vpop.f32.mrf.mxu0
  %v650 = vpop.f32.mrf.mxu0
  %651 = vdwg.mxu0
  %v652 = vpack.c.bf16 %v592, %v592
  %654 = vrot.lane.b32.xlu0 %v652, 96
  %v655 = vpop.permute.xlu0 %654
  %v657 = vsel %vm100, %v655, 0
  %659 = vmatprep.subr.bf16.mxu0 0
  %660 = vmatpush1.bf16.msra.mxu0 0
  %661 = vmatprep.subr.bf16.mxu0 0
  %662 = vmatpush1.bf16.msra.mxu0 0
  %663 = vmatprep.subr.bf16.mxu0 0
  %664 = vmatpush1.bf16.msra.mxu0 0
  %665 = vmatprep.subr.bf16.mxu0 0
  %666 = vmatpush1.bf16.msra.mxu0 0
  %667 = vmatprep.subr.bf16.mxu0 0
  %668 = vmatpush1.bf16.msra.mxu0 0
  %669 = vmatprep.subr.bf16.mxu0 0
  %670 = vmatpush1.bf16.msra.mxu0 0
  %671 = vmatprep.subr.bf16.mxu0 0
  %672 = vmatpush1.bf16.msra.mxu0 %v160
  %673 = vmatprep.subr.bf16.mxu0 0
  %674 = vmatpush1.bf16.msra.mxu0 %v159
  %675 = vmatprep.subr.bf16.mxu0 0
  %676 = vmatpush2.bf16.msra.mxu0 0
  %677 = vmatprep.subr.bf16.mxu0 0
  %678 = vmatpush2.bf16.msra.mxu0 0
  %679 = vmatprep.subr.bf16.mxu0 0
  %680 = vmatpush2.bf16.msra.mxu0 0
  %681 = vmatprep.subr.bf16.mxu0 0
  %682 = vmatpush2.bf16.msra.mxu0 0
  %683 = vmatprep.subr.bf16.mxu0 0
  %684 = vmatpush2.bf16.msra.mxu0 0
  %685 = vmatprep.subr.bf16.mxu0 0
  %686 = vmatpush2.bf16.msra.mxu0 0
  %687 = vmatprep.subr.bf16.mxu0 0
  %688 = vmatpush2.bf16.msra.mxu0 0
  %689 = vmatprep.subr.bf16.mxu0 0
  %690 = vmatpush2.bf16.msra.mxu0 0
  %691 = vmatprep.mubr.bf16.mxu0 0
  %692 = vmatmul.mubr.bf16.gmra.mxu0 %v657
  %v693 = vpop.f32.mrf.mxu0
  %v694 = vadd.f32 %v149, %v693
  %v695 = vpop.f32.mrf.mxu0
  %v696 = vpop.f32.mrf.mxu0
  %v697 = vpop.f32.mrf.mxu0
  %698 = vdwg.mxu0
  %s699 = scalar_lea.vmem %s0, 6
  %v700 = vld [vmem:[%s699] sm:$0x3]
  %v701 = vadd.f32 %v700, %v647
  %v702 = vxor.u32 %v701, 2147483648
  %v703 = vmul.f32 %v702, 1.442695
  %v704 = vpow.pop %v703
  %v705 = vadd.f32 %v704, 1.0
  %v706 = vrcp.pop %v705
  %v707 = vmul.f32 1.0, %v706
  %709 = vrot.lane.b32.xlu0 %v647, 64
  %v710 = vpop.permute.xlu0 %709
  %v712 = vmul.f32 %v707, %v710
  %714 = vrot.lane.b32.xlu0 %v712, 64
  %v715 = vpop.permute.xlu0 %714
  %v717 = vadd.f32 %v700, %v715
  %v718 = vtanh.pop %v717
  %v719 = vsub.f32 1.0, %v707
  %721 = vrot.lane.b32.xlu0 %v718, 96
  %v722 = vpop.permute.xlu0 %721
  %v724 = vmul.f32 %v719, %v722
  %v725 = vmul.f32 %v707, %v564
  %v726 = vadd.f32 %v724, %v725
  %s727 = scalar_lea.vmem %s47, 8
  %v728 = vld [vmem:[%s727] sm:$0x3]
  %v729 = vadd.f32 %v728, %v694
  %v730 = vxor.u32 %v729, 2147483648
  %v731 = vmul.f32 %v730, 1.442695
  %v732 = vpow.pop %v731
  %v733 = vadd.f32 %v732, 1.0
  %v734 = vrcp.pop %v733
  %v735 = vmul.f32 1.0, %v734
  %737 = vrot.lane.b32.xlu0 %v694, 64
  %v738 = vpop.permute.xlu0 %737
  %v740 = vmul.f32 %v735, %v738
  %742 = vrot.lane.b32.xlu0 %v740, 64
  %v743 = vpop.permute.xlu0 %742
  %v745 = vadd.f32 %v728, %v743
  %v746 = vtanh.pop %v745
  %v747 = vsub.f32 1.0, %v735
  %749 = vrot.lane.b32.xlu0 %v746, 96
  %v750 = vpop.permute.xlu0 %749
  %v752 = vmul.f32 %v747, %v750
  %v753 = vmul.f32 %v735, %v592
  %v754 = vadd.f32 %v752, %v753
  %756 = vrot.lane.b32.xlu0 %v726, 96
  %v757 = vpop.permute.xlu0 %756
  %s759 = scalar_lea.vmem %s4, 6
  %760 = vst.msk [vmem:[%s759] sm:$0x3] %vm273, %v757
  %762 = vrot.lane.b32.xlu0 %v754, 96
  %v763 = vpop.permute.xlu0 %762
  %s765 = scalar_lea.vmem %s55, 8
  %766 = vst.msk [vmem:[%s765] sm:$0x3] %vm273, %v763
  %v767 = vpack.c.bf16 %v726, %v726
  %769 = vrot.lane.b32.xlu0 %v767, 96
  %v770 = vpop.permute.xlu0 %769
  %v772 = vsel %vm100, %v770, 0
  %774 = vmatprep.subr.bf16.mxu0 0
  %775 = vmatpush1.bf16.msra.mxu0 0
  %776 = vmatprep.subr.bf16.mxu0 0
  %777 = vmatpush1.bf16.msra.mxu0 0
  %778 = vmatprep.subr.bf16.mxu0 0
  %779 = vmatpush1.bf16.msra.mxu0 0
  %780 = vmatprep.subr.bf16.mxu0 0
  %781 = vmatpush1.bf16.msra.mxu0 0
  %782 = vmatprep.subr.bf16.mxu0 0
  %783 = vmatpush1.bf16.msra.mxu0 0
  %784 = vmatprep.subr.bf16.mxu0 0
  %785 = vmatpush1.bf16.msra.mxu0 0
  %786 = vmatprep.subr.bf16.mxu0 0
  %787 = vmatpush1.bf16.msra.mxu0 %v97
  %788 = vmatprep.subr.bf16.mxu0 0
  %789 = vmatpush1.bf16.msra.mxu0 %v96
  %790 = vmatprep.subr.bf16.mxu0 0
  %791 = vmatpush2.bf16.msra.mxu0 0
  %792 = vmatprep.subr.bf16.mxu0 0
  %793 = vmatpush2.bf16.msra.mxu0 0
  %794 = vmatprep.subr.bf16.mxu0 0
  %795 = vmatpush2.bf16.msra.mxu0 0
  %796 = vmatprep.subr.bf16.mxu0 0
  %797 = vmatpush2.bf16.msra.mxu0 0
  %798 = vmatprep.subr.bf16.mxu0 0
  %799 = vmatpush2.bf16.msra.mxu0 0
  %800 = vmatprep.subr.bf16.mxu0 0
  %801 = vmatpush2.bf16.msra.mxu0 0
  %802 = vmatprep.subr.bf16.mxu0 0
  %803 = vmatpush2.bf16.msra.mxu0 0
  %804 = vmatprep.subr.bf16.mxu0 0
  %805 = vmatpush2.bf16.msra.mxu0 0
  %806 = vmatprep.mubr.bf16.mxu0 0
  %807 = vmatmul.mubr.bf16.gmra.mxu0 %v772
  %v808 = vpop.f32.mrf.mxu0
  %v809 = vadd.f32 %v86, %v808
  %v810 = vpop.f32.mrf.mxu0
  %v811 = vpop.f32.mrf.mxu0
  %v812 = vpop.f32.mrf.mxu0
  %813 = vdwg.mxu0
  %v814 = vpack.c.bf16 %v754, %v754
  %816 = vrot.lane.b32.xlu0 %v814, 96
  %v817 = vpop.permute.xlu0 %816
  %v819 = vsel %vm100, %v817, 0
  %821 = vmatprep.subr.bf16.mxu0 0
  %822 = vmatpush1.bf16.msra.mxu0 0
  %823 = vmatprep.subr.bf16.mxu0 0
  %824 = vmatpush1.bf16.msra.mxu0 0
  %825 = vmatprep.subr.bf16.mxu0 0
  %826 = vmatpush1.bf16.msra.mxu0 0
  %827 = vmatprep.subr.bf16.mxu0 0
  %828 = vmatpush1.bf16.msra.mxu0 0
  %829 = vmatprep.subr.bf16.mxu0 0
  %830 = vmatpush1.bf16.msra.mxu0 0
  %831 = vmatprep.subr.bf16.mxu0 0
  %832 = vmatpush1.bf16.msra.mxu0 0
  %833 = vmatprep.subr.bf16.mxu0 0
  %834 = vmatpush1.bf16.msra.mxu0 %v160
  %835 = vmatprep.subr.bf16.mxu0 0
  %836 = vmatpush1.bf16.msra.mxu0 %v159
  %837 = vmatprep.subr.bf16.mxu0 0
  %838 = vmatpush2.bf16.msra.mxu0 0
  %839 = vmatprep.subr.bf16.mxu0 0
  %840 = vmatpush2.bf16.msra.mxu0 0
  %841 = vmatprep.subr.bf16.mxu0 0
  %842 = vmatpush2.bf16.msra.mxu0 0
  %843 = vmatprep.subr.bf16.mxu0 0
  %844 = vmatpush2.bf16.msra.mxu0 0
  %845 = vmatprep.subr.bf16.mxu0 0
  %846 = vmatpush2.bf16.msra.mxu0 0
  %847 = vmatprep.subr.bf16.mxu0 0
  %848 = vmatpush2.bf16.msra.mxu0 0
  %849 = vmatprep.subr.bf16.mxu0 0
  %850 = vmatpush2.bf16.msra.mxu0 0
  %851 = vmatprep.subr.bf16.mxu0 0
  %852 = vmatpush2.bf16.msra.mxu0 0
  %853 = vmatprep.mubr.bf16.mxu0 0
  %854 = vmatmul.mubr.bf16.gmra.mxu0 %v819
  %v855 = vpop.f32.mrf.mxu0
  %v856 = vadd.f32 %v149, %v855
  %v857 = vpop.f32.mrf.mxu0
  %v858 = vpop.f32.mrf.mxu0
  %v859 = vpop.f32.mrf.mxu0
  %860 = vdwg.mxu0
  %s861 = scalar_lea.vmem %s0, 8
  %v862 = vld [vmem:[%s861] sm:$0x3]
  %v863 = vadd.f32 %v862, %v809
  %v864 = vxor.u32 %v863, 2147483648
  %v865 = vmul.f32 %v864, 1.442695
  %v866 = vpow.pop %v865
  %v867 = vadd.f32 %v866, 1.0
  %v868 = vrcp.pop %v867
  %v869 = vmul.f32 1.0, %v868
  %871 = vrot.lane.b32.xlu0 %v809, 64
  %v872 = vpop.permute.xlu0 %871
  %v874 = vmul.f32 %v869, %v872
  %876 = vrot.lane.b32.xlu0 %v874, 64
  %v877 = vpop.permute.xlu0 %876
  %v879 = vadd.f32 %v862, %v877
  %v880 = vtanh.pop %v879
  %v881 = vsub.f32 1.0, %v869
  %883 = vrot.lane.b32.xlu0 %v880, 96
  %v884 = vpop.permute.xlu0 %883
  %v886 = vmul.f32 %v881, %v884
  %v887 = vmul.f32 %v869, %v726
  %v888 = vadd.f32 %v886, %v887
  %s889 = scalar_lea.vmem %s47, 6
  %v890 = vld [vmem:[%s889] sm:$0x3]
  %v891 = vadd.f32 %v890, %v856
  %v892 = vxor.u32 %v891, 2147483648
  %v893 = vmul.f32 %v892, 1.442695
  %v894 = vpow.pop %v893
  %v895 = vadd.f32 %v894, 1.0
  %v896 = vrcp.pop %v895
  %v897 = vmul.f32 1.0, %v896
  %899 = vrot.lane.b32.xlu0 %v856, 64
  %v900 = vpop.permute.xlu0 %899
  %v902 = vmul.f32 %v897, %v900
  %904 = vrot.lane.b32.xlu0 %v902, 64
  %v905 = vpop.permute.xlu0 %904
  %v907 = vadd.f32 %v890, %v905
  %v908 = vtanh.pop %v907
  %v909 = vsub.f32 1.0, %v897
  %911 = vrot.lane.b32.xlu0 %v908, 96
  %v912 = vpop.permute.xlu0 %911
  %v914 = vmul.f32 %v909, %v912
  %v915 = vmul.f32 %v897, %v754
  %v916 = vadd.f32 %v914, %v915
  %918 = vrot.lane.b32.xlu0 %v888, 96
  %v919 = vpop.permute.xlu0 %918
  %s921 = scalar_lea.vmem %s4, 8
  %922 = vst.msk [vmem:[%s921] sm:$0x3] %vm273, %v919
  %924 = vrot.lane.b32.xlu0 %v916, 96
  %v925 = vpop.permute.xlu0 %924
  %s927 = scalar_lea.vmem %s55, 6
  %928 = vst.msk [vmem:[%s927] sm:$0x3] %vm273, %v925
  %v929 = vpack.c.bf16 %v888, %v888
  %931 = vrot.lane.b32.xlu0 %v929, 96
  %v932 = vpop.permute.xlu0 %931
  %v934 = vsel %vm100, %v932, 0
  %936 = vmatprep.subr.bf16.mxu0 0
  %937 = vmatpush1.bf16.msra.mxu0 0
  %938 = vmatprep.subr.bf16.mxu0 0
  %939 = vmatpush1.bf16.msra.mxu0 0
  %940 = vmatprep.subr.bf16.mxu0 0
  %941 = vmatpush1.bf16.msra.mxu0 0
  %942 = vmatprep.subr.bf16.mxu0 0
  %943 = vmatpush1.bf16.msra.mxu0 0
  %944 = vmatprep.subr.bf16.mxu0 0
  %945 = vmatpush1.bf16.msra.mxu0 0
  %946 = vmatprep.subr.bf16.mxu0 0
  %947 = vmatpush1.bf16.msra.mxu0 0
  %948 = vmatprep.subr.bf16.mxu0 0
  %949 = vmatpush1.bf16.msra.mxu0 %v97
  %950 = vmatprep.subr.bf16.mxu0 0
  %951 = vmatpush1.bf16.msra.mxu0 %v96
  %952 = vmatprep.subr.bf16.mxu0 0
  %953 = vmatpush2.bf16.msra.mxu0 0
  %954 = vmatprep.subr.bf16.mxu0 0
  %955 = vmatpush2.bf16.msra.mxu0 0
  %956 = vmatprep.subr.bf16.mxu0 0
  %957 = vmatpush2.bf16.msra.mxu0 0
  %958 = vmatprep.subr.bf16.mxu0 0
  %959 = vmatpush2.bf16.msra.mxu0 0
  %960 = vmatprep.subr.bf16.mxu0 0
  %961 = vmatpush2.bf16.msra.mxu0 0
  %962 = vmatprep.subr.bf16.mxu0 0
  %963 = vmatpush2.bf16.msra.mxu0 0
  %964 = vmatprep.subr.bf16.mxu0 0
  %965 = vmatpush2.bf16.msra.mxu0 0
  %966 = vmatprep.subr.bf16.mxu0 0
  %967 = vmatpush2.bf16.msra.mxu0 0
  %968 = vmatprep.mubr.bf16.mxu0 0
  %969 = vmatmul.mubr.bf16.gmra.mxu0 %v934
  %v970 = vpop.f32.mrf.mxu0
  %v971 = vadd.f32 %v86, %v970
  %v972 = vpop.f32.mrf.mxu0
  %v973 = vpop.f32.mrf.mxu0
  %v974 = vpop.f32.mrf.mxu0
  %975 = vdwg.mxu0
  %v976 = vpack.c.bf16 %v916, %v916
  %978 = vrot.lane.b32.xlu0 %v976, 96
  %v979 = vpop.permute.xlu0 %978
  %v981 = vsel %vm100, %v979, 0
  %983 = vmatprep.subr.bf16.mxu0 0
  %984 = vmatpush1.bf16.msra.mxu0 0
  %985 = vmatprep.subr.bf16.mxu0 0
  %986 = vmatpush1.bf16.msra.mxu0 0
  %987 = vmatprep.subr.bf16.mxu0 0
  %988 = vmatpush1.bf16.msra.mxu0 0
  %989 = vmatprep.subr.bf16.mxu0 0
  %990 = vmatpush1.bf16.msra.mxu0 0
  %991 = vmatprep.subr.bf16.mxu0 0
  %992 = vmatpush1.bf16.msra.mxu0 0
  %993 = vmatprep.subr.bf16.mxu0 0
  %994 = vmatpush1.bf16.msra.mxu0 0
  %995 = vmatprep.subr.bf16.mxu0 0
  %996 = vmatpush1.bf16.msra.mxu0 %v160
  %997 = vmatprep.subr.bf16.mxu0 0
  %998 = vmatpush1.bf16.msra.mxu0 %v159
  %999 = vmatprep.subr.bf16.mxu0 0
  %1000 = vmatpush2.bf16.msra.mxu0 0
  %1001 = vmatprep.subr.bf16.mxu0 0
  %1002 = vmatpush2.bf16.msra.mxu0 0
  %1003 = vmatprep.subr.bf16.mxu0 0
  %1004 = vmatpush2.bf16.msra.mxu0 0
  %1005 = vmatprep.subr.bf16.mxu0 0
  %1006 = vmatpush2.bf16.msra.mxu0 0
  %1007 = vmatprep.subr.bf16.mxu0 0
  %1008 = vmatpush2.bf16.msra.mxu0 0
  %1009 = vmatprep.subr.bf16.mxu0 0
  %1010 = vmatpush2.bf16.msra.mxu0 0
  %1011 = vmatprep.subr.bf16.mxu0 0
  %1012 = vmatpush2.bf16.msra.mxu0 0
  %1013 = vmatprep.subr.bf16.mxu0 0
  %1014 = vmatpush2.bf16.msra.mxu0 0
  %1015 = vmatprep.mubr.bf16.mxu0 0
  %1016 = vmatmul.mubr.bf16.gmra.mxu0 %v981
  %v1017 = vpop.f32.mrf.mxu0
  %v1018 = vadd.f32 %v149, %v1017
  %v1019 = vpop.f32.mrf.mxu0
  %v1020 = vpop.f32.mrf.mxu0
  %v1021 = vpop.f32.mrf.mxu0
  %1022 = vdwg.mxu0
  %s1023 = scalar_lea.vmem %s0, 10
  %v1024 = vld [vmem:[%s1023] sm:$0x3]
  %v1025 = vadd.f32 %v1024, %v971
  %v1026 = vxor.u32 %v1025, 2147483648
  %v1027 = vmul.f32 %v1026, 1.442695
  %v1028 = vpow.pop %v1027
  %v1029 = vadd.f32 %v1028, 1.0
  %v1030 = vrcp.pop %v1029
  %v1031 = vmul.f32 1.0, %v1030
  %1033 = vrot.lane.b32.xlu0 %v971, 64
  %v1034 = vpop.permute.xlu0 %1033
  %v1036 = vmul.f32 %v1031, %v1034
  %1038 = vrot.lane.b32.xlu0 %v1036, 64
  %v1039 = vpop.permute.xlu0 %1038
  %v1041 = vadd.f32 %v1024, %v1039
  %v1042 = vtanh.pop %v1041
  %v1043 = vsub.f32 1.0, %v1031
  %1045 = vrot.lane.b32.xlu0 %v1042, 96
  %v1046 = vpop.permute.xlu0 %1045
  %v1048 = vmul.f32 %v1043, %v1046
  %v1049 = vmul.f32 %v1031, %v888
  %v1050 = vadd.f32 %v1048, %v1049
  %s1051 = scalar_lea.vmem %s47, 4
  %v1052 = vld [vmem:[%s1051] sm:$0x3]
  %v1053 = vadd.f32 %v1052, %v1018
  %v1054 = vxor.u32 %v1053, 2147483648
  %v1055 = vmul.f32 %v1054, 1.442695
  %v1056 = vpow.pop %v1055
  %v1057 = vadd.f32 %v1056, 1.0
  %v1058 = vrcp.pop %v1057
  %v1059 = vmul.f32 1.0, %v1058
  %1061 = vrot.lane.b32.xlu0 %v1018, 64
  %v1062 = vpop.permute.xlu0 %1061
  %v1064 = vmul.f32 %v1059, %v1062
  %1066 = vrot.lane.b32.xlu0 %v1064, 64
  %v1067 = vpop.permute.xlu0 %1066
  %v1069 = vadd.f32 %v1052, %v1067
  %v1070 = vtanh.pop %v1069
  %v1071 = vsub.f32 1.0, %v1059
  %1073 = vrot.lane.b32.xlu0 %v1070, 96
  %v1074 = vpop.permute.xlu0 %1073
  %v1076 = vmul.f32 %v1071, %v1074
  %v1077 = vmul.f32 %v1059, %v916
  %v1078 = vadd.f32 %v1076, %v1077
  %1080 = vrot.lane.b32.xlu0 %v1050, 96
  %v1081 = vpop.permute.xlu0 %1080
  %s1083 = scalar_lea.vmem %s4, 10
  %1084 = vst.msk [vmem:[%s1083] sm:$0x3] %vm273, %v1081
  %1086 = vrot.lane.b32.xlu0 %v1078, 96
  %v1087 = vpop.permute.xlu0 %1086
  %s1089 = scalar_lea.vmem %s55, 4
  %1090 = vst.msk [vmem:[%s1089] sm:$0x3] %vm273, %v1087
  %v1091 = vpack.c.bf16 %v1050, %v1050
  %1093 = vrot.lane.b32.xlu0 %v1091, 96
  %v1094 = vpop.permute.xlu0 %1093
  %v1096 = vsel %vm100, %v1094, 0
  %1098 = vmatprep.subr.bf16.mxu0 0
  %1099 = vmatpush1.bf16.msra.mxu0 0
  %1100 = vmatprep.subr.bf16.mxu0 0
  %1101 = vmatpush1.bf16.msra.mxu0 0
  %1102 = vmatprep.subr.bf16.mxu0 0
  %1103 = vmatpush1.bf16.msra.mxu0 0
  %1104 = vmatprep.subr.bf16.mxu0 0
  %1105 = vmatpush1.bf16.msra.mxu0 0
  %1106 = vmatprep.subr.bf16.mxu0 0
  %1107 = vmatpush1.bf16.msra.mxu0 0
  %1108 = vmatprep.subr.bf16.mxu0 0
  %1109 = vmatpush1.bf16.msra.mxu0 0
  %1110 = vmatprep.subr.bf16.mxu0 0
  %1111 = vmatpush1.bf16.msra.mxu0 %v97
  %1112 = vmatprep.subr.bf16.mxu0 0
  %1113 = vmatpush1.bf16.msra.mxu0 %v96
  %1114 = vmatprep.subr.bf16.mxu0 0
  %1115 = vmatpush2.bf16.msra.mxu0 0
  %1116 = vmatprep.subr.bf16.mxu0 0
  %1117 = vmatpush2.bf16.msra.mxu0 0
  %1118 = vmatprep.subr.bf16.mxu0 0
  %1119 = vmatpush2.bf16.msra.mxu0 0
  %1120 = vmatprep.subr.bf16.mxu0 0
  %1121 = vmatpush2.bf16.msra.mxu0 0
  %1122 = vmatprep.subr.bf16.mxu0 0
  %1123 = vmatpush2.bf16.msra.mxu0 0
  %1124 = vmatprep.subr.bf16.mxu0 0
  %1125 = vmatpush2.bf16.msra.mxu0 0
  %1126 = vmatprep.subr.bf16.mxu0 0
  %1127 = vmatpush2.bf16.msra.mxu0 0
  %1128 = vmatprep.subr.bf16.mxu0 0
  %1129 = vmatpush2.bf16.msra.mxu0 0
  %1130 = vmatprep.mubr.bf16.mxu0 0
  %1131 = vmatmul.mubr.bf16.gmra.mxu0 %v1096
  %v1132 = vpop.f32.mrf.mxu0
  %v1133 = vadd.f32 %v86, %v1132
  %v1134 = vpop.f32.mrf.mxu0
  %v1135 = vpop.f32.mrf.mxu0
  %v1136 = vpop.f32.mrf.mxu0
  %1137 = vdwg.mxu0
  %v1138 = vpack.c.bf16 %v1078, %v1078
  %1140 = vrot.lane.b32.xlu0 %v1138, 96
  %v1141 = vpop.permute.xlu0 %1140
  %v1143 = vsel %vm100, %v1141, 0
  %1145 = vmatprep.subr.bf16.mxu0 0
  %1146 = vmatpush1.bf16.msra.mxu0 0
  %1147 = vmatprep.subr.bf16.mxu0 0
  %1148 = vmatpush1.bf16.msra.mxu0 0
  %1149 = vmatprep.subr.bf16.mxu0 0
  %1150 = vmatpush1.bf16.msra.mxu0 0
  %1151 = vmatprep.subr.bf16.mxu0 0
  %1152 = vmatpush1.bf16.msra.mxu0 0
  %1153 = vmatprep.subr.bf16.mxu0 0
  %1154 = vmatpush1.bf16.msra.mxu0 0
  %1155 = vmatprep.subr.bf16.mxu0 0
  %1156 = vmatpush1.bf16.msra.mxu0 0
  %1157 = vmatprep.subr.bf16.mxu0 0
  %1158 = vmatpush1.bf16.msra.mxu0 %v160
  %1159 = vmatprep.subr.bf16.mxu0 0
  %1160 = vmatpush1.bf16.msra.mxu0 %v159
  %1161 = vmatprep.subr.bf16.mxu0 0
  %1162 = vmatpush2.bf16.msra.mxu0 0
  %1163 = vmatprep.subr.bf16.mxu0 0
  %1164 = vmatpush2.bf16.msra.mxu0 0
  %1165 = vmatprep.subr.bf16.mxu0 0
  %1166 = vmatpush2.bf16.msra.mxu0 0
  %1167 = vmatprep.subr.bf16.mxu0 0
  %1168 = vmatpush2.bf16.msra.mxu0 0
  %1169 = vmatprep.subr.bf16.mxu0 0
  %1170 = vmatpush2.bf16.msra.mxu0 0
  %1171 = vmatprep.subr.bf16.mxu0 0
  %1172 = vmatpush2.bf16.msra.mxu0 0
  %1173 = vmatprep.subr.bf16.mxu0 0
  %1174 = vmatpush2.bf16.msra.mxu0 0
  %1175 = vmatprep.subr.bf16.mxu0 0
  %1176 = vmatpush2.bf16.msra.mxu0 0
  %1177 = vmatprep.mubr.bf16.mxu0 0
  %1178 = vmatmul.mubr.bf16.gmra.mxu0 %v1143
  %v1179 = vpop.f32.mrf.mxu0
  %v1180 = vadd.f32 %v149, %v1179
  %v1181 = vpop.f32.mrf.mxu0
  %v1182 = vpop.f32.mrf.mxu0
  %v1183 = vpop.f32.mrf.mxu0
  %1184 = vdwg.mxu0
  %s1185 = scalar_lea.vmem %s0, 12
  %v1186 = vld [vmem:[%s1185] sm:$0x3]
  %v1187 = vadd.f32 %v1186, %v1133
  %v1188 = vxor.u32 %v1187, 2147483648
  %v1189 = vmul.f32 %v1188, 1.442695
  %v1190 = vpow.pop %v1189
  %v1191 = vadd.f32 %v1190, 1.0
  %v1192 = vrcp.pop %v1191
  %v1193 = vmul.f32 1.0, %v1192
  %1195 = vrot.lane.b32.xlu0 %v1133, 64
  %v1196 = vpop.permute.xlu0 %1195
  %v1198 = vmul.f32 %v1193, %v1196
  %1200 = vrot.lane.b32.xlu0 %v1198, 64
  %v1201 = vpop.permute.xlu0 %1200
  %v1203 = vadd.f32 %v1186, %v1201
  %v1204 = vtanh.pop %v1203
  %v1205 = vsub.f32 1.0, %v1193
  %1207 = vrot.lane.b32.xlu0 %v1204, 96
  %v1208 = vpop.permute.xlu0 %1207
  %v1210 = vmul.f32 %v1205, %v1208
  %v1211 = vmul.f32 %v1193, %v1050
  %v1212 = vadd.f32 %v1210, %v1211
  %s1213 = scalar_lea.vmem %s47, 2
  %v1214 = vld [vmem:[%s1213] sm:$0x3]
  %v1215 = vadd.f32 %v1214, %v1180
  %v1216 = vxor.u32 %v1215, 2147483648
  %v1217 = vmul.f32 %v1216, 1.442695
  %v1218 = vpow.pop %v1217
  %v1219 = vadd.f32 %v1218, 1.0
  %v1220 = vrcp.pop %v1219
  %v1221 = vmul.f32 1.0, %v1220
  %1223 = vrot.lane.b32.xlu0 %v1180, 64
  %v1224 = vpop.permute.xlu0 %1223
  %v1226 = vmul.f32 %v1221, %v1224
  %1228 = vrot.lane.b32.xlu0 %v1226, 64
  %v1229 = vpop.permute.xlu0 %1228
  %v1231 = vadd.f32 %v1214, %v1229
  %v1232 = vtanh.pop %v1231
  %v1233 = vsub.f32 1.0, %v1221
  %1235 = vrot.lane.b32.xlu0 %v1232, 96
  %v1236 = vpop.permute.xlu0 %1235
  %v1238 = vmul.f32 %v1233, %v1236
  %v1239 = vmul.f32 %v1221, %v1078
  %v1240 = vadd.f32 %v1238, %v1239
  %1242 = vrot.lane.b32.xlu0 %v1212, 96
  %v1243 = vpop.permute.xlu0 %1242
  %s1245 = scalar_lea.vmem %s4, 12
  %1246 = vst.msk [vmem:[%s1245] sm:$0x3] %vm273, %v1243
  %1248 = vrot.lane.b32.xlu0 %v1240, 96
  %v1249 = vpop.permute.xlu0 %1248
  %s1251 = scalar_lea.vmem %s55, 2
  %1252 = vst.msk [vmem:[%s1251] sm:$0x3] %vm273, %v1249
  %v1253 = vpack.c.bf16 %v1212, %v1212
  %1255 = vrot.lane.b32.xlu0 %v1253, 96
  %v1256 = vpop.permute.xlu0 %1255
  %v1258 = vsel %vm100, %v1256, 0
  %1260 = vmatprep.subr.bf16.mxu0 0
  %1261 = vmatpush1.bf16.msra.mxu0 0
  %1262 = vmatprep.subr.bf16.mxu0 0
  %1263 = vmatpush1.bf16.msra.mxu0 0
  %1264 = vmatprep.subr.bf16.mxu0 0
  %1265 = vmatpush1.bf16.msra.mxu0 0
  %1266 = vmatprep.subr.bf16.mxu0 0
  %1267 = vmatpush1.bf16.msra.mxu0 0
  %1268 = vmatprep.subr.bf16.mxu0 0
  %1269 = vmatpush1.bf16.msra.mxu0 0
  %1270 = vmatprep.subr.bf16.mxu0 0
  %1271 = vmatpush1.bf16.msra.mxu0 0
  %1272 = vmatprep.subr.bf16.mxu0 0
  %1273 = vmatpush1.bf16.msra.mxu0 %v97
  %1274 = vmatprep.subr.bf16.mxu0 0
  %1275 = vmatpush1.bf16.msra.mxu0 %v96
  %1276 = vmatprep.subr.bf16.mxu0 0
  %1277 = vmatpush2.bf16.msra.mxu0 0
  %1278 = vmatprep.subr.bf16.mxu0 0
  %1279 = vmatpush2.bf16.msra.mxu0 0
  %1280 = vmatprep.subr.bf16.mxu0 0
  %1281 = vmatpush2.bf16.msra.mxu0 0
  %1282 = vmatprep.subr.bf16.mxu0 0
  %1283 = vmatpush2.bf16.msra.mxu0 0
  %1284 = vmatprep.subr.bf16.mxu0 0
  %1285 = vmatpush2.bf16.msra.mxu0 0
  %1286 = vmatprep.subr.bf16.mxu0 0
  %1287 = vmatpush2.bf16.msra.mxu0 0
  %1288 = vmatprep.subr.bf16.mxu0 0
  %1289 = vmatpush2.bf16.msra.mxu0 0
  %1290 = vmatprep.subr.bf16.mxu0 0
  %1291 = vmatpush2.bf16.msra.mxu0 0
  %1292 = vmatprep.mubr.bf16.mxu0 0
  %1293 = vmatmul.mubr.bf16.gmra.mxu0 %v1258
  %v1294 = vpop.f32.mrf.mxu0
  %v1295 = vadd.f32 %v86, %v1294
  %v1296 = vpop.f32.mrf.mxu0
  %v1297 = vpop.f32.mrf.mxu0
  %v1298 = vpop.f32.mrf.mxu0
  %1299 = vdwg.mxu0
  %v1300 = vpack.c.bf16 %v1240, %v1240
  %1302 = vrot.lane.b32.xlu0 %v1300, 96
  %v1303 = vpop.permute.xlu0 %1302
  %v1305 = vsel %vm100, %v1303, 0
  %1307 = vmatprep.subr.bf16.mxu0 0
  %1308 = vmatpush1.bf16.msra.mxu0 0
  %1309 = vmatprep.subr.bf16.mxu0 0
  %1310 = vmatpush1.bf16.msra.mxu0 0
  %1311 = vmatprep.subr.bf16.mxu0 0
  %1312 = vmatpush1.bf16.msra.mxu0 0
  %1313 = vmatprep.subr.bf16.mxu0 0
  %1314 = vmatpush1.bf16.msra.mxu0 0
  %1315 = vmatprep.subr.bf16.mxu0 0
  %1316 = vmatpush1.bf16.msra.mxu0 0
  %1317 = vmatprep.subr.bf16.mxu0 0
  %1318 = vmatpush1.bf16.msra.mxu0 0
  %1319 = vmatprep.subr.bf16.mxu0 0
  %1320 = vmatpush1.bf16.msra.mxu0 %v160
  %1321 = vmatprep.subr.bf16.mxu0 0
  %1322 = vmatpush1.bf16.msra.mxu0 %v159
  %1323 = vmatprep.subr.bf16.mxu0 0
  %1324 = vmatpush2.bf16.msra.mxu0 0
  %1325 = vmatprep.subr.bf16.mxu0 0
  %1326 = vmatpush2.bf16.msra.mxu0 0
  %1327 = vmatprep.subr.bf16.mxu0 0
  %1328 = vmatpush2.bf16.msra.mxu0 0
  %1329 = vmatprep.subr.bf16.mxu0 0
  %1330 = vmatpush2.bf16.msra.mxu0 0
  %1331 = vmatprep.subr.bf16.mxu0 0
  %1332 = vmatpush2.bf16.msra.mxu0 0
  %1333 = vmatprep.subr.bf16.mxu0 0
  %1334 = vmatpush2.bf16.msra.mxu0 0
  %1335 = vmatprep.subr.bf16.mxu0 0
  %1336 = vmatpush2.bf16.msra.mxu0 0
  %1337 = vmatprep.subr.bf16.mxu0 0
  %1338 = vmatpush2.bf16.msra.mxu0 0
  %1339 = vmatprep.mubr.bf16.mxu0 0
  %1340 = vmatmul.mubr.bf16.gmra.mxu0 %v1305
  %v1341 = vpop.f32.mrf.mxu0
  %v1342 = vadd.f32 %v149, %v1341
  %v1343 = vpop.f32.mrf.mxu0
  %v1344 = vpop.f32.mrf.mxu0
  %v1345 = vpop.f32.mrf.mxu0
  %1346 = vdwg.mxu0
  %s1347 = scalar_lea.vmem %s0, 14
  %v1348 = vld [vmem:[%s1347] sm:$0x3]
  %v1349 = vadd.f32 %v1348, %v1295
  %v1350 = vxor.u32 %v1349, 2147483648
  %v1351 = vmul.f32 %v1350, 1.442695
  %v1352 = vpow.pop %v1351
  %v1353 = vadd.f32 %v1352, 1.0
  %v1354 = vrcp.pop %v1353
  %v1355 = vmul.f32 1.0, %v1354
  %1357 = vrot.lane.b32.xlu0 %v1295, 64
  %v1358 = vpop.permute.xlu0 %1357
  %v1360 = vmul.f32 %v1355, %v1358
  %1362 = vrot.lane.b32.xlu0 %v1360, 64
  %v1363 = vpop.permute.xlu0 %1362
  %v1365 = vadd.f32 %v1348, %v1363
  %v1366 = vtanh.pop %v1365
  %v1367 = vsub.f32 1.0, %v1355
  %1369 = vrot.lane.b32.xlu0 %v1366, 96
  %v1370 = vpop.permute.xlu0 %1369
  %v1372 = vmul.f32 %v1367, %v1370
  %v1373 = vmul.f32 %v1355, %v1212
  %v1374 = vadd.f32 %v1372, %v1373
  %v1375 = vld [vmem:[%s47] sm:$0x3]
  %v1376 = vadd.f32 %v1375, %v1342
  %v1377 = vxor.u32 %v1376, 2147483648
  %v1378 = vmul.f32 %v1377, 1.442695
  %v1379 = vpow.pop %v1378
  %v1380 = vadd.f32 %v1379, 1.0
  %v1381 = vrcp.pop %v1380
  %v1382 = vmul.f32 1.0, %v1381
  %1384 = vrot.lane.b32.xlu0 %v1342, 64
  %v1385 = vpop.permute.xlu0 %1384
  %v1387 = vmul.f32 %v1382, %v1385
  %1389 = vrot.lane.b32.xlu0 %v1387, 64
  %v1390 = vpop.permute.xlu0 %1389
  %v1392 = vadd.f32 %v1375, %v1390
  %v1393 = vtanh.pop %v1392
  %v1394 = vsub.f32 1.0, %v1382
  %1396 = vrot.lane.b32.xlu0 %v1393, 96
  %v1397 = vpop.permute.xlu0 %1396
  %v1399 = vmul.f32 %v1394, %v1397
  %v1400 = vmul.f32 %v1382, %v1240
  %v1401 = vadd.f32 %v1399, %v1400
  %1403 = vrot.lane.b32.xlu0 %v1374, 96
  %v1404 = vpop.permute.xlu0 %1403
  %s1406 = scalar_lea.vmem %s4, 14
  %1407 = vst.msk [vmem:[%s1406] sm:$0x3] %vm273, %v1404
  %1409 = vrot.lane.b32.xlu0 %v1401, 96
  %v1410 = vpop.permute.xlu0 %1409
  %1412 = vst.msk [vmem:[%s55] sm:$0x3] %vm273, %v1410
  %1413 = vst.msk [vmem:[#allocation2] sm:$0x3] %vm273, %v1404
  %1414 = vst.msk [vmem:[%s79] sm:$0x3] %vm273, %v1410
  %s1415 = ssub.s32 0, 0
  %s1416 = smul.u32 8, %s1415
  %p1417 = scmp.lt.s32.totalorder %s1416, 7
  %s1418 = scalar_select %p1417, %s1416, 7
  %s1419 = smul.addr %s1418, 2
  %s1420 = scalar_lea.vmem %s5, %s1419
  // Predicated region
  $region22: #{asr_forward.18} parent=0 // pred_check
    _
  $region23: #{asr_forward.18} parent=0 // pred_check_branch
    %1422 = sbr.rel (0) target = $region25
  $region24: #{asr_forward.18} parent=0 // pred_region
    _
  $region25: #{asr_forward.18} parent=0 // pred_fallthru
    _
  // Predicated region
  $region26: #{asr_forward.18} parent=0 // pred_check
    _
  $region27: #{asr_forward.18} parent=0 // pred_check_branch
    %1424 = sbr.rel (0) target = $region29
  $region28: #{asr_forward.18} parent=0 // pred_region
    %s1425 = ssub.s32 0, 0
    %s1426 = smul.u32 8, %s1425
  $region29: #{asr_forward.18} parent=0 // pred_fallthru
    _
  // Predicated region
  $region30: #{asr_forward.18} parent=0 // pred_check
    _
  $region31: #{asr_forward.18} parent=0 // pred_check_branch
    %1428 = sbr.rel (0) target = $region33
  $region32: #{asr_forward.18} parent=0 // pred_region
    _
  $region33: #{asr_forward.18} parent=0 // pred_fallthru
    _
  // Predicated region
  $region34: #{asr_forward.18} parent=0 // pred_check
    _
  $region35: #{asr_forward.18} parent=0 // pred_check_branch
    %1430 = sbr.rel (0) target = $region37
  $region36: #{asr_forward.18} parent=0 // pred_region
    %s1431 = ssub.s32 0, 0
    %s1432 = smul.u32 8, %s1431
    %p1433 = scmp.lt.s32.totalorder %s1432, 7
    %s1434 = scalar_select %p1433, %s1432, 7
    %s1435 = smul.addr %s1434, 2
    %s1436 = scalar_lea.vmem %s5, %s1435
  $region37: #{asr_forward.18} parent=0 // pred_fallthru
    _

</llo_original>
